<compile_context>
chip_gen: v7x
topology: tpu7x:2x2x1
jax: 0.10.0
libtpu: 0.0.40
codegen_flags: <defaults>
</compile_context>

<pallas_src>
import functools

import jax
import jax.numpy as jnp
from jax import lax
from jax.experimental import pallas as pl
from jax.experimental.pallas import tpu as pltpu


# ----------------------------- kernel helpers -------------------------------

def _zero_border(ref, h, w):
    """Zero the 1-pixel border of a padded (h+2, w+2, c) VMEM scratch image."""
    c = ref.shape[2]
    zrow = jnp.zeros((1, w + 2, c), ref.dtype)
    ref[pl.ds(0, 1), :, :] = zrow
    ref[pl.ds(h + 1, 1), :, :] = zrow
    zcol = jnp.zeros((h + 2, 1, c), ref.dtype)
    ref[:, pl.ds(0, 1), :] = zcol
    ref[:, pl.ds(w + 1, 1), :] = zcol


def _conv3x3_rowchunked(src_ref, w_ref, b_ref, h, w, t, emit):
    """3x3 'same' conv over a zero-padded (h+2, w+2, cin) VMEM image.

    w_ref : (3, 3*cin, cout) bf16 folded weights, per-dy rows ordered (dx, ci)
    b_ref : (1, cout)        f32 bias
    emit(row0, y) is called once per T-row chunk with y = (t*w, cout) f32
    pre-activation for output rows [row0, row0+t).
    """
    cin = src_ref.shape[2]
    cout = w_ref.shape[2]
    n_chunks = h // t

    def body(r, carry):
        row0 = r * t
        acc = jnp.zeros((t * w, cout), jnp.float32)
        for dy in range(3):                                  # static unroll
            sub = src_ref[pl.ds(row0 + dy, t), :, :]         # (t, w+2, cin)
            patch = jnp.concatenate(
                [sub[:, dx:dx + w, :] for dx in range(3)], axis=-1)
            patch = patch.reshape(t * w, 3 * cin)            # free: w % 8 == 0
            acc = acc + jnp.dot(patch, w_ref[dy],
                                preferred_element_type=jnp.float32)
        emit(row0, acc + b_ref[...])
        return carry

    lax.fori_loop(0, n_chunks, body, 0)


def _fused_fcn_kernel(x_ref, w1_ref, w3_ref, w4_ref, b1_ref, b3_ref, b4_ref,
                      out_ref, xpad_ref, a1_ref, a2_ref, *, row_chunk):
    """One batch element per grid step; all intermediates stay on-chip."""
    h, w, cout = out_ref.shape[1], out_ref.shape[2], out_ref.shape[3]
    t = row_chunk

    # Borders are re-zeroed every grid step: with a "parallel" batch axis each
    # core owns its own scratch, so a pl.when(program_id == 0) guard would be
    # wrong on the second core.  The border slabs are tiny.
    _zero_border(xpad_ref, h, w)
    _zero_border(a1_ref, h, w)
    _zero_border(a2_ref, h, w)

    # Stage the zero-padded input into VMEM scratch.
    xpad_ref[pl.ds(1, h), pl.ds(1, w), :] = x_ref[0]

    def store_mid(dst_ref):
        def emit(row0, y):
            c = dst_ref.shape[2]
            dst_ref[pl.ds(row0 + 1, t), pl.ds(1, w), :] = (
                y.reshape(t, w, c).astype(dst_ref.dtype))
        return emit

    _conv3x3_rowchunked(xpad_ref, w1_ref, b1_ref, h, w, t, store_mid(a1_ref))
    _conv3x3_rowchunked(a1_ref, w3_ref, b3_ref, h, w, t, store_mid(a2_ref))

    def emit_out(row0, y):
        y = 1.0 / (1.0 + jnp.exp(-y))                        # sigmoid in f32
        out_ref[0, pl.ds(row0, t), :, :] = (
            y.reshape(t, w, cout).astype(out_ref.dtype))

    _conv3x3_rowchunked(a2_ref, w4_ref, b4_ref, h, w, t, emit_out)


# ----------------------------- wrapper ---------------------------------------

def _pick_row_chunk(h):
    for t in (64, 32, 16, 8, 4, 2, 1):
        if h % t == 0:
            return t
    return 1


@jax.jit
def occupancy_encoder_cnn(params, x_nchw):
    """Forward pass of OccupancyEncoderCNN: conv1 -> conv3 -> conv4 -> sigmoid.

    Public interface is NCHW f32 (PyTorch convention); compute runs in NHWC
    bf16 with f32 accumulation inside a single fused Pallas kernel.
    Note: the reference module has NO activation between conv layers.
    """
    n, cin, h, w = x_nchw.shape
    w1, b1 = params["conv1"]
    w3, b3 = params["conv3"]
    w4, b4 = params["conv4"]
    cmid = w1.shape[-1]
    cout = w4.shape[-1]

    # NCHW -> NHWC + bf16 cast in one fused XLA pass (no jnp.pad anywhere).
    x = jnp.transpose(x_nchw, (0, 2, 3, 1)).astype(jnp.bfloat16)

    # Fold dx+cin into the contraction dim, keep dy as the accumulated axis:
    # (3, 3, Ci, Co) HWIO  ->  (3, 3*Ci, Co), per-dy rows ordered (dx, ci).
    def fold(wk):
        return wk.reshape(3, 3 * wk.shape[2], wk.shape[3]).astype(jnp.bfloat16)

    w1f, w3f, w4f = fold(w1), fold(w3), fold(w4)
    b1f = b1.reshape(1, -1).astype(jnp.float32)
    b3f = b3.reshape(1, -1).astype(jnp.float32)
    b4f = b4.reshape(1, -1).astype(jnp.float32)

    t = _pick_row_chunk(h)

    # VMEM budget from the actual working set (padded input + 2 full-res
    # intermediates + pipelined IO blocks + per-chunk patch/acc), ~1.5x
    # headroom, clamped to [16 MiB, 64 MiB] so it is valid on every generation.
    scratch_b = (h + 2) * (w + 2) * (cin + 2 * cmid) * 2           # bf16
    io_b = 2 * (h * w * cin * 2 + h * w * cout * 4)                # dbl-buffered
    wgt_b = 2 * (w1f.size + w3f.size + w4f.size) + 4 * (2 * cmid + cout)
    patch_b = t * w * (3 * cmid * 2 * 4 + cmid * 4)                # taps + acc
    need = int(1.5 * (scratch_b + io_b + wgt_b + patch_b))
    vmem_limit = max(16 * 2 ** 20, min(need, 64 * 2 ** 20))

    flops = 2 * n * h * w * 9 * (cin * cmid + cmid * cmid + cmid * cout)
    cost = pl.CostEstimate(
        flops=flops,
        transcendentals=n * h * w * cout,
        bytes_accessed=(x.size * 2 + n * h * w * cout * 4
                        + (w1f.size + w3f.size + w4f.size) * 2))

    kernel = functools.partial(_fused_fcn_kernel, row_chunk=t)

    out_nhwc = pl.pallas_call(
        kernel,
        out_shape=jax.ShapeDtypeStruct((n, h, w, cout), jnp.float32),
        grid=(n,),
        in_specs=[
            pl.BlockSpec((1, h, w, cin), lambda i: (i, 0, 0, 0)),
            pl.BlockSpec(w1f.shape, lambda i: (0, 0, 0)),
            pl.BlockSpec(w3f.shape, lambda i: (0, 0, 0)),
            pl.BlockSpec(w4f.shape, lambda i: (0, 0, 0)),
            pl.BlockSpec(b1f.shape, lambda i: (0, 0)),
            pl.BlockSpec(b3f.shape, lambda i: (0, 0)),
            pl.BlockSpec(b4f.shape, lambda i: (0, 0)),
        ],
        out_specs=pl.BlockSpec((1, h, w, cout), lambda i: (i, 0, 0, 0)),
        scratch_shapes=[
            pltpu.VMEM((h + 2, w + 2, cin), jnp.bfloat16),   # padded input
            pltpu.VMEM((h + 2, w + 2, cmid), jnp.bfloat16),  # conv1 output
            pltpu.VMEM((h + 2, w + 2, cmid), jnp.bfloat16),  # conv3 output
        ],
        compiler_params=pltpu.CompilerParams(
            dimension_semantics=("parallel",),
            vmem_limit_bytes=vmem_limit),
        cost_estimate=cost,
    )(x, w1f, w3f, w4f, b1f, b3f, b4f)

    return jnp.transpose(out_nhwc, (0, 3, 1, 2))  # NHWC -> NCHW


# ----------------------------- init helpers ---------------------------------

def init_conv_params(key, cin, cout):
    """PyTorch-style (kaiming-uniform-ish) init. Weights stored in HWIO."""
    kw, kb = jax.random.split(key)
    fan_in = cin * 3 * 3
    bound = 1.0 / jnp.sqrt(float(fan_in))
    w = jax.random.uniform(kw, (3, 3, cin, cout), jnp.float32, -bound, bound)
    b = jax.random.uniform(kb, (cout,), jnp.float32, -bound, bound)
    return w, b


def init_occupancy_encoder_params(key, in_channel, out_channel):
    k1, k2, k3 = jax.random.split(key, 3)
    return {
        "conv1": init_conv_params(k1, in_channel, 64),
        "conv3": init_conv_params(k2, 64, 64),
        "conv4": init_conv_params(k3, 64, out_channel),
    }


# ----------------------------- references -----------------------------------

def _reference_forward_bf16(params, x_nchw):
    """Precision-matched reference (bf16 operands, f32 accumulation)."""
    x = jnp.transpose(x_nchw, (0, 2, 3, 1)).astype(jnp.bfloat16)

    def conv(a_bf16, wgt, bias):
        y = lax.conv_general_dilated(
            a_bf16, wgt.astype(jnp.bfloat16), (1, 1), "SAME",
            dimension_numbers=("NHWC", "HWIO", "NHWC"),
            preferred_element_type=jnp.float32)
        return y + bias.reshape(1, 1, 1, -1)

    o = conv(x, *params["conv1"])
    o = conv(o.astype(jnp.bfloat16), *params["conv3"])
    o = conv(o.astype(jnp.bfloat16), *params["conv4"])
    o = 1.0 / (1.0 + jnp.exp(-o))
    return jnp.transpose(o, (0, 3, 1, 2))


def _reference_forward_f32(params, x_nchw):
    """Full-f32 reference matching the original PyTorch module."""
    x = jnp.transpose(x_nchw, (0, 2, 3, 1))

    def conv(a, wgt, bias):
        y = lax.conv_general_dilated(
            a, wgt, (1, 1), "SAME",
            dimension_numbers=("NHWC", "HWIO", "NHWC"))
        return y + bias.reshape(1, 1, 1, -1)

    o = conv(x, *params["conv1"])
    o = conv(o, *params["conv3"])
    o = conv(o, *params["conv4"])
    return jnp.transpose(jax.nn.sigmoid(o), (0, 3, 1, 2))


if __name__ == "__main__":
    key = jax.random.PRNGKey(0)
    k_params, k_x = jax.random.split(key)

    batch, in_channel, out_channel, spatial = 2, 4, 4, 16
    params = init_occupancy_encoder_params(k_params, in_channel, out_channel)
    x = jax.random.normal(k_x, (batch, in_channel, spatial, spatial), jnp.float32)

    out = jax.block_until_ready(occupancy_encoder_cnn(params, x))
    assert out.shape == (batch, out_channel, spatial, spatial), out.shape

    ref_matched = jax.block_until_ready(_reference_forward_bf16(params, x))
    err = float(jnp.max(jnp.abs(out - ref_matched)))
    assert err < 5e-3, f"mismatch vs precision-matched reference: {err}"

    ref_f32 = jax.block_until_ready(_reference_forward_f32(params, x))
    err32 = float(jnp.max(jnp.abs(out - ref_f32)))
    assert err32 < 3e-2, f"mismatch vs f32 reference: {err32}"

    print("KERNEL_OK")
</pallas_src>

<mosaic_0001>
module attributes {stable_mosaic.version = 11 : i64} {
  func.func @_fused_fcn_kernel(%arg0: i32, %arg1: memref<1x16x16x4xbf16, #tpu.memory_space<vmem>>, %arg2: memref<3x12x64xbf16, #tpu.memory_space<vmem>>, %arg3: memref<3x192x64xbf16, #tpu.memory_space<vmem>>, %arg4: memref<3x192x4xbf16, #tpu.memory_space<vmem>>, %arg5: memref<1x64xf32, #tpu.memory_space<vmem>>, %arg6: memref<1x64xf32, #tpu.memory_space<vmem>>, %arg7: memref<1x4xf32, #tpu.memory_space<vmem>>, %arg8: memref<1x16x16x4xf32, #tpu.memory_space<vmem>>, %arg9: memref<18x18x4xbf16, #tpu.memory_space<vmem>>, %arg10: memref<18x18x64xbf16, #tpu.memory_space<vmem>>, %arg11: memref<18x18x64xbf16, #tpu.memory_space<vmem>>) attributes {dimension_semantics = [#tpu.dimension_semantics<parallel>], iteration_bounds = array<i64: 2>, scalar_prefetch = 0 : i64, scratch_operands = 3 : i64, tpu.core_type = #tpu.core_type<tc>, window_params = [{transform_indices = @transform_0, window_bounds = array<i64: 1, 16, 16, 4>}, {pipeline_mode = #tpu.pipeline_mode<synchronous>, transform_indices = @transform_1, window_bounds = array<i64: 3, 12, 64>}, {pipeline_mode = #tpu.pipeline_mode<synchronous>, transform_indices = @transform_2, window_bounds = array<i64: 3, 192, 64>}, {pipeline_mode = #tpu.pipeline_mode<synchronous>, transform_indices = @transform_3, window_bounds = array<i64: 3, 192, 4>}, {pipeline_mode = #tpu.pipeline_mode<synchronous>, transform_indices = @transform_4, window_bounds = array<i64: 1, 64>}, {pipeline_mode = #tpu.pipeline_mode<synchronous>, transform_indices = @transform_5, window_bounds = array<i64: 1, 64>}, {pipeline_mode = #tpu.pipeline_mode<synchronous>, transform_indices = @transform_6, window_bounds = array<i64: 1, 4>}, {transform_indices = @transform_7, window_bounds = array<i64: 1, 16, 16, 4>}]} {
    %cst = arith.constant 0.000000e+00 : bf16
    %0 = vector.broadcast %cst : bf16 to vector<1x18x4xbf16>
    %c0 = arith.constant 0 : index
    %c0_0 = arith.constant 0 : index
    %c0_1 = arith.constant 0 : index
    %1 = vector.load %arg9[%c0, %c0_0, %c0_1] : memref<18x18x4xbf16, #tpu.memory_space<vmem>>, vector<1x18x4xbf16>
    tpu.vector_store %arg9[%c0, %c0_0, %c0_1], %0 {strides = array<i32>} : memref<18x18x4xbf16, #tpu.memory_space<vmem>>, vector<1x18x4xbf16>,
    %c17 = arith.constant 17 : index
    %c0_2 = arith.constant 0 : index
    %c0_3 = arith.constant 0 : index
    %2 = vector.load %arg9[%c17, %c0_2, %c0_3] : memref<18x18x4xbf16, #tpu.memory_space<vmem>>, vector<1x18x4xbf16>
    tpu.vector_store %arg9[%c17, %c0_2, %c0_3], %0 {strides = array<i32>} : memref<18x18x4xbf16, #tpu.memory_space<vmem>>, vector<1x18x4xbf16>,
    %cst_4 = arith.constant 0.000000e+00 : bf16
    %3 = vector.broadcast %cst_4 : bf16 to vector<18x1x4xbf16>
    %c0_5 = arith.constant 0 : index
    %c0_6 = arith.constant 0 : index
    %c0_7 = arith.constant 0 : index
    %4 = vector.load %arg9[%c0_5, %c0_6, %c0_7] : memref<18x18x4xbf16, #tpu.memory_space<vmem>>, vector<18x1x4xbf16>
    tpu.vector_store %arg9[%c0_5, %c0_6, %c0_7], %3 {strides = array<i32>} : memref<18x18x4xbf16, #tpu.memory_space<vmem>>, vector<18x1x4xbf16>,
    %c0_8 = arith.constant 0 : index
    %c17_9 = arith.constant 17 : index
    %c0_10 = arith.constant 0 : index
    %5 = vector.load %arg9[%c0_8, %c17_9, %c0_10] : memref<18x18x4xbf16, #tpu.memory_space<vmem>>, vector<18x1x4xbf16>
    tpu.vector_store %arg9[%c0_8, %c17_9, %c0_10], %3 {strides = array<i32>} : memref<18x18x4xbf16, #tpu.memory_space<vmem>>, vector<18x1x4xbf16>,
    %cst_11 = arith.constant 0.000000e+00 : bf16
    %6 = vector.broadcast %cst_11 : bf16 to vector<1x18x64xbf16>
    %c0_12 = arith.constant 0 : index
    %c0_13 = arith.constant 0 : index
    %c0_14 = arith.constant 0 : index
    %7 = vector.load %arg10[%c0_12, %c0_13, %c0_14] : memref<18x18x64xbf16, #tpu.memory_space<vmem>>, vector<1x18x64xbf16>
    tpu.vector_store %arg10[%c0_12, %c0_13, %c0_14], %6 {strides = array<i32>} : memref<18x18x64xbf16, #tpu.memory_space<vmem>>, vector<1x18x64xbf16>,
    %c17_15 = arith.constant 17 : index
    %c0_16 = arith.constant 0 : index
    %c0_17 = arith.constant 0 : index
    %8 = vector.load %arg10[%c17_15, %c0_16, %c0_17] : memref<18x18x64xbf16, #tpu.memory_space<vmem>>, vector<1x18x64xbf16>
    tpu.vector_store %arg10[%c17_15, %c0_16, %c0_17], %6 {strides = array<i32>} : memref<18x18x64xbf16, #tpu.memory_space<vmem>>, vector<1x18x64xbf16>,
    %cst_18 = arith.constant 0.000000e+00 : bf16
    %9 = vector.broadcast %cst_18 : bf16 to vector<18x1x64xbf16>
    %c0_19 = arith.constant 0 : index
    %c0_20 = arith.constant 0 : index
    %c0_21 = arith.constant 0 : index
    %10 = vector.load %arg10[%c0_19, %c0_20, %c0_21] : memref<18x18x64xbf16, #tpu.memory_space<vmem>>, vector<18x1x64xbf16>
    tpu.vector_store %arg10[%c0_19, %c0_20, %c0_21], %9 {strides = array<i32>} : memref<18x18x64xbf16, #tpu.memory_space<vmem>>, vector<18x1x64xbf16>,
    %c0_22 = arith.constant 0 : index
    %c17_23 = arith.constant 17 : index
    %c0_24 = arith.constant 0 : index
    %11 = vector.load %arg10[%c0_22, %c17_23, %c0_24] : memref<18x18x64xbf16, #tpu.memory_space<vmem>>, vector<18x1x64xbf16>
    tpu.vector_store %arg10[%c0_22, %c17_23, %c0_24], %9 {strides = array<i32>} : memref<18x18x64xbf16, #tpu.memory_space<vmem>>, vector<18x1x64xbf16>,
    %cst_25 = arith.constant 0.000000e+00 : bf16
    %12 = vector.broadcast %cst_25 : bf16 to vector<1x18x64xbf16>
    %c0_26 = arith.constant 0 : index
    %c0_27 = arith.constant 0 : index
    %c0_28 = arith.constant 0 : index
    %13 = vector.load %arg11[%c0_26, %c0_27, %c0_28] : memref<18x18x64xbf16, #tpu.memory_space<vmem>>, vector<1x18x64xbf16>
    tpu.vector_store %arg11[%c0_26, %c0_27, %c0_28], %12 {strides = array<i32>} : memref<18x18x64xbf16, #tpu.memory_space<vmem>>, vector<1x18x64xbf16>,
    %c17_29 = arith.constant 17 : index
    %c0_30 = arith.constant 0 : index
    %c0_31 = arith.constant 0 : index
    %14 = vector.load %arg11[%c17_29, %c0_30, %c0_31] : memref<18x18x64xbf16, #tpu.memory_space<vmem>>, vector<1x18x64xbf16>
    tpu.vector_store %arg11[%c17_29, %c0_30, %c0_31], %12 {strides = array<i32>} : memref<18x18x64xbf16, #tpu.memory_space<vmem>>, vector<1x18x64xbf16>,
    %cst_32 = arith.constant 0.000000e+00 : bf16
    %15 = vector.broadcast %cst_32 : bf16 to vector<18x1x64xbf16>
    %c0_33 = arith.constant 0 : index
    %c0_34 = arith.constant 0 : index
    %c0_35 = arith.constant 0 : index
    %16 = vector.load %arg11[%c0_33, %c0_34, %c0_35] : memref<18x18x64xbf16, #tpu.memory_space<vmem>>, vector<18x1x64xbf16>
    tpu.vector_store %arg11[%c0_33, %c0_34, %c0_35], %15 {strides = array<i32>} : memref<18x18x64xbf16, #tpu.memory_space<vmem>>, vector<18x1x64xbf16>,
    %c0_36 = arith.constant 0 : index
    %c17_37 = arith.constant 17 : index
    %c0_38 = arith.constant 0 : index
    %17 = vector.load %arg11[%c0_36, %c17_37, %c0_38] : memref<18x18x64xbf16, #tpu.memory_space<vmem>>, vector<18x1x64xbf16>
    tpu.vector_store %arg11[%c0_36, %c17_37, %c0_38], %15 {strides = array<i32>} : memref<18x18x64xbf16, #tpu.memory_space<vmem>>, vector<18x1x64xbf16>,
    %c0_39 = arith.constant 0 : index
    %c0_40 = arith.constant 0 : index
    %c0_41 = arith.constant 0 : index
    %c0_42 = arith.constant 0 : index
    %18 = vector.load %arg1[%c0_39, %c0_40, %c0_41, %c0_42] : memref<1x16x16x4xbf16, #tpu.memory_space<vmem>>, vector<1x16x16x4xbf16>
    %19 = vector.shape_cast %18 : vector<1x16x16x4xbf16> to vector<16x16x4xbf16>
    %c1 = arith.constant 1 : index
    %c1_43 = arith.constant 1 : index
    %c0_44 = arith.constant 0 : index
    %20 = vector.load %arg9[%c1, %c1_43, %c0_44] : memref<18x18x4xbf16, #tpu.memory_space<vmem>>, vector<16x16x4xbf16>
    tpu.vector_store %arg9[%c1, %c1_43, %c0_44], %19 {strides = array<i32>} : memref<18x18x4xbf16, #tpu.memory_space<vmem>>, vector<16x16x4xbf16>,
    %c0_i32 = arith.constant 0 : i32
    %c16_i32 = arith.constant 16 : i32
    %21 = arith.muli %c0_i32, %c16_i32 : i32
    %cst_45 = arith.constant 0.000000e+00 : f32
    %22 = vector.broadcast %cst_45 : f32 to vector<256x64xf32>
    %c0_i32_46 = arith.constant 0 : i32
    %23 = arith.addi %21, %c0_i32_46 : i32
    %24 = arith.index_cast %23 : i32 to index
    %c0_47 = arith.constant 0 : index
    %c0_48 = arith.constant 0 : index
    %25 = vector.load %arg9[%24, %c0_47, %c0_48] : memref<18x18x4xbf16, #tpu.memory_space<vmem>>, vector<16x18x4xbf16>
    %26 = vector.extract_strided_slice %25 {offsets = [0, 0, 0], sizes = [16, 16, 4], strides = [1, 1, 1]} : vector<16x18x4xbf16> to vector<16x16x4xbf16>
    %27 = vector.extract_strided_slice %25 {offsets = [0, 1, 0], sizes = [16, 16, 4], strides = [1, 1, 1]} : vector<16x18x4xbf16> to vector<16x16x4xbf16>
    %28 = vector.extract_strided_slice %25 {offsets = [0, 2, 0], sizes = [16, 16, 4], strides = [1, 1, 1]} : vector<16x18x4xbf16> to vector<16x16x4xbf16>
    %29 = tpu.concatenate %26, %27, %28 in 2 : vector<16x16x4xbf16>, vector<16x16x4xbf16>, vector<16x16x4xbf16> -> vector<16x16x12xbf16>
    %30 = vector.shape_cast %29 : vector<16x16x12xbf16> to vector<256x12xbf16>
    %c0_49 = arith.constant 0 : index
    %c0_50 = arith.constant 0 : index
    %c0_51 = arith.constant 0 : index
    %31 = vector.load %arg2[%c0_49, %c0_50, %c0_51] : memref<3x12x64xbf16, #tpu.memory_space<vmem>>, vector<1x12x64xbf16>
    %32 = vector.shape_cast %31 : vector<1x12x64xbf16> to vector<12x64xbf16>
    %cst_52 = arith.constant dense<0.000000e+00> : vector<256x64xf32>
    %33 = tpu.matmul %30, %32, %cst_52 {dimension_numbers = #tpu.dot_dimension_numbers<[1], [0], [0], [1], [0, 0, 1, 1], [], []>} : vector<256x12xbf16>, vector<12x64xbf16>, vector<256x64xf32> -> vector<256x64xf32>
    %34 = arith.addf %22, %33 : vector<256x64xf32>
    %c1_i32 = arith.constant 1 : i32
    %35 = arith.addi %21, %c1_i32 : i32
    %36 = arith.index_cast %35 : i32 to index
    %c0_53 = arith.constant 0 : index
    %c0_54 = arith.constant 0 : index
    %37 = vector.load %arg9[%36, %c0_53, %c0_54] : memref<18x18x4xbf16, #tpu.memory_space<vmem>>, vector<16x18x4xbf16>
    %38 = vector.extract_strided_slice %37 {offsets = [0, 0, 0], sizes = [16, 16, 4], strides = [1, 1, 1]} : vector<16x18x4xbf16> to vector<16x16x4xbf16>
    %39 = vector.extract_strided_slice %37 {offsets = [0, 1, 0], sizes = [16, 16, 4], strides = [1, 1, 1]} : vector<16x18x4xbf16> to vector<16x16x4xbf16>
    %40 = vector.extract_strided_slice %37 {offsets = [0, 2, 0], sizes = [16, 16, 4], strides = [1, 1, 1]} : vector<16x18x4xbf16> to vector<16x16x4xbf16>
    %41 = tpu.concatenate %38, %39, %40 in 2 : vector<16x16x4xbf16>, vector<16x16x4xbf16>, vector<16x16x4xbf16> -> vector<16x16x12xbf16>
    %42 = vector.shape_cast %41 : vector<16x16x12xbf16> to vector<256x12xbf16>
    %c1_55 = arith.constant 1 : index
    %c0_56 = arith.constant 0 : index
    %c0_57 = arith.constant 0 : index
    %43 = vector.load %arg2[%c1_55, %c0_56, %c0_57] : memref<3x12x64xbf16, #tpu.memory_space<vmem>>, vector<1x12x64xbf16>
    %44 = vector.shape_cast %43 : vector<1x12x64xbf16> to vector<12x64xbf16>
    %cst_58 = arith.constant dense<0.000000e+00> : vector<256x64xf32>
    %45 = tpu.matmul %42, %44, %cst_58 {dimension_numbers = #tpu.dot_dimension_numbers<[1], [0], [0], [1], [0, 0, 1, 1], [], []>} : vector<256x12xbf16>, vector<12x64xbf16>, vector<256x64xf32> -> vector<256x64xf32>
    %46 = arith.addf %34, %45 : vector<256x64xf32>
    %c2_i32 = arith.constant 2 : i32
    %47 = arith.addi %21, %c2_i32 : i32
    %48 = arith.index_cast %47 : i32 to index
    %c0_59 = arith.constant 0 : index
    %c0_60 = arith.constant 0 : index
    %49 = vector.load %arg9[%48, %c0_59, %c0_60] : memref<18x18x4xbf16, #tpu.memory_space<vmem>>, vector<16x18x4xbf16>
    %50 = vector.extract_strided_slice %49 {offsets = [0, 0, 0], sizes = [16, 16, 4], strides = [1, 1, 1]} : vector<16x18x4xbf16> to vector<16x16x4xbf16>
    %51 = vector.extract_strided_slice %49 {offsets = [0, 1, 0], sizes = [16, 16, 4], strides = [1, 1, 1]} : vector<16x18x4xbf16> to vector<16x16x4xbf16>
    %52 = vector.extract_strided_slice %49 {offsets = [0, 2, 0], sizes = [16, 16, 4], strides = [1, 1, 1]} : vector<16x18x4xbf16> to vector<16x16x4xbf16>
    %53 = tpu.concatenate %50, %51, %52 in 2 : vector<16x16x4xbf16>, vector<16x16x4xbf16>, vector<16x16x4xbf16> -> vector<16x16x12xbf16>
    %54 = vector.shape_cast %53 : vector<16x16x12xbf16> to vector<256x12xbf16>
    %c2 = arith.constant 2 : index
    %c0_61 = arith.constant 0 : index
    %c0_62 = arith.constant 0 : index
    %55 = vector.load %arg2[%c2, %c0_61, %c0_62] : memref<3x12x64xbf16, #tpu.memory_space<vmem>>, vector<1x12x64xbf16>
    %56 = vector.shape_cast %55 : vector<1x12x64xbf16> to vector<12x64xbf16>
    %cst_63 = arith.constant dense<0.000000e+00> : vector<256x64xf32>
    %57 = tpu.matmul %54, %56, %cst_63 {dimension_numbers = #tpu.dot_dimension_numbers<[1], [0], [0], [1], [0, 0, 1, 1], [], []>} : vector<256x12xbf16>, vector<12x64xbf16>, vector<256x64xf32> -> vector<256x64xf32>
    %58 = arith.addf %46, %57 : vector<256x64xf32>
    %c0_64 = arith.constant 0 : index
    %c0_65 = arith.constant 0 : index
    %59 = vector.load %arg5[%c0_64, %c0_65] : memref<1x64xf32, #tpu.memory_space<vmem>>, vector<1x64xf32>
    %60 = vector.broadcast %59 : vector<1x64xf32> to vector<256x64xf32>
    %61 = arith.addf %58, %60 : vector<256x64xf32>
    %62 = vector.shape_cast %61 : vector<256x64xf32> to vector<16x16x64xf32>
    %63 = arith.truncf %62 : vector<16x16x64xf32> to vector<16x16x64xbf16>
    %c1_i32_66 = arith.constant 1 : i32
    %64 = arith.addi %21, %c1_i32_66 : i32
    %65 = arith.index_cast %64 : i32 to index
    %c1_67 = arith.constant 1 : index
    %c0_68 = arith.constant 0 : index
    %66 = vector.load %arg10[%65, %c1_67, %c0_68] : memref<18x18x64xbf16, #tpu.memory_space<vmem>>, vector<16x16x64xbf16>
    tpu.vector_store %arg10[%65, %c1_67, %c0_68], %63 {strides = array<i32>} : memref<18x18x64xbf16, #tpu.memory_space<vmem>>, vector<16x16x64xbf16>,
    %c1_i32_69 = arith.constant 1 : i32
    %c0_i32_70 = arith.constant 0 : i32
    %c16_i32_71 = arith.constant 16 : i32
    %67 = arith.muli %c0_i32_70, %c16_i32_71 : i32
    %cst_72 = arith.constant 0.000000e+00 : f32
    %68 = vector.broadcast %cst_72 : f32 to vector<256x64xf32>
    %c0_i32_73 = arith.constant 0 : i32
    %69 = arith.addi %67, %c0_i32_73 : i32
    %70 = arith.index_cast %69 : i32 to index
    %c0_74 = arith.constant 0 : index
    %c0_75 = arith.constant 0 : index
    %71 = vector.load %arg10[%70, %c0_74, %c0_75] : memref<18x18x64xbf16, #tpu.memory_space<vmem>>, vector<16x18x64xbf16>
    %72 = vector.extract_strided_slice %71 {offsets = [0, 0, 0], sizes = [16, 16, 64], strides = [1, 1, 1]} : vector<16x18x64xbf16> to vector<16x16x64xbf16>
    %73 = vector.extract_strided_slice %71 {offsets = [0, 1, 0], sizes = [16, 16, 64], strides = [1, 1, 1]} : vector<16x18x64xbf16> to vector<16x16x64xbf16>
    %74 = vector.extract_strided_slice %71 {offsets = [0, 2, 0], sizes = [16, 16, 64], strides = [1, 1, 1]} : vector<16x18x64xbf16> to vector<16x16x64xbf16>
    %75 = tpu.concatenate %72, %73, %74 in 2 : vector<16x16x64xbf16>, vector<16x16x64xbf16>, vector<16x16x64xbf16> -> vector<16x16x192xbf16>
    %76 = vector.shape_cast %75 : vector<16x16x192xbf16> to vector<256x192xbf16>
    %c0_76 = arith.constant 0 : index
    %c0_77 = arith.constant 0 : index
    %c0_78 = arith.constant 0 : index
    %77 = vector.load %arg3[%c0_76, %c0_77, %c0_78] : memref<3x192x64xbf16, #tpu.memory_space<vmem>>, vector<1x192x64xbf16>
    %78 = vector.shape_cast %77 : vector<1x192x64xbf16> to vector<192x64xbf16>
    %cst_79 = arith.constant dense<0.000000e+00> : vector<256x64xf32>
    %79 = tpu.matmul %76, %78, %cst_79 {dimension_numbers = #tpu.dot_dimension_numbers<[1], [0], [0], [1], [0, 0, 1, 1], [], []>} : vector<256x192xbf16>, vector<192x64xbf16>, vector<256x64xf32> -> vector<256x64xf32>
    %80 = arith.addf %68, %79 : vector<256x64xf32>
    %c1_i32_80 = arith.constant 1 : i32
    %81 = arith.addi %67, %c1_i32_80 : i32
    %82 = arith.index_cast %81 : i32 to index
    %c0_81 = arith.constant 0 : index
    %c0_82 = arith.constant 0 : index
    %83 = vector.load %arg10[%82, %c0_81, %c0_82] : memref<18x18x64xbf16, #tpu.memory_space<vmem>>, vector<16x18x64xbf16>
    %84 = vector.extract_strided_slice %83 {offsets = [0, 0, 0], sizes = [16, 16, 64], strides = [1, 1, 1]} : vector<16x18x64xbf16> to vector<16x16x64xbf16>
    %85 = vector.extract_strided_slice %83 {offsets = [0, 1, 0], sizes = [16, 16, 64], strides = [1, 1, 1]} : vector<16x18x64xbf16> to vector<16x16x64xbf16>
    %86 = vector.extract_strided_slice %83 {offsets = [0, 2, 0], sizes = [16, 16, 64], strides = [1, 1, 1]} : vector<16x18x64xbf16> to vector<16x16x64xbf16>
    %87 = tpu.concatenate %84, %85, %86 in 2 : vector<16x16x64xbf16>, vector<16x16x64xbf16>, vector<16x16x64xbf16> -> vector<16x16x192xbf16>
    %88 = vector.shape_cast %87 : vector<16x16x192xbf16> to vector<256x192xbf16>
    %c1_83 = arith.constant 1 : index
    %c0_84 = arith.constant 0 : index
    %c0_85 = arith.constant 0 : index
    %89 = vector.load %arg3[%c1_83, %c0_84, %c0_85] : memref<3x192x64xbf16, #tpu.memory_space<vmem>>, vector<1x192x64xbf16>
    %90 = vector.shape_cast %89 : vector<1x192x64xbf16> to vector<192x64xbf16>
    %cst_86 = arith.constant dense<0.000000e+00> : vector<256x64xf32>
    %91 = tpu.matmul %88, %90, %cst_86 {dimension_numbers = #tpu.dot_dimension_numbers<[1], [0], [0], [1], [0, 0, 1, 1], [], []>} : vector<256x192xbf16>, vector<192x64xbf16>, vector<256x64xf32> -> vector<256x64xf32>
    %92 = arith.addf %80, %91 : vector<256x64xf32>
    %c2_i32_87 = arith.constant 2 : i32
    %93 = arith.addi %67, %c2_i32_87 : i32
    %94 = arith.index_cast %93 : i32 to index
    %c0_88 = arith.constant 0 : index
    %c0_89 = arith.constant 0 : index
    %95 = vector.load %arg10[%94, %c0_88, %c0_89] : memref<18x18x64xbf16, #tpu.memory_space<vmem>>, vector<16x18x64xbf16>
    %96 = vector.extract_strided_slice %95 {offsets = [0, 0, 0], sizes = [16, 16, 64], strides = [1, 1, 1]} : vector<16x18x64xbf16> to vector<16x16x64xbf16>
    %97 = vector.extract_strided_slice %95 {offsets = [0, 1, 0], sizes = [16, 16, 64], strides = [1, 1, 1]} : vector<16x18x64xbf16> to vector<16x16x64xbf16>
    %98 = vector.extract_strided_slice %95 {offsets = [0, 2, 0], sizes = [16, 16, 64], strides = [1, 1, 1]} : vector<16x18x64xbf16> to vector<16x16x64xbf16>
    %99 = tpu.concatenate %96, %97, %98 in 2 : vector<16x16x64xbf16>, vector<16x16x64xbf16>, vector<16x16x64xbf16> -> vector<16x16x192xbf16>
    %100 = vector.shape_cast %99 : vector<16x16x192xbf16> to vector<256x192xbf16>
    %c2_90 = arith.constant 2 : index
    %c0_91 = arith.constant 0 : index
    %c0_92 = arith.constant 0 : index
    %101 = vector.load %arg3[%c2_90, %c0_91, %c0_92] : memref<3x192x64xbf16, #tpu.memory_space<vmem>>, vector<1x192x64xbf16>
    %102 = vector.shape_cast %101 : vector<1x192x64xbf16> to vector<192x64xbf16>
    %cst_93 = arith.constant dense<0.000000e+00> : vector<256x64xf32>
    %103 = tpu.matmul %100, %102, %cst_93 {dimension_numbers = #tpu.dot_dimension_numbers<[1], [0], [0], [1], [0, 0, 1, 1], [], []>} : vector<256x192xbf16>, vector<192x64xbf16>, vector<256x64xf32> -> vector<256x64xf32>
    %104 = arith.addf %92, %103 : vector<256x64xf32>
    %c0_94 = arith.constant 0 : index
    %c0_95 = arith.constant 0 : index
    %105 = vector.load %arg6[%c0_94, %c0_95] : memref<1x64xf32, #tpu.memory_space<vmem>>, vector<1x64xf32>
    %106 = vector.broadcast %105 : vector<1x64xf32> to vector<256x64xf32>
    %107 = arith.addf %104, %106 : vector<256x64xf32>
    %108 = vector.shape_cast %107 : vector<256x64xf32> to vector<16x16x64xf32>
    %109 = arith.truncf %108 : vector<16x16x64xf32> to vector<16x16x64xbf16>
    %c1_i32_96 = arith.constant 1 : i32
    %110 = arith.addi %67, %c1_i32_96 : i32
    %111 = arith.index_cast %110 : i32 to index
    %c1_97 = arith.constant 1 : index
    %c0_98 = arith.constant 0 : index
    %112 = vector.load %arg11[%111, %c1_97, %c0_98] : memref<18x18x64xbf16, #tpu.memory_space<vmem>>, vector<16x16x64xbf16>
    tpu.vector_store %arg11[%111, %c1_97, %c0_98], %109 {strides = array<i32>} : memref<18x18x64xbf16, #tpu.memory_space<vmem>>, vector<16x16x64xbf16>,
    %c1_i32_99 = arith.constant 1 : i32
    %c0_i32_100 = arith.constant 0 : i32
    %c16_i32_101 = arith.constant 16 : i32
    %113 = arith.muli %c0_i32_100, %c16_i32_101 : i32
    %cst_102 = arith.constant 0.000000e+00 : f32
    %114 = vector.broadcast %cst_102 : f32 to vector<256x4xf32>
    %c0_i32_103 = arith.constant 0 : i32
    %115 = arith.addi %113, %c0_i32_103 : i32
    %116 = arith.index_cast %115 : i32 to index
    %c0_104 = arith.constant 0 : index
    %c0_105 = arith.constant 0 : index
    %117 = vector.load %arg11[%116, %c0_104, %c0_105] : memref<18x18x64xbf16, #tpu.memory_space<vmem>>, vector<16x18x64xbf16>
    %118 = vector.extract_strided_slice %117 {offsets = [0, 0, 0], sizes = [16, 16, 64], strides = [1, 1, 1]} : vector<16x18x64xbf16> to vector<16x16x64xbf16>
    %119 = vector.extract_strided_slice %117 {offsets = [0, 1, 0], sizes = [16, 16, 64], strides = [1, 1, 1]} : vector<16x18x64xbf16> to vector<16x16x64xbf16>
    %120 = vector.extract_strided_slice %117 {offsets = [0, 2, 0], sizes = [16, 16, 64], strides = [1, 1, 1]} : vector<16x18x64xbf16> to vector<16x16x64xbf16>
    %121 = tpu.concatenate %118, %119, %120 in 2 : vector<16x16x64xbf16>, vector<16x16x64xbf16>, vector<16x16x64xbf16> -> vector<16x16x192xbf16>
    %122 = vector.shape_cast %121 : vector<16x16x192xbf16> to vector<256x192xbf16>
    %c0_106 = arith.constant 0 : index
    %c0_107 = arith.constant 0 : index
    %c0_108 = arith.constant 0 : index
    %123 = vector.load %arg4[%c0_106, %c0_107, %c0_108] : memref<3x192x4xbf16, #tpu.memory_space<vmem>>, vector<1x192x4xbf16>
    %124 = vector.shape_cast %123 : vector<1x192x4xbf16> to vector<192x4xbf16>
    %cst_109 = arith.constant dense<0.000000e+00> : vector<256x4xf32>
    %125 = tpu.matmul %122, %124, %cst_109 {dimension_numbers = #tpu.dot_dimension_numbers<[1], [0], [0], [1], [0, 0, 1, 1], [], []>} : vector<256x192xbf16>, vector<192x4xbf16>, vector<256x4xf32> -> vector<256x4xf32>
    %126 = arith.addf %114, %125 : vector<256x4xf32>
    %c1_i32_110 = arith.constant 1 : i32
    %127 = arith.addi %113, %c1_i32_110 : i32
    %128 = arith.index_cast %127 : i32 to index
    %c0_111 = arith.constant 0 : index
    %c0_112 = arith.constant 0 : index
    %129 = vector.load %arg11[%128, %c0_111, %c0_112] : memref<18x18x64xbf16, #tpu.memory_space<vmem>>, vector<16x18x64xbf16>
    %130 = vector.extract_strided_slice %129 {offsets = [0, 0, 0], sizes = [16, 16, 64], strides = [1, 1, 1]} : vector<16x18x64xbf16> to vector<16x16x64xbf16>
    %131 = vector.extract_strided_slice %129 {offsets = [0, 1, 0], sizes = [16, 16, 64], strides = [1, 1, 1]} : vector<16x18x64xbf16> to vector<16x16x64xbf16>
    %132 = vector.extract_strided_slice %129 {offsets = [0, 2, 0], sizes = [16, 16, 64], strides = [1, 1, 1]} : vector<16x18x64xbf16> to vector<16x16x64xbf16>
    %133 = tpu.concatenate %130, %131, %132 in 2 : vector<16x16x64xbf16>, vector<16x16x64xbf16>, vector<16x16x64xbf16> -> vector<16x16x192xbf16>
    %134 = vector.shape_cast %133 : vector<16x16x192xbf16> to vector<256x192xbf16>
    %c1_113 = arith.constant 1 : index
    %c0_114 = arith.constant 0 : index
    %c0_115 = arith.constant 0 : index
    %135 = vector.load %arg4[%c1_113, %c0_114, %c0_115] : memref<3x192x4xbf16, #tpu.memory_space<vmem>>, vector<1x192x4xbf16>
    %136 = vector.shape_cast %135 : vector<1x192x4xbf16> to vector<192x4xbf16>
    %cst_116 = arith.constant dense<0.000000e+00> : vector<256x4xf32>
    %137 = tpu.matmul %134, %136, %cst_116 {dimension_numbers = #tpu.dot_dimension_numbers<[1], [0], [0], [1], [0, 0, 1, 1], [], []>} : vector<256x192xbf16>, vector<192x4xbf16>, vector<256x4xf32> -> vector<256x4xf32>
    %138 = arith.addf %126, %137 : vector<256x4xf32>
    %c2_i32_117 = arith.constant 2 : i32
    %139 = arith.addi %113, %c2_i32_117 : i32
    %140 = arith.index_cast %139 : i32 to index
    %c0_118 = arith.constant 0 : index
    %c0_119 = arith.constant 0 : index
    %141 = vector.load %arg11[%140, %c0_118, %c0_119] : memref<18x18x64xbf16, #tpu.memory_space<vmem>>, vector<16x18x64xbf16>
    %142 = vector.extract_strided_slice %141 {offsets = [0, 0, 0], sizes = [16, 16, 64], strides = [1, 1, 1]} : vector<16x18x64xbf16> to vector<16x16x64xbf16>
    %143 = vector.extract_strided_slice %141 {offsets = [0, 1, 0], sizes = [16, 16, 64], strides = [1, 1, 1]} : vector<16x18x64xbf16> to vector<16x16x64xbf16>
    %144 = vector.extract_strided_slice %141 {offsets = [0, 2, 0], sizes = [16, 16, 64], strides = [1, 1, 1]} : vector<16x18x64xbf16> to vector<16x16x64xbf16>
    %145 = tpu.concatenate %142, %143, %144 in 2 : vector<16x16x64xbf16>, vector<16x16x64xbf16>, vector<16x16x64xbf16> -> vector<16x16x192xbf16>
    %146 = vector.shape_cast %145 : vector<16x16x192xbf16> to vector<256x192xbf16>
    %c2_120 = arith.constant 2 : index
    %c0_121 = arith.constant 0 : index
    %c0_122 = arith.constant 0 : index
    %147 = vector.load %arg4[%c2_120, %c0_121, %c0_122] : memref<3x192x4xbf16, #tpu.memory_space<vmem>>, vector<1x192x4xbf16>
    %148 = vector.shape_cast %147 : vector<1x192x4xbf16> to vector<192x4xbf16>
    %cst_123 = arith.constant dense<0.000000e+00> : vector<256x4xf32>
    %149 = tpu.matmul %146, %148, %cst_123 {dimension_numbers = #tpu.dot_dimension_numbers<[1], [0], [0], [1], [0, 0, 1, 1], [], []>} : vector<256x192xbf16>, vector<192x4xbf16>, vector<256x4xf32> -> vector<256x4xf32>
    %150 = arith.addf %138, %149 : vector<256x4xf32>
    %c0_124 = arith.constant 0 : index
    %c0_125 = arith.constant 0 : index
    %151 = vector.load %arg7[%c0_124, %c0_125] : memref<1x4xf32, #tpu.memory_space<vmem>>, vector<1x4xf32>
    %152 = vector.broadcast %151 : vector<1x4xf32> to vector<256x4xf32>
    %153 = arith.addf %150, %152 : vector<256x4xf32>
    %cst_126 = arith.constant 0.000000e+00 : f32
    %154 = vector.broadcast %cst_126 : f32 to vector<256x4xf32>
    %155 = arith.subf %154, %153 : vector<256x4xf32>
    %156 = math.exp %155 : vector<256x4xf32>
    %cst_127 = arith.constant 1.000000e+00 : f32
    %157 = vector.broadcast %cst_127 : f32 to vector<256x4xf32>
    %158 = arith.addf %157, %156 : vector<256x4xf32>
    %cst_128 = arith.constant 1.000000e+00 : f32
    %159 = vector.broadcast %cst_128 : f32 to vector<256x4xf32>
    %160 = arith.divf %159, %158 : vector<256x4xf32>
    %161 = vector.shape_cast %160 : vector<256x4xf32> to vector<16x16x4xf32>
    %c0_129 = arith.constant 0 : index
    %162 = arith.index_cast %113 : i32 to index
    %c0_130 = arith.constant 0 : index
    %c0_131 = arith.constant 0 : index
    %163 = vector.load %arg8[%c0_129, %162, %c0_130, %c0_131] : memref<1x16x16x4xf32, #tpu.memory_space<vmem>>, vector<1x16x16x4xf32>
    %164 = vector.shape_cast %163 : vector<1x16x16x4xf32> to vector<16x16x4xf32>
    %165 = vector.shape_cast %161 : vector<16x16x4xf32> to vector<1x16x16x4xf32>
    tpu.vector_store %arg8[%c0_129, %162, %c0_130, %c0_131], %165 {strides = array<i32>} : memref<1x16x16x4xf32, #tpu.memory_space<vmem>>, vector<1x16x16x4xf32>,
    %c1_i32_132 = arith.constant 1 : i32
    return
  }
  func.func @transform_0(%arg0: i32) -> (i32, i32, i32, i32) {
    %c0_i32 = arith.constant 0 : i32
    %c0_i32_0 = arith.constant 0 : i32
    %c0_i32_1 = arith.constant 0 : i32
    %c0_i32_2 = arith.constant 0 : i32
    return %arg0, %c0_i32, %c0_i32_0, %c0_i32_1 : i32, i32, i32, i32
  }
  func.func @transform_1(%arg0: i32) -> (i32, i32, i32) {
    %c0_i32 = arith.constant 0 : i32
    %c0_i32_0 = arith.constant 0 : i32
    %c0_i32_1 = arith.constant 0 : i32
    %c0_i32_2 = arith.constant 0 : i32
    return %c0_i32, %c0_i32_0, %c0_i32_1 : i32, i32, i32
  }
  func.func @transform_2(%arg0: i32) -> (i32, i32, i32) {
    %c0_i32 = arith.constant 0 : i32
    %c0_i32_0 = arith.constant 0 : i32
    %c0_i32_1 = arith.constant 0 : i32
    %c0_i32_2 = arith.constant 0 : i32
    return %c0_i32, %c0_i32_0, %c0_i32_1 : i32, i32, i32
  }
  func.func @transform_3(%arg0: i32) -> (i32, i32, i32) {
    %c0_i32 = arith.constant 0 : i32
    %c0_i32_0 = arith.constant 0 : i32
    %c0_i32_1 = arith.constant 0 : i32
    %c0_i32_2 = arith.constant 0 : i32
    return %c0_i32, %c0_i32_0, %c0_i32_1 : i32, i32, i32
  }
  func.func @transform_4(%arg0: i32) -> (i32, i32) {
    %c0_i32 = arith.constant 0 : i32
    %c0_i32_0 = arith.constant 0 : i32
    %c0_i32_1 = arith.constant 0 : i32
    return %c0_i32, %c0_i32_0 : i32, i32
  }
  func.func @transform_5(%arg0: i32) -> (i32, i32) {
    %c0_i32 = arith.constant 0 : i32
    %c0_i32_0 = arith.constant 0 : i32
    %c0_i32_1 = arith.constant 0 : i32
    return %c0_i32, %c0_i32_0 : i32, i32
  }
  func.func @transform_6(%arg0: i32) -> (i32, i32) {
    %c0_i32 = arith.constant 0 : i32
    %c0_i32_0 = arith.constant 0 : i32
    %c0_i32_1 = arith.constant 0 : i32
    return %c0_i32, %c0_i32_0 : i32, i32
  }
  func.func @transform_7(%arg0: i32) -> (i32, i32, i32, i32) {
    %c0_i32 = arith.constant 0 : i32
    %c0_i32_0 = arith.constant 0 : i32
    %c0_i32_1 = arith.constant 0 : i32
    %c0_i32_2 = arith.constant 0 : i32
    return %arg0, %c0_i32, %c0_i32_0, %c0_i32_1 : i32, i32, i32, i32
  }
}

</mosaic_0001>

<llo_original>
// kernel: occupancy_encoder_cnn.1
$region0: #{occupancy_encoder_cnn.1}
  #allocation0 [shape = 'u32[]', space=smem, size = 0x4, offset = 0x4, fixed_abs, tag = 'smem constant byte address 0x4 - core index']
  #allocation1 [shape = 'u32[144,128]{1,0:T(1,128)}', space=vmem, size = 0x12000, scoped, tag = 'internal scratch']
  #allocation2 [shape = 'bf16[18,18,4]{2,1,0:T(8,128)(2,1)}', space=vmem, size = 0x1b000, scoped, tag = 'scratch operand']
  #allocation3 [shape = 'bf16[18,18,64]{2,1,0:T(8,128)(2,1)}', space=vmem, size = 0x1b000, scoped, tag = 'scratch operand']
  #allocation4 [shape = 'bf16[18,18,64]{2,1,0:T(8,128)(2,1)}', space=vmem, size = 0x1b000, scoped, tag = 'scratch operand']
  %s0 = inlined_call_operand.vmem [shape: bf16[2,16,16,4], index: 0, kind: input, shape index: {}]
  %s1 = inlined_call_operand.vmem [shape: bf16[3,12,64], index: 1, kind: input, shape index: {}]
  %s2 = inlined_call_operand.vmem [shape: bf16[3,192,64], index: 2, kind: input, shape index: {}]
  %s3 = inlined_call_operand.vmem [shape: bf16[3,192,4], index: 3, kind: input, shape index: {}]
  %s4 = inlined_call_operand.vmem [shape: f32[1,64], index: 4, kind: input, shape index: {}]
  %s5 = inlined_call_operand.vmem [shape: f32[1,64], index: 5, kind: input, shape index: {}]
  %s6 = inlined_call_operand.vmem [shape: f32[1,4], index: 6, kind: input, shape index: {}]
  %s7 = inlined_call_operand.vmem [shape: f32[2,16,16,4], index: 7, kind: output, shape index: {}]
  %s8 = sld [smem:[#allocation0]]
  $region61: #{occupancy_encoder_cnn.1} parent=0
    _
  %s10 = ssub.s32 1, %s8
  %s11 = scalar_select 0, %s10, %s8
  loop: start=0, step=1, limit=4
  $region2: #{occupancy_encoder_cnn.1} parent=0 // loop_pre_header
    _
  $region3: #{occupancy_encoder_cnn.1} parent=0 // loop_header
    %s13 = sphi 0, %s17
    %p14 = scmp.ge.s32.totalorder %s13, 4
    %s23 = sphi 0, %s25
    %s26 = sphi 0, %s23
    %s27 = sphi 0, %s26
    %s43 = sphi 0, %s27
    %s47 = sphi 0, %s47
    %s49 = sphi 0, %s47
    %s50 = sphi 0, %s49
    %s64 = sphi 0, %s50
    %s68 = sphi 0, %s68
    %s70 = sphi 0, %s68
    %s71 = sphi 0, %s70
    %s85 = sphi 0, %s71
    %s89 = sphi 0, %s89
    %s91 = sphi 0, %s89
    %s92 = sphi 0, %s91
    %s106 = sphi 0, %s92
    %s110 = sphi 0, %s110
    %s112 = sphi 0, %s110
    %s113 = sphi 0, %s112
    %s127 = sphi 0, %s113
    %s131 = sphi 0, %s131
    %s133 = sphi 0, %s131
    %s134 = sphi 0, %s133
    %s148 = sphi 0, %s134
    %s152 = sphi 0, %s152
    %s154 = sphi 0, %s152
    %s155 = sphi 0, %s154
    %s169 = sphi 0, %s155
    %s175 = sphi 0, %s177
    %s178 = sphi 0, %s175
    %s179 = sphi 0, %s178
    %s195 = sphi 0, %s179
  $region4: #{occupancy_encoder_cnn.1} parent=0 // loop_header_branch
    %16 = sbr.rel (%p14) target = $region8
  $region5: #{occupancy_encoder_cnn.1} parent=0 // loop_body
    %s18 = ssub.s32 %s13, 1
    %s19 = ssub.s32 %s13, 2
    %s20 = sadd.s32 %s13, 1
    %s21 = ssub.s32 %s13, %s20
    %p22 = scmp.eq.s32.totalorder %s21, 0
    %s24 = sadd.s32 %s23, 1
    %s25 = scalar_select %p22, %s23, %s24
    %p28 = pneg %p22
    %p29 = scmp.eq.s32.totalorder %s13, 1
    %p30 = por %p28, %p29
    %p31 = scmp.ne.s32.totalorder %s23, %s26
    %p32 = scmp.eq.s32.totalorder %s13, 0
    %p33 = por %p31, %p32
    %p34 = scmp.ne.s32.totalorder %s23, %s26
    %p35 = scmp.eq.s32.totalorder %s18, 1
    %p36 = por %p34, %p35
    %p37 = scmp.ne.s32.totalorder %s26, %s27
    %p38 = scmp.eq.s32.totalorder %s18, 0
    %p39 = por %p37, %p38
    %p40 = scmp.ne.s32.totalorder %s26, %s27
    %p41 = scmp.eq.s32.totalorder %s19, 1
    %p42 = por %p40, %p41
    %p44 = scmp.ne.s32.totalorder %s27, %s43
    %p45 = scmp.eq.s32.totalorder %s19, 0
    %p46 = por %p44, %p45
    %s48 = sadd.s32 %s47, 1
    %p51 = scmp.eq.s32.totalorder %s13, 1
    %p52 = scmp.ne.s32.totalorder %s47, %s49
    %p53 = scmp.eq.s32.totalorder %s13, 0
    %p54 = por %p52, %p53
    %p55 = scmp.ne.s32.totalorder %s47, %s49
    %p56 = scmp.eq.s32.totalorder %s18, 1
    %p57 = por %p55, %p56
    %p58 = scmp.ne.s32.totalorder %s49, %s50
    %p59 = scmp.eq.s32.totalorder %s18, 0
    %p60 = por %p58, %p59
    %p61 = scmp.ne.s32.totalorder %s49, %s50
    %p62 = scmp.eq.s32.totalorder %s19, 1
    %p63 = por %p61, %p62
    %p65 = scmp.ne.s32.totalorder %s50, %s64
    %p66 = scmp.eq.s32.totalorder %s19, 0
    %p67 = por %p65, %p66
    %s69 = sadd.s32 %s68, 1
    %p72 = scmp.eq.s32.totalorder %s13, 1
    %p73 = scmp.ne.s32.totalorder %s68, %s70
    %p74 = scmp.eq.s32.totalorder %s13, 0
    %p75 = por %p73, %p74
    %p76 = scmp.ne.s32.totalorder %s68, %s70
    %p77 = scmp.eq.s32.totalorder %s18, 1
    %p78 = por %p76, %p77
    %p79 = scmp.ne.s32.totalorder %s70, %s71
    %p80 = scmp.eq.s32.totalorder %s18, 0
    %p81 = por %p79, %p80
    %p82 = scmp.ne.s32.totalorder %s70, %s71
    %p83 = scmp.eq.s32.totalorder %s19, 1
    %p84 = por %p82, %p83
    %p86 = scmp.ne.s32.totalorder %s71, %s85
    %p87 = scmp.eq.s32.totalorder %s19, 0
    %p88 = por %p86, %p87
    %s90 = sadd.s32 %s89, 1
    %p93 = scmp.eq.s32.totalorder %s13, 1
    %p94 = scmp.ne.s32.totalorder %s89, %s91
    %p95 = scmp.eq.s32.totalorder %s13, 0
    %p96 = por %p94, %p95
    %p97 = scmp.ne.s32.totalorder %s89, %s91
    %p98 = scmp.eq.s32.totalorder %s18, 1
    %p99 = por %p97, %p98
    %p100 = scmp.ne.s32.totalorder %s91, %s92
    %p101 = scmp.eq.s32.totalorder %s18, 0
    %p102 = por %p100, %p101
    %p103 = scmp.ne.s32.totalorder %s91, %s92
    %p104 = scmp.eq.s32.totalorder %s19, 1
    %p105 = por %p103, %p104
    %p107 = scmp.ne.s32.totalorder %s92, %s106
    %p108 = scmp.eq.s32.totalorder %s19, 0
    %p109 = por %p107, %p108
    %s111 = sadd.s32 %s110, 1
    %p114 = scmp.eq.s32.totalorder %s13, 1
    %p115 = scmp.ne.s32.totalorder %s110, %s112
    %p116 = scmp.eq.s32.totalorder %s13, 0
    %p117 = por %p115, %p116
    %p118 = scmp.ne.s32.totalorder %s110, %s112
    %p119 = scmp.eq.s32.totalorder %s18, 1
    %p120 = por %p118, %p119
    %p121 = scmp.ne.s32.totalorder %s112, %s113
    %p122 = scmp.eq.s32.totalorder %s18, 0
    %p123 = por %p121, %p122
    %p124 = scmp.ne.s32.totalorder %s112, %s113
    %p125 = scmp.eq.s32.totalorder %s19, 1
    %p126 = por %p124, %p125
    %p128 = scmp.ne.s32.totalorder %s113, %s127
    %p129 = scmp.eq.s32.totalorder %s19, 0
    %p130 = por %p128, %p129
    %s132 = sadd.s32 %s131, 1
    %p135 = scmp.eq.s32.totalorder %s13, 1
    %p136 = scmp.ne.s32.totalorder %s131, %s133
    %p137 = scmp.eq.s32.totalorder %s13, 0
    %p138 = por %p136, %p137
    %p139 = scmp.ne.s32.totalorder %s131, %s133
    %p140 = scmp.eq.s32.totalorder %s18, 1
    %p141 = por %p139, %p140
    %p142 = scmp.ne.s32.totalorder %s133, %s134
    %p143 = scmp.eq.s32.totalorder %s18, 0
    %p144 = por %p142, %p143
    %p145 = scmp.ne.s32.totalorder %s133, %s134
    %p146 = scmp.eq.s32.totalorder %s19, 1
    %p147 = por %p145, %p146
    %p149 = scmp.ne.s32.totalorder %s134, %s148
    %p150 = scmp.eq.s32.totalorder %s19, 0
    %p151 = por %p149, %p150
    %s153 = sadd.s32 %s152, 1
    %p156 = scmp.eq.s32.totalorder %s13, 1
    %p157 = scmp.ne.s32.totalorder %s152, %s154
    %p158 = scmp.eq.s32.totalorder %s13, 0
    %p159 = por %p157, %p158
    %p160 = scmp.ne.s32.totalorder %s152, %s154
    %p161 = scmp.eq.s32.totalorder %s18, 1
    %p162 = por %p160, %p161
    %p163 = scmp.ne.s32.totalorder %s154, %s155
    %p164 = scmp.eq.s32.totalorder %s18, 0
    %p165 = por %p163, %p164
    %p166 = scmp.ne.s32.totalorder %s154, %s155
    %p167 = scmp.eq.s32.totalorder %s19, 1
    %p168 = por %p166, %p167
    %p170 = scmp.ne.s32.totalorder %s155, %s169
    %p171 = scmp.eq.s32.totalorder %s19, 0
    %p172 = por %p170, %p171
    %s173 = ssub.s32 %s13, %s20
    %p174 = scmp.eq.s32.totalorder %s173, 0
    %s176 = sadd.s32 %s175, 1
    %s177 = scalar_select %p174, %s175, %s176
    %p180 = pneg %p174
    %p181 = scmp.eq.s32.totalorder %s13, 1
    %p182 = por %p180, %p181
    %p183 = scmp.ne.s32.totalorder %s175, %s178
    %p184 = scmp.eq.s32.totalorder %s13, 0
    %p185 = por %p183, %p184
    %p186 = scmp.ne.s32.totalorder %s175, %s178
    %p187 = scmp.eq.s32.totalorder %s18, 1
    %p188 = por %p186, %p187
    %p189 = scmp.ne.s32.totalorder %s178, %s179
    %p190 = scmp.eq.s32.totalorder %s18, 0
    %p191 = por %p189, %p190
    %p192 = scmp.ne.s32.totalorder %s178, %s179
    %p193 = scmp.eq.s32.totalorder %s19, 1
    %p194 = por %p192, %p193
    %p196 = scmp.ne.s32.totalorder %s179, %s195
    %p197 = scmp.eq.s32.totalorder %s19, 0
    %p198 = por %p196, %p197
    %p199 = scmp.le.s32.totalorder 1, %s13
    %p200 = scmp.lt.s32.totalorder %s13, 3
    %p201 = pnand %p199, %p200
    %p202 = pneg %p201
    // Predicated region
    $region9: #{occupancy_encoder_cnn.1} parent=5 // pred_check
      _
    $region10: #{occupancy_encoder_cnn.1} parent=5 // pred_check_branch
      %204 = sbr.rel (%p201) target = $region12
    $region11: #{occupancy_encoder_cnn.1} parent=5 // pred_region
      %s205 = ssub.s32 %s13, 1
      // Predicated region
      $region13: #{occupancy_encoder_cnn.1} parent=11 // pred_check
        %p206 = pneg %p60
      $region14: #{occupancy_encoder_cnn.1} parent=11 // pred_check_branch
        %208 = sbr.rel (%p206) target = $region16
      $region15: #{occupancy_encoder_cnn.1} parent=11 // pred_region
        _
      $region16: #{occupancy_encoder_cnn.1} parent=11 // pred_fallthru
        _
      // Predicated region
      $region17: #{occupancy_encoder_cnn.1} parent=11 // pred_check
        %p209 = pneg %p81
      $region18: #{occupancy_encoder_cnn.1} parent=11 // pred_check_branch
        %211 = sbr.rel (%p209) target = $region20
      $region19: #{occupancy_encoder_cnn.1} parent=11 // pred_region
        _
      $region20: #{occupancy_encoder_cnn.1} parent=11 // pred_fallthru
        _
      // Predicated region
      $region21: #{occupancy_encoder_cnn.1} parent=11 // pred_check
        %p212 = pneg %p102
      $region22: #{occupancy_encoder_cnn.1} parent=11 // pred_check_branch
        %214 = sbr.rel (%p212) target = $region24
      $region23: #{occupancy_encoder_cnn.1} parent=11 // pred_region
        _
      $region24: #{occupancy_encoder_cnn.1} parent=11 // pred_fallthru
        _
      // Predicated region
      $region25: #{occupancy_encoder_cnn.1} parent=11 // pred_check
        %p215 = pneg %p123
      $region26: #{occupancy_encoder_cnn.1} parent=11 // pred_check_branch
        %217 = sbr.rel (%p215) target = $region28
      $region27: #{occupancy_encoder_cnn.1} parent=11 // pred_region
        _
      $region28: #{occupancy_encoder_cnn.1} parent=11 // pred_fallthru
        _
      // Predicated region
      $region29: #{occupancy_encoder_cnn.1} parent=11 // pred_check
        %p218 = pneg %p144
      $region30: #{occupancy_encoder_cnn.1} parent=11 // pred_check_branch
        %220 = sbr.rel (%p218) target = $region32
      $region31: #{occupancy_encoder_cnn.1} parent=11 // pred_region
        _
      $region32: #{occupancy_encoder_cnn.1} parent=11 // pred_fallthru
        _
      // Predicated region
      $region33: #{occupancy_encoder_cnn.1} parent=11 // pred_check
        %p221 = pneg %p165
      $region34: #{occupancy_encoder_cnn.1} parent=11 // pred_check_branch
        %223 = sbr.rel (%p221) target = $region36
      $region35: #{occupancy_encoder_cnn.1} parent=11 // pred_region
        _
      $region36: #{occupancy_encoder_cnn.1} parent=11 // pred_fallthru
        _
    $region12: #{occupancy_encoder_cnn.1} parent=5 // pred_fallthru
      _
    %p224 = scmp.lt.s32.totalorder %s13, 2
    // Predicated region
    $region37: #{occupancy_encoder_cnn.1} parent=5 // pred_check
      %p225 = pneg %p224
    $region38: #{occupancy_encoder_cnn.1} parent=5 // pred_check_branch
      %227 = sbr.rel (%p225) target = $region40
    $region39: #{occupancy_encoder_cnn.1} parent=5 // pred_region
      // Predicated region
      $region41: #{occupancy_encoder_cnn.1} parent=39 // pred_check
        %p228 = pneg %p33
      $region42: #{occupancy_encoder_cnn.1} parent=39 // pred_check_branch
        %230 = sbr.rel (%p228) target = $region44
      $region43: #{occupancy_encoder_cnn.1} parent=39 // pred_region
        %p231 = scmp.lt.s32.totalorder %s13, 1
        %s232 = scalar_select %p231, %s13, 1
        %s233 = smul.addr %s232, 32
        %s234 = smul.addr %s233, 4
        %s235 = scalar_lea.vmem %s0, %s234
      $region44: #{occupancy_encoder_cnn.1} parent=39 // pred_fallthru
        _
    $region40: #{occupancy_encoder_cnn.1} parent=5 // pred_fallthru
      _
    %p236 = scmp.le.s32.totalorder 1, %s13
    %p237 = scmp.lt.s32.totalorder %s13, 3
    %p238 = pnand %p236, %p237
    %p239 = pneg %p238
    // Predicated region
    $region45: #{occupancy_encoder_cnn.1} parent=5 // pred_check
      _
    $region46: #{occupancy_encoder_cnn.1} parent=5 // pred_check_branch
      %241 = sbr.rel (%p238) target = $region48
    $region47: #{occupancy_encoder_cnn.1} parent=5 // pred_region
      %s242 = ssub.s32 %s13, 1
      %p243 = scmp.lt.s32.totalorder %s18, 1
      %s244 = scalar_select %p243, %s18, 1
      %s245 = smul.addr %s244, 32
      %s246 = smul.addr %s245, 4
      %s247 = scalar_lea.vmem %s0, %s246
      %p248 = pneg %p39
      %p249 = pneg %p36
      %p250 = pneg %p60
      %p251 = pneg %p57
      %p252 = pneg %p81
      %p253 = pneg %p78
      %p254 = pneg %p102
      %p255 = pneg %p99
      %p256 = pneg %p123
      %p257 = pneg %p120
      %p258 = pneg %p144
      %p259 = pneg %p141
      %p260 = pneg %p165
      %p261 = pneg %p162
      %p262 = pneg %p191
      %p263 = pneg %p188
      %p264 = scmp.lt.s32.totalorder %s18, 1
      %s265 = scalar_select %p264, %s18, 1
      %s266 = smul.addr %s265, 32
      %s267 = smul.addr %s266, 8
      %s268 = scalar_lea.vmem %s7, %s267
      %p269 = scmp.lt.s32.totalorder %s18, 1
      %s270 = scalar_select %p269, %s18, 1
      %s271 = smul.addr %s270, 32
      %s272 = smul.addr %s271, 4
      %s273 = scalar_lea.vmem %s0, %s272
      %p274 = scmp.lt.s32.totalorder %s18, 1
      %s275 = scalar_select %p274, %s18, 1
      %s276 = smul.addr %s275, 32
      %s277 = smul.addr %s276, 8
      %s278 = scalar_lea.vmem %s7, %s277
      %vm280 = vcmask 27648
      %281 = vst.msk [vmem:[#allocation2] sm:$0xf] %vm280, 0
      %282 = vst.msk [vmem:[#allocation2 + $0x4] sm:$0xf] %vm280, 0
      %vm283 = vcmask 24576
      %284 = vst.msk [vmem:[#allocation2 + $0x8] sm:$0x1] %vm283, 0
      %s285 = scalar_lea.vmem [#allocation2], 204
      %286 = vst.msk [vmem:[%s285] sm:$0xf] %vm280, 0
      %287 = vst.msk [vmem:[%s285 + $0x4] sm:$0xf] %vm280, 0
      %288 = vst.msk [vmem:[%s285 + $0x8] sm:$0x1] %vm283, 0
      %vm289 = vcmask 24576
      %vm290 = vsmask.f32 256
      %vm291 = vmand %vm289, %vm290
      %v292 = vld [vmem:[#allocation2] sm:$0x1]
      %v293 = vsel %vm291, 0, %v292
      %294 = vst [vmem:[#allocation2] sm:$0x1] %v293
      %v295 = vld [vmem:[#allocation2 + $0xc] sm:$0x1]
      %v296 = vsel %vm291, 0, %v295
      %297 = vst [vmem:[#allocation2 + $0xc] sm:$0x1] %v296
      %v298 = vld [vmem:[#allocation2 + $0x18] sm:$0x1]
      %v299 = vsel %vm291, 0, %v298
      %300 = vst [vmem:[#allocation2 + $0x18] sm:$0x1] %v299
      %v301 = vld [vmem:[#allocation2 + $0x24] sm:$0x1]
      %v302 = vsel %vm291, 0, %v301
      %303 = vst [vmem:[#allocation2 + $0x24] sm:$0x1] %v302
      %v304 = vld [vmem:[#allocation2 + $0x30] sm:$0x1]
      %v305 = vsel %vm291, 0, %v304
      %306 = vst [vmem:[#allocation2 + $0x30] sm:$0x1] %v305
      %v307 = vld [vmem:[#allocation2 + $0x3c] sm:$0x1]
      %v308 = vsel %vm291, 0, %v307
      %309 = vst [vmem:[#allocation2 + $0x3c] sm:$0x1] %v308
      %v310 = vld [vmem:[#allocation2 + $0x48] sm:$0x1]
      %v311 = vsel %vm291, 0, %v310
      %312 = vst [vmem:[#allocation2 + $0x48] sm:$0x1] %v311
      %v313 = vld [vmem:[#allocation2 + $0x54] sm:$0x1]
      %v314 = vsel %vm291, 0, %v313
      %315 = vst [vmem:[#allocation2 + $0x54] sm:$0x1] %v314
      %v316 = vld [vmem:[#allocation2 + $0x60] sm:$0x1]
      %v317 = vsel %vm291, 0, %v316
      %318 = vst [vmem:[#allocation2 + $0x60] sm:$0x1] %v317
      %v319 = vld [vmem:[#allocation2 + $0x6c] sm:$0x1]
      %v320 = vsel %vm291, 0, %v319
      %321 = vst [vmem:[#allocation2 + $0x6c] sm:$0x1] %v320
      %v322 = vld [vmem:[#allocation2 + $0x78] sm:$0x1]
      %v323 = vsel %vm291, 0, %v322
      %324 = vst [vmem:[#allocation2 + $0x78] sm:$0x1] %v323
      %v325 = vld [vmem:[#allocation2 + $0x84] sm:$0x1]
      %v326 = vsel %vm291, 0, %v325
      %327 = vst [vmem:[#allocation2 + $0x84] sm:$0x1] %v326
      %v328 = vld [vmem:[#allocation2 + $0x90] sm:$0x1]
      %v329 = vsel %vm291, 0, %v328
      %330 = vst [vmem:[#allocation2 + $0x90] sm:$0x1] %v329
      %v331 = vld [vmem:[#allocation2 + $0x9c] sm:$0x1]
      %v332 = vsel %vm291, 0, %v331
      %333 = vst [vmem:[#allocation2 + $0x9c] sm:$0x1] %v332
      %v334 = vld [vmem:[#allocation2 + $0xa8] sm:$0x1]
      %v335 = vsel %vm291, 0, %v334
      %336 = vst [vmem:[#allocation2 + $0xa8] sm:$0x1] %v335
      %v337 = vld [vmem:[#allocation2 + $0xb4] sm:$0x1]
      %v338 = vsel %vm291, 0, %v337
      %339 = vst [vmem:[#allocation2 + $0xb4] sm:$0x1] %v338
      %v340 = vld [vmem:[#allocation2 + $0xc0] sm:$0x1]
      %v341 = vsel %vm291, 0, %v340
      %342 = vst [vmem:[#allocation2 + $0xc0] sm:$0x1] %v341
      %v343 = vld [vmem:[#allocation2 + $0xcc] sm:$0x1]
      %v344 = vsel %vm291, 0, %v343
      %345 = vst [vmem:[#allocation2 + $0xcc] sm:$0x1] %v344
      %vm346 = vsmask.f32 7938
      %vm347 = vmand %vm289, %vm346
      %v348 = vld [vmem:[#allocation2 + $0x8] sm:$0x1]
      %v349 = vsel %vm347, 0, %v348
      %350 = vst [vmem:[#allocation2 + $0x8] sm:$0x1] %v349
      %v351 = vld [vmem:[#allocation2 + $0x14] sm:$0x1]
      %v352 = vsel %vm347, 0, %v351
      %353 = vst [vmem:[#allocation2 + $0x14] sm:$0x1] %v352
      %v354 = vld [vmem:[#allocation2 + $0x20] sm:$0x1]
      %v355 = vsel %vm347, 0, %v354
      %356 = vst [vmem:[#allocation2 + $0x20] sm:$0x1] %v355
      %v357 = vld [vmem:[#allocation2 + $0x2c] sm:$0x1]
      %v358 = vsel %vm347, 0, %v357
      %359 = vst [vmem:[#allocation2 + $0x2c] sm:$0x1] %v358
      %v360 = vld [vmem:[#allocation2 + $0x38] sm:$0x1]
      %v361 = vsel %vm347, 0, %v360
      %362 = vst [vmem:[#allocation2 + $0x38] sm:$0x1] %v361
      %v363 = vld [vmem:[#allocation2 + $0x44] sm:$0x1]
      %v364 = vsel %vm347, 0, %v363
      %365 = vst [vmem:[#allocation2 + $0x44] sm:$0x1] %v364
      %v366 = vld [vmem:[#allocation2 + $0x50] sm:$0x1]
      %v367 = vsel %vm347, 0, %v366
      %368 = vst [vmem:[#allocation2 + $0x50] sm:$0x1] %v367
      %v369 = vld [vmem:[#allocation2 + $0x5c] sm:$0x1]
      %v370 = vsel %vm347, 0, %v369
      %371 = vst [vmem:[#allocation2 + $0x5c] sm:$0x1] %v370
      %v372 = vld [vmem:[#allocation2 + $0x68] sm:$0x1]
      %v373 = vsel %vm347, 0, %v372
      %374 = vst [vmem:[#allocation2 + $0x68] sm:$0x1] %v373
      %v375 = vld [vmem:[#allocation2 + $0x74] sm:$0x1]
      %v376 = vsel %vm347, 0, %v375
      %377 = vst [vmem:[#allocation2 + $0x74] sm:$0x1] %v376
      %v378 = vld [vmem:[#allocation2 + $0x80] sm:$0x1]
      %v379 = vsel %vm347, 0, %v378
      %380 = vst [vmem:[#allocation2 + $0x80] sm:$0x1] %v379
      %v381 = vld [vmem:[#allocation2 + $0x8c] sm:$0x1]
      %v382 = vsel %vm347, 0, %v381
      %383 = vst [vmem:[#allocation2 + $0x8c] sm:$0x1] %v382
      %v384 = vld [vmem:[#allocation2 + $0x98] sm:$0x1]
      %v385 = vsel %vm347, 0, %v384
      %386 = vst [vmem:[#allocation2 + $0x98] sm:$0x1] %v385
      %v387 = vld [vmem:[#allocation2 + $0xa4] sm:$0x1]
      %v388 = vsel %vm347, 0, %v387
      %389 = vst [vmem:[#allocation2 + $0xa4] sm:$0x1] %v388
      %v390 = vld [vmem:[#allocation2 + $0xb0] sm:$0x1]
      %v391 = vsel %vm347, 0, %v390
      %392 = vst [vmem:[#allocation2 + $0xb0] sm:$0x1] %v391
      %v393 = vld [vmem:[#allocation2 + $0xbc] sm:$0x1]
      %v394 = vsel %vm347, 0, %v393
      %395 = vst [vmem:[#allocation2 + $0xbc] sm:$0x1] %v394
      %v396 = vld [vmem:[#allocation2 + $0xc8] sm:$0x1]
      %v397 = vsel %vm347, 0, %v396
      %398 = vst [vmem:[#allocation2 + $0xc8] sm:$0x1] %v397
      %v399 = vld [vmem:[#allocation2 + $0xd4] sm:$0x1]
      %v400 = vsel %vm347, 0, %v399
      %401 = vst [vmem:[#allocation2 + $0xd4] sm:$0x1] %v400
      %vm402 = vcmask 519168
      %403 = vst.msk [vmem:[#allocation3] sm:$0xf] %vm402, 0
      %404 = vst.msk [vmem:[#allocation3 + $0x4] sm:$0xf] %vm402, 0
      %vm405 = vcmask 516096
      %406 = vst.msk [vmem:[#allocation3 + $0x8] sm:$0x1] %vm405, 0
      %s407 = scalar_lea.vmem [#allocation3], 204
      %408 = vst.msk [vmem:[%s407] sm:$0xf] %vm402, 0
      %409 = vst.msk [vmem:[%s407 + $0x4] sm:$0xf] %vm402, 0
      %410 = vst.msk [vmem:[%s407 + $0x8] sm:$0x1] %vm405, 0
      %vm411 = vcmask 516096
      %vm412 = vmand %vm411, %vm290
      %v413 = vld [vmem:[#allocation3] sm:$0x1]
      %v414 = vsel %vm412, 0, %v413
      %415 = vst [vmem:[#allocation3] sm:$0x1] %v414
      %v416 = vld [vmem:[#allocation3 + $0xc] sm:$0x1]
      %v417 = vsel %vm412, 0, %v416
      %418 = vst [vmem:[#allocation3 + $0xc] sm:$0x1] %v417
      %v419 = vld [vmem:[#allocation3 + $0x18] sm:$0x1]
      %v420 = vsel %vm412, 0, %v419
      %421 = vst [vmem:[#allocation3 + $0x18] sm:$0x1] %v420
      %v422 = vld [vmem:[#allocation3 + $0x24] sm:$0x1]
      %v423 = vsel %vm412, 0, %v422
      %424 = vst [vmem:[#allocation3 + $0x24] sm:$0x1] %v423
      %v425 = vld [vmem:[#allocation3 + $0x30] sm:$0x1]
      %v426 = vsel %vm412, 0, %v425
      %427 = vst [vmem:[#allocation3 + $0x30] sm:$0x1] %v426
      %v428 = vld [vmem:[#allocation3 + $0x3c] sm:$0x1]
      %v429 = vsel %vm412, 0, %v428
      %430 = vst [vmem:[#allocation3 + $0x3c] sm:$0x1] %v429
      %v431 = vld [vmem:[#allocation3 + $0x48] sm:$0x1]
      %v432 = vsel %vm412, 0, %v431
      %433 = vst [vmem:[#allocation3 + $0x48] sm:$0x1] %v432
      %v434 = vld [vmem:[#allocation3 + $0x54] sm:$0x1]
      %v435 = vsel %vm412, 0, %v434
      %436 = vst [vmem:[#allocation3 + $0x54] sm:$0x1] %v435
      %v437 = vld [vmem:[#allocation3 + $0x60] sm:$0x1]
      %v438 = vsel %vm412, 0, %v437
      %439 = vst [vmem:[#allocation3 + $0x60] sm:$0x1] %v438
      %v440 = vld [vmem:[#allocation3 + $0x6c] sm:$0x1]
      %v441 = vsel %vm412, 0, %v440
      %442 = vst [vmem:[#allocation3 + $0x6c] sm:$0x1] %v441
      %v443 = vld [vmem:[#allocation3 + $0x78] sm:$0x1]
      %v444 = vsel %vm412, 0, %v443
      %445 = vst [vmem:[#allocation3 + $0x78] sm:$0x1] %v444
      %v446 = vld [vmem:[#allocation3 + $0x84] sm:$0x1]
      %v447 = vsel %vm412, 0, %v446
      %448 = vst [vmem:[#allocation3 + $0x84] sm:$0x1] %v447
      %v449 = vld [vmem:[#allocation3 + $0x90] sm:$0x1]
      %v450 = vsel %vm412, 0, %v449
      %451 = vst [vmem:[#allocation3 + $0x90] sm:$0x1] %v450
      %v452 = vld [vmem:[#allocation3 + $0x9c] sm:$0x1]
      %v453 = vsel %vm412, 0, %v452
      %454 = vst [vmem:[#allocation3 + $0x9c] sm:$0x1] %v453
      %v455 = vld [vmem:[#allocation3 + $0xa8] sm:$0x1]
      %v456 = vsel %vm412, 0, %v455
      %457 = vst [vmem:[#allocation3 + $0xa8] sm:$0x1] %v456
      %v458 = vld [vmem:[#allocation3 + $0xb4] sm:$0x1]
      %v459 = vsel %vm412, 0, %v458
      %460 = vst [vmem:[#allocation3 + $0xb4] sm:$0x1] %v459
      %v461 = vld [vmem:[#allocation3 + $0xc0] sm:$0x1]
      %v462 = vsel %vm412, 0, %v461
      %463 = vst [vmem:[#allocation3 + $0xc0] sm:$0x1] %v462
      %v464 = vld [vmem:[#allocation3 + $0xcc] sm:$0x1]
      %v465 = vsel %vm412, 0, %v464
      %466 = vst [vmem:[#allocation3 + $0xcc] sm:$0x1] %v465
      %vm467 = vmand %vm411, %vm346
      %v468 = vld [vmem:[#allocation3 + $0x8] sm:$0x1]
      %v469 = vsel %vm467, 0, %v468
      %470 = vst [vmem:[#allocation3 + $0x8] sm:$0x1] %v469
      %v471 = vld [vmem:[#allocation3 + $0x14] sm:$0x1]
      %v472 = vsel %vm467, 0, %v471
      %473 = vst [vmem:[#allocation3 + $0x14] sm:$0x1] %v472
      %v474 = vld [vmem:[#allocation3 + $0x20] sm:$0x1]
      %v475 = vsel %vm467, 0, %v474
      %476 = vst [vmem:[#allocation3 + $0x20] sm:$0x1] %v475
      %v477 = vld [vmem:[#allocation3 + $0x2c] sm:$0x1]
      %v478 = vsel %vm467, 0, %v477
      %479 = vst [vmem:[#allocation3 + $0x2c] sm:$0x1] %v478
      %v480 = vld [vmem:[#allocation3 + $0x38] sm:$0x1]
      %v481 = vsel %vm467, 0, %v480
      %482 = vst [vmem:[#allocation3 + $0x38] sm:$0x1] %v481
      %v483 = vld [vmem:[#allocation3 + $0x44] sm:$0x1]
      %v484 = vsel %vm467, 0, %v483
      %485 = vst [vmem:[#allocation3 + $0x44] sm:$0x1] %v484
      %v486 = vld [vmem:[#allocation3 + $0x50] sm:$0x1]
      %v487 = vsel %vm467, 0, %v486
      %488 = vst [vmem:[#allocation3 + $0x50] sm:$0x1] %v487
      %v489 = vld [vmem:[#allocation3 + $0x5c] sm:$0x1]
      %v490 = vsel %vm467, 0, %v489
      %491 = vst [vmem:[#allocation3 + $0x5c] sm:$0x1] %v490
      %v492 = vld [vmem:[#allocation3 + $0x68] sm:$0x1]
      %v493 = vsel %vm467, 0, %v492
      %494 = vst [vmem:[#allocation3 + $0x68] sm:$0x1] %v493
      %v495 = vld [vmem:[#allocation3 + $0x74] sm:$0x1]
      %v496 = vsel %vm467, 0, %v495
      %497 = vst [vmem:[#allocation3 + $0x74] sm:$0x1] %v496
      %v498 = vld [vmem:[#allocation3 + $0x80] sm:$0x1]
      %v499 = vsel %vm467, 0, %v498
      %500 = vst [vmem:[#allocation3 + $0x80] sm:$0x1] %v499
      %v501 = vld [vmem:[#allocation3 + $0x8c] sm:$0x1]
      %v502 = vsel %vm467, 0, %v501
      %503 = vst [vmem:[#allocation3 + $0x8c] sm:$0x1] %v502
      %v504 = vld [vmem:[#allocation3 + $0x98] sm:$0x1]
      %v505 = vsel %vm467, 0, %v504
      %506 = vst [vmem:[#allocation3 + $0x98] sm:$0x1] %v505
      %v507 = vld [vmem:[#allocation3 + $0xa4] sm:$0x1]
      %v508 = vsel %vm467, 0, %v507
      %509 = vst [vmem:[#allocation3 + $0xa4] sm:$0x1] %v508
      %v510 = vld [vmem:[#allocation3 + $0xb0] sm:$0x1]
      %v511 = vsel %vm467, 0, %v510
      %512 = vst [vmem:[#allocation3 + $0xb0] sm:$0x1] %v511
      %v513 = vld [vmem:[#allocation3 + $0xbc] sm:$0x1]
      %v514 = vsel %vm467, 0, %v513
      %515 = vst [vmem:[#allocation3 + $0xbc] sm:$0x1] %v514
      %v516 = vld [vmem:[#allocation3 + $0xc8] sm:$0x1]
      %v517 = vsel %vm467, 0, %v516
      %518 = vst [vmem:[#allocation3 + $0xc8] sm:$0x1] %v517
      %v519 = vld [vmem:[#allocation3 + $0xd4] sm:$0x1]
      %v520 = vsel %vm467, 0, %v519
      %521 = vst [vmem:[#allocation3 + $0xd4] sm:$0x1] %v520
      %522 = vst.msk [vmem:[#allocation4] sm:$0xf] %vm402, 0
      %523 = vst.msk [vmem:[#allocation4 + $0x4] sm:$0xf] %vm402, 0
      %524 = vst.msk [vmem:[#allocation4 + $0x8] sm:$0x1] %vm405, 0
      %s525 = scalar_lea.vmem [#allocation4], 204
      %526 = vst.msk [vmem:[%s525] sm:$0xf] %vm402, 0
      %527 = vst.msk [vmem:[%s525 + $0x4] sm:$0xf] %vm402, 0
      %528 = vst.msk [vmem:[%s525 + $0x8] sm:$0x1] %vm405, 0
      %v529 = vld [vmem:[#allocation4] sm:$0x1]
      %v530 = vsel %vm412, 0, %v529
      %531 = vst [vmem:[#allocation4] sm:$0x1] %v530
      %v532 = vld [vmem:[#allocation4 + $0xc] sm:$0x1]
      %v533 = vsel %vm412, 0, %v532
      %534 = vst [vmem:[#allocation4 + $0xc] sm:$0x1] %v533
      %v535 = vld [vmem:[#allocation4 + $0x18] sm:$0x1]
      %v536 = vsel %vm412, 0, %v535
      %537 = vst [vmem:[#allocation4 + $0x18] sm:$0x1] %v536
      %v538 = vld [vmem:[#allocation4 + $0x24] sm:$0x1]
      %v539 = vsel %vm412, 0, %v538
      %540 = vst [vmem:[#allocation4 + $0x24] sm:$0x1] %v539
      %v541 = vld [vmem:[#allocation4 + $0x30] sm:$0x1]
      %v542 = vsel %vm412, 0, %v541
      %543 = vst [vmem:[#allocation4 + $0x30] sm:$0x1] %v542
      %v544 = vld [vmem:[#allocation4 + $0x3c] sm:$0x1]
      %v545 = vsel %vm412, 0, %v544
      %546 = vst [vmem:[#allocation4 + $0x3c] sm:$0x1] %v545
      %v547 = vld [vmem:[#allocation4 + $0x48] sm:$0x1]
      %v548 = vsel %vm412, 0, %v547
      %549 = vst [vmem:[#allocation4 + $0x48] sm:$0x1] %v548
      %v550 = vld [vmem:[#allocation4 + $0x54] sm:$0x1]
      %v551 = vsel %vm412, 0, %v550
      %552 = vst [vmem:[#allocation4 + $0x54] sm:$0x1] %v551
      %v553 = vld [vmem:[#allocation4 + $0x60] sm:$0x1]
      %v554 = vsel %vm412, 0, %v553
      %555 = vst [vmem:[#allocation4 + $0x60] sm:$0x1] %v554
      %v556 = vld [vmem:[#allocation4 + $0x6c] sm:$0x1]
      %v557 = vsel %vm412, 0, %v556
      %558 = vst [vmem:[#allocation4 + $0x6c] sm:$0x1] %v557
      %v559 = vld [vmem:[#allocation4 + $0x78] sm:$0x1]
      %v560 = vsel %vm412, 0, %v559
      %561 = vst [vmem:[#allocation4 + $0x78] sm:$0x1] %v560
      %v562 = vld [vmem:[#allocation4 + $0x84] sm:$0x1]
      %v563 = vsel %vm412, 0, %v562
      %564 = vst [vmem:[#allocation4 + $0x84] sm:$0x1] %v563
      %v565 = vld [vmem:[#allocation4 + $0x90] sm:$0x1]
      %v566 = vsel %vm412, 0, %v565
      %567 = vst [vmem:[#allocation4 + $0x90] sm:$0x1] %v566
      %v568 = vld [vmem:[#allocation4 + $0x9c] sm:$0x1]
      %v569 = vsel %vm412, 0, %v568
      %570 = vst [vmem:[#allocation4 + $0x9c] sm:$0x1] %v569
      %v571 = vld [vmem:[#allocation4 + $0xa8] sm:$0x1]
      %v572 = vsel %vm412, 0, %v571
      %573 = vst [vmem:[#allocation4 + $0xa8] sm:$0x1] %v572
      %v574 = vld [vmem:[#allocation4 + $0xb4] sm:$0x1]
      %v575 = vsel %vm412, 0, %v574
      %576 = vst [vmem:[#allocation4 + $0xb4] sm:$0x1] %v575
      %v577 = vld [vmem:[#allocation4 + $0xc0] sm:$0x1]
      %v578 = vsel %vm412, 0, %v577
      %579 = vst [vmem:[#allocation4 + $0xc0] sm:$0x1] %v578
      %v580 = vld [vmem:[#allocation4 + $0xcc] sm:$0x1]
      %v581 = vsel %vm412, 0, %v580
      %582 = vst [vmem:[#allocation4 + $0xcc] sm:$0x1] %v581
      %v583 = vld [vmem:[#allocation4 + $0x8] sm:$0x1]
      %v584 = vsel %vm467, 0, %v583
      %585 = vst [vmem:[#allocation4 + $0x8] sm:$0x1] %v584
      %v586 = vld [vmem:[#allocation4 + $0x14] sm:$0x1]
      %v587 = vsel %vm467, 0, %v586
      %588 = vst [vmem:[#allocation4 + $0x14] sm:$0x1] %v587
      %v589 = vld [vmem:[#allocation4 + $0x20] sm:$0x1]
      %v590 = vsel %vm467, 0, %v589
      %591 = vst [vmem:[#allocation4 + $0x20] sm:$0x1] %v590
      %v592 = vld [vmem:[#allocation4 + $0x2c] sm:$0x1]
      %v593 = vsel %vm467, 0, %v592
      %594 = vst [vmem:[#allocation4 + $0x2c] sm:$0x1] %v593
      %v595 = vld [vmem:[#allocation4 + $0x38] sm:$0x1]
      %v596 = vsel %vm467, 0, %v595
      %597 = vst [vmem:[#allocation4 + $0x38] sm:$0x1] %v596
      %v598 = vld [vmem:[#allocation4 + $0x44] sm:$0x1]
      %v599 = vsel %vm467, 0, %v598
      %600 = vst [vmem:[#allocation4 + $0x44] sm:$0x1] %v599
      %v601 = vld [vmem:[#allocation4 + $0x50] sm:$0x1]
      %v602 = vsel %vm467, 0, %v601
      %603 = vst [vmem:[#allocation4 + $0x50] sm:$0x1] %v602
      %v604 = vld [vmem:[#allocation4 + $0x5c] sm:$0x1]
      %v605 = vsel %vm467, 0, %v604
      %606 = vst [vmem:[#allocation4 + $0x5c] sm:$0x1] %v605
      %v607 = vld [vmem:[#allocation4 + $0x68] sm:$0x1]
      %v608 = vsel %vm467, 0, %v607
      %609 = vst [vmem:[#allocation4 + $0x68] sm:$0x1] %v608
      %v610 = vld [vmem:[#allocation4 + $0x74] sm:$0x1]
      %v611 = vsel %vm467, 0, %v610
      %612 = vst [vmem:[#allocation4 + $0x74] sm:$0x1] %v611
      %v613 = vld [vmem:[#allocation4 + $0x80] sm:$0x1]
      %v614 = vsel %vm467, 0, %v613
      %615 = vst [vmem:[#allocation4 + $0x80] sm:$0x1] %v614
      %v616 = vld [vmem:[#allocation4 + $0x8c] sm:$0x1]
      %v617 = vsel %vm467, 0, %v616
      %618 = vst [vmem:[#allocation4 + $0x8c] sm:$0x1] %v617
      %v619 = vld [vmem:[#allocation4 + $0x98] sm:$0x1]
      %v620 = vsel %vm467, 0, %v619
      %621 = vst [vmem:[#allocation4 + $0x98] sm:$0x1] %v620
      %v622 = vld [vmem:[#allocation4 + $0xa4] sm:$0x1]
      %v623 = vsel %vm467, 0, %v622
      %624 = vst [vmem:[#allocation4 + $0xa4] sm:$0x1] %v623
      %v625 = vld [vmem:[#allocation4 + $0xb0] sm:$0x1]
      %v626 = vsel %vm467, 0, %v625
      %627 = vst [vmem:[#allocation4 + $0xb0] sm:$0x1] %v626
      %v628 = vld [vmem:[#allocation4 + $0xbc] sm:$0x1]
      %v629 = vsel %vm467, 0, %v628
      %630 = vst [vmem:[#allocation4 + $0xbc] sm:$0x1] %v629
      %v631 = vld [vmem:[#allocation4 + $0xc8] sm:$0x1]
      %v632 = vsel %vm467, 0, %v631
      %633 = vst [vmem:[#allocation4 + $0xc8] sm:$0x1] %v632
      %v634 = vld [vmem:[#allocation4 + $0xd4] sm:$0x1]
      %v635 = vsel %vm467, 0, %v634
      %636 = vst [vmem:[#allocation4 + $0xd4] sm:$0x1] %v635
      %v637 = vld [vmem:[%s273] sm:$0xf]
      %v638 = vld [vmem:[%s273 + $0x4] sm:$0xf]
      %v639 = vld [vmem:[%s273 + $0x8] sm:$0xf]
      %v640 = vld [vmem:[%s273 + $0xc] sm:$0xf]
      %v641 = vld [vmem:[%s273 + $0x10] sm:$0xf]
      %v642 = vld [vmem:[%s273 + $0x14] sm:$0xf]
      %v643 = vld [vmem:[%s273 + $0x18] sm:$0xf]
      %v644 = vld [vmem:[%s273 + $0x1c] sm:$0xf]
      %v645 = vld [vmem:[%s273 + $0x20] sm:$0xf]
      %v646 = vld [vmem:[%s273 + $0x24] sm:$0xf]
      %v647 = vld [vmem:[%s273 + $0x28] sm:$0xf]
      %v648 = vld [vmem:[%s273 + $0x2c] sm:$0xf]
      %v649 = vld [vmem:[%s273 + $0x30] sm:$0xf]
      %v650 = vld [vmem:[%s273 + $0x34] sm:$0xf]
      %v651 = vld [vmem:[%s273 + $0x38] sm:$0xf]
      %v652 = vld [vmem:[%s273 + $0x3c] sm:$0xf]
      %v653 = vld [vmem:[%s273 + $0x40] sm:$0xf]
      %v654 = vld [vmem:[%s273 + $0x44] sm:$0xf]
      %v655 = vld [vmem:[%s273 + $0x48] sm:$0xf]
      %v656 = vld [vmem:[%s273 + $0x4c] sm:$0xf]
      %v657 = vld [vmem:[%s273 + $0x50] sm:$0xf]
      %v658 = vld [vmem:[%s273 + $0x54] sm:$0xf]
      %v659 = vld [vmem:[%s273 + $0x58] sm:$0xf]
      %v660 = vld [vmem:[%s273 + $0x5c] sm:$0xf]
      %v661 = vld [vmem:[%s273 + $0x60] sm:$0xf]
      %v662 = vld [vmem:[%s273 + $0x64] sm:$0xf]
      %v663 = vld [vmem:[%s273 + $0x68] sm:$0xf]
      %v664 = vld [vmem:[%s273 + $0x6c] sm:$0xf]
      %v665 = vld [vmem:[%s273 + $0x70] sm:$0xf]
      %v666 = vld [vmem:[%s273 + $0x74] sm:$0xf]
      %v667 = vld [vmem:[%s273 + $0x78] sm:$0xf]
      %v668 = vld [vmem:[%s273 + $0x7c] sm:$0xf]
      %vm669 = vsmask.f32 4368
      %vm670 = vmor %vm290, %vm669
      %v672 = vshrl.u32 %v637, 16
      %v674 = vrot.slane %v672, 7
      %v675 = vshll.u32 %v637, 16
      %v677 = vor.u32 %v674, %v675
      %v678 = vrot.slane %v674, 4
      %v680 = vshrl.u32 %v638, 16
      %v682 = vrot.slane %v680, 7
      %v683 = vshll.u32 %v638, 16
      %v685 = vor.u32 %v682, %v683
      %v686 = vsel %vm670, %v678, %v685
      %v687 = vrot.slane %v682, 4
      %v689 = vshrl.u32 %v639, 16
      %v691 = vrot.slane %v689, 7
      %v692 = vshll.u32 %v639, 16
      %v694 = vor.u32 %v691, %v692
      %v695 = vrot.slane %v691, 4
      %v697 = vshrl.u32 %v640, 16
      %v699 = vrot.slane %v697, 7
      %v700 = vshll.u32 %v640, 16
      %v702 = vor.u32 %v699, %v700
      %v703 = vsel %vm670, %v695, %v702
      %v704 = vrot.slane %v699, 4
      %v706 = vshrl.u32 %v641, 16
      %v708 = vrot.slane %v706, 7
      %v709 = vshll.u32 %v641, 16
      %v711 = vor.u32 %v708, %v709
      %v712 = vrot.slane %v708, 4
      %v714 = vshrl.u32 %v642, 16
      %v716 = vrot.slane %v714, 7
      %v717 = vshll.u32 %v642, 16
      %v719 = vor.u32 %v716, %v717
      %v720 = vsel %vm670, %v712, %v719
      %v721 = vrot.slane %v716, 4
      %v723 = vshrl.u32 %v643, 16
      %v725 = vrot.slane %v723, 7
      %v726 = vshll.u32 %v643, 16
      %v728 = vor.u32 %v725, %v726
      %v729 = vrot.slane %v725, 4
      %v731 = vshrl.u32 %v644, 16
      %v733 = vrot.slane %v731, 7
      %v734 = vshll.u32 %v644, 16
      %v736 = vor.u32 %v733, %v734
      %v737 = vsel %vm670, %v729, %v736
      %v738 = vrot.slane %v733, 4
      %v740 = vshrl.u32 %v645, 16
      %v742 = vrot.slane %v740, 7
      %v743 = vshll.u32 %v645, 16
      %v745 = vor.u32 %v742, %v743
      %v746 = vrot.slane %v742, 4
      %v748 = vshrl.u32 %v646, 16
      %v750 = vrot.slane %v748, 7
      %v751 = vshll.u32 %v646, 16
      %v753 = vor.u32 %v750, %v751
      %v754 = vsel %vm670, %v746, %v753
      %v755 = vrot.slane %v750, 4
      %v757 = vshrl.u32 %v647, 16
      %v759 = vrot.slane %v757, 7
      %v760 = vshll.u32 %v647, 16
      %v762 = vor.u32 %v759, %v760
      %v763 = vrot.slane %v759, 4
      %v765 = vshrl.u32 %v648, 16
      %v767 = vrot.slane %v765, 7
      %v768 = vshll.u32 %v648, 16
      %v770 = vor.u32 %v767, %v768
      %v771 = vsel %vm670, %v763, %v770
      %v772 = vrot.slane %v767, 4
      %v774 = vshrl.u32 %v649, 16
      %v776 = vrot.slane %v774, 7
      %v777 = vshll.u32 %v649, 16
      %v779 = vor.u32 %v776, %v777
      %v780 = vrot.slane %v776, 4
      %v782 = vshrl.u32 %v650, 16
      %v784 = vrot.slane %v782, 7
      %v785 = vshll.u32 %v650, 16
      %v787 = vor.u32 %v784, %v785
      %v788 = vsel %vm670, %v780, %v787
      %v789 = vrot.slane %v784, 4
      %v791 = vshrl.u32 %v651, 16
      %v793 = vrot.slane %v791, 7
      %v794 = vshll.u32 %v651, 16
      %v796 = vor.u32 %v793, %v794
      %v797 = vrot.slane %v793, 4
      %v799 = vshrl.u32 %v652, 16
      %v801 = vrot.slane %v799, 7
      %v802 = vshll.u32 %v652, 16
      %v804 = vor.u32 %v801, %v802
      %v805 = vsel %vm670, %v797, %v804
      %v806 = vrot.slane %v801, 4
      %v808 = vshrl.u32 %v653, 16
      %v810 = vrot.slane %v808, 7
      %v811 = vshll.u32 %v653, 16
      %v813 = vor.u32 %v810, %v811
      %v814 = vrot.slane %v810, 4
      %v816 = vshrl.u32 %v654, 16
      %v818 = vrot.slane %v816, 7
      %v819 = vshll.u32 %v654, 16
      %v821 = vor.u32 %v818, %v819
      %v822 = vsel %vm670, %v814, %v821
      %v823 = vrot.slane %v818, 4
      %v825 = vshrl.u32 %v655, 16
      %v827 = vrot.slane %v825, 7
      %v828 = vshll.u32 %v655, 16
      %v830 = vor.u32 %v827, %v828
      %v831 = vrot.slane %v827, 4
      %v833 = vshrl.u32 %v656, 16
      %v835 = vrot.slane %v833, 7
      %v836 = vshll.u32 %v656, 16
      %v838 = vor.u32 %v835, %v836
      %v839 = vsel %vm670, %v831, %v838
      %v840 = vrot.slane %v835, 4
      %v842 = vshrl.u32 %v657, 16
      %v844 = vrot.slane %v842, 7
      %v845 = vshll.u32 %v657, 16
      %v847 = vor.u32 %v844, %v845
      %v848 = vrot.slane %v844, 4
      %v850 = vshrl.u32 %v658, 16
      %v852 = vrot.slane %v850, 7
      %v853 = vshll.u32 %v658, 16
      %v855 = vor.u32 %v852, %v853
      %v856 = vsel %vm670, %v848, %v855
      %v857 = vrot.slane %v852, 4
      %v859 = vshrl.u32 %v659, 16
      %v861 = vrot.slane %v859, 7
      %v862 = vshll.u32 %v659, 16
      %v864 = vor.u32 %v861, %v862
      %v865 = vrot.slane %v861, 4
      %v867 = vshrl.u32 %v660, 16
      %v869 = vrot.slane %v867, 7
      %v870 = vshll.u32 %v660, 16
      %v872 = vor.u32 %v869, %v870
      %v873 = vsel %vm670, %v865, %v872
      %v874 = vrot.slane %v869, 4
      %v876 = vshrl.u32 %v661, 16
      %v878 = vrot.slane %v876, 7
      %v879 = vshll.u32 %v661, 16
      %v881 = vor.u32 %v878, %v879
      %v882 = vrot.slane %v878, 4
      %v884 = vshrl.u32 %v662, 16
      %v886 = vrot.slane %v884, 7
      %v887 = vshll.u32 %v662, 16
      %v889 = vor.u32 %v886, %v887
      %v890 = vsel %vm670, %v882, %v889
      %v891 = vrot.slane %v886, 4
      %v893 = vshrl.u32 %v663, 16
      %v895 = vrot.slane %v893, 7
      %v896 = vshll.u32 %v663, 16
      %v898 = vor.u32 %v895, %v896
      %v899 = vrot.slane %v895, 4
      %v901 = vshrl.u32 %v664, 16
      %v903 = vrot.slane %v901, 7
      %v904 = vshll.u32 %v664, 16
      %v906 = vor.u32 %v903, %v904
      %v907 = vsel %vm670, %v899, %v906
      %v908 = vrot.slane %v903, 4
      %v910 = vshrl.u32 %v665, 16
      %v912 = vrot.slane %v910, 7
      %v913 = vshll.u32 %v665, 16
      %v915 = vor.u32 %v912, %v913
      %v916 = vrot.slane %v912, 4
      %v918 = vshrl.u32 %v666, 16
      %v920 = vrot.slane %v918, 7
      %v921 = vshll.u32 %v666, 16
      %v923 = vor.u32 %v920, %v921
      %v924 = vsel %vm670, %v916, %v923
      %v925 = vrot.slane %v920, 4
      %v927 = vshrl.u32 %v667, 16
      %v929 = vrot.slane %v927, 7
      %v930 = vshll.u32 %v667, 16
      %v932 = vor.u32 %v929, %v930
      %v933 = vrot.slane %v929, 4
      %v935 = vshrl.u32 %v668, 16
      %v937 = vrot.slane %v935, 7
      %v938 = vshll.u32 %v668, 16
      %v940 = vor.u32 %v937, %v938
      %v941 = vsel %vm670, %v933, %v940
      %v942 = vrot.slane %v937, 4
      %s991 = scalar_lea.vmem [#allocation2], 12
      %vm992 = vcmask 27648
      %vm993 = vmand %vm992, %vm346
      %v994 = vld [vmem:[%s991] sm:$0xf]
      %v995 = vsel %vm993, %v677, %v994
      %996 = vst [vmem:[%s991] sm:$0xf] %v995
      %997 = vst.msk [vmem:[%s991 + $0x4] sm:$0xf] %vm280, %v686
      %v998 = vld [vmem:[%s991 + $0x8] sm:$0x1]
      %v999 = vsel %vm291, %v687, %v998
      %1000 = vst [vmem:[%s991 + $0x8] sm:$0x1] %v999
      %v1001 = vld [vmem:[%s991 + $0xc] sm:$0xf]
      %v1002 = vsel %vm993, %v694, %v1001
      %1003 = vst [vmem:[%s991 + $0xc] sm:$0xf] %v1002
      %1004 = vst.msk [vmem:[%s991 + $0x10] sm:$0xf] %vm280, %v703
      %v1005 = vld [vmem:[%s991 + $0x14] sm:$0x1]
      %v1006 = vsel %vm291, %v704, %v1005
      %1007 = vst [vmem:[%s991 + $0x14] sm:$0x1] %v1006
      %v1008 = vld [vmem:[%s991 + $0x18] sm:$0xf]
      %v1009 = vsel %vm993, %v711, %v1008
      %1010 = vst [vmem:[%s991 + $0x18] sm:$0xf] %v1009
      %1011 = vst.msk [vmem:[%s991 + $0x1c] sm:$0xf] %vm280, %v720
      %v1012 = vld [vmem:[%s991 + $0x20] sm:$0x1]
      %v1013 = vsel %vm291, %v721, %v1012
      %1014 = vst [vmem:[%s991 + $0x20] sm:$0x1] %v1013
      %v1015 = vld [vmem:[%s991 + $0x24] sm:$0xf]
      %v1016 = vsel %vm993, %v728, %v1015
      %1017 = vst [vmem:[%s991 + $0x24] sm:$0xf] %v1016
      %1018 = vst.msk [vmem:[%s991 + $0x28] sm:$0xf] %vm280, %v737
      %v1019 = vld [vmem:[%s991 + $0x2c] sm:$0x1]
      %v1020 = vsel %vm291, %v738, %v1019
      %1021 = vst [vmem:[%s991 + $0x2c] sm:$0x1] %v1020
      %v1022 = vld [vmem:[%s991 + $0x30] sm:$0xf]
      %v1023 = vsel %vm993, %v745, %v1022
      %1024 = vst [vmem:[%s991 + $0x30] sm:$0xf] %v1023
      %1025 = vst.msk [vmem:[%s991 + $0x34] sm:$0xf] %vm280, %v754
      %v1026 = vld [vmem:[%s991 + $0x38] sm:$0x1]
      %v1027 = vsel %vm291, %v755, %v1026
      %1028 = vst [vmem:[%s991 + $0x38] sm:$0x1] %v1027
      %v1029 = vld [vmem:[%s991 + $0x3c] sm:$0xf]
      %v1030 = vsel %vm993, %v762, %v1029
      %1031 = vst [vmem:[%s991 + $0x3c] sm:$0xf] %v1030
      %1032 = vst.msk [vmem:[%s991 + $0x40] sm:$0xf] %vm280, %v771
      %v1033 = vld [vmem:[%s991 + $0x44] sm:$0x1]
      %v1034 = vsel %vm291, %v772, %v1033
      %1035 = vst [vmem:[%s991 + $0x44] sm:$0x1] %v1034
      %v1036 = vld [vmem:[%s991 + $0x48] sm:$0xf]
      %v1037 = vsel %vm993, %v779, %v1036
      %1038 = vst [vmem:[%s991 + $0x48] sm:$0xf] %v1037
      %1039 = vst.msk [vmem:[%s991 + $0x4c] sm:$0xf] %vm280, %v788
      %v1040 = vld [vmem:[%s991 + $0x50] sm:$0x1]
      %v1041 = vsel %vm291, %v789, %v1040
      %1042 = vst [vmem:[%s991 + $0x50] sm:$0x1] %v1041
      %v1043 = vld [vmem:[%s991 + $0x54] sm:$0xf]
      %v1044 = vsel %vm993, %v796, %v1043
      %1045 = vst [vmem:[%s991 + $0x54] sm:$0xf] %v1044
      %1046 = vst.msk [vmem:[%s991 + $0x58] sm:$0xf] %vm280, %v805
      %v1047 = vld [vmem:[%s991 + $0x5c] sm:$0x1]
      %v1048 = vsel %vm291, %v806, %v1047
      %1049 = vst [vmem:[%s991 + $0x5c] sm:$0x1] %v1048
      %v1050 = vld [vmem:[%s991 + $0x60] sm:$0xf]
      %v1051 = vsel %vm993, %v813, %v1050
      %1052 = vst [vmem:[%s991 + $0x60] sm:$0xf] %v1051
      %1053 = vst.msk [vmem:[%s991 + $0x64] sm:$0xf] %vm280, %v822
      %v1054 = vld [vmem:[%s991 + $0x68] sm:$0x1]
      %v1055 = vsel %vm291, %v823, %v1054
      %1056 = vst [vmem:[%s991 + $0x68] sm:$0x1] %v1055
      %v1057 = vld [vmem:[%s991 + $0x6c] sm:$0xf]
      %v1058 = vsel %vm993, %v830, %v1057
      %1059 = vst [vmem:[%s991 + $0x6c] sm:$0xf] %v1058
      %1060 = vst.msk [vmem:[%s991 + $0x70] sm:$0xf] %vm280, %v839
      %v1061 = vld [vmem:[%s991 + $0x74] sm:$0x1]
      %v1062 = vsel %vm291, %v840, %v1061
      %1063 = vst [vmem:[%s991 + $0x74] sm:$0x1] %v1062
      %v1064 = vld [vmem:[%s991 + $0x78] sm:$0xf]
      %v1065 = vsel %vm993, %v847, %v1064
      %1066 = vst [vmem:[%s991 + $0x78] sm:$0xf] %v1065
      %1067 = vst.msk [vmem:[%s991 + $0x7c] sm:$0xf] %vm280, %v856
      %v1068 = vld [vmem:[%s991 + $0x80] sm:$0x1]
      %v1069 = vsel %vm291, %v857, %v1068
      %1070 = vst [vmem:[%s991 + $0x80] sm:$0x1] %v1069
      %v1071 = vld [vmem:[%s991 + $0x84] sm:$0xf]
      %v1072 = vsel %vm993, %v864, %v1071
      %1073 = vst [vmem:[%s991 + $0x84] sm:$0xf] %v1072
      %1074 = vst.msk [vmem:[%s991 + $0x88] sm:$0xf] %vm280, %v873
      %v1075 = vld [vmem:[%s991 + $0x8c] sm:$0x1]
      %v1076 = vsel %vm291, %v874, %v1075
      %1077 = vst [vmem:[%s991 + $0x8c] sm:$0x1] %v1076
      %v1078 = vld [vmem:[%s991 + $0x90] sm:$0xf]
      %v1079 = vsel %vm993, %v881, %v1078
      %1080 = vst [vmem:[%s991 + $0x90] sm:$0xf] %v1079
      %1081 = vst.msk [vmem:[%s991 + $0x94] sm:$0xf] %vm280, %v890
      %v1082 = vld [vmem:[%s991 + $0x98] sm:$0x1]
      %v1083 = vsel %vm291, %v891, %v1082
      %1084 = vst [vmem:[%s991 + $0x98] sm:$0x1] %v1083
      %v1085 = vld [vmem:[%s991 + $0x9c] sm:$0xf]
      %v1086 = vsel %vm993, %v898, %v1085
      %1087 = vst [vmem:[%s991 + $0x9c] sm:$0xf] %v1086
      %1088 = vst.msk [vmem:[%s991 + $0xa0] sm:$0xf] %vm280, %v907
      %v1089 = vld [vmem:[%s991 + $0xa4] sm:$0x1]
      %v1090 = vsel %vm291, %v908, %v1089
      %1091 = vst [vmem:[%s991 + $0xa4] sm:$0x1] %v1090
      %v1092 = vld [vmem:[%s991 + $0xa8] sm:$0xf]
      %v1093 = vsel %vm993, %v915, %v1092
      %1094 = vst [vmem:[%s991 + $0xa8] sm:$0xf] %v1093
      %1095 = vst.msk [vmem:[%s991 + $0xac] sm:$0xf] %vm280, %v924
      %v1096 = vld [vmem:[%s991 + $0xb0] sm:$0x1]
      %v1097 = vsel %vm291, %v925, %v1096
      %1098 = vst [vmem:[%s991 + $0xb0] sm:$0x1] %v1097
      %v1099 = vld [vmem:[%s991 + $0xb4] sm:$0xf]
      %v1100 = vsel %vm993, %v932, %v1099
      %1101 = vst [vmem:[%s991 + $0xb4] sm:$0xf] %v1100
      %1102 = vst.msk [vmem:[%s991 + $0xb8] sm:$0xf] %vm280, %v941
      %v1103 = vld [vmem:[%s991 + $0xbc] sm:$0x1]
      %v1104 = vsel %vm291, %v942, %v1103
      %1105 = vst [vmem:[%s991 + $0xbc] sm:$0x1] %v1104
      %v1106 = vld [vmem:[#allocation2] sm:$0xf]
      %v1107 = vld [vmem:[#allocation2 + $0x4] sm:$0xf]
      %v1108 = vld [vmem:[#allocation2 + $0x8] sm:$0x1]
      %v1109 = vld [vmem:[#allocation2 + $0xc] sm:$0xf]
      %v1110 = vld [vmem:[#allocation2 + $0x10] sm:$0xf]
      %v1111 = vld [vmem:[#allocation2 + $0x14] sm:$0x1]
      %v1112 = vld [vmem:[#allocation2 + $0x18] sm:$0xf]
      %v1113 = vld [vmem:[#allocation2 + $0x1c] sm:$0xf]
      %v1114 = vld [vmem:[#allocation2 + $0x20] sm:$0x1]
      %v1115 = vld [vmem:[#allocation2 + $0x24] sm:$0xf]
      %v1116 = vld [vmem:[#allocation2 + $0x28] sm:$0xf]
      %v1117 = vld [vmem:[#allocation2 + $0x2c] sm:$0x1]
      %v1118 = vld [vmem:[#allocation2 + $0x30] sm:$0xf]
      %v1119 = vld [vmem:[#allocation2 + $0x34] sm:$0xf]
      %v1120 = vld [vmem:[#allocation2 + $0x38] sm:$0x1]
      %v1121 = vld [vmem:[#allocation2 + $0x3c] sm:$0xf]
      %v1122 = vld [vmem:[#allocation2 + $0x40] sm:$0xf]
      %v1123 = vld [vmem:[#allocation2 + $0x44] sm:$0x1]
      %v1124 = vld [vmem:[#allocation2 + $0x48] sm:$0xf]
      %v1125 = vld [vmem:[#allocation2 + $0x4c] sm:$0xf]
      %v1126 = vld [vmem:[#allocation2 + $0x50] sm:$0x1]
      %v1127 = vld [vmem:[#allocation2 + $0x54] sm:$0xf]
      %v1128 = vld [vmem:[#allocation2 + $0x58] sm:$0xf]
      %v1129 = vld [vmem:[#allocation2 + $0x5c] sm:$0x1]
      %v1130 = vld [vmem:[#allocation2 + $0x60] sm:$0xf]
      %v1131 = vld [vmem:[#allocation2 + $0x64] sm:$0xf]
      %v1132 = vld [vmem:[#allocation2 + $0x68] sm:$0x1]
      %v1133 = vld [vmem:[#allocation2 + $0x6c] sm:$0xf]
      %v1134 = vld [vmem:[#allocation2 + $0x70] sm:$0xf]
      %v1135 = vld [vmem:[#allocation2 + $0x74] sm:$0x1]
      %v1136 = vld [vmem:[#allocation2 + $0x78] sm:$0xf]
      %v1137 = vld [vmem:[#allocation2 + $0x7c] sm:$0xf]
      %v1138 = vld [vmem:[#allocation2 + $0x80] sm:$0x1]
      %v1139 = vld [vmem:[#allocation2 + $0x84] sm:$0xf]
      %v1140 = vld [vmem:[#allocation2 + $0x88] sm:$0xf]
      %v1141 = vld [vmem:[#allocation2 + $0x8c] sm:$0x1]
      %v1142 = vld [vmem:[#allocation2 + $0x90] sm:$0xf]
      %v1143 = vld [vmem:[#allocation2 + $0x94] sm:$0xf]
      %v1144 = vld [vmem:[#allocation2 + $0x98] sm:$0x1]
      %v1145 = vld [vmem:[#allocation2 + $0x9c] sm:$0xf]
      %v1146 = vld [vmem:[#allocation2 + $0xa0] sm:$0xf]
      %v1147 = vld [vmem:[#allocation2 + $0xa4] sm:$0x1]
      %v1148 = vld [vmem:[#allocation2 + $0xa8] sm:$0xf]
      %v1149 = vld [vmem:[#allocation2 + $0xac] sm:$0xf]
      %v1150 = vld [vmem:[#allocation2 + $0xb0] sm:$0x1]
      %v1151 = vld [vmem:[#allocation2 + $0xb4] sm:$0xf]
      %v1152 = vld [vmem:[#allocation2 + $0xb8] sm:$0xf]
      %v1153 = vld [vmem:[#allocation2 + $0xbc] sm:$0x1]
      %v1186 = vunpack.c.l.b16 %v1106
      %v1187 = vunpack.c.l.b16 %v1107
      %v1188 = vunpack.c.l.b16 %v1109
      %v1189 = vunpack.c.l.b16 %v1110
      %v1190 = vunpack.c.l.b16 %v1112
      %v1191 = vunpack.c.l.b16 %v1113
      %v1192 = vunpack.c.l.b16 %v1115
      %v1193 = vunpack.c.l.b16 %v1116
      %v1194 = vunpack.c.l.b16 %v1118
      %v1195 = vunpack.c.l.b16 %v1119
      %v1196 = vunpack.c.l.b16 %v1121
      %v1197 = vunpack.c.l.b16 %v1122
      %v1198 = vunpack.c.l.b16 %v1124
      %v1199 = vunpack.c.l.b16 %v1125
      %v1200 = vunpack.c.l.b16 %v1127
      %v1201 = vunpack.c.l.b16 %v1128
      %v1202 = vunpack.c.l.b16 %v1130
      %v1203 = vunpack.c.l.b16 %v1131
      %v1204 = vunpack.c.l.b16 %v1133
      %v1205 = vunpack.c.l.b16 %v1134
      %v1206 = vunpack.c.l.b16 %v1136
      %v1207 = vunpack.c.l.b16 %v1137
      %v1208 = vunpack.c.l.b16 %v1139
      %v1209 = vunpack.c.l.b16 %v1140
      %v1210 = vunpack.c.l.b16 %v1142
      %v1211 = vunpack.c.l.b16 %v1143
      %v1212 = vunpack.c.l.b16 %v1145
      %v1213 = vunpack.c.l.b16 %v1146
      %v1214 = vunpack.c.l.b16 %v1148
      %v1215 = vunpack.c.l.b16 %v1149
      %v1216 = vunpack.c.l.b16 %v1151
      %v1217 = vunpack.c.l.b16 %v1152
      %v1218 = vpack.c.b16 %v1187, %v1186
      %v1219 = vpack.c.b16 %v1189, %v1188
      %v1220 = vpack.c.b16 %v1191, %v1190
      %v1221 = vpack.c.b16 %v1193, %v1192
      %v1222 = vpack.c.b16 %v1195, %v1194
      %v1223 = vpack.c.b16 %v1197, %v1196
      %v1224 = vpack.c.b16 %v1199, %v1198
      %v1225 = vpack.c.b16 %v1201, %v1200
      %v1226 = vpack.c.b16 %v1203, %v1202
      %v1227 = vpack.c.b16 %v1205, %v1204
      %v1228 = vpack.c.b16 %v1207, %v1206
      %v1229 = vpack.c.b16 %v1209, %v1208
      %v1230 = vpack.c.b16 %v1211, %v1210
      %v1231 = vpack.c.b16 %v1213, %v1212
      %v1232 = vpack.c.b16 %v1215, %v1214
      %v1233 = vpack.c.b16 %v1217, %v1216
      %v1250 = vunpack.c.l.b16 %v1108
      %v1251 = vunpack.c.l.b16 %v1111
      %v1252 = vunpack.c.l.b16 %v1114
      %v1253 = vunpack.c.l.b16 %v1117
      %v1254 = vunpack.c.l.b16 %v1120
      %v1255 = vunpack.c.l.b16 %v1123
      %v1256 = vunpack.c.l.b16 %v1126
      %v1257 = vunpack.c.l.b16 %v1129
      %v1258 = vunpack.c.l.b16 %v1132
      %v1259 = vunpack.c.l.b16 %v1135
      %v1260 = vunpack.c.l.b16 %v1138
      %v1261 = vunpack.c.l.b16 %v1141
      %v1262 = vunpack.c.l.b16 %v1144
      %v1263 = vunpack.c.l.b16 %v1147
      %v1264 = vunpack.c.l.b16 %v1150
      %v1265 = vunpack.c.l.b16 %v1153
      %v1266 = vpack.c.b16 %v1250, %v1250
      %v1267 = vpack.c.b16 %v1251, %v1251
      %v1268 = vpack.c.b16 %v1252, %v1252
      %v1269 = vpack.c.b16 %v1253, %v1253
      %v1270 = vpack.c.b16 %v1254, %v1254
      %v1271 = vpack.c.b16 %v1255, %v1255
      %v1272 = vpack.c.b16 %v1256, %v1256
      %v1273 = vpack.c.b16 %v1257, %v1257
      %v1274 = vpack.c.b16 %v1258, %v1258
      %v1275 = vpack.c.b16 %v1259, %v1259
      %v1276 = vpack.c.b16 %v1260, %v1260
      %v1277 = vpack.c.b16 %v1261, %v1261
      %v1278 = vpack.c.b16 %v1262, %v1262
      %v1279 = vpack.c.b16 %v1263, %v1263
      %v1280 = vpack.c.b16 %v1264, %v1264
      %v1281 = vpack.c.b16 %v1265, %v1265
      %vm1282 = vsmask.f32 7424
      %v1284 = vshrl.u32 %v1218, 16
      %v1286 = vshll.u32 %v1218, 16
      %v1288 = vrot.slane %v1286, 1
      %v1289 = vor.u32 %v1284, %v1288
      %v1291 = vshll.u32 %v1266, 16
      %v1293 = vrot.slane %v1291, 1
      %v1294 = vsel %vm1282, %v1289, %v1293
      %v1296 = vshrl.u32 %v1219, 16
      %v1298 = vshll.u32 %v1219, 16
      %v1300 = vrot.slane %v1298, 1
      %v1301 = vor.u32 %v1296, %v1300
      %v1303 = vshll.u32 %v1267, 16
      %v1305 = vrot.slane %v1303, 1
      %v1306 = vsel %vm1282, %v1301, %v1305
      %v1308 = vshrl.u32 %v1220, 16
      %v1310 = vshll.u32 %v1220, 16
      %v1312 = vrot.slane %v1310, 1
      %v1313 = vor.u32 %v1308, %v1312
      %v1315 = vshll.u32 %v1268, 16
      %v1317 = vrot.slane %v1315, 1
      %v1318 = vsel %vm1282, %v1313, %v1317
      %v1320 = vshrl.u32 %v1221, 16
      %v1322 = vshll.u32 %v1221, 16
      %v1324 = vrot.slane %v1322, 1
      %v1325 = vor.u32 %v1320, %v1324
      %v1327 = vshll.u32 %v1269, 16
      %v1329 = vrot.slane %v1327, 1
      %v1330 = vsel %vm1282, %v1325, %v1329
      %v1332 = vshrl.u32 %v1222, 16
      %v1334 = vshll.u32 %v1222, 16
      %v1336 = vrot.slane %v1334, 1
      %v1337 = vor.u32 %v1332, %v1336
      %v1339 = vshll.u32 %v1270, 16
      %v1341 = vrot.slane %v1339, 1
      %v1342 = vsel %vm1282, %v1337, %v1341
      %v1344 = vshrl.u32 %v1223, 16
      %v1346 = vshll.u32 %v1223, 16
      %v1348 = vrot.slane %v1346, 1
      %v1349 = vor.u32 %v1344, %v1348
      %v1351 = vshll.u32 %v1271, 16
      %v1353 = vrot.slane %v1351, 1
      %v1354 = vsel %vm1282, %v1349, %v1353
      %v1356 = vshrl.u32 %v1224, 16
      %v1358 = vshll.u32 %v1224, 16
      %v1360 = vrot.slane %v1358, 1
      %v1361 = vor.u32 %v1356, %v1360
      %v1363 = vshll.u32 %v1272, 16
      %v1365 = vrot.slane %v1363, 1
      %v1366 = vsel %vm1282, %v1361, %v1365
      %v1368 = vshrl.u32 %v1225, 16
      %v1370 = vshll.u32 %v1225, 16
      %v1372 = vrot.slane %v1370, 1
      %v1373 = vor.u32 %v1368, %v1372
      %v1375 = vshll.u32 %v1273, 16
      %v1377 = vrot.slane %v1375, 1
      %v1378 = vsel %vm1282, %v1373, %v1377
      %v1380 = vshrl.u32 %v1226, 16
      %v1382 = vshll.u32 %v1226, 16
      %v1384 = vrot.slane %v1382, 1
      %v1385 = vor.u32 %v1380, %v1384
      %v1387 = vshll.u32 %v1274, 16
      %v1389 = vrot.slane %v1387, 1
      %v1390 = vsel %vm1282, %v1385, %v1389
      %v1392 = vshrl.u32 %v1227, 16
      %v1394 = vshll.u32 %v1227, 16
      %v1396 = vrot.slane %v1394, 1
      %v1397 = vor.u32 %v1392, %v1396
      %v1399 = vshll.u32 %v1275, 16
      %v1401 = vrot.slane %v1399, 1
      %v1402 = vsel %vm1282, %v1397, %v1401
      %v1404 = vshrl.u32 %v1228, 16
      %v1406 = vshll.u32 %v1228, 16
      %v1408 = vrot.slane %v1406, 1
      %v1409 = vor.u32 %v1404, %v1408
      %v1411 = vshll.u32 %v1276, 16
      %v1413 = vrot.slane %v1411, 1
      %v1414 = vsel %vm1282, %v1409, %v1413
      %v1416 = vshrl.u32 %v1229, 16
      %v1418 = vshll.u32 %v1229, 16
      %v1420 = vrot.slane %v1418, 1
      %v1421 = vor.u32 %v1416, %v1420
      %v1423 = vshll.u32 %v1277, 16
      %v1425 = vrot.slane %v1423, 1
      %v1426 = vsel %vm1282, %v1421, %v1425
      %v1428 = vshrl.u32 %v1230, 16
      %v1430 = vshll.u32 %v1230, 16
      %v1432 = vrot.slane %v1430, 1
      %v1433 = vor.u32 %v1428, %v1432
      %v1435 = vshll.u32 %v1278, 16
      %v1437 = vrot.slane %v1435, 1
      %v1438 = vsel %vm1282, %v1433, %v1437
      %v1440 = vshrl.u32 %v1231, 16
      %v1442 = vshll.u32 %v1231, 16
      %v1444 = vrot.slane %v1442, 1
      %v1445 = vor.u32 %v1440, %v1444
      %v1447 = vshll.u32 %v1279, 16
      %v1449 = vrot.slane %v1447, 1
      %v1450 = vsel %vm1282, %v1445, %v1449
      %v1452 = vshrl.u32 %v1232, 16
      %v1454 = vshll.u32 %v1232, 16
      %v1456 = vrot.slane %v1454, 1
      %v1457 = vor.u32 %v1452, %v1456
      %v1459 = vshll.u32 %v1280, 16
      %v1461 = vrot.slane %v1459, 1
      %v1462 = vsel %vm1282, %v1457, %v1461
      %v1464 = vshrl.u32 %v1233, 16
      %v1466 = vshll.u32 %v1233, 16
      %v1468 = vrot.slane %v1466, 1
      %v1469 = vor.u32 %v1464, %v1468
      %v1471 = vshll.u32 %v1281, 16
      %v1473 = vrot.slane %v1471, 1
      %v1474 = vsel %vm1282, %v1469, %v1473
      %1475 = vrot.lane.b32.xlu0 %v1294, 4
      %v1476 = vpop.permute.xlu0 %1475
      %1477 = vrot.lane.b32.xlu0 %v1306, 4
      %v1478 = vpop.permute.xlu0 %1477
      %1479 = vrot.lane.b32.xlu0 %v1318, 4
      %v1480 = vpop.permute.xlu0 %1479
      %1481 = vrot.lane.b32.xlu0 %v1330, 4
      %v1482 = vpop.permute.xlu0 %1481
      %1483 = vrot.lane.b32.xlu0 %v1342, 4
      %v1484 = vpop.permute.xlu0 %1483
      %1485 = vrot.lane.b32.xlu0 %v1354, 4
      %v1486 = vpop.permute.xlu0 %1485
      %1487 = vrot.lane.b32.xlu0 %v1366, 4
      %v1488 = vpop.permute.xlu0 %1487
      %1489 = vrot.lane.b32.xlu0 %v1378, 4
      %v1490 = vpop.permute.xlu0 %1489
      %1491 = vrot.lane.b32.xlu0 %v1390, 4
      %v1492 = vpop.permute.xlu0 %1491
      %1493 = vrot.lane.b32.xlu0 %v1402, 4
      %v1494 = vpop.permute.xlu0 %1493
      %1495 = vrot.lane.b32.xlu0 %v1414, 4
      %v1496 = vpop.permute.xlu0 %1495
      %1497 = vrot.lane.b32.xlu0 %v1426, 4
      %v1498 = vpop.permute.xlu0 %1497
      %1499 = vrot.lane.b32.xlu0 %v1438, 4
      %v1500 = vpop.permute.xlu0 %1499
      %1501 = vrot.lane.b32.xlu0 %v1450, 4
      %v1502 = vpop.permute.xlu0 %1501
      %1503 = vrot.lane.b32.xlu0 %v1462, 4
      %v1504 = vpop.permute.xlu0 %1503
      %1505 = vrot.lane.b32.xlu0 %v1474, 4
      %v1506 = vpop.permute.xlu0 %1505
      %vm1507 = vcmask 1046528
      %v1508 = vrot.slane %v1218, 1
      %v1509 = vrot.slane %v1266, 1
      %v1510 = vsel %vm1507, %v1508, %v1509
      %v1511 = vrot.slane %v1219, 1
      %v1512 = vrot.slane %v1267, 1
      %v1513 = vsel %vm1507, %v1511, %v1512
      %v1514 = vrot.slane %v1220, 1
      %v1515 = vrot.slane %v1268, 1
      %v1516 = vsel %vm1507, %v1514, %v1515
      %v1517 = vrot.slane %v1221, 1
      %v1518 = vrot.slane %v1269, 1
      %v1519 = vsel %vm1507, %v1517, %v1518
      %v1520 = vrot.slane %v1222, 1
      %v1521 = vrot.slane %v1270, 1
      %v1522 = vsel %vm1507, %v1520, %v1521
      %v1523 = vrot.slane %v1223, 1
      %v1524 = vrot.slane %v1271, 1
      %v1525 = vsel %vm1507, %v1523, %v1524
      %v1526 = vrot.slane %v1224, 1
      %v1527 = vrot.slane %v1272, 1
      %v1528 = vsel %vm1507, %v1526, %v1527
      %v1529 = vrot.slane %v1225, 1
      %v1530 = vrot.slane %v1273, 1
      %v1531 = vsel %vm1507, %v1529, %v1530
      %v1532 = vrot.slane %v1226, 1
      %v1533 = vrot.slane %v1274, 1
      %v1534 = vsel %vm1507, %v1532, %v1533
      %v1535 = vrot.slane %v1227, 1
      %v1536 = vrot.slane %v1275, 1
      %v1537 = vsel %vm1507, %v1535, %v1536
      %v1538 = vrot.slane %v1228, 1
      %v1539 = vrot.slane %v1276, 1
      %v1540 = vsel %vm1507, %v1538, %v1539
      %v1541 = vrot.slane %v1229, 1
      %v1542 = vrot.slane %v1277, 1
      %v1543 = vsel %vm1507, %v1541, %v1542
      %v1544 = vrot.slane %v1230, 1
      %v1545 = vrot.slane %v1278, 1
      %v1546 = vsel %vm1507, %v1544, %v1545
      %v1547 = vrot.slane %v1231, 1
      %v1548 = vrot.slane %v1279, 1
      %v1549 = vsel %vm1507, %v1547, %v1548
      %v1550 = vrot.slane %v1232, 1
      %v1551 = vrot.slane %v1280, 1
      %v1552 = vsel %vm1507, %v1550, %v1551
      %v1553 = vrot.slane %v1233, 1
      %v1554 = vrot.slane %v1281, 1
      %v1555 = vsel %vm1507, %v1553, %v1554
      %1556 = vrot.lane.b32.xlu0 %v1510, 8
      %v1557 = vpop.permute.xlu0 %1556
      %1558 = vrot.lane.b32.xlu0 %v1513, 8
      %v1559 = vpop.permute.xlu0 %1558
      %1560 = vrot.lane.b32.xlu0 %v1516, 8
      %v1561 = vpop.permute.xlu0 %1560
      %1562 = vrot.lane.b32.xlu0 %v1519, 8
      %v1563 = vpop.permute.xlu0 %1562
      %1564 = vrot.lane.b32.xlu0 %v1522, 8
      %v1565 = vpop.permute.xlu0 %1564
      %1566 = vrot.lane.b32.xlu0 %v1525, 8
      %v1567 = vpop.permute.xlu0 %1566
      %1568 = vrot.lane.b32.xlu0 %v1528, 8
      %v1569 = vpop.permute.xlu0 %1568
      %1570 = vrot.lane.b32.xlu0 %v1531, 8
      %v1571 = vpop.permute.xlu0 %1570
      %1572 = vrot.lane.b32.xlu0 %v1534, 8
      %v1573 = vpop.permute.xlu0 %1572
      %1574 = vrot.lane.b32.xlu0 %v1537, 8
      %v1575 = vpop.permute.xlu0 %1574
      %1576 = vrot.lane.b32.xlu0 %v1540, 8
      %v1577 = vpop.permute.xlu0 %1576
      %1578 = vrot.lane.b32.xlu0 %v1543, 8
      %v1579 = vpop.permute.xlu0 %1578
      %1580 = vrot.lane.b32.xlu0 %v1546, 8
      %v1581 = vpop.permute.xlu0 %1580
      %1582 = vrot.lane.b32.xlu0 %v1549, 8
      %v1583 = vpop.permute.xlu0 %1582
      %1584 = vrot.lane.b32.xlu0 %v1552, 8
      %v1585 = vpop.permute.xlu0 %1584
      %1586 = vrot.lane.b32.xlu0 %v1555, 8
      %v1587 = vpop.permute.xlu0 %1586
      %vm1588 = vcmask 31744
      %v1590 = vsel %vm1588, %v1218, %v1476
      %v1592 = vsel %vm1588, %v1219, %v1478
      %v1594 = vsel %vm1588, %v1220, %v1480
      %v1596 = vsel %vm1588, %v1221, %v1482
      %v1598 = vsel %vm1588, %v1222, %v1484
      %v1600 = vsel %vm1588, %v1223, %v1486
      %v1602 = vsel %vm1588, %v1224, %v1488
      %v1604 = vsel %vm1588, %v1225, %v1490
      %v1606 = vsel %vm1588, %v1226, %v1492
      %v1608 = vsel %vm1588, %v1227, %v1494
      %v1610 = vsel %vm1588, %v1228, %v1496
      %v1612 = vsel %vm1588, %v1229, %v1498
      %v1614 = vsel %vm1588, %v1230, %v1500
      %v1616 = vsel %vm1588, %v1231, %v1502
      %v1618 = vsel %vm1588, %v1232, %v1504
      %v1620 = vsel %vm1588, %v1233, %v1506
      %vm1621 = vcmask 64512
      %v1623 = vsel %vm1621, %v1590, %v1557
      %v1625 = vsel %vm1621, %v1592, %v1559
      %v1627 = vsel %vm1621, %v1594, %v1561
      %v1629 = vsel %vm1621, %v1596, %v1563
      %v1631 = vsel %vm1621, %v1598, %v1565
      %v1633 = vsel %vm1621, %v1600, %v1567
      %v1635 = vsel %vm1621, %v1602, %v1569
      %v1637 = vsel %vm1621, %v1604, %v1571
      %v1639 = vsel %vm1621, %v1606, %v1573
      %v1641 = vsel %vm1621, %v1608, %v1575
      %v1643 = vsel %vm1621, %v1610, %v1577
      %v1645 = vsel %vm1621, %v1612, %v1579
      %v1647 = vsel %vm1621, %v1614, %v1581
      %v1649 = vsel %vm1621, %v1616, %v1583
      %v1651 = vsel %vm1621, %v1618, %v1585
      %v1653 = vsel %vm1621, %v1620, %v1587
      %v1654 = vld [vmem:[%s1] sm:$0xf]
      %v1655 = vld [vmem:[%s1 + $0x4] sm:$0x3]
      %v1656 = vld [vmem:[%s991] sm:$0xf]
      %v1657 = vld [vmem:[%s991 + $0x4] sm:$0xf]
      %v1658 = vld [vmem:[%s991 + $0x8] sm:$0x1]
      %v1659 = vld [vmem:[%s991 + $0xc] sm:$0xf]
      %v1660 = vld [vmem:[%s991 + $0x10] sm:$0xf]
      %v1661 = vld [vmem:[%s991 + $0x14] sm:$0x1]
      %v1662 = vld [vmem:[%s991 + $0x18] sm:$0xf]
      %v1663 = vld [vmem:[%s991 + $0x1c] sm:$0xf]
      %v1664 = vld [vmem:[%s991 + $0x20] sm:$0x1]
      %v1665 = vld [vmem:[%s991 + $0x24] sm:$0xf]
      %v1666 = vld [vmem:[%s991 + $0x28] sm:$0xf]
      %v1667 = vld [vmem:[%s991 + $0x2c] sm:$0x1]
      %v1668 = vld [vmem:[%s991 + $0x30] sm:$0xf]
      %v1669 = vld [vmem:[%s991 + $0x34] sm:$0xf]
      %v1670 = vld [vmem:[%s991 + $0x38] sm:$0x1]
      %v1671 = vld [vmem:[%s991 + $0x3c] sm:$0xf]
      %v1672 = vld [vmem:[%s991 + $0x40] sm:$0xf]
      %v1673 = vld [vmem:[%s991 + $0x44] sm:$0x1]
      %v1674 = vld [vmem:[%s991 + $0x48] sm:$0xf]
      %v1675 = vld [vmem:[%s991 + $0x4c] sm:$0xf]
      %v1676 = vld [vmem:[%s991 + $0x50] sm:$0x1]
      %v1677 = vld [vmem:[%s991 + $0x54] sm:$0xf]
      %v1678 = vld [vmem:[%s991 + $0x58] sm:$0xf]
      %v1679 = vld [vmem:[%s991 + $0x5c] sm:$0x1]
      %v1680 = vld [vmem:[%s991 + $0x60] sm:$0xf]
      %v1681 = vld [vmem:[%s991 + $0x64] sm:$0xf]
      %v1682 = vld [vmem:[%s991 + $0x68] sm:$0x1]
      %v1683 = vld [vmem:[%s991 + $0x6c] sm:$0xf]
      %v1684 = vld [vmem:[%s991 + $0x70] sm:$0xf]
      %v1685 = vld [vmem:[%s991 + $0x74] sm:$0x1]
      %v1686 = vld [vmem:[%s991 + $0x78] sm:$0xf]
      %v1687 = vld [vmem:[%s991 + $0x7c] sm:$0xf]
      %v1688 = vld [vmem:[%s991 + $0x80] sm:$0x1]
      %v1689 = vld [vmem:[%s991 + $0x84] sm:$0xf]
      %v1690 = vld [vmem:[%s991 + $0x88] sm:$0xf]
      %v1691 = vld [vmem:[%s991 + $0x8c] sm:$0x1]
      %v1692 = vld [vmem:[%s991 + $0x90] sm:$0xf]
      %v1693 = vld [vmem:[%s991 + $0x94] sm:$0xf]
      %v1694 = vld [vmem:[%s991 + $0x98] sm:$0x1]
      %v1695 = vld [vmem:[%s991 + $0x9c] sm:$0xf]
      %v1696 = vld [vmem:[%s991 + $0xa0] sm:$0xf]
      %v1697 = vld [vmem:[%s991 + $0xa4] sm:$0x1]
      %v1698 = vld [vmem:[%s991 + $0xa8] sm:$0xf]
      %v1699 = vld [vmem:[%s991 + $0xac] sm:$0xf]
      %v1700 = vld [vmem:[%s991 + $0xb0] sm:$0x1]
      %v1701 = vld [vmem:[%s991 + $0xb4] sm:$0xf]
      %v1702 = vld [vmem:[%s991 + $0xb8] sm:$0xf]
      %v1703 = vld [vmem:[%s991 + $0xbc] sm:$0x1]
      %v1736 = vunpack.c.l.b16 %v1656
      %v1737 = vunpack.c.l.b16 %v1657
      %v1738 = vunpack.c.l.b16 %v1659
      %v1739 = vunpack.c.l.b16 %v1660
      %v1740 = vunpack.c.l.b16 %v1662
      %v1741 = vunpack.c.l.b16 %v1663
      %v1742 = vunpack.c.l.b16 %v1665
      %v1743 = vunpack.c.l.b16 %v1666
      %v1744 = vunpack.c.l.b16 %v1668
      %v1745 = vunpack.c.l.b16 %v1669
      %v1746 = vunpack.c.l.b16 %v1671
      %v1747 = vunpack.c.l.b16 %v1672
      %v1748 = vunpack.c.l.b16 %v1674
      %v1749 = vunpack.c.l.b16 %v1675
      %v1750 = vunpack.c.l.b16 %v1677
      %v1751 = vunpack.c.l.b16 %v1678
      %v1752 = vunpack.c.l.b16 %v1680
      %v1753 = vunpack.c.l.b16 %v1681
      %v1754 = vunpack.c.l.b16 %v1683
      %v1755 = vunpack.c.l.b16 %v1684
      %v1756 = vunpack.c.l.b16 %v1686
      %v1757 = vunpack.c.l.b16 %v1687
      %v1758 = vunpack.c.l.b16 %v1689
      %v1759 = vunpack.c.l.b16 %v1690
      %v1760 = vunpack.c.l.b16 %v1692
      %v1761 = vunpack.c.l.b16 %v1693
      %v1762 = vunpack.c.l.b16 %v1695
      %v1763 = vunpack.c.l.b16 %v1696
      %v1764 = vunpack.c.l.b16 %v1698
      %v1765 = vunpack.c.l.b16 %v1699
      %v1766 = vunpack.c.l.b16 %v1701
      %v1767 = vunpack.c.l.b16 %v1702
      %v1768 = vpack.c.b16 %v1737, %v1736
      %v1769 = vpack.c.b16 %v1739, %v1738
      %v1770 = vpack.c.b16 %v1741, %v1740
      %v1771 = vpack.c.b16 %v1743, %v1742
      %v1772 = vpack.c.b16 %v1745, %v1744
      %v1773 = vpack.c.b16 %v1747, %v1746
      %v1774 = vpack.c.b16 %v1749, %v1748
      %v1775 = vpack.c.b16 %v1751, %v1750
      %v1776 = vpack.c.b16 %v1753, %v1752
      %v1777 = vpack.c.b16 %v1755, %v1754
      %v1778 = vpack.c.b16 %v1757, %v1756
      %v1779 = vpack.c.b16 %v1759, %v1758
      %v1780 = vpack.c.b16 %v1761, %v1760
      %v1781 = vpack.c.b16 %v1763, %v1762
      %v1782 = vpack.c.b16 %v1765, %v1764
      %v1783 = vpack.c.b16 %v1767, %v1766
      %v1800 = vunpack.c.l.b16 %v1658
      %v1801 = vunpack.c.l.b16 %v1661
      %v1802 = vunpack.c.l.b16 %v1664
      %v1803 = vunpack.c.l.b16 %v1667
      %v1804 = vunpack.c.l.b16 %v1670
      %v1805 = vunpack.c.l.b16 %v1673
      %v1806 = vunpack.c.l.b16 %v1676
      %v1807 = vunpack.c.l.b16 %v1679
      %v1808 = vunpack.c.l.b16 %v1682
      %v1809 = vunpack.c.l.b16 %v1685
      %v1810 = vunpack.c.l.b16 %v1688
      %v1811 = vunpack.c.l.b16 %v1691
      %v1812 = vunpack.c.l.b16 %v1694
      %v1813 = vunpack.c.l.b16 %v1697
      %v1814 = vunpack.c.l.b16 %v1700
      %v1815 = vunpack.c.l.b16 %v1703
      %v1816 = vpack.c.b16 %v1800, %v1800
      %v1817 = vpack.c.b16 %v1801, %v1801
      %v1818 = vpack.c.b16 %v1802, %v1802
      %v1819 = vpack.c.b16 %v1803, %v1803
      %v1820 = vpack.c.b16 %v1804, %v1804
      %v1821 = vpack.c.b16 %v1805, %v1805
      %v1822 = vpack.c.b16 %v1806, %v1806
      %v1823 = vpack.c.b16 %v1807, %v1807
      %v1824 = vpack.c.b16 %v1808, %v1808
      %v1825 = vpack.c.b16 %v1809, %v1809
      %v1826 = vpack.c.b16 %v1810, %v1810
      %v1827 = vpack.c.b16 %v1811, %v1811
      %v1828 = vpack.c.b16 %v1812, %v1812
      %v1829 = vpack.c.b16 %v1813, %v1813
      %v1830 = vpack.c.b16 %v1814, %v1814
      %v1831 = vpack.c.b16 %v1815, %v1815
      %v1833 = vshrl.u32 %v1768, 16
      %v1835 = vshll.u32 %v1768, 16
      %v1837 = vrot.slane %v1835, 1
      %v1838 = vor.u32 %v1833, %v1837
      %v1840 = vshll.u32 %v1816, 16
      %v1842 = vrot.slane %v1840, 1
      %v1843 = vsel %vm1282, %v1838, %v1842
      %v1845 = vshrl.u32 %v1769, 16
      %v1847 = vshll.u32 %v1769, 16
      %v1849 = vrot.slane %v1847, 1
      %v1850 = vor.u32 %v1845, %v1849
      %v1852 = vshll.u32 %v1817, 16
      %v1854 = vrot.slane %v1852, 1
      %v1855 = vsel %vm1282, %v1850, %v1854
      %v1857 = vshrl.u32 %v1770, 16
      %v1859 = vshll.u32 %v1770, 16
      %v1861 = vrot.slane %v1859, 1
      %v1862 = vor.u32 %v1857, %v1861
      %v1864 = vshll.u32 %v1818, 16
      %v1866 = vrot.slane %v1864, 1
      %v1867 = vsel %vm1282, %v1862, %v1866
      %v1869 = vshrl.u32 %v1771, 16
      %v1871 = vshll.u32 %v1771, 16
      %v1873 = vrot.slane %v1871, 1
      %v1874 = vor.u32 %v1869, %v1873
      %v1876 = vshll.u32 %v1819, 16
      %v1878 = vrot.slane %v1876, 1
      %v1879 = vsel %vm1282, %v1874, %v1878
      %v1881 = vshrl.u32 %v1772, 16
      %v1883 = vshll.u32 %v1772, 16
      %v1885 = vrot.slane %v1883, 1
      %v1886 = vor.u32 %v1881, %v1885
      %v1888 = vshll.u32 %v1820, 16
      %v1890 = vrot.slane %v1888, 1
      %v1891 = vsel %vm1282, %v1886, %v1890
      %v1893 = vshrl.u32 %v1773, 16
      %v1895 = vshll.u32 %v1773, 16
      %v1897 = vrot.slane %v1895, 1
      %v1898 = vor.u32 %v1893, %v1897
      %v1900 = vshll.u32 %v1821, 16
      %v1902 = vrot.slane %v1900, 1
      %v1903 = vsel %vm1282, %v1898, %v1902
      %v1905 = vshrl.u32 %v1774, 16
      %v1907 = vshll.u32 %v1774, 16
      %v1909 = vrot.slane %v1907, 1
      %v1910 = vor.u32 %v1905, %v1909
      %v1912 = vshll.u32 %v1822, 16
      %v1914 = vrot.slane %v1912, 1
      %v1915 = vsel %vm1282, %v1910, %v1914
      %v1917 = vshrl.u32 %v1775, 16
      %v1919 = vshll.u32 %v1775, 16
      %v1921 = vrot.slane %v1919, 1
      %v1922 = vor.u32 %v1917, %v1921
      %v1924 = vshll.u32 %v1823, 16
      %v1926 = vrot.slane %v1924, 1
      %v1927 = vsel %vm1282, %v1922, %v1926
      %v1929 = vshrl.u32 %v1776, 16
      %v1931 = vshll.u32 %v1776, 16
      %v1933 = vrot.slane %v1931, 1
      %v1934 = vor.u32 %v1929, %v1933
      %v1936 = vshll.u32 %v1824, 16
      %v1938 = vrot.slane %v1936, 1
      %v1939 = vsel %vm1282, %v1934, %v1938
      %v1941 = vshrl.u32 %v1777, 16
      %v1943 = vshll.u32 %v1777, 16
      %v1945 = vrot.slane %v1943, 1
      %v1946 = vor.u32 %v1941, %v1945
      %v1948 = vshll.u32 %v1825, 16
      %v1950 = vrot.slane %v1948, 1
      %v1951 = vsel %vm1282, %v1946, %v1950
      %v1953 = vshrl.u32 %v1778, 16
      %v1955 = vshll.u32 %v1778, 16
      %v1957 = vrot.slane %v1955, 1
      %v1958 = vor.u32 %v1953, %v1957
      %v1960 = vshll.u32 %v1826, 16
      %v1962 = vrot.slane %v1960, 1
      %v1963 = vsel %vm1282, %v1958, %v1962
      %v1965 = vshrl.u32 %v1779, 16
      %v1967 = vshll.u32 %v1779, 16
      %v1969 = vrot.slane %v1967, 1
      %v1970 = vor.u32 %v1965, %v1969
      %v1972 = vshll.u32 %v1827, 16
      %v1974 = vrot.slane %v1972, 1
      %v1975 = vsel %vm1282, %v1970, %v1974
      %v1977 = vshrl.u32 %v1780, 16
      %v1979 = vshll.u32 %v1780, 16
      %v1981 = vrot.slane %v1979, 1
      %v1982 = vor.u32 %v1977, %v1981
      %v1984 = vshll.u32 %v1828, 16
      %v1986 = vrot.slane %v1984, 1
      %v1987 = vsel %vm1282, %v1982, %v1986
      %v1989 = vshrl.u32 %v1781, 16
      %v1991 = vshll.u32 %v1781, 16
      %v1993 = vrot.slane %v1991, 1
      %v1994 = vor.u32 %v1989, %v1993
      %v1996 = vshll.u32 %v1829, 16
      %v1998 = vrot.slane %v1996, 1
      %v1999 = vsel %vm1282, %v1994, %v1998
      %v2001 = vshrl.u32 %v1782, 16
      %v2003 = vshll.u32 %v1782, 16
      %v2005 = vrot.slane %v2003, 1
      %v2006 = vor.u32 %v2001, %v2005
      %v2008 = vshll.u32 %v1830, 16
      %v2010 = vrot.slane %v2008, 1
      %v2011 = vsel %vm1282, %v2006, %v2010
      %v2013 = vshrl.u32 %v1783, 16
      %v2015 = vshll.u32 %v1783, 16
      %v2017 = vrot.slane %v2015, 1
      %v2018 = vor.u32 %v2013, %v2017
      %v2020 = vshll.u32 %v1831, 16
      %v2022 = vrot.slane %v2020, 1
      %v2023 = vsel %vm1282, %v2018, %v2022
      %2024 = vrot.lane.b32.xlu0 %v1843, 4
      %v2025 = vpop.permute.xlu0 %2024
      %2026 = vrot.lane.b32.xlu0 %v1855, 4
      %v2027 = vpop.permute.xlu0 %2026
      %2028 = vrot.lane.b32.xlu0 %v1867, 4
      %v2029 = vpop.permute.xlu0 %2028
      %2030 = vrot.lane.b32.xlu0 %v1879, 4
      %v2031 = vpop.permute.xlu0 %2030
      %2032 = vrot.lane.b32.xlu0 %v1891, 4
      %v2033 = vpop.permute.xlu0 %2032
      %2034 = vrot.lane.b32.xlu0 %v1903, 4
      %v2035 = vpop.permute.xlu0 %2034
      %2036 = vrot.lane.b32.xlu0 %v1915, 4
      %v2037 = vpop.permute.xlu0 %2036
      %2038 = vrot.lane.b32.xlu0 %v1927, 4
      %v2039 = vpop.permute.xlu0 %2038
      %2040 = vrot.lane.b32.xlu0 %v1939, 4
      %v2041 = vpop.permute.xlu0 %2040
      %2042 = vrot.lane.b32.xlu0 %v1951, 4
      %v2043 = vpop.permute.xlu0 %2042
      %2044 = vrot.lane.b32.xlu0 %v1963, 4
      %v2045 = vpop.permute.xlu0 %2044
      %2046 = vrot.lane.b32.xlu0 %v1975, 4
      %v2047 = vpop.permute.xlu0 %2046
      %2048 = vrot.lane.b32.xlu0 %v1987, 4
      %v2049 = vpop.permute.xlu0 %2048
      %2050 = vrot.lane.b32.xlu0 %v1999, 4
      %v2051 = vpop.permute.xlu0 %2050
      %2052 = vrot.lane.b32.xlu0 %v2011, 4
      %v2053 = vpop.permute.xlu0 %2052
      %2054 = vrot.lane.b32.xlu0 %v2023, 4
      %v2055 = vpop.permute.xlu0 %2054
      %v2056 = vrot.slane %v1768, 1
      %v2057 = vrot.slane %v1816, 1
      %v2058 = vsel %vm1507, %v2056, %v2057
      %v2059 = vrot.slane %v1769, 1
      %v2060 = vrot.slane %v1817, 1
      %v2061 = vsel %vm1507, %v2059, %v2060
      %v2062 = vrot.slane %v1770, 1
      %v2063 = vrot.slane %v1818, 1
      %v2064 = vsel %vm1507, %v2062, %v2063
      %v2065 = vrot.slane %v1771, 1
      %v2066 = vrot.slane %v1819, 1
      %v2067 = vsel %vm1507, %v2065, %v2066
      %v2068 = vrot.slane %v1772, 1
      %v2069 = vrot.slane %v1820, 1
      %v2070 = vsel %vm1507, %v2068, %v2069
      %v2071 = vrot.slane %v1773, 1
      %v2072 = vrot.slane %v1821, 1
      %v2073 = vsel %vm1507, %v2071, %v2072
      %v2074 = vrot.slane %v1774, 1
      %v2075 = vrot.slane %v1822, 1
      %v2076 = vsel %vm1507, %v2074, %v2075
      %v2077 = vrot.slane %v1775, 1
      %v2078 = vrot.slane %v1823, 1
      %v2079 = vsel %vm1507, %v2077, %v2078
      %v2080 = vrot.slane %v1776, 1
      %v2081 = vrot.slane %v1824, 1
      %v2082 = vsel %vm1507, %v2080, %v2081
      %v2083 = vrot.slane %v1777, 1
      %v2084 = vrot.slane %v1825, 1
      %v2085 = vsel %vm1507, %v2083, %v2084
      %v2086 = vrot.slane %v1778, 1
      %v2087 = vrot.slane %v1826, 1
      %v2088 = vsel %vm1507, %v2086, %v2087
      %v2089 = vrot.slane %v1779, 1
      %v2090 = vrot.slane %v1827, 1
      %v2091 = vsel %vm1507, %v2089, %v2090
      %v2092 = vrot.slane %v1780, 1
      %v2093 = vrot.slane %v1828, 1
      %v2094 = vsel %vm1507, %v2092, %v2093
      %v2095 = vrot.slane %v1781, 1
      %v2096 = vrot.slane %v1829, 1
      %v2097 = vsel %vm1507, %v2095, %v2096
      %v2098 = vrot.slane %v1782, 1
      %v2099 = vrot.slane %v1830, 1
      %v2100 = vsel %vm1507, %v2098, %v2099
      %v2101 = vrot.slane %v1783, 1
      %v2102 = vrot.slane %v1831, 1
      %v2103 = vsel %vm1507, %v2101, %v2102
      %2104 = vrot.lane.b32.xlu0 %v2058, 8
      %v2105 = vpop.permute.xlu0 %2104
      %2106 = vrot.lane.b32.xlu0 %v2061, 8
      %v2107 = vpop.permute.xlu0 %2106
      %2108 = vrot.lane.b32.xlu0 %v2064, 8
      %v2109 = vpop.permute.xlu0 %2108
      %2110 = vrot.lane.b32.xlu0 %v2067, 8
      %v2111 = vpop.permute.xlu0 %2110
      %2112 = vrot.lane.b32.xlu0 %v2070, 8
      %v2113 = vpop.permute.xlu0 %2112
      %2114 = vrot.lane.b32.xlu0 %v2073, 8
      %v2115 = vpop.permute.xlu0 %2114
      %2116 = vrot.lane.b32.xlu0 %v2076, 8
      %v2117 = vpop.permute.xlu0 %2116
      %2118 = vrot.lane.b32.xlu0 %v2079, 8
      %v2119 = vpop.permute.xlu0 %2118
      %2120 = vrot.lane.b32.xlu0 %v2082, 8
      %v2121 = vpop.permute.xlu0 %2120
      %2122 = vrot.lane.b32.xlu0 %v2085, 8
      %v2123 = vpop.permute.xlu0 %2122
      %2124 = vrot.lane.b32.xlu0 %v2088, 8
      %v2125 = vpop.permute.xlu0 %2124
      %2126 = vrot.lane.b32.xlu0 %v2091, 8
      %v2127 = vpop.permute.xlu0 %2126
      %2128 = vrot.lane.b32.xlu0 %v2094, 8
      %v2129 = vpop.permute.xlu0 %2128
      %2130 = vrot.lane.b32.xlu0 %v2097, 8
      %v2131 = vpop.permute.xlu0 %2130
      %2132 = vrot.lane.b32.xlu0 %v2100, 8
      %v2133 = vpop.permute.xlu0 %2132
      %2134 = vrot.lane.b32.xlu0 %v2103, 8
      %v2135 = vpop.permute.xlu0 %2134
      %v2137 = vsel %vm1588, %v1768, %v2025
      %v2139 = vsel %vm1588, %v1769, %v2027
      %v2141 = vsel %vm1588, %v1770, %v2029
      %v2143 = vsel %vm1588, %v1771, %v2031
      %v2145 = vsel %vm1588, %v1772, %v2033
      %v2147 = vsel %vm1588, %v1773, %v2035
      %v2149 = vsel %vm1588, %v1774, %v2037
      %v2151 = vsel %vm1588, %v1775, %v2039
      %v2153 = vsel %vm1588, %v1776, %v2041
      %v2155 = vsel %vm1588, %v1777, %v2043
      %v2157 = vsel %vm1588, %v1778, %v2045
      %v2159 = vsel %vm1588, %v1779, %v2047
      %v2161 = vsel %vm1588, %v1780, %v2049
      %v2163 = vsel %vm1588, %v1781, %v2051
      %v2165 = vsel %vm1588, %v1782, %v2053
      %v2167 = vsel %vm1588, %v1783, %v2055
      %v2169 = vsel %vm1621, %v2137, %v2105
      %v2171 = vsel %vm1621, %v2139, %v2107
      %v2173 = vsel %vm1621, %v2141, %v2109
      %v2175 = vsel %vm1621, %v2143, %v2111
      %v2177 = vsel %vm1621, %v2145, %v2113
      %v2179 = vsel %vm1621, %v2147, %v2115
      %v2181 = vsel %vm1621, %v2149, %v2117
      %v2183 = vsel %vm1621, %v2151, %v2119
      %v2185 = vsel %vm1621, %v2153, %v2121
      %v2187 = vsel %vm1621, %v2155, %v2123
      %v2189 = vsel %vm1621, %v2157, %v2125
      %v2191 = vsel %vm1621, %v2159, %v2127
      %v2193 = vsel %vm1621, %v2161, %v2129
      %v2195 = vsel %vm1621, %v2163, %v2131
      %v2197 = vsel %vm1621, %v2165, %v2133
      %v2199 = vsel %vm1621, %v2167, %v2135
      %s2200 = scalar_lea.vmem %s1, 8
      %v2201 = vld [vmem:[%s2200] sm:$0xf]
      %v2202 = vld [vmem:[%s2200 + $0x4] sm:$0x3]
      %v2205 = vunpack.c.l.b16 %v2201
      %v2206 = vunpack.c.l.b16 %v2202
      %v2207 = vpack.c.b16 %v2206, %v2205
      %vm2208 = vcmask 97280
      %v2209 = vsel %vm2208, %v2169, 0
      %v2211 = vsel %vm2208, %v2171, 0
      %v2213 = vsel %vm2208, %v2173, 0
      %v2215 = vsel %vm2208, %v2175, 0
      %v2217 = vsel %vm2208, %v2177, 0
      %v2219 = vsel %vm2208, %v2179, 0
      %v2221 = vsel %vm2208, %v2181, 0
      %v2223 = vsel %vm2208, %v2183, 0
      %v2225 = vsel %vm2208, %v2185, 0
      %v2227 = vsel %vm2208, %v2187, 0
      %v2229 = vsel %vm2208, %v2189, 0
      %v2231 = vsel %vm2208, %v2191, 0
      %v2233 = vsel %vm2208, %v2193, 0
      %v2235 = vsel %vm2208, %v2195, 0
      %v2237 = vsel %vm2208, %v2197, 0
      %v2239 = vsel %vm2208, %v2199, 0
      %vm2241 = vcmask 1045504
      %v2243 = vsel %vm2241, %v2207, 0
      %2245 = vmatprep.subr.bf16.mxu0 0
      %2246 = vmatpush1.bf16.msra.mxu0 %v2243
      %2247 = vmatprep.subr.bf16.mxu0 0
      %2248 = vmatpush1.bf16.msra.mxu0 0
      %2249 = vmatprep.subr.bf16.mxu0 0
      %2250 = vmatpush1.bf16.msra.mxu0 0
      %2251 = vmatprep.subr.bf16.mxu0 0
      %2252 = vmatpush1.bf16.msra.mxu0 0
      %2253 = vmatprep.subr.bf16.mxu0 0
      %2254 = vmatpush1.bf16.msra.mxu0 0
      %2255 = vmatprep.subr.bf16.mxu0 0
      %2256 = vmatpush1.bf16.msra.mxu0 0
      %2257 = vmatprep.subr.bf16.mxu0 0
      %2258 = vmatpush1.bf16.msra.mxu0 0
      %2259 = vmatprep.subr.bf16.mxu0 0
      %2260 = vmatpush1.bf16.msra.mxu0 0
      %2261 = vmatprep.subr.bf16.mxu0 0
      %2262 = vmatpush1.bf16.msra.mxu0 0
      %2263 = vmatprep.subr.bf16.mxu0 0
      %2264 = vmatpush1.bf16.msra.mxu0 0
      %2265 = vmatprep.subr.bf16.mxu0 0
      %2266 = vmatpush1.bf16.msra.mxu0 0
      %2267 = vmatprep.subr.bf16.mxu0 0
      %2268 = vmatpush1.bf16.msra.mxu0 0
      %2269 = vmatprep.subr.bf16.mxu0 0
      %2270 = vmatpush1.bf16.msra.mxu0 0
      %2271 = vmatprep.subr.bf16.mxu0 0
      %2272 = vmatpush1.bf16.msra.mxu0 0
      %2273 = vmatprep.subr.bf16.mxu0 0
      %2274 = vmatpush1.bf16.msra.mxu0 0
      %2275 = vmatprep.subr.bf16.mxu0 0
      %2276 = vmatpush1.bf16.msra.mxu0 0
      %2277 = vmatprep.mubr.bf16.mxu0 0
      %2278 = vmatmul.mubr.bf16.gmra.mrb[0].mxu0 %v2209
      %v2279 = vpop.f32.mrb[0].mxu0
      %v2280 = vadd.f32 0.0, %v2279
      %v2281 = vpop.f32.mrb[0].mxu0
      %v2282 = vpop.f32.mrb[0].mxu0
      %v2283 = vadd.f32 0.0, %v2282
      %v2284 = vpop.f32.mrb[0].mxu0
      %2285 = vmatprep.mubr.bf16.mxu0 0
      %2286 = vmatmul.mubr.bf16.gmra.mrb[0].mxu0 %v2211
      %v2287 = vpop.f32.mrb[0].mxu0
      %v2288 = vadd.f32 0.0, %v2287
      %v2289 = vpop.f32.mrb[0].mxu0
      %v2290 = vpop.f32.mrb[0].mxu0
      %v2291 = vadd.f32 0.0, %v2290
      %v2292 = vpop.f32.mrb[0].mxu0
      %2293 = vmatprep.mubr.bf16.mxu0 0
      %2294 = vmatmul.mubr.bf16.gmra.mrb[0].mxu0 %v2213
      %v2295 = vpop.f32.mrb[0].mxu0
      %v2296 = vadd.f32 0.0, %v2295
      %v2297 = vpop.f32.mrb[0].mxu0
      %v2298 = vpop.f32.mrb[0].mxu0
      %v2299 = vadd.f32 0.0, %v2298
      %v2300 = vpop.f32.mrb[0].mxu0
      %2301 = vmatprep.mubr.bf16.mxu0 0
      %2302 = vmatmul.mubr.bf16.gmra.mrb[0].mxu0 %v2215
      %v2303 = vpop.f32.mrb[0].mxu0
      %v2304 = vadd.f32 0.0, %v2303
      %v2305 = vpop.f32.mrb[0].mxu0
      %v2306 = vpop.f32.mrb[0].mxu0
      %v2307 = vadd.f32 0.0, %v2306
      %v2308 = vpop.f32.mrb[0].mxu0
      %2309 = vmatprep.mubr.bf16.mxu0 0
      %2310 = vmatmul.mubr.bf16.gmra.mrb[0].mxu0 %v2217
      %v2311 = vpop.f32.mrb[0].mxu0
      %v2312 = vadd.f32 0.0, %v2311
      %v2313 = vpop.f32.mrb[0].mxu0
      %v2314 = vpop.f32.mrb[0].mxu0
      %v2315 = vadd.f32 0.0, %v2314
      %v2316 = vpop.f32.mrb[0].mxu0
      %2317 = vmatprep.mubr.bf16.mxu0 0
      %2318 = vmatmul.mubr.bf16.gmra.mrb[0].mxu0 %v2219
      %v2319 = vpop.f32.mrb[0].mxu0
      %v2320 = vadd.f32 0.0, %v2319
      %v2321 = vpop.f32.mrb[0].mxu0
      %v2322 = vpop.f32.mrb[0].mxu0
      %v2323 = vadd.f32 0.0, %v2322
      %v2324 = vpop.f32.mrb[0].mxu0
      %2325 = vmatprep.mubr.bf16.mxu0 0
      %2326 = vmatmul.mubr.bf16.gmra.mrb[0].mxu0 %v2221
      %v2327 = vpop.f32.mrb[0].mxu0
      %v2328 = vadd.f32 0.0, %v2327
      %v2329 = vpop.f32.mrb[0].mxu0
      %v2330 = vpop.f32.mrb[0].mxu0
      %v2331 = vadd.f32 0.0, %v2330
      %v2332 = vpop.f32.mrb[0].mxu0
      %2333 = vmatprep.mubr.bf16.mxu0 0
      %2334 = vmatmul.mubr.bf16.gmra.mrb[0].mxu0 %v2223
      %v2335 = vpop.f32.mrb[0].mxu0
      %v2336 = vadd.f32 0.0, %v2335
      %v2337 = vpop.f32.mrb[0].mxu0
      %v2338 = vpop.f32.mrb[0].mxu0
      %v2339 = vadd.f32 0.0, %v2338
      %v2340 = vpop.f32.mrb[0].mxu0
      %2341 = vmatprep.mubr.bf16.mxu0 0
      %2342 = vmatmul.mubr.bf16.gmra.mrb[0].mxu0 %v2225
      %v2343 = vpop.f32.mrb[0].mxu0
      %v2344 = vadd.f32 0.0, %v2343
      %v2345 = vpop.f32.mrb[0].mxu0
      %v2346 = vpop.f32.mrb[0].mxu0
      %v2347 = vadd.f32 0.0, %v2346
      %v2348 = vpop.f32.mrb[0].mxu0
      %2349 = vmatprep.mubr.bf16.mxu0 0
      %2350 = vmatmul.mubr.bf16.gmra.mrb[0].mxu0 %v2227
      %v2351 = vpop.f32.mrb[0].mxu0
      %v2352 = vadd.f32 0.0, %v2351
      %v2353 = vpop.f32.mrb[0].mxu0
      %v2354 = vpop.f32.mrb[0].mxu0
      %v2355 = vadd.f32 0.0, %v2354
      %v2356 = vpop.f32.mrb[0].mxu0
      %2357 = vmatprep.mubr.bf16.mxu0 0
      %2358 = vmatmul.mubr.bf16.gmra.mrb[0].mxu0 %v2229
      %v2359 = vpop.f32.mrb[0].mxu0
      %v2360 = vadd.f32 0.0, %v2359
      %v2361 = vpop.f32.mrb[0].mxu0
      %v2362 = vpop.f32.mrb[0].mxu0
      %v2363 = vadd.f32 0.0, %v2362
      %v2364 = vpop.f32.mrb[0].mxu0
      %2365 = vmatprep.mubr.bf16.mxu0 0
      %2366 = vmatmul.mubr.bf16.gmra.mrb[0].mxu0 %v2231
      %v2367 = vpop.f32.mrb[0].mxu0
      %v2368 = vadd.f32 0.0, %v2367
      %v2369 = vpop.f32.mrb[0].mxu0
      %v2370 = vpop.f32.mrb[0].mxu0
      %v2371 = vadd.f32 0.0, %v2370
      %v2372 = vpop.f32.mrb[0].mxu0
      %2373 = vmatprep.mubr.bf16.mxu0 0
      %2374 = vmatmul.mubr.bf16.gmra.mrb[0].mxu0 %v2233
      %v2375 = vpop.f32.mrb[0].mxu0
      %v2376 = vadd.f32 0.0, %v2375
      %v2377 = vpop.f32.mrb[0].mxu0
      %v2378 = vpop.f32.mrb[0].mxu0
      %v2379 = vadd.f32 0.0, %v2378
      %v2380 = vpop.f32.mrb[0].mxu0
      %2381 = vmatprep.mubr.bf16.mxu0 0
      %2382 = vmatmul.mubr.bf16.gmra.mrb[0].mxu0 %v2235
      %v2383 = vpop.f32.mrb[0].mxu0
      %v2384 = vadd.f32 0.0, %v2383
      %v2385 = vpop.f32.mrb[0].mxu0
      %v2386 = vpop.f32.mrb[0].mxu0
      %v2387 = vadd.f32 0.0, %v2386
      %v2388 = vpop.f32.mrb[0].mxu0
      %2389 = vmatprep.mubr.bf16.mxu0 0
      %2390 = vmatmul.mubr.bf16.gmra.mrb[0].mxu0 %v2237
      %v2391 = vpop.f32.mrb[0].mxu0
      %v2392 = vadd.f32 0.0, %v2391
      %v2393 = vpop.f32.mrb[0].mxu0
      %v2394 = vpop.f32.mrb[0].mxu0
      %v2395 = vadd.f32 0.0, %v2394
      %v2396 = vpop.f32.mrb[0].mxu0
      %2397 = vmatprep.mubr.bf16.mxu0 0
      %2398 = vmatmul.mubr.bf16.gmra.mrb[0].mxu0 %v2239
      %v2399 = vpop.f32.mrb[0].mxu0
      %v2400 = vadd.f32 0.0, %v2399
      %v2401 = vpop.f32.mrb[0].mxu0
      %v2402 = vpop.f32.mrb[0].mxu0
      %v2403 = vadd.f32 0.0, %v2402
      %v2404 = vpop.f32.mrb[0].mxu0
      %2405 = vdwg.mxu0
      %v2408 = vunpack.c.l.b16 %v1654
      %v2409 = vunpack.c.l.b16 %v1655
      %v2410 = vpack.c.b16 %v2409, %v2408
      %v2411 = vsel %vm2208, %v1623, 0
      %v2413 = vsel %vm2208, %v1625, 0
      %v2415 = vsel %vm2208, %v1627, 0
      %v2417 = vsel %vm2208, %v1629, 0
      %v2419 = vsel %vm2208, %v1631, 0
      %v2421 = vsel %vm2208, %v1633, 0
      %v2423 = vsel %vm2208, %v1635, 0
      %v2425 = vsel %vm2208, %v1637, 0
      %v2427 = vsel %vm2208, %v1639, 0
      %v2429 = vsel %vm2208, %v1641, 0
      %v2431 = vsel %vm2208, %v1643, 0
      %v2433 = vsel %vm2208, %v1645, 0
      %v2435 = vsel %vm2208, %v1647, 0
      %v2437 = vsel %vm2208, %v1649, 0
      %v2439 = vsel %vm2208, %v1651, 0
      %v2441 = vsel %vm2208, %v1653, 0
      %v2444 = vsel %vm2241, %v2410, 0
      %2446 = vmatprep.subr.bf16.mxu0 0
      %2447 = vmatpush1.bf16.msra.mxu0 %v2444
      %2448 = vmatprep.subr.bf16.mxu0 0
      %2449 = vmatpush1.bf16.msra.mxu0 0
      %2450 = vmatprep.subr.bf16.mxu0 0
      %2451 = vmatpush1.bf16.msra.mxu0 0
      %2452 = vmatprep.subr.bf16.mxu0 0
      %2453 = vmatpush1.bf16.msra.mxu0 0
      %2454 = vmatprep.subr.bf16.mxu0 0
      %2455 = vmatpush1.bf16.msra.mxu0 0
      %2456 = vmatprep.subr.bf16.mxu0 0
      %2457 = vmatpush1.bf16.msra.mxu0 0
      %2458 = vmatprep.subr.bf16.mxu0 0
      %2459 = vmatpush1.bf16.msra.mxu0 0
      %2460 = vmatprep.subr.bf16.mxu0 0
      %2461 = vmatpush1.bf16.msra.mxu0 0
      %2462 = vmatprep.subr.bf16.mxu0 0
      %2463 = vmatpush1.bf16.msra.mxu0 0
      %2464 = vmatprep.subr.bf16.mxu0 0
      %2465 = vmatpush1.bf16.msra.mxu0 0
      %2466 = vmatprep.subr.bf16.mxu0 0
      %2467 = vmatpush1.bf16.msra.mxu0 0
      %2468 = vmatprep.subr.bf16.mxu0 0
      %2469 = vmatpush1.bf16.msra.mxu0 0
      %2470 = vmatprep.subr.bf16.mxu0 0
      %2471 = vmatpush1.bf16.msra.mxu0 0
      %2472 = vmatprep.subr.bf16.mxu0 0
      %2473 = vmatpush1.bf16.msra.mxu0 0
      %2474 = vmatprep.subr.bf16.mxu0 0
      %2475 = vmatpush1.bf16.msra.mxu0 0
      %2476 = vmatprep.subr.bf16.mxu0 0
      %2477 = vmatpush1.bf16.msra.mxu0 0
      %2478 = vmatprep.mubr.bf16.mxu0 0
      %2479 = vmatmul.mubr.bf16.gmra.mrb[0].mxu0 %v2411
      %v2480 = vpop.f32.mrb[0].mxu0
      %v2481 = vadd.f32 %v2280, %v2480
      %v2482 = vpop.f32.mrb[0].mxu0
      %v2483 = vpop.f32.mrb[0].mxu0
      %v2484 = vadd.f32 %v2283, %v2483
      %v2485 = vpop.f32.mrb[0].mxu0
      %2486 = vmatprep.mubr.bf16.mxu0 0
      %2487 = vmatmul.mubr.bf16.gmra.mrb[0].mxu0 %v2413
      %v2488 = vpop.f32.mrb[0].mxu0
      %v2489 = vadd.f32 %v2288, %v2488
      %v2490 = vpop.f32.mrb[0].mxu0
      %v2491 = vpop.f32.mrb[0].mxu0
      %v2492 = vadd.f32 %v2291, %v2491
      %v2493 = vpop.f32.mrb[0].mxu0
      %2494 = vmatprep.mubr.bf16.mxu0 0
      %2495 = vmatmul.mubr.bf16.gmra.mrb[0].mxu0 %v2415
      %v2496 = vpop.f32.mrb[0].mxu0
      %v2497 = vadd.f32 %v2296, %v2496
      %v2498 = vpop.f32.mrb[0].mxu0
      %v2499 = vpop.f32.mrb[0].mxu0
      %v2500 = vadd.f32 %v2299, %v2499
      %v2501 = vpop.f32.mrb[0].mxu0
      %2502 = vmatprep.mubr.bf16.mxu0 0
      %2503 = vmatmul.mubr.bf16.gmra.mrb[0].mxu0 %v2417
      %v2504 = vpop.f32.mrb[0].mxu0
      %v2505 = vadd.f32 %v2304, %v2504
      %v2506 = vpop.f32.mrb[0].mxu0
      %v2507 = vpop.f32.mrb[0].mxu0
      %v2508 = vadd.f32 %v2307, %v2507
      %v2509 = vpop.f32.mrb[0].mxu0
      %2510 = vmatprep.mubr.bf16.mxu0 0
      %2511 = vmatmul.mubr.bf16.gmra.mrb[0].mxu0 %v2419
      %v2512 = vpop.f32.mrb[0].mxu0
      %v2513 = vadd.f32 %v2312, %v2512
      %v2514 = vpop.f32.mrb[0].mxu0
      %v2515 = vpop.f32.mrb[0].mxu0
      %v2516 = vadd.f32 %v2315, %v2515
      %v2517 = vpop.f32.mrb[0].mxu0
      %2518 = vmatprep.mubr.bf16.mxu0 0
      %2519 = vmatmul.mubr.bf16.gmra.mrb[0].mxu0 %v2421
      %v2520 = vpop.f32.mrb[0].mxu0
      %v2521 = vadd.f32 %v2320, %v2520
      %v2522 = vpop.f32.mrb[0].mxu0
      %v2523 = vpop.f32.mrb[0].mxu0
      %v2524 = vadd.f32 %v2323, %v2523
      %v2525 = vpop.f32.mrb[0].mxu0
      %2526 = vmatprep.mubr.bf16.mxu0 0
      %2527 = vmatmul.mubr.bf16.gmra.mrb[0].mxu0 %v2423
      %v2528 = vpop.f32.mrb[0].mxu0
      %v2529 = vadd.f32 %v2328, %v2528
      %v2530 = vpop.f32.mrb[0].mxu0
      %v2531 = vpop.f32.mrb[0].mxu0
      %v2532 = vadd.f32 %v2331, %v2531
      %v2533 = vpop.f32.mrb[0].mxu0
      %2534 = vmatprep.mubr.bf16.mxu0 0
      %2535 = vmatmul.mubr.bf16.gmra.mrb[0].mxu0 %v2425
      %v2536 = vpop.f32.mrb[0].mxu0
      %v2537 = vadd.f32 %v2336, %v2536
      %v2538 = vpop.f32.mrb[0].mxu0
      %v2539 = vpop.f32.mrb[0].mxu0
      %v2540 = vadd.f32 %v2339, %v2539
      %v2541 = vpop.f32.mrb[0].mxu0
      %2542 = vmatprep.mubr.bf16.mxu0 0
      %2543 = vmatmul.mubr.bf16.gmra.mrb[0].mxu0 %v2427
      %v2544 = vpop.f32.mrb[0].mxu0
      %v2545 = vadd.f32 %v2344, %v2544
      %v2546 = vpop.f32.mrb[0].mxu0
      %v2547 = vpop.f32.mrb[0].mxu0
      %v2548 = vadd.f32 %v2347, %v2547
      %v2549 = vpop.f32.mrb[0].mxu0
      %2550 = vmatprep.mubr.bf16.mxu0 0
      %2551 = vmatmul.mubr.bf16.gmra.mrb[0].mxu0 %v2429
      %v2552 = vpop.f32.mrb[0].mxu0
      %v2553 = vadd.f32 %v2352, %v2552
      %v2554 = vpop.f32.mrb[0].mxu0
      %v2555 = vpop.f32.mrb[0].mxu0
      %v2556 = vadd.f32 %v2355, %v2555
      %v2557 = vpop.f32.mrb[0].mxu0
      %2558 = vmatprep.mubr.bf16.mxu0 0
      %2559 = vmatmul.mubr.bf16.gmra.mrb[0].mxu0 %v2431
      %v2560 = vpop.f32.mrb[0].mxu0
      %v2561 = vadd.f32 %v2360, %v2560
      %v2562 = vpop.f32.mrb[0].mxu0
      %v2563 = vpop.f32.mrb[0].mxu0
      %v2564 = vadd.f32 %v2363, %v2563
      %v2565 = vpop.f32.mrb[0].mxu0
      %2566 = vmatprep.mubr.bf16.mxu0 0
      %2567 = vmatmul.mubr.bf16.gmra.mrb[0].mxu0 %v2433
      %v2568 = vpop.f32.mrb[0].mxu0
      %v2569 = vadd.f32 %v2368, %v2568
      %v2570 = vpop.f32.mrb[0].mxu0
      %v2571 = vpop.f32.mrb[0].mxu0
      %v2572 = vadd.f32 %v2371, %v2571
      %v2573 = vpop.f32.mrb[0].mxu0
      %2574 = vmatprep.mubr.bf16.mxu0 0
      %2575 = vmatmul.mubr.bf16.gmra.mrb[0].mxu0 %v2435
      %v2576 = vpop.f32.mrb[0].mxu0
      %v2577 = vadd.f32 %v2376, %v2576
      %v2578 = vpop.f32.mrb[0].mxu0
      %v2579 = vpop.f32.mrb[0].mxu0
      %v2580 = vadd.f32 %v2379, %v2579
      %v2581 = vpop.f32.mrb[0].mxu0
      %2582 = vmatprep.mubr.bf16.mxu0 0
      %2583 = vmatmul.mubr.bf16.gmra.mrb[0].mxu0 %v2437
      %v2584 = vpop.f32.mrb[0].mxu0
      %v2585 = vadd.f32 %v2384, %v2584
      %v2586 = vpop.f32.mrb[0].mxu0
      %v2587 = vpop.f32.mrb[0].mxu0
      %v2588 = vadd.f32 %v2387, %v2587
      %v2589 = vpop.f32.mrb[0].mxu0
      %2590 = vmatprep.mubr.bf16.mxu0 0
      %2591 = vmatmul.mubr.bf16.gmra.mrb[0].mxu0 %v2439
      %v2592 = vpop.f32.mrb[0].mxu0
      %v2593 = vadd.f32 %v2392, %v2592
      %v2594 = vpop.f32.mrb[0].mxu0
      %v2595 = vpop.f32.mrb[0].mxu0
      %v2596 = vadd.f32 %v2395, %v2595
      %v2597 = vpop.f32.mrb[0].mxu0
      %2598 = vmatprep.mubr.bf16.mxu0 0
      %2599 = vmatmul.mubr.bf16.gmra.mrb[0].mxu0 %v2441
      %v2600 = vpop.f32.mrb[0].mxu0
      %v2601 = vadd.f32 %v2400, %v2600
      %v2602 = vpop.f32.mrb[0].mxu0
      %v2603 = vpop.f32.mrb[0].mxu0
      %v2604 = vadd.f32 %v2403, %v2603
      %v2605 = vpop.f32.mrb[0].mxu0
      %2606 = vdwg.mxu0
      %s2607 = scalar_lea.vmem [#allocation2], 24
      %v2608 = vld [vmem:[%s2607] sm:$0xf]
      %v2609 = vld [vmem:[%s2607 + $0x4] sm:$0xf]
      %v2610 = vld [vmem:[%s2607 + $0x8] sm:$0x1]
      %v2611 = vld [vmem:[%s2607 + $0xc] sm:$0xf]
      %v2612 = vld [vmem:[%s2607 + $0x10] sm:$0xf]
      %v2613 = vld [vmem:[%s2607 + $0x14] sm:$0x1]
      %v2614 = vld [vmem:[%s2607 + $0x18] sm:$0xf]
      %v2615 = vld [vmem:[%s2607 + $0x1c] sm:$0xf]
      %v2616 = vld [vmem:[%s2607 + $0x20] sm:$0x1]
      %v2617 = vld [vmem:[%s2607 + $0x24] sm:$0xf]
      %v2618 = vld [vmem:[%s2607 + $0x28] sm:$0xf]
      %v2619 = vld [vmem:[%s2607 + $0x2c] sm:$0x1]
      %v2620 = vld [vmem:[%s2607 + $0x30] sm:$0xf]
      %v2621 = vld [vmem:[%s2607 + $0x34] sm:$0xf]
      %v2622 = vld [vmem:[%s2607 + $0x38] sm:$0x1]
      %v2623 = vld [vmem:[%s2607 + $0x3c] sm:$0xf]
      %v2624 = vld [vmem:[%s2607 + $0x40] sm:$0xf]
      %v2625 = vld [vmem:[%s2607 + $0x44] sm:$0x1]
      %v2626 = vld [vmem:[%s2607 + $0x48] sm:$0xf]
      %v2627 = vld [vmem:[%s2607 + $0x4c] sm:$0xf]
      %v2628 = vld [vmem:[%s2607 + $0x50] sm:$0x1]
      %v2629 = vld [vmem:[%s2607 + $0x54] sm:$0xf]
      %v2630 = vld [vmem:[%s2607 + $0x58] sm:$0xf]
      %v2631 = vld [vmem:[%s2607 + $0x5c] sm:$0x1]
      %v2632 = vld [vmem:[%s2607 + $0x60] sm:$0xf]
      %v2633 = vld [vmem:[%s2607 + $0x64] sm:$0xf]
      %v2634 = vld [vmem:[%s2607 + $0x68] sm:$0x1]
      %v2635 = vld [vmem:[%s2607 + $0x6c] sm:$0xf]
      %v2636 = vld [vmem:[%s2607 + $0x70] sm:$0xf]
      %v2637 = vld [vmem:[%s2607 + $0x74] sm:$0x1]
      %v2638 = vld [vmem:[%s2607 + $0x78] sm:$0xf]
      %v2639 = vld [vmem:[%s2607 + $0x7c] sm:$0xf]
      %v2640 = vld [vmem:[%s2607 + $0x80] sm:$0x1]
      %v2641 = vld [vmem:[%s2607 + $0x84] sm:$0xf]
      %v2642 = vld [vmem:[%s2607 + $0x88] sm:$0xf]
      %v2643 = vld [vmem:[%s2607 + $0x8c] sm:$0x1]
      %v2644 = vld [vmem:[%s2607 + $0x90] sm:$0xf]
      %v2645 = vld [vmem:[%s2607 + $0x94] sm:$0xf]
      %v2646 = vld [vmem:[%s2607 + $0x98] sm:$0x1]
      %v2647 = vld [vmem:[%s2607 + $0x9c] sm:$0xf]
      %v2648 = vld [vmem:[%s2607 + $0xa0] sm:$0xf]
      %v2649 = vld [vmem:[%s2607 + $0xa4] sm:$0x1]
      %v2650 = vld [vmem:[%s2607 + $0xa8] sm:$0xf]
      %v2651 = vld [vmem:[%s2607 + $0xac] sm:$0xf]
      %v2652 = vld [vmem:[%s2607 + $0xb0] sm:$0x1]
      %v2653 = vld [vmem:[%s2607 + $0xb4] sm:$0xf]
      %v2654 = vld [vmem:[%s2607 + $0xb8] sm:$0xf]
      %v2655 = vld [vmem:[%s2607 + $0xbc] sm:$0x1]
      %v2688 = vunpack.c.l.b16 %v2608
      %v2689 = vunpack.c.l.b16 %v2609
      %v2690 = vunpack.c.l.b16 %v2611
      %v2691 = vunpack.c.l.b16 %v2612
      %v2692 = vunpack.c.l.b16 %v2614
      %v2693 = vunpack.c.l.b16 %v2615
      %v2694 = vunpack.c.l.b16 %v2617
      %v2695 = vunpack.c.l.b16 %v2618
      %v2696 = vunpack.c.l.b16 %v2620
      %v2697 = vunpack.c.l.b16 %v2621
      %v2698 = vunpack.c.l.b16 %v2623
      %v2699 = vunpack.c.l.b16 %v2624
      %v2700 = vunpack.c.l.b16 %v2626
      %v2701 = vunpack.c.l.b16 %v2627
      %v2702 = vunpack.c.l.b16 %v2629
      %v2703 = vunpack.c.l.b16 %v2630
      %v2704 = vunpack.c.l.b16 %v2632
      %v2705 = vunpack.c.l.b16 %v2633
      %v2706 = vunpack.c.l.b16 %v2635
      %v2707 = vunpack.c.l.b16 %v2636
      %v2708 = vunpack.c.l.b16 %v2638
      %v2709 = vunpack.c.l.b16 %v2639
      %v2710 = vunpack.c.l.b16 %v2641
      %v2711 = vunpack.c.l.b16 %v2642
      %v2712 = vunpack.c.l.b16 %v2644
      %v2713 = vunpack.c.l.b16 %v2645
      %v2714 = vunpack.c.l.b16 %v2647
      %v2715 = vunpack.c.l.b16 %v2648
      %v2716 = vunpack.c.l.b16 %v2650
      %v2717 = vunpack.c.l.b16 %v2651
      %v2718 = vunpack.c.l.b16 %v2653
      %v2719 = vunpack.c.l.b16 %v2654
      %v2720 = vpack.c.b16 %v2689, %v2688
      %v2721 = vpack.c.b16 %v2691, %v2690
      %v2722 = vpack.c.b16 %v2693, %v2692
      %v2723 = vpack.c.b16 %v2695, %v2694
      %v2724 = vpack.c.b16 %v2697, %v2696
      %v2725 = vpack.c.b16 %v2699, %v2698
      %v2726 = vpack.c.b16 %v2701, %v2700
      %v2727 = vpack.c.b16 %v2703, %v2702
      %v2728 = vpack.c.b16 %v2705, %v2704
      %v2729 = vpack.c.b16 %v2707, %v2706
      %v2730 = vpack.c.b16 %v2709, %v2708
      %v2731 = vpack.c.b16 %v2711, %v2710
      %v2732 = vpack.c.b16 %v2713, %v2712
      %v2733 = vpack.c.b16 %v2715, %v2714
      %v2734 = vpack.c.b16 %v2717, %v2716
      %v2735 = vpack.c.b16 %v2719, %v2718
      %v2752 = vunpack.c.l.b16 %v2610
      %v2753 = vunpack.c.l.b16 %v2613
      %v2754 = vunpack.c.l.b16 %v2616
      %v2755 = vunpack.c.l.b16 %v2619
      %v2756 = vunpack.c.l.b16 %v2622
      %v2757 = vunpack.c.l.b16 %v2625
      %v2758 = vunpack.c.l.b16 %v2628
      %v2759 = vunpack.c.l.b16 %v2631
      %v2760 = vunpack.c.l.b16 %v2634
      %v2761 = vunpack.c.l.b16 %v2637
      %v2762 = vunpack.c.l.b16 %v2640
      %v2763 = vunpack.c.l.b16 %v2643
      %v2764 = vunpack.c.l.b16 %v2646
      %v2765 = vunpack.c.l.b16 %v2649
      %v2766 = vunpack.c.l.b16 %v2652
      %v2767 = vunpack.c.l.b16 %v2655
      %v2768 = vpack.c.b16 %v2752, %v2752
      %v2769 = vpack.c.b16 %v2753, %v2753
      %v2770 = vpack.c.b16 %v2754, %v2754
      %v2771 = vpack.c.b16 %v2755, %v2755
      %v2772 = vpack.c.b16 %v2756, %v2756
      %v2773 = vpack.c.b16 %v2757, %v2757
      %v2774 = vpack.c.b16 %v2758, %v2758
      %v2775 = vpack.c.b16 %v2759, %v2759
      %v2776 = vpack.c.b16 %v2760, %v2760
      %v2777 = vpack.c.b16 %v2761, %v2761
      %v2778 = vpack.c.b16 %v2762, %v2762
      %v2779 = vpack.c.b16 %v2763, %v2763
      %v2780 = vpack.c.b16 %v2764, %v2764
      %v2781 = vpack.c.b16 %v2765, %v2765
      %v2782 = vpack.c.b16 %v2766, %v2766
      %v2783 = vpack.c.b16 %v2767, %v2767
      %v2785 = vshrl.u32 %v2720, 16
      %v2787 = vshll.u32 %v2720, 16
      %v2789 = vrot.slane %v2787, 1
      %v2790 = vor.u32 %v2785, %v2789
      %v2792 = vshll.u32 %v2768, 16
      %v2794 = vrot.slane %v2792, 1
      %v2795 = vsel %vm1282, %v2790, %v2794
      %v2797 = vshrl.u32 %v2721, 16
      %v2799 = vshll.u32 %v2721, 16
      %v2801 = vrot.slane %v2799, 1
      %v2802 = vor.u32 %v2797, %v2801
      %v2804 = vshll.u32 %v2769, 16
      %v2806 = vrot.slane %v2804, 1
      %v2807 = vsel %vm1282, %v2802, %v2806
      %v2809 = vshrl.u32 %v2722, 16
      %v2811 = vshll.u32 %v2722, 16
      %v2813 = vrot.slane %v2811, 1
      %v2814 = vor.u32 %v2809, %v2813
      %v2816 = vshll.u32 %v2770, 16
      %v2818 = vrot.slane %v2816, 1
      %v2819 = vsel %vm1282, %v2814, %v2818
      %v2821 = vshrl.u32 %v2723, 16
      %v2823 = vshll.u32 %v2723, 16
      %v2825 = vrot.slane %v2823, 1
      %v2826 = vor.u32 %v2821, %v2825
      %v2828 = vshll.u32 %v2771, 16
      %v2830 = vrot.slane %v2828, 1
      %v2831 = vsel %vm1282, %v2826, %v2830
      %v2833 = vshrl.u32 %v2724, 16
      %v2835 = vshll.u32 %v2724, 16
      %v2837 = vrot.slane %v2835, 1
      %v2838 = vor.u32 %v2833, %v2837
      %v2840 = vshll.u32 %v2772, 16
      %v2842 = vrot.slane %v2840, 1
      %v2843 = vsel %vm1282, %v2838, %v2842
      %v2845 = vshrl.u32 %v2725, 16
      %v2847 = vshll.u32 %v2725, 16
      %v2849 = vrot.slane %v2847, 1
      %v2850 = vor.u32 %v2845, %v2849
      %v2852 = vshll.u32 %v2773, 16
      %v2854 = vrot.slane %v2852, 1
      %v2855 = vsel %vm1282, %v2850, %v2854
      %v2857 = vshrl.u32 %v2726, 16
      %v2859 = vshll.u32 %v2726, 16
      %v2861 = vrot.slane %v2859, 1
      %v2862 = vor.u32 %v2857, %v2861
      %v2864 = vshll.u32 %v2774, 16
      %v2866 = vrot.slane %v2864, 1
      %v2867 = vsel %vm1282, %v2862, %v2866
      %v2869 = vshrl.u32 %v2727, 16
      %v2871 = vshll.u32 %v2727, 16
      %v2873 = vrot.slane %v2871, 1
      %v2874 = vor.u32 %v2869, %v2873
      %v2876 = vshll.u32 %v2775, 16
      %v2878 = vrot.slane %v2876, 1
      %v2879 = vsel %vm1282, %v2874, %v2878
      %v2881 = vshrl.u32 %v2728, 16
      %v2883 = vshll.u32 %v2728, 16
      %v2885 = vrot.slane %v2883, 1
      %v2886 = vor.u32 %v2881, %v2885
      %v2888 = vshll.u32 %v2776, 16
      %v2890 = vrot.slane %v2888, 1
      %v2891 = vsel %vm1282, %v2886, %v2890
      %v2893 = vshrl.u32 %v2729, 16
      %v2895 = vshll.u32 %v2729, 16
      %v2897 = vrot.slane %v2895, 1
      %v2898 = vor.u32 %v2893, %v2897
      %v2900 = vshll.u32 %v2777, 16
      %v2902 = vrot.slane %v2900, 1
      %v2903 = vsel %vm1282, %v2898, %v2902
      %v2905 = vshrl.u32 %v2730, 16
      %v2907 = vshll.u32 %v2730, 16
      %v2909 = vrot.slane %v2907, 1
      %v2910 = vor.u32 %v2905, %v2909
      %v2912 = vshll.u32 %v2778, 16
      %v2914 = vrot.slane %v2912, 1
      %v2915 = vsel %vm1282, %v2910, %v2914
      %v2917 = vshrl.u32 %v2731, 16
      %v2919 = vshll.u32 %v2731, 16
      %v2921 = vrot.slane %v2919, 1
      %v2922 = vor.u32 %v2917, %v2921
      %v2924 = vshll.u32 %v2779, 16
      %v2926 = vrot.slane %v2924, 1
      %v2927 = vsel %vm1282, %v2922, %v2926
      %v2929 = vshrl.u32 %v2732, 16
      %v2931 = vshll.u32 %v2732, 16
      %v2933 = vrot.slane %v2931, 1
      %v2934 = vor.u32 %v2929, %v2933
      %v2936 = vshll.u32 %v2780, 16
      %v2938 = vrot.slane %v2936, 1
      %v2939 = vsel %vm1282, %v2934, %v2938
      %v2941 = vshrl.u32 %v2733, 16
      %v2943 = vshll.u32 %v2733, 16
      %v2945 = vrot.slane %v2943, 1
      %v2946 = vor.u32 %v2941, %v2945
      %v2948 = vshll.u32 %v2781, 16
      %v2950 = vrot.slane %v2948, 1
      %v2951 = vsel %vm1282, %v2946, %v2950
      %v2953 = vshrl.u32 %v2734, 16
      %v2955 = vshll.u32 %v2734, 16
      %v2957 = vrot.slane %v2955, 1
      %v2958 = vor.u32 %v2953, %v2957
      %v2960 = vshll.u32 %v2782, 16
      %v2962 = vrot.slane %v2960, 1
      %v2963 = vsel %vm1282, %v2958, %v2962
      %v2965 = vshrl.u32 %v2735, 16
      %v2967 = vshll.u32 %v2735, 16
      %v2969 = vrot.slane %v2967, 1
      %v2970 = vor.u32 %v2965, %v2969
      %v2972 = vshll.u32 %v2783, 16
      %v2974 = vrot.slane %v2972, 1
      %v2975 = vsel %vm1282, %v2970, %v2974
      %2976 = vrot.lane.b32.xlu0 %v2795, 4
      %v2977 = vpop.permute.xlu0 %2976
      %2978 = vrot.lane.b32.xlu0 %v2807, 4
      %v2979 = vpop.permute.xlu0 %2978
      %2980 = vrot.lane.b32.xlu0 %v2819, 4
      %v2981 = vpop.permute.xlu0 %2980
      %2982 = vrot.lane.b32.xlu0 %v2831, 4
      %v2983 = vpop.permute.xlu0 %2982
      %2984 = vrot.lane.b32.xlu0 %v2843, 4
      %v2985 = vpop.permute.xlu0 %2984
      %2986 = vrot.lane.b32.xlu0 %v2855, 4
      %v2987 = vpop.permute.xlu0 %2986
      %2988 = vrot.lane.b32.xlu0 %v2867, 4
      %v2989 = vpop.permute.xlu0 %2988
      %2990 = vrot.lane.b32.xlu0 %v2879, 4
      %v2991 = vpop.permute.xlu0 %2990
      %2992 = vrot.lane.b32.xlu0 %v2891, 4
      %v2993 = vpop.permute.xlu0 %2992
      %2994 = vrot.lane.b32.xlu0 %v2903, 4
      %v2995 = vpop.permute.xlu0 %2994
      %2996 = vrot.lane.b32.xlu0 %v2915, 4
      %v2997 = vpop.permute.xlu0 %2996
      %2998 = vrot.lane.b32.xlu0 %v2927, 4
      %v2999 = vpop.permute.xlu0 %2998
      %3000 = vrot.lane.b32.xlu0 %v2939, 4
      %v3001 = vpop.permute.xlu0 %3000
      %3002 = vrot.lane.b32.xlu0 %v2951, 4
      %v3003 = vpop.permute.xlu0 %3002
      %3004 = vrot.lane.b32.xlu0 %v2963, 4
      %v3005 = vpop.permute.xlu0 %3004
      %3006 = vrot.lane.b32.xlu0 %v2975, 4
      %v3007 = vpop.permute.xlu0 %3006
      %v3008 = vrot.slane %v2720, 1
      %v3009 = vrot.slane %v2768, 1
      %v3010 = vsel %vm1507, %v3008, %v3009
      %v3011 = vrot.slane %v2721, 1
      %v3012 = vrot.slane %v2769, 1
      %v3013 = vsel %vm1507, %v3011, %v3012
      %v3014 = vrot.slane %v2722, 1
      %v3015 = vrot.slane %v2770, 1
      %v3016 = vsel %vm1507, %v3014, %v3015
      %v3017 = vrot.slane %v2723, 1
      %v3018 = vrot.slane %v2771, 1
      %v3019 = vsel %vm1507, %v3017, %v3018
      %v3020 = vrot.slane %v2724, 1
      %v3021 = vrot.slane %v2772, 1
      %v3022 = vsel %vm1507, %v3020, %v3021
      %v3023 = vrot.slane %v2725, 1
      %v3024 = vrot.slane %v2773, 1
      %v3025 = vsel %vm1507, %v3023, %v3024
      %v3026 = vrot.slane %v2726, 1
      %v3027 = vrot.slane %v2774, 1
      %v3028 = vsel %vm1507, %v3026, %v3027
      %v3029 = vrot.slane %v2727, 1
      %v3030 = vrot.slane %v2775, 1
      %v3031 = vsel %vm1507, %v3029, %v3030
      %v3032 = vrot.slane %v2728, 1
      %v3033 = vrot.slane %v2776, 1
      %v3034 = vsel %vm1507, %v3032, %v3033
      %v3035 = vrot.slane %v2729, 1
      %v3036 = vrot.slane %v2777, 1
      %v3037 = vsel %vm1507, %v3035, %v3036
      %v3038 = vrot.slane %v2730, 1
      %v3039 = vrot.slane %v2778, 1
      %v3040 = vsel %vm1507, %v3038, %v3039
      %v3041 = vrot.slane %v2731, 1
      %v3042 = vrot.slane %v2779, 1
      %v3043 = vsel %vm1507, %v3041, %v3042
      %v3044 = vrot.slane %v2732, 1
      %v3045 = vrot.slane %v2780, 1
      %v3046 = vsel %vm1507, %v3044, %v3045
      %v3047 = vrot.slane %v2733, 1
      %v3048 = vrot.slane %v2781, 1
      %v3049 = vsel %vm1507, %v3047, %v3048
      %v3050 = vrot.slane %v2734, 1
      %v3051 = vrot.slane %v2782, 1
      %v3052 = vsel %vm1507, %v3050, %v3051
      %v3053 = vrot.slane %v2735, 1
      %v3054 = vrot.slane %v2783, 1
      %v3055 = vsel %vm1507, %v3053, %v3054
      %3056 = vrot.lane.b32.xlu0 %v3010, 8
      %v3057 = vpop.permute.xlu0 %3056
      %3058 = vrot.lane.b32.xlu0 %v3013, 8
      %v3059 = vpop.permute.xlu0 %3058
      %3060 = vrot.lane.b32.xlu0 %v3016, 8
      %v3061 = vpop.permute.xlu0 %3060
      %3062 = vrot.lane.b32.xlu0 %v3019, 8
      %v3063 = vpop.permute.xlu0 %3062
      %3064 = vrot.lane.b32.xlu0 %v3022, 8
      %v3065 = vpop.permute.xlu0 %3064
      %3066 = vrot.lane.b32.xlu0 %v3025, 8
      %v3067 = vpop.permute.xlu0 %3066
      %3068 = vrot.lane.b32.xlu0 %v3028, 8
      %v3069 = vpop.permute.xlu0 %3068
      %3070 = vrot.lane.b32.xlu0 %v3031, 8
      %v3071 = vpop.permute.xlu0 %3070
      %3072 = vrot.lane.b32.xlu0 %v3034, 8
      %v3073 = vpop.permute.xlu0 %3072
      %3074 = vrot.lane.b32.xlu0 %v3037, 8
      %v3075 = vpop.permute.xlu0 %3074
      %3076 = vrot.lane.b32.xlu0 %v3040, 8
      %v3077 = vpop.permute.xlu0 %3076
      %3078 = vrot.lane.b32.xlu0 %v3043, 8
      %v3079 = vpop.permute.xlu0 %3078
      %3080 = vrot.lane.b32.xlu0 %v3046, 8
      %v3081 = vpop.permute.xlu0 %3080
      %3082 = vrot.lane.b32.xlu0 %v3049, 8
      %v3083 = vpop.permute.xlu0 %3082
      %3084 = vrot.lane.b32.xlu0 %v3052, 8
      %v3085 = vpop.permute.xlu0 %3084
      %3086 = vrot.lane.b32.xlu0 %v3055, 8
      %v3087 = vpop.permute.xlu0 %3086
      %v3089 = vsel %vm1588, %v2720, %v2977
      %v3091 = vsel %vm1588, %v2721, %v2979
      %v3093 = vsel %vm1588, %v2722, %v2981
      %v3095 = vsel %vm1588, %v2723, %v2983
      %v3097 = vsel %vm1588, %v2724, %v2985
      %v3099 = vsel %vm1588, %v2725, %v2987
      %v3101 = vsel %vm1588, %v2726, %v2989
      %v3103 = vsel %vm1588, %v2727, %v2991
      %v3105 = vsel %vm1588, %v2728, %v2993
      %v3107 = vsel %vm1588, %v2729, %v2995
      %v3109 = vsel %vm1588, %v2730, %v2997
      %v3111 = vsel %vm1588, %v2731, %v2999
      %v3113 = vsel %vm1588, %v2732, %v3001
      %v3115 = vsel %vm1588, %v2733, %v3003
      %v3117 = vsel %vm1588, %v2734, %v3005
      %v3119 = vsel %vm1588, %v2735, %v3007
      %v3121 = vsel %vm1621, %v3089, %v3057
      %v3123 = vsel %vm1621, %v3091, %v3059
      %v3125 = vsel %vm1621, %v3093, %v3061
      %v3127 = vsel %vm1621, %v3095, %v3063
      %v3129 = vsel %vm1621, %v3097, %v3065
      %v3131 = vsel %vm1621, %v3099, %v3067
      %v3133 = vsel %vm1621, %v3101, %v3069
      %v3135 = vsel %vm1621, %v3103, %v3071
      %v3137 = vsel %vm1621, %v3105, %v3073
      %v3139 = vsel %vm1621, %v3107, %v3075
      %v3141 = vsel %vm1621, %v3109, %v3077
      %v3143 = vsel %vm1621, %v3111, %v3079
      %v3145 = vsel %vm1621, %v3113, %v3081
      %v3147 = vsel %vm1621, %v3115, %v3083
      %v3149 = vsel %vm1621, %v3117, %v3085
      %v3151 = vsel %vm1621, %v3119, %v3087
      %s3152 = scalar_lea.vmem %s1, 16
      %v3153 = vld [vmem:[%s3152] sm:$0xf]
      %v3154 = vld [vmem:[%s3152 + $0x4] sm:$0x3]
      %v3157 = vunpack.c.l.b16 %v3153
      %v3158 = vunpack.c.l.b16 %v3154
      %v3159 = vpack.c.b16 %v3158, %v3157
      %v3160 = vsel %vm2208, %v3121, 0
      %v3162 = vsel %vm2208, %v3123, 0
      %v3164 = vsel %vm2208, %v3125, 0
      %v3166 = vsel %vm2208, %v3127, 0
      %v3168 = vsel %vm2208, %v3129, 0
      %v3170 = vsel %vm2208, %v3131, 0
      %v3172 = vsel %vm2208, %v3133, 0
      %v3174 = vsel %vm2208, %v3135, 0
      %v3176 = vsel %vm2208, %v3137, 0
      %v3178 = vsel %vm2208, %v3139, 0
      %v3180 = vsel %vm2208, %v3141, 0
      %v3182 = vsel %vm2208, %v3143, 0
      %v3184 = vsel %vm2208, %v3145, 0
      %v3186 = vsel %vm2208, %v3147, 0
      %v3188 = vsel %vm2208, %v3149, 0
      %v3190 = vsel %vm2208, %v3151, 0
      %v3193 = vsel %vm2241, %v3159, 0
      %3195 = vmatprep.subr.bf16.mxu0 0
      %3196 = vmatpush1.bf16.msra.mxu0 %v3193
      %3197 = vmatprep.subr.bf16.mxu0 0
      %3198 = vmatpush1.bf16.msra.mxu0 0
      %3199 = vmatprep.subr.bf16.mxu0 0
      %3200 = vmatpush1.bf16.msra.mxu0 0
      %3201 = vmatprep.subr.bf16.mxu0 0
      %3202 = vmatpush1.bf16.msra.mxu0 0
      %3203 = vmatprep.subr.bf16.mxu0 0
      %3204 = vmatpush1.bf16.msra.mxu0 0
      %3205 = vmatprep.subr.bf16.mxu0 0
      %3206 = vmatpush1.bf16.msra.mxu0 0
      %3207 = vmatprep.subr.bf16.mxu0 0
      %3208 = vmatpush1.bf16.msra.mxu0 0
      %3209 = vmatprep.subr.bf16.mxu0 0
      %3210 = vmatpush1.bf16.msra.mxu0 0
      %3211 = vmatprep.subr.bf16.mxu0 0
      %3212 = vmatpush1.bf16.msra.mxu0 0
      %3213 = vmatprep.subr.bf16.mxu0 0
      %3214 = vmatpush1.bf16.msra.mxu0 0
      %3215 = vmatprep.subr.bf16.mxu0 0
      %3216 = vmatpush1.bf16.msra.mxu0 0
      %3217 = vmatprep.subr.bf16.mxu0 0
      %3218 = vmatpush1.bf16.msra.mxu0 0
      %3219 = vmatprep.subr.bf16.mxu0 0
      %3220 = vmatpush1.bf16.msra.mxu0 0
      %3221 = vmatprep.subr.bf16.mxu0 0
      %3222 = vmatpush1.bf16.msra.mxu0 0
      %3223 = vmatprep.subr.bf16.mxu0 0
      %3224 = vmatpush1.bf16.msra.mxu0 0
      %3225 = vmatprep.subr.bf16.mxu0 0
      %3226 = vmatpush1.bf16.msra.mxu0 0
      %3227 = vmatprep.mubr.bf16.mxu0 0
      %3228 = vmatmul.mubr.bf16.gmra.mrb[0].mxu0 %v3160
      %v3229 = vpop.f32.mrb[0].mxu0
      %v3230 = vadd.f32 0.0, %v3229
      %v3231 = vpop.f32.mrb[0].mxu0
      %v3232 = vpop.f32.mrb[0].mxu0
      %v3233 = vadd.f32 0.0, %v3232
      %v3234 = vpop.f32.mrb[0].mxu0
      %3235 = vmatprep.mubr.bf16.mxu0 0
      %3236 = vmatmul.mubr.bf16.gmra.mrb[0].mxu0 %v3162
      %v3237 = vpop.f32.mrb[0].mxu0
      %v3238 = vadd.f32 0.0, %v3237
      %v3239 = vpop.f32.mrb[0].mxu0
      %v3240 = vpop.f32.mrb[0].mxu0
      %v3241 = vadd.f32 0.0, %v3240
      %v3242 = vpop.f32.mrb[0].mxu0
      %3243 = vmatprep.mubr.bf16.mxu0 0
      %3244 = vmatmul.mubr.bf16.gmra.mrb[0].mxu0 %v3164
      %v3245 = vpop.f32.mrb[0].mxu0
      %v3246 = vadd.f32 0.0, %v3245
      %v3247 = vpop.f32.mrb[0].mxu0
      %v3248 = vpop.f32.mrb[0].mxu0
      %v3249 = vadd.f32 0.0, %v3248
      %v3250 = vpop.f32.mrb[0].mxu0
      %3251 = vmatprep.mubr.bf16.mxu0 0
      %3252 = vmatmul.mubr.bf16.gmra.mrb[0].mxu0 %v3166
      %v3253 = vpop.f32.mrb[0].mxu0
      %v3254 = vadd.f32 0.0, %v3253
      %v3255 = vpop.f32.mrb[0].mxu0
      %v3256 = vpop.f32.mrb[0].mxu0
      %v3257 = vadd.f32 0.0, %v3256
      %v3258 = vpop.f32.mrb[0].mxu0
      %3259 = vmatprep.mubr.bf16.mxu0 0
      %3260 = vmatmul.mubr.bf16.gmra.mrb[0].mxu0 %v3168
      %v3261 = vpop.f32.mrb[0].mxu0
      %v3262 = vadd.f32 0.0, %v3261
      %v3263 = vpop.f32.mrb[0].mxu0
      %v3264 = vpop.f32.mrb[0].mxu0
      %v3265 = vadd.f32 0.0, %v3264
      %v3266 = vpop.f32.mrb[0].mxu0
      %3267 = vmatprep.mubr.bf16.mxu0 0
      %3268 = vmatmul.mubr.bf16.gmra.mrb[0].mxu0 %v3170
      %v3269 = vpop.f32.mrb[0].mxu0
      %v3270 = vadd.f32 0.0, %v3269
      %v3271 = vpop.f32.mrb[0].mxu0
      %v3272 = vpop.f32.mrb[0].mxu0
      %v3273 = vadd.f32 0.0, %v3272
      %v3274 = vpop.f32.mrb[0].mxu0
      %3275 = vmatprep.mubr.bf16.mxu0 0
      %3276 = vmatmul.mubr.bf16.gmra.mrb[0].mxu0 %v3172
      %v3277 = vpop.f32.mrb[0].mxu0
      %v3278 = vadd.f32 0.0, %v3277
      %v3279 = vpop.f32.mrb[0].mxu0
      %v3280 = vpop.f32.mrb[0].mxu0
      %v3281 = vadd.f32 0.0, %v3280
      %v3282 = vpop.f32.mrb[0].mxu0
      %3283 = vmatprep.mubr.bf16.mxu0 0
      %3284 = vmatmul.mubr.bf16.gmra.mrb[0].mxu0 %v3174
      %v3285 = vpop.f32.mrb[0].mxu0
      %v3286 = vadd.f32 0.0, %v3285
      %v3287 = vpop.f32.mrb[0].mxu0
      %v3288 = vpop.f32.mrb[0].mxu0
      %v3289 = vadd.f32 0.0, %v3288
      %v3290 = vpop.f32.mrb[0].mxu0
      %3291 = vmatprep.mubr.bf16.mxu0 0
      %3292 = vmatmul.mubr.bf16.gmra.mrb[0].mxu0 %v3176
      %v3293 = vpop.f32.mrb[0].mxu0
      %v3294 = vadd.f32 0.0, %v3293
      %v3295 = vpop.f32.mrb[0].mxu0
      %v3296 = vpop.f32.mrb[0].mxu0
      %v3297 = vadd.f32 0.0, %v3296
      %v3298 = vpop.f32.mrb[0].mxu0
      %3299 = vmatprep.mubr.bf16.mxu0 0
      %3300 = vmatmul.mubr.bf16.gmra.mrb[0].mxu0 %v3178
      %v3301 = vpop.f32.mrb[0].mxu0
      %v3302 = vadd.f32 0.0, %v3301
      %v3303 = vpop.f32.mrb[0].mxu0
      %v3304 = vpop.f32.mrb[0].mxu0
      %v3305 = vadd.f32 0.0, %v3304
      %v3306 = vpop.f32.mrb[0].mxu0
      %3307 = vmatprep.mubr.bf16.mxu0 0
      %3308 = vmatmul.mubr.bf16.gmra.mrb[0].mxu0 %v3180
      %v3309 = vpop.f32.mrb[0].mxu0
      %v3310 = vadd.f32 0.0, %v3309
      %v3311 = vpop.f32.mrb[0].mxu0
      %v3312 = vpop.f32.mrb[0].mxu0
      %v3313 = vadd.f32 0.0, %v3312
      %v3314 = vpop.f32.mrb[0].mxu0
      %3315 = vmatprep.mubr.bf16.mxu0 0
      %3316 = vmatmul.mubr.bf16.gmra.mrb[0].mxu0 %v3182
      %v3317 = vpop.f32.mrb[0].mxu0
      %v3318 = vadd.f32 0.0, %v3317
      %v3319 = vpop.f32.mrb[0].mxu0
      %v3320 = vpop.f32.mrb[0].mxu0
      %v3321 = vadd.f32 0.0, %v3320
      %v3322 = vpop.f32.mrb[0].mxu0
      %3323 = vmatprep.mubr.bf16.mxu0 0
      %3324 = vmatmul.mubr.bf16.gmra.mrb[0].mxu0 %v3184
      %v3325 = vpop.f32.mrb[0].mxu0
      %v3326 = vadd.f32 0.0, %v3325
      %v3327 = vpop.f32.mrb[0].mxu0
      %v3328 = vpop.f32.mrb[0].mxu0
      %v3329 = vadd.f32 0.0, %v3328
      %v3330 = vpop.f32.mrb[0].mxu0
      %3331 = vmatprep.mubr.bf16.mxu0 0
      %3332 = vmatmul.mubr.bf16.gmra.mrb[0].mxu0 %v3186
      %v3333 = vpop.f32.mrb[0].mxu0
      %v3334 = vadd.f32 0.0, %v3333
      %v3335 = vpop.f32.mrb[0].mxu0
      %v3336 = vpop.f32.mrb[0].mxu0
      %v3337 = vadd.f32 0.0, %v3336
      %v3338 = vpop.f32.mrb[0].mxu0
      %3339 = vmatprep.mubr.bf16.mxu0 0
      %3340 = vmatmul.mubr.bf16.gmra.mrb[0].mxu0 %v3188
      %v3341 = vpop.f32.mrb[0].mxu0
      %v3342 = vadd.f32 0.0, %v3341
      %v3343 = vpop.f32.mrb[0].mxu0
      %v3344 = vpop.f32.mrb[0].mxu0
      %v3345 = vadd.f32 0.0, %v3344
      %v3346 = vpop.f32.mrb[0].mxu0
      %3347 = vmatprep.mubr.bf16.mxu0 0
      %3348 = vmatmul.mubr.bf16.gmra.mrb[0].mxu0 %v3190
      %v3349 = vpop.f32.mrb[0].mxu0
      %v3350 = vadd.f32 0.0, %v3349
      %v3351 = vpop.f32.mrb[0].mxu0
      %v3352 = vpop.f32.mrb[0].mxu0
      %v3353 = vadd.f32 0.0, %v3352
      %v3354 = vpop.f32.mrb[0].mxu0
      %3355 = vdwg.mxu0
      %v3356 = vadd.f32 %v2481, %v3230
      %v3357 = vadd.f32 %v2484, %v3233
      %v3358 = vadd.f32 %v2489, %v3238
      %v3359 = vadd.f32 %v2492, %v3241
      %v3360 = vadd.f32 %v2497, %v3246
      %v3361 = vadd.f32 %v2500, %v3249
      %v3362 = vadd.f32 %v2505, %v3254
      %v3363 = vadd.f32 %v2508, %v3257
      %v3364 = vadd.f32 %v2513, %v3262
      %v3365 = vadd.f32 %v2516, %v3265
      %v3366 = vadd.f32 %v2521, %v3270
      %v3367 = vadd.f32 %v2524, %v3273
      %v3368 = vadd.f32 %v2529, %v3278
      %v3369 = vadd.f32 %v2532, %v3281
      %v3370 = vadd.f32 %v2537, %v3286
      %v3371 = vadd.f32 %v2540, %v3289
      %v3372 = vadd.f32 %v2545, %v3294
      %v3373 = vadd.f32 %v2548, %v3297
      %v3374 = vadd.f32 %v2553, %v3302
      %v3375 = vadd.f32 %v2556, %v3305
      %v3376 = vadd.f32 %v2561, %v3310
      %v3377 = vadd.f32 %v2564, %v3313
      %v3378 = vadd.f32 %v2569, %v3318
      %v3379 = vadd.f32 %v2572, %v3321
      %v3380 = vadd.f32 %v2577, %v3326
      %v3381 = vadd.f32 %v2580, %v3329
      %v3382 = vadd.f32 %v2585, %v3334
      %v3383 = vadd.f32 %v2588, %v3337
      %v3384 = vadd.f32 %v2593, %v3342
      %v3385 = vadd.f32 %v2596, %v3345
      %v3386 = vadd.f32 %v2601, %v3350
      %v3387 = vadd.f32 %v2604, %v3353
      %v3388 = vld [vmem:[%s4] sm:$0x1]
      %v3390 = vlaneseq
      %v3391 = vshrl.u32 %v3390, 7
      %v3392 = vsub.s32 0, %v3391
      %v3393 = vrot.slane %v3388, %v3392
      %v3395 = vadd.f32 %v3356, %v3393
      %v3396 = vadd.f32 %v3357, %v3393
      %v3397 = vadd.f32 %v3358, %v3393
      %v3398 = vadd.f32 %v3359, %v3393
      %v3399 = vadd.f32 %v3360, %v3393
      %v3400 = vadd.f32 %v3361, %v3393
      %v3401 = vadd.f32 %v3362, %v3393
      %v3402 = vadd.f32 %v3363, %v3393
      %v3403 = vadd.f32 %v3364, %v3393
      %v3404 = vadd.f32 %v3365, %v3393
      %v3405 = vadd.f32 %v3366, %v3393
      %v3406 = vadd.f32 %v3367, %v3393
      %v3407 = vadd.f32 %v3368, %v3393
      %v3408 = vadd.f32 %v3369, %v3393
      %v3409 = vadd.f32 %v3370, %v3393
      %v3410 = vadd.f32 %v3371, %v3393
      %v3411 = vadd.f32 %v3372, %v3393
      %v3412 = vadd.f32 %v3373, %v3393
      %v3413 = vadd.f32 %v3374, %v3393
      %v3414 = vadd.f32 %v3375, %v3393
      %v3415 = vadd.f32 %v3376, %v3393
      %v3416 = vadd.f32 %v3377, %v3393
      %v3417 = vadd.f32 %v3378, %v3393
      %v3418 = vadd.f32 %v3379, %v3393
      %v3419 = vadd.f32 %v3380, %v3393
      %v3420 = vadd.f32 %v3381, %v3393
      %v3421 = vadd.f32 %v3382, %v3393
      %v3422 = vadd.f32 %v3383, %v3393
      %v3423 = vadd.f32 %v3384, %v3393
      %v3424 = vadd.f32 %v3385, %v3393
      %v3425 = vadd.f32 %v3386, %v3393
      %v3426 = vadd.f32 %v3387, %v3393
      %v3427 = vpack.c.bf16 %v3396, %v3395
      %v3428 = vpack.c.bf16 %v3398, %v3397
      %v3429 = vpack.c.bf16 %v3400, %v3399
      %v3430 = vpack.c.bf16 %v3402, %v3401
      %v3431 = vpack.c.bf16 %v3404, %v3403
      %v3432 = vpack.c.bf16 %v3406, %v3405
      %v3433 = vpack.c.bf16 %v3408, %v3407
      %v3434 = vpack.c.bf16 %v3410, %v3409
      %v3435 = vpack.c.bf16 %v3412, %v3411
      %v3436 = vpack.c.bf16 %v3414, %v3413
      %v3437 = vpack.c.bf16 %v3416, %v3415
      %v3438 = vpack.c.bf16 %v3418, %v3417
      %v3439 = vpack.c.bf16 %v3420, %v3419
      %v3440 = vpack.c.bf16 %v3422, %v3421
      %v3441 = vpack.c.bf16 %v3424, %v3423
      %v3442 = vpack.c.bf16 %v3426, %v3425
      %v3459 = vunpack.c.l.b16 %v3427
      %v3460 = vunpack.c.h.b16 %v3427
      %v3461 = vunpack.c.l.b16 %v3428
      %v3462 = vunpack.c.h.b16 %v3428
      %v3463 = vunpack.c.l.b16 %v3429
      %v3464 = vunpack.c.h.b16 %v3429
      %v3465 = vunpack.c.l.b16 %v3430
      %v3466 = vunpack.c.h.b16 %v3430
      %v3467 = vunpack.c.l.b16 %v3431
      %v3468 = vunpack.c.h.b16 %v3431
      %v3469 = vunpack.c.l.b16 %v3432
      %v3470 = vunpack.c.h.b16 %v3432
      %v3471 = vunpack.c.l.b16 %v3433
      %v3472 = vunpack.c.h.b16 %v3433
      %v3473 = vunpack.c.l.b16 %v3434
      %v3474 = vunpack.c.h.b16 %v3434
      %v3475 = vunpack.c.l.b16 %v3435
      %v3476 = vunpack.c.h.b16 %v3435
      %v3477 = vunpack.c.l.b16 %v3436
      %v3478 = vunpack.c.h.b16 %v3436
      %v3479 = vunpack.c.l.b16 %v3437
      %v3480 = vunpack.c.h.b16 %v3437
      %v3481 = vunpack.c.l.b16 %v3438
      %v3482 = vunpack.c.h.b16 %v3438
      %v3483 = vunpack.c.l.b16 %v3439
      %v3484 = vunpack.c.h.b16 %v3439
      %v3485 = vunpack.c.l.b16 %v3440
      %v3486 = vunpack.c.h.b16 %v3440
      %v3487 = vunpack.c.l.b16 %v3441
      %v3488 = vunpack.c.h.b16 %v3441
      %v3489 = vunpack.c.l.b16 %v3442
      %v3490 = vunpack.c.h.b16 %v3442
      %v3491 = vpack.c.b16 %v3459, %v3459
      %v3492 = vpack.c.b16 %v3460, %v3460
      %v3493 = vpack.c.b16 %v3461, %v3461
      %v3494 = vpack.c.b16 %v3462, %v3462
      %v3495 = vpack.c.b16 %v3463, %v3463
      %v3496 = vpack.c.b16 %v3464, %v3464
      %v3497 = vpack.c.b16 %v3465, %v3465
      %v3498 = vpack.c.b16 %v3466, %v3466
      %v3499 = vpack.c.b16 %v3467, %v3467
      %v3500 = vpack.c.b16 %v3468, %v3468
      %v3501 = vpack.c.b16 %v3469, %v3469
      %v3502 = vpack.c.b16 %v3470, %v3470
      %v3503 = vpack.c.b16 %v3471, %v3471
      %v3504 = vpack.c.b16 %v3472, %v3472
      %v3505 = vpack.c.b16 %v3473, %v3473
      %v3506 = vpack.c.b16 %v3474, %v3474
      %v3507 = vpack.c.b16 %v3475, %v3475
      %v3508 = vpack.c.b16 %v3476, %v3476
      %v3509 = vpack.c.b16 %v3477, %v3477
      %v3510 = vpack.c.b16 %v3478, %v3478
      %v3511 = vpack.c.b16 %v3479, %v3479
      %v3512 = vpack.c.b16 %v3480, %v3480
      %v3513 = vpack.c.b16 %v3481, %v3481
      %v3514 = vpack.c.b16 %v3482, %v3482
      %v3515 = vpack.c.b16 %v3483, %v3483
      %v3516 = vpack.c.b16 %v3484, %v3484
      %v3517 = vpack.c.b16 %v3485, %v3485
      %v3518 = vpack.c.b16 %v3486, %v3486
      %v3519 = vpack.c.b16 %v3487, %v3487
      %v3520 = vpack.c.b16 %v3488, %v3488
      %v3521 = vpack.c.b16 %v3489, %v3489
      %v3522 = vpack.c.b16 %v3490, %v3490
      %v3524 = vshrl.u32 %v3491, 16
      %v3526 = vrot.slane %v3524, 7
      %v3527 = vshll.u32 %v3491, 16
      %v3529 = vor.u32 %v3526, %v3527
      %v3530 = vrot.slane %v3526, 4
      %v3532 = vshrl.u32 %v3492, 16
      %v3534 = vrot.slane %v3532, 7
      %v3535 = vshll.u32 %v3492, 16
      %v3537 = vor.u32 %v3534, %v3535
      %v3538 = vsel %vm670, %v3530, %v3537
      %v3539 = vrot.slane %v3534, 4
      %v3541 = vshrl.u32 %v3493, 16
      %v3543 = vrot.slane %v3541, 7
      %v3544 = vshll.u32 %v3493, 16
      %v3546 = vor.u32 %v3543, %v3544
      %v3547 = vrot.slane %v3543, 4
      %v3549 = vshrl.u32 %v3494, 16
      %v3551 = vrot.slane %v3549, 7
      %v3552 = vshll.u32 %v3494, 16
      %v3554 = vor.u32 %v3551, %v3552
      %v3555 = vsel %vm670, %v3547, %v3554
      %v3556 = vrot.slane %v3551, 4
      %v3558 = vshrl.u32 %v3495, 16
      %v3560 = vrot.slane %v3558, 7
      %v3561 = vshll.u32 %v3495, 16
      %v3563 = vor.u32 %v3560, %v3561
      %v3564 = vrot.slane %v3560, 4
      %v3566 = vshrl.u32 %v3496, 16
      %v3568 = vrot.slane %v3566, 7
      %v3569 = vshll.u32 %v3496, 16
      %v3571 = vor.u32 %v3568, %v3569
      %v3572 = vsel %vm670, %v3564, %v3571
      %v3573 = vrot.slane %v3568, 4
      %v3575 = vshrl.u32 %v3497, 16
      %v3577 = vrot.slane %v3575, 7
      %v3578 = vshll.u32 %v3497, 16
      %v3580 = vor.u32 %v3577, %v3578
      %v3581 = vrot.slane %v3577, 4
      %v3583 = vshrl.u32 %v3498, 16
      %v3585 = vrot.slane %v3583, 7
      %v3586 = vshll.u32 %v3498, 16
      %v3588 = vor.u32 %v3585, %v3586
      %v3589 = vsel %vm670, %v3581, %v3588
      %v3590 = vrot.slane %v3585, 4
      %v3592 = vshrl.u32 %v3499, 16
      %v3594 = vrot.slane %v3592, 7
      %v3595 = vshll.u32 %v3499, 16
      %v3597 = vor.u32 %v3594, %v3595
      %v3598 = vrot.slane %v3594, 4
      %v3600 = vshrl.u32 %v3500, 16
      %v3602 = vrot.slane %v3600, 7
      %v3603 = vshll.u32 %v3500, 16
      %v3605 = vor.u32 %v3602, %v3603
      %v3606 = vsel %vm670, %v3598, %v3605
      %v3607 = vrot.slane %v3602, 4
      %v3609 = vshrl.u32 %v3501, 16
      %v3611 = vrot.slane %v3609, 7
      %v3612 = vshll.u32 %v3501, 16
      %v3614 = vor.u32 %v3611, %v3612
      %v3615 = vrot.slane %v3611, 4
      %v3617 = vshrl.u32 %v3502, 16
      %v3619 = vrot.slane %v3617, 7
      %v3620 = vshll.u32 %v3502, 16
      %v3622 = vor.u32 %v3619, %v3620
      %v3623 = vsel %vm670, %v3615, %v3622
      %v3624 = vrot.slane %v3619, 4
      %v3626 = vshrl.u32 %v3503, 16
      %v3628 = vrot.slane %v3626, 7
      %v3629 = vshll.u32 %v3503, 16
      %v3631 = vor.u32 %v3628, %v3629
      %v3632 = vrot.slane %v3628, 4
      %v3634 = vshrl.u32 %v3504, 16
      %v3636 = vrot.slane %v3634, 7
      %v3637 = vshll.u32 %v3504, 16
      %v3639 = vor.u32 %v3636, %v3637
      %v3640 = vsel %vm670, %v3632, %v3639
      %v3641 = vrot.slane %v3636, 4
      %v3643 = vshrl.u32 %v3505, 16
      %v3645 = vrot.slane %v3643, 7
      %v3646 = vshll.u32 %v3505, 16
      %v3648 = vor.u32 %v3645, %v3646
      %v3649 = vrot.slane %v3645, 4
      %v3651 = vshrl.u32 %v3506, 16
      %v3653 = vrot.slane %v3651, 7
      %v3654 = vshll.u32 %v3506, 16
      %v3656 = vor.u32 %v3653, %v3654
      %v3657 = vsel %vm670, %v3649, %v3656
      %v3658 = vrot.slane %v3653, 4
      %v3660 = vshrl.u32 %v3507, 16
      %v3662 = vrot.slane %v3660, 7
      %v3663 = vshll.u32 %v3507, 16
      %v3665 = vor.u32 %v3662, %v3663
      %v3666 = vrot.slane %v3662, 4
      %v3668 = vshrl.u32 %v3508, 16
      %v3670 = vrot.slane %v3668, 7
      %v3671 = vshll.u32 %v3508, 16
      %v3673 = vor.u32 %v3670, %v3671
      %v3674 = vsel %vm670, %v3666, %v3673
      %v3675 = vrot.slane %v3670, 4
      %v3677 = vshrl.u32 %v3509, 16
      %v3679 = vrot.slane %v3677, 7
      %v3680 = vshll.u32 %v3509, 16
      %v3682 = vor.u32 %v3679, %v3680
      %v3683 = vrot.slane %v3679, 4
      %v3685 = vshrl.u32 %v3510, 16
      %v3687 = vrot.slane %v3685, 7
      %v3688 = vshll.u32 %v3510, 16
      %v3690 = vor.u32 %v3687, %v3688
      %v3691 = vsel %vm670, %v3683, %v3690
      %v3692 = vrot.slane %v3687, 4
      %v3694 = vshrl.u32 %v3511, 16
      %v3696 = vrot.slane %v3694, 7
      %v3697 = vshll.u32 %v3511, 16
      %v3699 = vor.u32 %v3696, %v3697
      %v3700 = vrot.slane %v3696, 4
      %v3702 = vshrl.u32 %v3512, 16
      %v3704 = vrot.slane %v3702, 7
      %v3705 = vshll.u32 %v3512, 16
      %v3707 = vor.u32 %v3704, %v3705
      %v3708 = vsel %vm670, %v3700, %v3707
      %v3709 = vrot.slane %v3704, 4
      %v3711 = vshrl.u32 %v3513, 16
      %v3713 = vrot.slane %v3711, 7
      %v3714 = vshll.u32 %v3513, 16
      %v3716 = vor.u32 %v3713, %v3714
      %v3717 = vrot.slane %v3713, 4
      %v3719 = vshrl.u32 %v3514, 16
      %v3721 = vrot.slane %v3719, 7
      %v3722 = vshll.u32 %v3514, 16
      %v3724 = vor.u32 %v3721, %v3722
      %v3725 = vsel %vm670, %v3717, %v3724
      %v3726 = vrot.slane %v3721, 4
      %v3728 = vshrl.u32 %v3515, 16
      %v3730 = vrot.slane %v3728, 7
      %v3731 = vshll.u32 %v3515, 16
      %v3733 = vor.u32 %v3730, %v3731
      %v3734 = vrot.slane %v3730, 4
      %v3736 = vshrl.u32 %v3516, 16
      %v3738 = vrot.slane %v3736, 7
      %v3739 = vshll.u32 %v3516, 16
      %v3741 = vor.u32 %v3738, %v3739
      %v3742 = vsel %vm670, %v3734, %v3741
      %v3743 = vrot.slane %v3738, 4
      %v3745 = vshrl.u32 %v3517, 16
      %v3747 = vrot.slane %v3745, 7
      %v3748 = vshll.u32 %v3517, 16
      %v3750 = vor.u32 %v3747, %v3748
      %v3751 = vrot.slane %v3747, 4
      %v3753 = vshrl.u32 %v3518, 16
      %v3755 = vrot.slane %v3753, 7
      %v3756 = vshll.u32 %v3518, 16
      %v3758 = vor.u32 %v3755, %v3756
      %v3759 = vsel %vm670, %v3751, %v3758
      %v3760 = vrot.slane %v3755, 4
      %v3762 = vshrl.u32 %v3519, 16
      %v3764 = vrot.slane %v3762, 7
      %v3765 = vshll.u32 %v3519, 16
      %v3767 = vor.u32 %v3764, %v3765
      %v3768 = vrot.slane %v3764, 4
      %v3770 = vshrl.u32 %v3520, 16
      %v3772 = vrot.slane %v3770, 7
      %v3773 = vshll.u32 %v3520, 16
      %v3775 = vor.u32 %v3772, %v3773
      %v3776 = vsel %vm670, %v3768, %v3775
      %v3777 = vrot.slane %v3772, 4
      %v3779 = vshrl.u32 %v3521, 16
      %v3781 = vrot.slane %v3779, 7
      %v3782 = vshll.u32 %v3521, 16
      %v3784 = vor.u32 %v3781, %v3782
      %v3785 = vrot.slane %v3781, 4
      %v3787 = vshrl.u32 %v3522, 16
      %v3789 = vrot.slane %v3787, 7
      %v3790 = vshll.u32 %v3522, 16
      %v3792 = vor.u32 %v3789, %v3790
      %v3793 = vsel %vm670, %v3785, %v3792
      %v3794 = vrot.slane %v3789, 4
      %s3843 = scalar_lea.vmem [#allocation3], 12
      %vm3844 = vcmask 519168
      %vm3845 = vmand %vm3844, %vm346
      %v3846 = vld [vmem:[%s3843] sm:$0xf]
      %v3847 = vsel %vm3845, %v3529, %v3846
      %3848 = vst [vmem:[%s3843] sm:$0xf] %v3847
      %3849 = vst.msk [vmem:[%s3843 + $0x4] sm:$0xf] %vm402, %v3538
      %v3850 = vld [vmem:[%s3843 + $0x8] sm:$0x1]
      %v3851 = vsel %vm412, %v3539, %v3850
      %3852 = vst [vmem:[%s3843 + $0x8] sm:$0x1] %v3851
      %v3853 = vld [vmem:[%s3843 + $0xc] sm:$0xf]
      %v3854 = vsel %vm3845, %v3546, %v3853
      %3855 = vst [vmem:[%s3843 + $0xc] sm:$0xf] %v3854
      %3856 = vst.msk [vmem:[%s3843 + $0x10] sm:$0xf] %vm402, %v3555
      %v3857 = vld [vmem:[%s3843 + $0x14] sm:$0x1]
      %v3858 = vsel %vm412, %v3556, %v3857
      %3859 = vst [vmem:[%s3843 + $0x14] sm:$0x1] %v3858
      %v3860 = vld [vmem:[%s3843 + $0x18] sm:$0xf]
      %v3861 = vsel %vm3845, %v3563, %v3860
      %3862 = vst [vmem:[%s3843 + $0x18] sm:$0xf] %v3861
      %3863 = vst.msk [vmem:[%s3843 + $0x1c] sm:$0xf] %vm402, %v3572
      %v3864 = vld [vmem:[%s3843 + $0x20] sm:$0x1]
      %v3865 = vsel %vm412, %v3573, %v3864
      %3866 = vst [vmem:[%s3843 + $0x20] sm:$0x1] %v3865
      %v3867 = vld [vmem:[%s3843 + $0x24] sm:$0xf]
      %v3868 = vsel %vm3845, %v3580, %v3867
      %3869 = vst [vmem:[%s3843 + $0x24] sm:$0xf] %v3868
      %3870 = vst.msk [vmem:[%s3843 + $0x28] sm:$0xf] %vm402, %v3589
      %v3871 = vld [vmem:[%s3843 + $0x2c] sm:$0x1]
      %v3872 = vsel %vm412, %v3590, %v3871
      %3873 = vst [vmem:[%s3843 + $0x2c] sm:$0x1] %v3872
      %v3874 = vld [vmem:[%s3843 + $0x30] sm:$0xf]
      %v3875 = vsel %vm3845, %v3597, %v3874
      %3876 = vst [vmem:[%s3843 + $0x30] sm:$0xf] %v3875
      %3877 = vst.msk [vmem:[%s3843 + $0x34] sm:$0xf] %vm402, %v3606
      %v3878 = vld [vmem:[%s3843 + $0x38] sm:$0x1]
      %v3879 = vsel %vm412, %v3607, %v3878
      %3880 = vst [vmem:[%s3843 + $0x38] sm:$0x1] %v3879
      %v3881 = vld [vmem:[%s3843 + $0x3c] sm:$0xf]
      %v3882 = vsel %vm3845, %v3614, %v3881
      %3883 = vst [vmem:[%s3843 + $0x3c] sm:$0xf] %v3882
      %3884 = vst.msk [vmem:[%s3843 + $0x40] sm:$0xf] %vm402, %v3623
      %v3885 = vld [vmem:[%s3843 + $0x44] sm:$0x1]
      %v3886 = vsel %vm412, %v3624, %v3885
      %3887 = vst [vmem:[%s3843 + $0x44] sm:$0x1] %v3886
      %v3888 = vld [vmem:[%s3843 + $0x48] sm:$0xf]
      %v3889 = vsel %vm3845, %v3631, %v3888
      %3890 = vst [vmem:[%s3843 + $0x48] sm:$0xf] %v3889
      %3891 = vst.msk [vmem:[%s3843 + $0x4c] sm:$0xf] %vm402, %v3640
      %v3892 = vld [vmem:[%s3843 + $0x50] sm:$0x1]
      %v3893 = vsel %vm412, %v3641, %v3892
      %3894 = vst [vmem:[%s3843 + $0x50] sm:$0x1] %v3893
      %v3895 = vld [vmem:[%s3843 + $0x54] sm:$0xf]
      %v3896 = vsel %vm3845, %v3648, %v3895
      %3897 = vst [vmem:[%s3843 + $0x54] sm:$0xf] %v3896
      %3898 = vst.msk [vmem:[%s3843 + $0x58] sm:$0xf] %vm402, %v3657
      %v3899 = vld [vmem:[%s3843 + $0x5c] sm:$0x1]
      %v3900 = vsel %vm412, %v3658, %v3899
      %3901 = vst [vmem:[%s3843 + $0x5c] sm:$0x1] %v3900
      %v3902 = vld [vmem:[%s3843 + $0x60] sm:$0xf]
      %v3903 = vsel %vm3845, %v3665, %v3902
      %3904 = vst [vmem:[%s3843 + $0x60] sm:$0xf] %v3903
      %3905 = vst.msk [vmem:[%s3843 + $0x64] sm:$0xf] %vm402, %v3674
      %v3906 = vld [vmem:[%s3843 + $0x68] sm:$0x1]
      %v3907 = vsel %vm412, %v3675, %v3906
      %3908 = vst [vmem:[%s3843 + $0x68] sm:$0x1] %v3907
      %v3909 = vld [vmem:[%s3843 + $0x6c] sm:$0xf]
      %v3910 = vsel %vm3845, %v3682, %v3909
      %3911 = vst [vmem:[%s3843 + $0x6c] sm:$0xf] %v3910
      %3912 = vst.msk [vmem:[%s3843 + $0x70] sm:$0xf] %vm402, %v3691
      %v3913 = vld [vmem:[%s3843 + $0x74] sm:$0x1]
      %v3914 = vsel %vm412, %v3692, %v3913
      %3915 = vst [vmem:[%s3843 + $0x74] sm:$0x1] %v3914
      %v3916 = vld [vmem:[%s3843 + $0x78] sm:$0xf]
      %v3917 = vsel %vm3845, %v3699, %v3916
      %3918 = vst [vmem:[%s3843 + $0x78] sm:$0xf] %v3917
      %3919 = vst.msk [vmem:[%s3843 + $0x7c] sm:$0xf] %vm402, %v3708
      %v3920 = vld [vmem:[%s3843 + $0x80] sm:$0x1]
      %v3921 = vsel %vm412, %v3709, %v3920
      %3922 = vst [vmem:[%s3843 + $0x80] sm:$0x1] %v3921
      %v3923 = vld [vmem:[%s3843 + $0x84] sm:$0xf]
      %v3924 = vsel %vm3845, %v3716, %v3923
      %3925 = vst [vmem:[%s3843 + $0x84] sm:$0xf] %v3924
      %3926 = vst.msk [vmem:[%s3843 + $0x88] sm:$0xf] %vm402, %v3725
      %v3927 = vld [vmem:[%s3843 + $0x8c] sm:$0x1]
      %v3928 = vsel %vm412, %v3726, %v3927
      %3929 = vst [vmem:[%s3843 + $0x8c] sm:$0x1] %v3928
      %v3930 = vld [vmem:[%s3843 + $0x90] sm:$0xf]
      %v3931 = vsel %vm3845, %v3733, %v3930
      %3932 = vst [vmem:[%s3843 + $0x90] sm:$0xf] %v3931
      %3933 = vst.msk [vmem:[%s3843 + $0x94] sm:$0xf] %vm402, %v3742
      %v3934 = vld [vmem:[%s3843 + $0x98] sm:$0x1]
      %v3935 = vsel %vm412, %v3743, %v3934
      %3936 = vst [vmem:[%s3843 + $0x98] sm:$0x1] %v3935
      %v3937 = vld [vmem:[%s3843 + $0x9c] sm:$0xf]
      %v3938 = vsel %vm3845, %v3750, %v3937
      %3939 = vst [vmem:[%s3843 + $0x9c] sm:$0xf] %v3938
      %3940 = vst.msk [vmem:[%s3843 + $0xa0] sm:$0xf] %vm402, %v3759
      %v3941 = vld [vmem:[%s3843 + $0xa4] sm:$0x1]
      %v3942 = vsel %vm412, %v3760, %v3941
      %3943 = vst [vmem:[%s3843 + $0xa4] sm:$0x1] %v3942
      %v3944 = vld [vmem:[%s3843 + $0xa8] sm:$0xf]
      %v3945 = vsel %vm3845, %v3767, %v3944
      %3946 = vst [vmem:[%s3843 + $0xa8] sm:$0xf] %v3945
      %3947 = vst.msk [vmem:[%s3843 + $0xac] sm:$0xf] %vm402, %v3776
      %v3948 = vld [vmem:[%s3843 + $0xb0] sm:$0x1]
      %v3949 = vsel %vm412, %v3777, %v3948
      %3950 = vst [vmem:[%s3843 + $0xb0] sm:$0x1] %v3949
      %v3951 = vld [vmem:[%s3843 + $0xb4] sm:$0xf]
      %v3952 = vsel %vm3845, %v3784, %v3951
      %3953 = vst [vmem:[%s3843 + $0xb4] sm:$0xf] %v3952
      %3954 = vst.msk [vmem:[%s3843 + $0xb8] sm:$0xf] %vm402, %v3793
      %v3955 = vld [vmem:[%s3843 + $0xbc] sm:$0x1]
      %v3956 = vsel %vm412, %v3794, %v3955
      %3957 = vst [vmem:[%s3843 + $0xbc] sm:$0x1] %v3956
      %v3958 = vld [vmem:[#allocation3] sm:$0xf]
      %v3959 = vld [vmem:[#allocation3 + $0x4] sm:$0xf]
      %v3960 = vld [vmem:[#allocation3 + $0x8] sm:$0x1]
      %v3961 = vld [vmem:[#allocation3 + $0xc] sm:$0xf]
      %v3962 = vld [vmem:[#allocation3 + $0x10] sm:$0xf]
      %v3963 = vld [vmem:[#allocation3 + $0x14] sm:$0x1]
      %v3964 = vld [vmem:[#allocation3 + $0x18] sm:$0xf]
      %v3965 = vld [vmem:[#allocation3 + $0x1c] sm:$0xf]
      %v3966 = vld [vmem:[#allocation3 + $0x20] sm:$0x1]
      %v3967 = vld [vmem:[#allocation3 + $0x24] sm:$0xf]
      %v3968 = vld [vmem:[#allocation3 + $0x28] sm:$0xf]
      %v3969 = vld [vmem:[#allocation3 + $0x2c] sm:$0x1]
      %v3970 = vld [vmem:[#allocation3 + $0x30] sm:$0xf]
      %v3971 = vld [vmem:[#allocation3 + $0x34] sm:$0xf]
      %v3972 = vld [vmem:[#allocation3 + $0x38] sm:$0x1]
      %v3973 = vld [vmem:[#allocation3 + $0x3c] sm:$0xf]
      %v3974 = vld [vmem:[#allocation3 + $0x40] sm:$0xf]
      %v3975 = vld [vmem:[#allocation3 + $0x44] sm:$0x1]
      %v3976 = vld [vmem:[#allocation3 + $0x48] sm:$0xf]
      %v3977 = vld [vmem:[#allocation3 + $0x4c] sm:$0xf]
      %v3978 = vld [vmem:[#allocation3 + $0x50] sm:$0x1]
      %v3979 = vld [vmem:[#allocation3 + $0x54] sm:$0xf]
      %v3980 = vld [vmem:[#allocation3 + $0x58] sm:$0xf]
      %v3981 = vld [vmem:[#allocation3 + $0x5c] sm:$0x1]
      %v3982 = vld [vmem:[#allocation3 + $0x60] sm:$0xf]
      %v3983 = vld [vmem:[#allocation3 + $0x64] sm:$0xf]
      %v3984 = vld [vmem:[#allocation3 + $0x68] sm:$0x1]
      %v3985 = vld [vmem:[#allocation3 + $0x6c] sm:$0xf]
      %v3986 = vld [vmem:[#allocation3 + $0x70] sm:$0xf]
      %v3987 = vld [vmem:[#allocation3 + $0x74] sm:$0x1]
      %v3988 = vld [vmem:[#allocation3 + $0x78] sm:$0xf]
      %v3989 = vld [vmem:[#allocation3 + $0x7c] sm:$0xf]
      %v3990 = vld [vmem:[#allocation3 + $0x80] sm:$0x1]
      %v3991 = vld [vmem:[#allocation3 + $0x84] sm:$0xf]
      %v3992 = vld [vmem:[#allocation3 + $0x88] sm:$0xf]
      %v3993 = vld [vmem:[#allocation3 + $0x8c] sm:$0x1]
      %v3994 = vld [vmem:[#allocation3 + $0x90] sm:$0xf]
      %v3995 = vld [vmem:[#allocation3 + $0x94] sm:$0xf]
      %v3996 = vld [vmem:[#allocation3 + $0x98] sm:$0x1]
      %v3997 = vld [vmem:[#allocation3 + $0x9c] sm:$0xf]
      %v3998 = vld [vmem:[#allocation3 + $0xa0] sm:$0xf]
      %v3999 = vld [vmem:[#allocation3 + $0xa4] sm:$0x1]
      %v4000 = vld [vmem:[#allocation3 + $0xa8] sm:$0xf]
      %v4001 = vld [vmem:[#allocation3 + $0xac] sm:$0xf]
      %v4002 = vld [vmem:[#allocation3 + $0xb0] sm:$0x1]
      %v4003 = vld [vmem:[#allocation3 + $0xb4] sm:$0xf]
      %v4004 = vld [vmem:[#allocation3 + $0xb8] sm:$0xf]
      %v4005 = vld [vmem:[#allocation3 + $0xbc] sm:$0x1]
      %v4038 = vunpack.c.l.b16 %v3958
      %v4039 = vunpack.c.l.b16 %v3959
      %v4040 = vunpack.c.l.b16 %v3961
      %v4041 = vunpack.c.l.b16 %v3962
      %v4042 = vunpack.c.l.b16 %v3964
      %v4043 = vunpack.c.l.b16 %v3965
      %v4044 = vunpack.c.l.b16 %v3967
      %v4045 = vunpack.c.l.b16 %v3968
      %v4046 = vunpack.c.l.b16 %v3970
      %v4047 = vunpack.c.l.b16 %v3971
      %v4048 = vunpack.c.l.b16 %v3973
      %v4049 = vunpack.c.l.b16 %v3974
      %v4050 = vunpack.c.l.b16 %v3976
      %v4051 = vunpack.c.l.b16 %v3977
      %v4052 = vunpack.c.l.b16 %v3979
      %v4053 = vunpack.c.l.b16 %v3980
      %v4054 = vunpack.c.l.b16 %v3982
      %v4055 = vunpack.c.l.b16 %v3983
      %v4056 = vunpack.c.l.b16 %v3985
      %v4057 = vunpack.c.l.b16 %v3986
      %v4058 = vunpack.c.l.b16 %v3988
      %v4059 = vunpack.c.l.b16 %v3989
      %v4060 = vunpack.c.l.b16 %v3991
      %v4061 = vunpack.c.l.b16 %v3992
      %v4062 = vunpack.c.l.b16 %v3994
      %v4063 = vunpack.c.l.b16 %v3995
      %v4064 = vunpack.c.l.b16 %v3997
      %v4065 = vunpack.c.l.b16 %v3998
      %v4066 = vunpack.c.l.b16 %v4000
      %v4067 = vunpack.c.l.b16 %v4001
      %v4068 = vunpack.c.l.b16 %v4003
      %v4069 = vunpack.c.l.b16 %v4004
      %v4070 = vpack.c.b16 %v4039, %v4038
      %v4071 = vpack.c.b16 %v4041, %v4040
      %v4072 = vpack.c.b16 %v4043, %v4042
      %v4073 = vpack.c.b16 %v4045, %v4044
      %v4074 = vpack.c.b16 %v4047, %v4046
      %v4075 = vpack.c.b16 %v4049, %v4048
      %v4076 = vpack.c.b16 %v4051, %v4050
      %v4077 = vpack.c.b16 %v4053, %v4052
      %v4078 = vpack.c.b16 %v4055, %v4054
      %v4079 = vpack.c.b16 %v4057, %v4056
      %v4080 = vpack.c.b16 %v4059, %v4058
      %v4081 = vpack.c.b16 %v4061, %v4060
      %v4082 = vpack.c.b16 %v4063, %v4062
      %v4083 = vpack.c.b16 %v4065, %v4064
      %v4084 = vpack.c.b16 %v4067, %v4066
      %v4085 = vpack.c.b16 %v4069, %v4068
      %v4102 = vunpack.c.l.b16 %v3960
      %v4103 = vunpack.c.l.b16 %v3963
      %v4104 = vunpack.c.l.b16 %v3966
      %v4105 = vunpack.c.l.b16 %v3969
      %v4106 = vunpack.c.l.b16 %v3972
      %v4107 = vunpack.c.l.b16 %v3975
      %v4108 = vunpack.c.l.b16 %v3978
      %v4109 = vunpack.c.l.b16 %v3981
      %v4110 = vunpack.c.l.b16 %v3984
      %v4111 = vunpack.c.l.b16 %v3987
      %v4112 = vunpack.c.l.b16 %v3990
      %v4113 = vunpack.c.l.b16 %v3993
      %v4114 = vunpack.c.l.b16 %v3996
      %v4115 = vunpack.c.l.b16 %v3999
      %v4116 = vunpack.c.l.b16 %v4002
      %v4117 = vunpack.c.l.b16 %v4005
      %v4118 = vpack.c.b16 %v4102, %v4102
      %v4119 = vpack.c.b16 %v4103, %v4103
      %v4120 = vpack.c.b16 %v4104, %v4104
      %v4121 = vpack.c.b16 %v4105, %v4105
      %v4122 = vpack.c.b16 %v4106, %v4106
      %v4123 = vpack.c.b16 %v4107, %v4107
      %v4124 = vpack.c.b16 %v4108, %v4108
      %v4125 = vpack.c.b16 %v4109, %v4109
      %v4126 = vpack.c.b16 %v4110, %v4110
      %v4127 = vpack.c.b16 %v4111, %v4111
      %v4128 = vpack.c.b16 %v4112, %v4112
      %v4129 = vpack.c.b16 %v4113, %v4113
      %v4130 = vpack.c.b16 %v4114, %v4114
      %v4131 = vpack.c.b16 %v4115, %v4115
      %v4132 = vpack.c.b16 %v4116, %v4116
      %v4133 = vpack.c.b16 %v4117, %v4117
      %v4135 = vshrl.u32 %v4070, 16
      %v4137 = vshll.u32 %v4070, 16
      %v4139 = vrot.slane %v4137, 1
      %v4140 = vor.u32 %v4135, %v4139
      %v4142 = vshll.u32 %v4118, 16
      %v4144 = vrot.slane %v4142, 1
      %v4145 = vsel %vm1282, %v4140, %v4144
      %v4147 = vshrl.u32 %v4071, 16
      %v4149 = vshll.u32 %v4071, 16
      %v4151 = vrot.slane %v4149, 1
      %v4152 = vor.u32 %v4147, %v4151
      %v4154 = vshll.u32 %v4119, 16
      %v4156 = vrot.slane %v4154, 1
      %v4157 = vsel %vm1282, %v4152, %v4156
      %v4159 = vshrl.u32 %v4072, 16
      %v4161 = vshll.u32 %v4072, 16
      %v4163 = vrot.slane %v4161, 1
      %v4164 = vor.u32 %v4159, %v4163
      %v4166 = vshll.u32 %v4120, 16
      %v4168 = vrot.slane %v4166, 1
      %v4169 = vsel %vm1282, %v4164, %v4168
      %v4171 = vshrl.u32 %v4073, 16
      %v4173 = vshll.u32 %v4073, 16
      %v4175 = vrot.slane %v4173, 1
      %v4176 = vor.u32 %v4171, %v4175
      %v4178 = vshll.u32 %v4121, 16
      %v4180 = vrot.slane %v4178, 1
      %v4181 = vsel %vm1282, %v4176, %v4180
      %v4183 = vshrl.u32 %v4074, 16
      %v4185 = vshll.u32 %v4074, 16
      %v4187 = vrot.slane %v4185, 1
      %v4188 = vor.u32 %v4183, %v4187
      %v4190 = vshll.u32 %v4122, 16
      %v4192 = vrot.slane %v4190, 1
      %v4193 = vsel %vm1282, %v4188, %v4192
      %v4195 = vshrl.u32 %v4075, 16
      %v4197 = vshll.u32 %v4075, 16
      %v4199 = vrot.slane %v4197, 1
      %v4200 = vor.u32 %v4195, %v4199
      %v4202 = vshll.u32 %v4123, 16
      %v4204 = vrot.slane %v4202, 1
      %v4205 = vsel %vm1282, %v4200, %v4204
      %v4207 = vshrl.u32 %v4076, 16
      %v4209 = vshll.u32 %v4076, 16
      %v4211 = vrot.slane %v4209, 1
      %v4212 = vor.u32 %v4207, %v4211
      %v4214 = vshll.u32 %v4124, 16
      %v4216 = vrot.slane %v4214, 1
      %v4217 = vsel %vm1282, %v4212, %v4216
      %v4219 = vshrl.u32 %v4077, 16
      %v4221 = vshll.u32 %v4077, 16
      %v4223 = vrot.slane %v4221, 1
      %v4224 = vor.u32 %v4219, %v4223
      %v4226 = vshll.u32 %v4125, 16
      %v4228 = vrot.slane %v4226, 1
      %v4229 = vsel %vm1282, %v4224, %v4228
      %v4231 = vshrl.u32 %v4078, 16
      %v4233 = vshll.u32 %v4078, 16
      %v4235 = vrot.slane %v4233, 1
      %v4236 = vor.u32 %v4231, %v4235
      %v4238 = vshll.u32 %v4126, 16
      %v4240 = vrot.slane %v4238, 1
      %v4241 = vsel %vm1282, %v4236, %v4240
      %v4243 = vshrl.u32 %v4079, 16
      %v4245 = vshll.u32 %v4079, 16
      %v4247 = vrot.slane %v4245, 1
      %v4248 = vor.u32 %v4243, %v4247
      %v4250 = vshll.u32 %v4127, 16
      %v4252 = vrot.slane %v4250, 1
      %v4253 = vsel %vm1282, %v4248, %v4252
      %v4255 = vshrl.u32 %v4080, 16
      %v4257 = vshll.u32 %v4080, 16
      %v4259 = vrot.slane %v4257, 1
      %v4260 = vor.u32 %v4255, %v4259
      %v4262 = vshll.u32 %v4128, 16
      %v4264 = vrot.slane %v4262, 1
      %v4265 = vsel %vm1282, %v4260, %v4264
      %v4267 = vshrl.u32 %v4081, 16
      %v4269 = vshll.u32 %v4081, 16
      %v4271 = vrot.slane %v4269, 1
      %v4272 = vor.u32 %v4267, %v4271
      %v4274 = vshll.u32 %v4129, 16
      %v4276 = vrot.slane %v4274, 1
      %v4277 = vsel %vm1282, %v4272, %v4276
      %v4279 = vshrl.u32 %v4082, 16
      %v4281 = vshll.u32 %v4082, 16
      %v4283 = vrot.slane %v4281, 1
      %v4284 = vor.u32 %v4279, %v4283
      %v4286 = vshll.u32 %v4130, 16
      %v4288 = vrot.slane %v4286, 1
      %v4289 = vsel %vm1282, %v4284, %v4288
      %v4291 = vshrl.u32 %v4083, 16
      %v4293 = vshll.u32 %v4083, 16
      %v4295 = vrot.slane %v4293, 1
      %v4296 = vor.u32 %v4291, %v4295
      %v4298 = vshll.u32 %v4131, 16
      %v4300 = vrot.slane %v4298, 1
      %v4301 = vsel %vm1282, %v4296, %v4300
      %v4303 = vshrl.u32 %v4084, 16
      %v4305 = vshll.u32 %v4084, 16
      %v4307 = vrot.slane %v4305, 1
      %v4308 = vor.u32 %v4303, %v4307
      %v4310 = vshll.u32 %v4132, 16
      %v4312 = vrot.slane %v4310, 1
      %v4313 = vsel %vm1282, %v4308, %v4312
      %v4315 = vshrl.u32 %v4085, 16
      %v4317 = vshll.u32 %v4085, 16
      %v4319 = vrot.slane %v4317, 1
      %v4320 = vor.u32 %v4315, %v4319
      %v4322 = vshll.u32 %v4133, 16
      %v4324 = vrot.slane %v4322, 1
      %v4325 = vsel %vm1282, %v4320, %v4324
      %4326 = vrot.lane.b32.xlu0 %v4145, 64
      %v4327 = vpop.permute.xlu0 %4326
      %4328 = vrot.lane.b32.xlu0 %v4157, 64
      %v4329 = vpop.permute.xlu0 %4328
      %4330 = vrot.lane.b32.xlu0 %v4169, 64
      %v4331 = vpop.permute.xlu0 %4330
      %4332 = vrot.lane.b32.xlu0 %v4181, 64
      %v4333 = vpop.permute.xlu0 %4332
      %4334 = vrot.lane.b32.xlu0 %v4193, 64
      %v4335 = vpop.permute.xlu0 %4334
      %4336 = vrot.lane.b32.xlu0 %v4205, 64
      %v4337 = vpop.permute.xlu0 %4336
      %4338 = vrot.lane.b32.xlu0 %v4217, 64
      %v4339 = vpop.permute.xlu0 %4338
      %4340 = vrot.lane.b32.xlu0 %v4229, 64
      %v4341 = vpop.permute.xlu0 %4340
      %4342 = vrot.lane.b32.xlu0 %v4241, 64
      %v4343 = vpop.permute.xlu0 %4342
      %4344 = vrot.lane.b32.xlu0 %v4253, 64
      %v4345 = vpop.permute.xlu0 %4344
      %4346 = vrot.lane.b32.xlu0 %v4265, 64
      %v4347 = vpop.permute.xlu0 %4346
      %4348 = vrot.lane.b32.xlu0 %v4277, 64
      %v4349 = vpop.permute.xlu0 %4348
      %4350 = vrot.lane.b32.xlu0 %v4289, 64
      %v4351 = vpop.permute.xlu0 %4350
      %4352 = vrot.lane.b32.xlu0 %v4301, 64
      %v4353 = vpop.permute.xlu0 %4352
      %4354 = vrot.lane.b32.xlu0 %v4313, 64
      %v4355 = vpop.permute.xlu0 %4354
      %4356 = vrot.lane.b32.xlu0 %v4325, 64
      %v4357 = vpop.permute.xlu0 %4356
      %v4358 = vrot.slane %v4070, 1
      %v4359 = vrot.slane %v4118, 1
      %v4360 = vsel %vm1507, %v4358, %v4359
      %v4361 = vrot.slane %v4071, 1
      %v4362 = vrot.slane %v4119, 1
      %v4363 = vsel %vm1507, %v4361, %v4362
      %v4364 = vrot.slane %v4072, 1
      %v4365 = vrot.slane %v4120, 1
      %v4366 = vsel %vm1507, %v4364, %v4365
      %v4367 = vrot.slane %v4073, 1
      %v4368 = vrot.slane %v4121, 1
      %v4369 = vsel %vm1507, %v4367, %v4368
      %v4370 = vrot.slane %v4074, 1
      %v4371 = vrot.slane %v4122, 1
      %v4372 = vsel %vm1507, %v4370, %v4371
      %v4373 = vrot.slane %v4075, 1
      %v4374 = vrot.slane %v4123, 1
      %v4375 = vsel %vm1507, %v4373, %v4374
      %v4376 = vrot.slane %v4076, 1
      %v4377 = vrot.slane %v4124, 1
      %v4378 = vsel %vm1507, %v4376, %v4377
      %v4379 = vrot.slane %v4077, 1
      %v4380 = vrot.slane %v4125, 1
      %v4381 = vsel %vm1507, %v4379, %v4380
      %v4382 = vrot.slane %v4078, 1
      %v4383 = vrot.slane %v4126, 1
      %v4384 = vsel %vm1507, %v4382, %v4383
      %v4385 = vrot.slane %v4079, 1
      %v4386 = vrot.slane %v4127, 1
      %v4387 = vsel %vm1507, %v4385, %v4386
      %v4388 = vrot.slane %v4080, 1
      %v4389 = vrot.slane %v4128, 1
      %v4390 = vsel %vm1507, %v4388, %v4389
      %v4391 = vrot.slane %v4081, 1
      %v4392 = vrot.slane %v4129, 1
      %v4393 = vsel %vm1507, %v4391, %v4392
      %v4394 = vrot.slane %v4082, 1
      %v4395 = vrot.slane %v4130, 1
      %v4396 = vsel %vm1507, %v4394, %v4395
      %v4397 = vrot.slane %v4083, 1
      %v4398 = vrot.slane %v4131, 1
      %v4399 = vsel %vm1507, %v4397, %v4398
      %v4400 = vrot.slane %v4084, 1
      %v4401 = vrot.slane %v4132, 1
      %v4402 = vsel %vm1507, %v4400, %v4401
      %v4403 = vrot.slane %v4085, 1
      %v4404 = vrot.slane %v4133, 1
      %v4405 = vsel %vm1507, %v4403, %v4404
      %vm4406 = vcmask 523264
      %v4408 = vsel %vm4406, %v4070, %v4327
      %v4411 = vsel %vm4406, %v4071, %v4329
      %v4414 = vsel %vm4406, %v4072, %v4331
      %v4417 = vsel %vm4406, %v4073, %v4333
      %v4420 = vsel %vm4406, %v4074, %v4335
      %v4423 = vsel %vm4406, %v4075, %v4337
      %v4426 = vsel %vm4406, %v4076, %v4339
      %v4429 = vsel %vm4406, %v4077, %v4341
      %v4432 = vsel %vm4406, %v4078, %v4343
      %v4435 = vsel %vm4406, %v4079, %v4345
      %v4438 = vsel %vm4406, %v4080, %v4347
      %v4441 = vsel %vm4406, %v4081, %v4349
      %v4444 = vsel %vm4406, %v4082, %v4351
      %v4447 = vsel %vm4406, %v4083, %v4353
      %v4450 = vsel %vm4406, %v4084, %v4355
      %v4453 = vsel %vm4406, %v4085, %v4357
      %v4455 = vld [vmem:[%s2] sm:$0xf]
      %v4456 = vld [vmem:[%s2 + $0x4] sm:$0xf]
      %v4457 = vld [vmem:[%s2 + $0x8] sm:$0xf]
      %v4458 = vld [vmem:[%s2 + $0xc] sm:$0xf]
      %v4459 = vld [vmem:[%s2 + $0x10] sm:$0xf]
      %v4460 = vld [vmem:[%s2 + $0x14] sm:$0xf]
      %v4461 = vld [vmem:[%s2 + $0x18] sm:$0xf]
      %v4462 = vld [vmem:[%s2 + $0x1c] sm:$0xf]
      %v4463 = vld [vmem:[%s2 + $0x20] sm:$0xf]
      %v4464 = vld [vmem:[%s2 + $0x24] sm:$0xf]
      %v4465 = vld [vmem:[%s2 + $0x28] sm:$0xf]
      %v4466 = vld [vmem:[%s2 + $0x2c] sm:$0xf]
      %v4467 = vld [vmem:[%s2 + $0x30] sm:$0xf]
      %v4468 = vld [vmem:[%s2 + $0x34] sm:$0xf]
      %v4469 = vld [vmem:[%s2 + $0x38] sm:$0xf]
      %v4470 = vld [vmem:[%s2 + $0x3c] sm:$0xf]
      %v4471 = vld [vmem:[%s2 + $0x40] sm:$0xf]
      %v4472 = vld [vmem:[%s2 + $0x44] sm:$0xf]
      %v4473 = vld [vmem:[%s2 + $0x48] sm:$0xf]
      %v4474 = vld [vmem:[%s2 + $0x4c] sm:$0xf]
      %v4475 = vld [vmem:[%s2 + $0x50] sm:$0xf]
      %v4476 = vld [vmem:[%s2 + $0x54] sm:$0xf]
      %v4477 = vld [vmem:[%s2 + $0x58] sm:$0xf]
      %v4478 = vld [vmem:[%s2 + $0x5c] sm:$0xf]
      %v4479 = vld [vmem:[%s3843] sm:$0xf]
      %v4480 = vld [vmem:[%s3843 + $0x4] sm:$0xf]
      %v4481 = vld [vmem:[%s3843 + $0x8] sm:$0x1]
      %v4482 = vld [vmem:[%s3843 + $0xc] sm:$0xf]
      %v4483 = vld [vmem:[%s3843 + $0x10] sm:$0xf]
      %v4484 = vld [vmem:[%s3843 + $0x14] sm:$0x1]
      %v4485 = vld [vmem:[%s3843 + $0x18] sm:$0xf]
      %v4486 = vld [vmem:[%s3843 + $0x1c] sm:$0xf]
      %v4487 = vld [vmem:[%s3843 + $0x20] sm:$0x1]
      %v4488 = vld [vmem:[%s3843 + $0x24] sm:$0xf]
      %v4489 = vld [vmem:[%s3843 + $0x28] sm:$0xf]
      %v4490 = vld [vmem:[%s3843 + $0x2c] sm:$0x1]
      %v4491 = vld [vmem:[%s3843 + $0x30] sm:$0xf]
      %v4492 = vld [vmem:[%s3843 + $0x34] sm:$0xf]
      %v4493 = vld [vmem:[%s3843 + $0x38] sm:$0x1]
      %v4494 = vld [vmem:[%s3843 + $0x3c] sm:$0xf]
      %v4495 = vld [vmem:[%s3843 + $0x40] sm:$0xf]
      %v4496 = vld [vmem:[%s3843 + $0x44] sm:$0x1]
      %v4497 = vld [vmem:[%s3843 + $0x48] sm:$0xf]
      %v4498 = vld [vmem:[%s3843 + $0x4c] sm:$0xf]
      %v4499 = vld [vmem:[%s3843 + $0x50] sm:$0x1]
      %v4500 = vld [vmem:[%s3843 + $0x54] sm:$0xf]
      %v4501 = vld [vmem:[%s3843 + $0x58] sm:$0xf]
      %v4502 = vld [vmem:[%s3843 + $0x5c] sm:$0x1]
      %v4503 = vld [vmem:[%s3843 + $0x60] sm:$0xf]
      %v4504 = vld [vmem:[%s3843 + $0x64] sm:$0xf]
      %v4505 = vld [vmem:[%s3843 + $0x68] sm:$0x1]
      %v4506 = vld [vmem:[%s3843 + $0x6c] sm:$0xf]
      %v4507 = vld [vmem:[%s3843 + $0x70] sm:$0xf]
      %v4508 = vld [vmem:[%s3843 + $0x74] sm:$0x1]
      %v4509 = vld [vmem:[%s3843 + $0x78] sm:$0xf]
      %v4510 = vld [vmem:[%s3843 + $0x7c] sm:$0xf]
      %v4511 = vld [vmem:[%s3843 + $0x80] sm:$0x1]
      %v4512 = vld [vmem:[%s3843 + $0x84] sm:$0xf]
      %v4513 = vld [vmem:[%s3843 + $0x88] sm:$0xf]
      %v4514 = vld [vmem:[%s3843 + $0x8c] sm:$0x1]
      %v4515 = vld [vmem:[%s3843 + $0x90] sm:$0xf]
      %v4516 = vld [vmem:[%s3843 + $0x94] sm:$0xf]
      %v4517 = vld [vmem:[%s3843 + $0x98] sm:$0x1]
      %v4518 = vld [vmem:[%s3843 + $0x9c] sm:$0xf]
      %v4519 = vld [vmem:[%s3843 + $0xa0] sm:$0xf]
      %v4520 = vld [vmem:[%s3843 + $0xa4] sm:$0x1]
      %v4521 = vld [vmem:[%s3843 + $0xa8] sm:$0xf]
      %v4522 = vld [vmem:[%s3843 + $0xac] sm:$0xf]
      %v4523 = vld [vmem:[%s3843 + $0xb0] sm:$0x1]
      %v4524 = vld [vmem:[%s3843 + $0xb4] sm:$0xf]
      %v4525 = vld [vmem:[%s3843 + $0xb8] sm:$0xf]
      %v4526 = vld [vmem:[%s3843 + $0xbc] sm:$0x1]
      %v4559 = vunpack.c.l.b16 %v4479
      %v4560 = vunpack.c.l.b16 %v4480
      %v4561 = vunpack.c.l.b16 %v4482
      %v4562 = vunpack.c.l.b16 %v4483
      %v4563 = vunpack.c.l.b16 %v4485
      %v4564 = vunpack.c.l.b16 %v4486
      %v4565 = vunpack.c.l.b16 %v4488
      %v4566 = vunpack.c.l.b16 %v4489
      %v4567 = vunpack.c.l.b16 %v4491
      %v4568 = vunpack.c.l.b16 %v4492
      %v4569 = vunpack.c.l.b16 %v4494
      %v4570 = vunpack.c.l.b16 %v4495
      %v4571 = vunpack.c.l.b16 %v4497
      %v4572 = vunpack.c.l.b16 %v4498
      %v4573 = vunpack.c.l.b16 %v4500
      %v4574 = vunpack.c.l.b16 %v4501
      %v4575 = vunpack.c.l.b16 %v4503
      %v4576 = vunpack.c.l.b16 %v4504
      %v4577 = vunpack.c.l.b16 %v4506
      %v4578 = vunpack.c.l.b16 %v4507
      %v4579 = vunpack.c.l.b16 %v4509
      %v4580 = vunpack.c.l.b16 %v4510
      %v4581 = vunpack.c.l.b16 %v4512
      %v4582 = vunpack.c.l.b16 %v4513
      %v4583 = vunpack.c.l.b16 %v4515
      %v4584 = vunpack.c.l.b16 %v4516
      %v4585 = vunpack.c.l.b16 %v4518
      %v4586 = vunpack.c.l.b16 %v4519
      %v4587 = vunpack.c.l.b16 %v4521
      %v4588 = vunpack.c.l.b16 %v4522
      %v4589 = vunpack.c.l.b16 %v4524
      %v4590 = vunpack.c.l.b16 %v4525
      %v4591 = vpack.c.b16 %v4560, %v4559
      %v4592 = vpack.c.b16 %v4562, %v4561
      %v4593 = vpack.c.b16 %v4564, %v4563
      %v4594 = vpack.c.b16 %v4566, %v4565
      %v4595 = vpack.c.b16 %v4568, %v4567
      %v4596 = vpack.c.b16 %v4570, %v4569
      %v4597 = vpack.c.b16 %v4572, %v4571
      %v4598 = vpack.c.b16 %v4574, %v4573
      %v4599 = vpack.c.b16 %v4576, %v4575
      %v4600 = vpack.c.b16 %v4578, %v4577
      %v4601 = vpack.c.b16 %v4580, %v4579
      %v4602 = vpack.c.b16 %v4582, %v4581
      %v4603 = vpack.c.b16 %v4584, %v4583
      %v4604 = vpack.c.b16 %v4586, %v4585
      %v4605 = vpack.c.b16 %v4588, %v4587
      %v4606 = vpack.c.b16 %v4590, %v4589
      %v4623 = vunpack.c.l.b16 %v4481
      %v4624 = vunpack.c.l.b16 %v4484
      %v4625 = vunpack.c.l.b16 %v4487
      %v4626 = vunpack.c.l.b16 %v4490
      %v4627 = vunpack.c.l.b16 %v4493
      %v4628 = vunpack.c.l.b16 %v4496
      %v4629 = vunpack.c.l.b16 %v4499
      %v4630 = vunpack.c.l.b16 %v4502
      %v4631 = vunpack.c.l.b16 %v4505
      %v4632 = vunpack.c.l.b16 %v4508
      %v4633 = vunpack.c.l.b16 %v4511
      %v4634 = vunpack.c.l.b16 %v4514
      %v4635 = vunpack.c.l.b16 %v4517
      %v4636 = vunpack.c.l.b16 %v4520
      %v4637 = vunpack.c.l.b16 %v4523
      %v4638 = vunpack.c.l.b16 %v4526
      %v4639 = vpack.c.b16 %v4623, %v4623
      %v4640 = vpack.c.b16 %v4624, %v4624
      %v4641 = vpack.c.b16 %v4625, %v4625
      %v4642 = vpack.c.b16 %v4626, %v4626
      %v4643 = vpack.c.b16 %v4627, %v4627
      %v4644 = vpack.c.b16 %v4628, %v4628
      %v4645 = vpack.c.b16 %v4629, %v4629
      %v4646 = vpack.c.b16 %v4630, %v4630
      %v4647 = vpack.c.b16 %v4631, %v4631
      %v4648 = vpack.c.b16 %v4632, %v4632
      %v4649 = vpack.c.b16 %v4633, %v4633
      %v4650 = vpack.c.b16 %v4634, %v4634
      %v4651 = vpack.c.b16 %v4635, %v4635
      %v4652 = vpack.c.b16 %v4636, %v4636
      %v4653 = vpack.c.b16 %v4637, %v4637
      %v4654 = vpack.c.b16 %v4638, %v4638
      %v4656 = vshrl.u32 %v4591, 16
      %v4658 = vshll.u32 %v4591, 16
      %v4660 = vrot.slane %v4658, 1
      %v4661 = vor.u32 %v4656, %v4660
      %v4663 = vshll.u32 %v4639, 16
      %v4665 = vrot.slane %v4663, 1
      %v4666 = vsel %vm1282, %v4661, %v4665
      %v4668 = vshrl.u32 %v4592, 16
      %v4670 = vshll.u32 %v4592, 16
      %v4672 = vrot.slane %v4670, 1
      %v4673 = vor.u32 %v4668, %v4672
      %v4675 = vshll.u32 %v4640, 16
      %v4677 = vrot.slane %v4675, 1
      %v4678 = vsel %vm1282, %v4673, %v4677
      %v4680 = vshrl.u32 %v4593, 16
      %v4682 = vshll.u32 %v4593, 16
      %v4684 = vrot.slane %v4682, 1
      %v4685 = vor.u32 %v4680, %v4684
      %v4687 = vshll.u32 %v4641, 16
      %v4689 = vrot.slane %v4687, 1
      %v4690 = vsel %vm1282, %v4685, %v4689
      %v4692 = vshrl.u32 %v4594, 16
      %v4694 = vshll.u32 %v4594, 16
      %v4696 = vrot.slane %v4694, 1
      %v4697 = vor.u32 %v4692, %v4696
      %v4699 = vshll.u32 %v4642, 16
      %v4701 = vrot.slane %v4699, 1
      %v4702 = vsel %vm1282, %v4697, %v4701
      %v4704 = vshrl.u32 %v4595, 16
      %v4706 = vshll.u32 %v4595, 16
      %v4708 = vrot.slane %v4706, 1
      %v4709 = vor.u32 %v4704, %v4708
      %v4711 = vshll.u32 %v4643, 16
      %v4713 = vrot.slane %v4711, 1
      %v4714 = vsel %vm1282, %v4709, %v4713
      %v4716 = vshrl.u32 %v4596, 16
      %v4718 = vshll.u32 %v4596, 16
      %v4720 = vrot.slane %v4718, 1
      %v4721 = vor.u32 %v4716, %v4720
      %v4723 = vshll.u32 %v4644, 16
      %v4725 = vrot.slane %v4723, 1
      %v4726 = vsel %vm1282, %v4721, %v4725
      %v4728 = vshrl.u32 %v4597, 16
      %v4730 = vshll.u32 %v4597, 16
      %v4732 = vrot.slane %v4730, 1
      %v4733 = vor.u32 %v4728, %v4732
      %v4735 = vshll.u32 %v4645, 16
      %v4737 = vrot.slane %v4735, 1
      %v4738 = vsel %vm1282, %v4733, %v4737
      %v4740 = vshrl.u32 %v4598, 16
      %v4742 = vshll.u32 %v4598, 16
      %v4744 = vrot.slane %v4742, 1
      %v4745 = vor.u32 %v4740, %v4744
      %v4747 = vshll.u32 %v4646, 16
      %v4749 = vrot.slane %v4747, 1
      %v4750 = vsel %vm1282, %v4745, %v4749
      %v4752 = vshrl.u32 %v4599, 16
      %v4754 = vshll.u32 %v4599, 16
      %v4756 = vrot.slane %v4754, 1
      %v4757 = vor.u32 %v4752, %v4756
      %v4759 = vshll.u32 %v4647, 16
      %v4761 = vrot.slane %v4759, 1
      %v4762 = vsel %vm1282, %v4757, %v4761
      %v4764 = vshrl.u32 %v4600, 16
      %v4766 = vshll.u32 %v4600, 16
      %v4768 = vrot.slane %v4766, 1
      %v4769 = vor.u32 %v4764, %v4768
      %v4771 = vshll.u32 %v4648, 16
      %v4773 = vrot.slane %v4771, 1
      %v4774 = vsel %vm1282, %v4769, %v4773
      %v4776 = vshrl.u32 %v4601, 16
      %v4778 = vshll.u32 %v4601, 16
      %v4780 = vrot.slane %v4778, 1
      %v4781 = vor.u32 %v4776, %v4780
      %v4783 = vshll.u32 %v4649, 16
      %v4785 = vrot.slane %v4783, 1
      %v4786 = vsel %vm1282, %v4781, %v4785
      %v4788 = vshrl.u32 %v4602, 16
      %v4790 = vshll.u32 %v4602, 16
      %v4792 = vrot.slane %v4790, 1
      %v4793 = vor.u32 %v4788, %v4792
      %v4795 = vshll.u32 %v4650, 16
      %v4797 = vrot.slane %v4795, 1
      %v4798 = vsel %vm1282, %v4793, %v4797
      %v4800 = vshrl.u32 %v4603, 16
      %v4802 = vshll.u32 %v4603, 16
      %v4804 = vrot.slane %v4802, 1
      %v4805 = vor.u32 %v4800, %v4804
      %v4807 = vshll.u32 %v4651, 16
      %v4809 = vrot.slane %v4807, 1
      %v4810 = vsel %vm1282, %v4805, %v4809
      %v4812 = vshrl.u32 %v4604, 16
      %v4814 = vshll.u32 %v4604, 16
      %v4816 = vrot.slane %v4814, 1
      %v4817 = vor.u32 %v4812, %v4816
      %v4819 = vshll.u32 %v4652, 16
      %v4821 = vrot.slane %v4819, 1
      %v4822 = vsel %vm1282, %v4817, %v4821
      %v4824 = vshrl.u32 %v4605, 16
      %v4826 = vshll.u32 %v4605, 16
      %v4828 = vrot.slane %v4826, 1
      %v4829 = vor.u32 %v4824, %v4828
      %v4831 = vshll.u32 %v4653, 16
      %v4833 = vrot.slane %v4831, 1
      %v4834 = vsel %vm1282, %v4829, %v4833
      %v4836 = vshrl.u32 %v4606, 16
      %v4838 = vshll.u32 %v4606, 16
      %v4840 = vrot.slane %v4838, 1
      %v4841 = vor.u32 %v4836, %v4840
      %v4843 = vshll.u32 %v4654, 16
      %v4845 = vrot.slane %v4843, 1
      %v4846 = vsel %vm1282, %v4841, %v4845
      %4847 = vrot.lane.b32.xlu0 %v4666, 64
      %v4848 = vpop.permute.xlu0 %4847
      %4849 = vrot.lane.b32.xlu0 %v4678, 64
      %v4850 = vpop.permute.xlu0 %4849
      %4851 = vrot.lane.b32.xlu0 %v4690, 64
      %v4852 = vpop.permute.xlu0 %4851
      %4853 = vrot.lane.b32.xlu0 %v4702, 64
      %v4854 = vpop.permute.xlu0 %4853
      %4855 = vrot.lane.b32.xlu0 %v4714, 64
      %v4856 = vpop.permute.xlu0 %4855
      %4857 = vrot.lane.b32.xlu0 %v4726, 64
      %v4858 = vpop.permute.xlu0 %4857
      %4859 = vrot.lane.b32.xlu0 %v4738, 64
      %v4860 = vpop.permute.xlu0 %4859
      %4861 = vrot.lane.b32.xlu0 %v4750, 64
      %v4862 = vpop.permute.xlu0 %4861
      %4863 = vrot.lane.b32.xlu0 %v4762, 64
      %v4864 = vpop.permute.xlu0 %4863
      %4865 = vrot.lane.b32.xlu0 %v4774, 64
      %v4866 = vpop.permute.xlu0 %4865
      %4867 = vrot.lane.b32.xlu0 %v4786, 64
      %v4868 = vpop.permute.xlu0 %4867
      %4869 = vrot.lane.b32.xlu0 %v4798, 64
      %v4870 = vpop.permute.xlu0 %4869
      %4871 = vrot.lane.b32.xlu0 %v4810, 64
      %v4872 = vpop.permute.xlu0 %4871
      %4873 = vrot.lane.b32.xlu0 %v4822, 64
      %v4874 = vpop.permute.xlu0 %4873
      %4875 = vrot.lane.b32.xlu0 %v4834, 64
      %v4876 = vpop.permute.xlu0 %4875
      %4877 = vrot.lane.b32.xlu0 %v4846, 64
      %v4878 = vpop.permute.xlu0 %4877
      %v4879 = vrot.slane %v4591, 1
      %v4880 = vrot.slane %v4639, 1
      %v4881 = vsel %vm1507, %v4879, %v4880
      %v4882 = vrot.slane %v4592, 1
      %v4883 = vrot.slane %v4640, 1
      %v4884 = vsel %vm1507, %v4882, %v4883
      %v4885 = vrot.slane %v4593, 1
      %v4886 = vrot.slane %v4641, 1
      %v4887 = vsel %vm1507, %v4885, %v4886
      %v4888 = vrot.slane %v4594, 1
      %v4889 = vrot.slane %v4642, 1
      %v4890 = vsel %vm1507, %v4888, %v4889
      %v4891 = vrot.slane %v4595, 1
      %v4892 = vrot.slane %v4643, 1
      %v4893 = vsel %vm1507, %v4891, %v4892
      %v4894 = vrot.slane %v4596, 1
      %v4895 = vrot.slane %v4644, 1
      %v4896 = vsel %vm1507, %v4894, %v4895
      %v4897 = vrot.slane %v4597, 1
      %v4898 = vrot.slane %v4645, 1
      %v4899 = vsel %vm1507, %v4897, %v4898
      %v4900 = vrot.slane %v4598, 1
      %v4901 = vrot.slane %v4646, 1
      %v4902 = vsel %vm1507, %v4900, %v4901
      %v4903 = vrot.slane %v4599, 1
      %v4904 = vrot.slane %v4647, 1
      %v4905 = vsel %vm1507, %v4903, %v4904
      %v4906 = vrot.slane %v4600, 1
      %v4907 = vrot.slane %v4648, 1
      %v4908 = vsel %vm1507, %v4906, %v4907
      %v4909 = vrot.slane %v4601, 1
      %v4910 = vrot.slane %v4649, 1
      %v4911 = vsel %vm1507, %v4909, %v4910
      %v4912 = vrot.slane %v4602, 1
      %v4913 = vrot.slane %v4650, 1
      %v4914 = vsel %vm1507, %v4912, %v4913
      %v4915 = vrot.slane %v4603, 1
      %v4916 = vrot.slane %v4651, 1
      %v4917 = vsel %vm1507, %v4915, %v4916
      %v4918 = vrot.slane %v4604, 1
      %v4919 = vrot.slane %v4652, 1
      %v4920 = vsel %vm1507, %v4918, %v4919
      %v4921 = vrot.slane %v4605, 1
      %v4922 = vrot.slane %v4653, 1
      %v4923 = vsel %vm1507, %v4921, %v4922
      %v4924 = vrot.slane %v4606, 1
      %v4925 = vrot.slane %v4654, 1
      %v4926 = vsel %vm1507, %v4924, %v4925
      %v4928 = vsel %vm4406, %v4591, %v4848
      %v4931 = vsel %vm4406, %v4592, %v4850
      %v4934 = vsel %vm4406, %v4593, %v4852
      %v4937 = vsel %vm4406, %v4594, %v4854
      %v4940 = vsel %vm4406, %v4595, %v4856
      %v4943 = vsel %vm4406, %v4596, %v4858
      %v4946 = vsel %vm4406, %v4597, %v4860
      %v4949 = vsel %vm4406, %v4598, %v4862
      %v4952 = vsel %vm4406, %v4599, %v4864
      %v4955 = vsel %vm4406, %v4600, %v4866
      %v4958 = vsel %vm4406, %v4601, %v4868
      %v4961 = vsel %vm4406, %v4602, %v4870
      %v4964 = vsel %vm4406, %v4603, %v4872
      %v4967 = vsel %vm4406, %v4604, %v4874
      %v4970 = vsel %vm4406, %v4605, %v4876
      %v4973 = vsel %vm4406, %v4606, %v4878
      %s4975 = scalar_lea.vmem %s2, 96
      %v4976 = vld [vmem:[%s4975] sm:$0xf]
      %v4977 = vld [vmem:[%s4975 + $0x4] sm:$0xf]
      %v4978 = vld [vmem:[%s4975 + $0x8] sm:$0xf]
      %v4979 = vld [vmem:[%s4975 + $0xc] sm:$0xf]
      %v4980 = vld [vmem:[%s4975 + $0x10] sm:$0xf]
      %v4981 = vld [vmem:[%s4975 + $0x14] sm:$0xf]
      %v4982 = vld [vmem:[%s4975 + $0x18] sm:$0xf]
      %v4983 = vld [vmem:[%s4975 + $0x1c] sm:$0xf]
      %v4984 = vld [vmem:[%s4975 + $0x20] sm:$0xf]
      %v4985 = vld [vmem:[%s4975 + $0x24] sm:$0xf]
      %v4986 = vld [vmem:[%s4975 + $0x28] sm:$0xf]
      %v4987 = vld [vmem:[%s4975 + $0x2c] sm:$0xf]
      %v4988 = vld [vmem:[%s4975 + $0x30] sm:$0xf]
      %v4989 = vld [vmem:[%s4975 + $0x34] sm:$0xf]
      %v4990 = vld [vmem:[%s4975 + $0x38] sm:$0xf]
      %v4991 = vld [vmem:[%s4975 + $0x3c] sm:$0xf]
      %v4992 = vld [vmem:[%s4975 + $0x40] sm:$0xf]
      %v4993 = vld [vmem:[%s4975 + $0x44] sm:$0xf]
      %v4994 = vld [vmem:[%s4975 + $0x48] sm:$0xf]
      %v4995 = vld [vmem:[%s4975 + $0x4c] sm:$0xf]
      %v4996 = vld [vmem:[%s4975 + $0x50] sm:$0xf]
      %v4997 = vld [vmem:[%s4975 + $0x54] sm:$0xf]
      %v4998 = vld [vmem:[%s4975 + $0x58] sm:$0xf]
      %v4999 = vld [vmem:[%s4975 + $0x5c] sm:$0xf]
      %v5024 = vunpack.c.l.b16 %v4976
      %v5025 = vunpack.c.l.b16 %v4977
      %v5026 = vunpack.c.l.b16 %v4978
      %v5027 = vunpack.c.l.b16 %v4979
      %v5028 = vunpack.c.l.b16 %v4980
      %v5029 = vunpack.c.l.b16 %v4981
      %v5030 = vunpack.c.l.b16 %v4982
      %v5031 = vunpack.c.l.b16 %v4983
      %v5032 = vunpack.c.l.b16 %v4984
      %v5033 = vunpack.c.l.b16 %v4985
      %v5034 = vunpack.c.l.b16 %v4986
      %v5035 = vunpack.c.l.b16 %v4987
      %v5036 = vunpack.c.l.b16 %v4988
      %v5037 = vunpack.c.l.b16 %v4989
      %v5038 = vunpack.c.l.b16 %v4990
      %v5039 = vunpack.c.l.b16 %v4991
      %v5040 = vunpack.c.l.b16 %v4992
      %v5041 = vunpack.c.l.b16 %v4993
      %v5042 = vunpack.c.l.b16 %v4994
      %v5043 = vunpack.c.l.b16 %v4995
      %v5044 = vunpack.c.l.b16 %v4996
      %v5045 = vunpack.c.l.b16 %v4997
      %v5046 = vunpack.c.l.b16 %v4998
      %v5047 = vunpack.c.l.b16 %v4999
      %v5048 = vpack.c.b16 %v5025, %v5024
      %v5049 = vpack.c.b16 %v5027, %v5026
      %v5050 = vpack.c.b16 %v5029, %v5028
      %v5051 = vpack.c.b16 %v5031, %v5030
      %v5052 = vpack.c.b16 %v5033, %v5032
      %v5053 = vpack.c.b16 %v5035, %v5034
      %v5054 = vpack.c.b16 %v5037, %v5036
      %v5055 = vpack.c.b16 %v5039, %v5038
      %v5056 = vpack.c.b16 %v5041, %v5040
      %v5057 = vpack.c.b16 %v5043, %v5042
      %v5058 = vpack.c.b16 %v5045, %v5044
      %v5059 = vpack.c.b16 %v5047, %v5046
      %v5073 = vsel %vm4406, %v4881, 0
      %v5076 = vsel %vm4406, %v4884, 0
      %v5079 = vsel %vm4406, %v4887, 0
      %v5082 = vsel %vm4406, %v4890, 0
      %v5085 = vsel %vm4406, %v4893, 0
      %v5088 = vsel %vm4406, %v4896, 0
      %v5091 = vsel %vm4406, %v4899, 0
      %v5094 = vsel %vm4406, %v4902, 0
      %v5097 = vsel %vm4406, %v4905, 0
      %v5100 = vsel %vm4406, %v4908, 0
      %v5103 = vsel %vm4406, %v4911, 0
      %v5106 = vsel %vm4406, %v4914, 0
      %v5109 = vsel %vm4406, %v4917, 0
      %v5112 = vsel %vm4406, %v4920, 0
      %v5115 = vsel %vm4406, %v4923, 0
      %v5118 = vsel %vm4406, %v4926, 0
      %5120 = vmatprep.subr.bf16.mxu0 0
      %5121 = vmatpush1.bf16.msra.mxu0 %v5048
      %5122 = vmatprep.subr.bf16.mxu0 0
      %5123 = vmatpush1.bf16.msra.mxu0 %v5049
      %5124 = vmatprep.subr.bf16.mxu0 0
      %5125 = vmatpush1.bf16.msra.mxu0 %v5050
      %5126 = vmatprep.subr.bf16.mxu0 0
      %5127 = vmatpush1.bf16.msra.mxu0 %v5051
      %5128 = vmatprep.subr.bf16.mxu0 0
      %5129 = vmatpush1.bf16.msra.mxu0 %v5052
      %5130 = vmatprep.subr.bf16.mxu0 0
      %5131 = vmatpush1.bf16.msra.mxu0 %v5053
      %5132 = vmatprep.subr.bf16.mxu0 0
      %5133 = vmatpush1.bf16.msra.mxu0 %v5054
      %5134 = vmatprep.subr.bf16.mxu0 0
      %5135 = vmatpush1.bf16.msra.mxu0 %v5055
      %5136 = vmatprep.subr.bf16.mxu0 0
      %5137 = vmatpush1.bf16.msra.mxu0 %v5056
      %5138 = vmatprep.subr.bf16.mxu0 0
      %5139 = vmatpush1.bf16.msra.mxu0 %v5057
      %5140 = vmatprep.subr.bf16.mxu0 0
      %5141 = vmatpush1.bf16.msra.mxu0 %v5058
      %5142 = vmatprep.subr.bf16.mxu0 0
      %5143 = vmatpush1.bf16.msra.mxu0 %v5059
      %5144 = vmatprep.subr.bf16.mxu0 0
      %5145 = vmatpush1.bf16.msra.mxu0 0
      %5146 = vmatprep.subr.bf16.mxu0 0
      %5147 = vmatpush1.bf16.msra.mxu0 0
      %5148 = vmatprep.subr.bf16.mxu0 0
      %5149 = vmatpush1.bf16.msra.mxu0 0
      %5150 = vmatprep.subr.bf16.mxu0 0
      %5151 = vmatpush1.bf16.msra.mxu0 0
      %5152 = vmatprep.mubr.bf16.mxu0 %v5073
      %5153 = vmatmul.mubr.bf16.gmra.mrb[0].mxu0 %v4928
      %v5154 = vpop.f32.mrb[0].mxu0
      %v5155 = vadd.f32 0.0, %v5154
      %v5156 = vpop.f32.mrb[0].mxu0
      %v5157 = vpop.f32.mrb[0].mxu0
      %v5158 = vadd.f32 0.0, %v5157
      %v5159 = vpop.f32.mrb[0].mxu0
      %5160 = vmatprep.mubr.bf16.mxu0 %v5076
      %5161 = vmatmul.mubr.bf16.gmra.mrb[0].mxu0 %v4931
      %v5162 = vpop.f32.mrb[0].mxu0
      %v5163 = vadd.f32 0.0, %v5162
      %v5164 = vpop.f32.mrb[0].mxu0
      %v5165 = vpop.f32.mrb[0].mxu0
      %v5166 = vadd.f32 0.0, %v5165
      %v5167 = vpop.f32.mrb[0].mxu0
      %5168 = vmatprep.mubr.bf16.mxu0 %v5079
      %5169 = vmatmul.mubr.bf16.gmra.mrb[0].mxu0 %v4934
      %v5170 = vpop.f32.mrb[0].mxu0
      %v5171 = vadd.f32 0.0, %v5170
      %v5172 = vpop.f32.mrb[0].mxu0
      %v5173 = vpop.f32.mrb[0].mxu0
      %v5174 = vadd.f32 0.0, %v5173
      %v5175 = vpop.f32.mrb[0].mxu0
      %5176 = vmatprep.mubr.bf16.mxu0 %v5082
      %5177 = vmatmul.mubr.bf16.gmra.mrb[0].mxu0 %v4937
      %v5178 = vpop.f32.mrb[0].mxu0
      %v5179 = vadd.f32 0.0, %v5178
      %v5180 = vpop.f32.mrb[0].mxu0
      %v5181 = vpop.f32.mrb[0].mxu0
      %v5182 = vadd.f32 0.0, %v5181
      %v5183 = vpop.f32.mrb[0].mxu0
      %5184 = vmatprep.mubr.bf16.mxu0 %v5085
      %5185 = vmatmul.mubr.bf16.gmra.mrb[0].mxu0 %v4940
      %v5186 = vpop.f32.mrb[0].mxu0
      %v5187 = vadd.f32 0.0, %v5186
      %v5188 = vpop.f32.mrb[0].mxu0
      %v5189 = vpop.f32.mrb[0].mxu0
      %v5190 = vadd.f32 0.0, %v5189
      %v5191 = vpop.f32.mrb[0].mxu0
      %5192 = vmatprep.mubr.bf16.mxu0 %v5088
      %5193 = vmatmul.mubr.bf16.gmra.mrb[0].mxu0 %v4943
      %v5194 = vpop.f32.mrb[0].mxu0
      %v5195 = vadd.f32 0.0, %v5194
      %v5196 = vpop.f32.mrb[0].mxu0
      %v5197 = vpop.f32.mrb[0].mxu0
      %v5198 = vadd.f32 0.0, %v5197
      %v5199 = vpop.f32.mrb[0].mxu0
      %5200 = vmatprep.mubr.bf16.mxu0 %v5091
      %5201 = vmatmul.mubr.bf16.gmra.mrb[0].mxu0 %v4946
      %v5202 = vpop.f32.mrb[0].mxu0
      %v5203 = vadd.f32 0.0, %v5202
      %v5204 = vpop.f32.mrb[0].mxu0
      %v5205 = vpop.f32.mrb[0].mxu0
      %v5206 = vadd.f32 0.0, %v5205
      %v5207 = vpop.f32.mrb[0].mxu0
      %5208 = vmatprep.mubr.bf16.mxu0 %v5094
      %5209 = vmatmul.mubr.bf16.gmra.mrb[0].mxu0 %v4949
      %v5210 = vpop.f32.mrb[0].mxu0
      %v5211 = vadd.f32 0.0, %v5210
      %v5212 = vpop.f32.mrb[0].mxu0
      %v5213 = vpop.f32.mrb[0].mxu0
      %v5214 = vadd.f32 0.0, %v5213
      %v5215 = vpop.f32.mrb[0].mxu0
      %5216 = vmatprep.mubr.bf16.mxu0 %v5097
      %5217 = vmatmul.mubr.bf16.gmra.mrb[0].mxu0 %v4952
      %v5218 = vpop.f32.mrb[0].mxu0
      %v5219 = vadd.f32 0.0, %v5218
      %v5220 = vpop.f32.mrb[0].mxu0
      %v5221 = vpop.f32.mrb[0].mxu0
      %v5222 = vadd.f32 0.0, %v5221
      %v5223 = vpop.f32.mrb[0].mxu0
      %5224 = vmatprep.mubr.bf16.mxu0 %v5100
      %5225 = vmatmul.mubr.bf16.gmra.mrb[0].mxu0 %v4955
      %v5226 = vpop.f32.mrb[0].mxu0
      %v5227 = vadd.f32 0.0, %v5226
      %v5228 = vpop.f32.mrb[0].mxu0
      %v5229 = vpop.f32.mrb[0].mxu0
      %v5230 = vadd.f32 0.0, %v5229
      %v5231 = vpop.f32.mrb[0].mxu0
      %5232 = vmatprep.mubr.bf16.mxu0 %v5103
      %5233 = vmatmul.mubr.bf16.gmra.mrb[0].mxu0 %v4958
      %v5234 = vpop.f32.mrb[0].mxu0
      %v5235 = vadd.f32 0.0, %v5234
      %v5236 = vpop.f32.mrb[0].mxu0
      %v5237 = vpop.f32.mrb[0].mxu0
      %v5238 = vadd.f32 0.0, %v5237
      %v5239 = vpop.f32.mrb[0].mxu0
      %5240 = vmatprep.mubr.bf16.mxu0 %v5106
      %5241 = vmatmul.mubr.bf16.gmra.mrb[0].mxu0 %v4961
      %v5242 = vpop.f32.mrb[0].mxu0
      %v5243 = vadd.f32 0.0, %v5242
      %v5244 = vpop.f32.mrb[0].mxu0
      %v5245 = vpop.f32.mrb[0].mxu0
      %v5246 = vadd.f32 0.0, %v5245
      %v5247 = vpop.f32.mrb[0].mxu0
      %5248 = vmatprep.mubr.bf16.mxu0 %v5109
      %5249 = vmatmul.mubr.bf16.gmra.mrb[0].mxu0 %v4964
      %v5250 = vpop.f32.mrb[0].mxu0
      %v5251 = vadd.f32 0.0, %v5250
      %v5252 = vpop.f32.mrb[0].mxu0
      %v5253 = vpop.f32.mrb[0].mxu0
      %v5254 = vadd.f32 0.0, %v5253
      %v5255 = vpop.f32.mrb[0].mxu0
      %5256 = vmatprep.mubr.bf16.mxu0 %v5112
      %5257 = vmatmul.mubr.bf16.gmra.mrb[0].mxu0 %v4967
      %v5258 = vpop.f32.mrb[0].mxu0
      %v5259 = vadd.f32 0.0, %v5258
      %v5260 = vpop.f32.mrb[0].mxu0
      %v5261 = vpop.f32.mrb[0].mxu0
      %v5262 = vadd.f32 0.0, %v5261
      %v5263 = vpop.f32.mrb[0].mxu0
      %5264 = vmatprep.mubr.bf16.mxu0 %v5115
      %5265 = vmatmul.mubr.bf16.gmra.mrb[0].mxu0 %v4970
      %v5266 = vpop.f32.mrb[0].mxu0
      %v5267 = vadd.f32 0.0, %v5266
      %v5268 = vpop.f32.mrb[0].mxu0
      %v5269 = vpop.f32.mrb[0].mxu0
      %v5270 = vadd.f32 0.0, %v5269
      %v5271 = vpop.f32.mrb[0].mxu0
      %5272 = vmatprep.mubr.bf16.mxu0 %v5118
      %5273 = vmatmul.mubr.bf16.gmra.mrb[0].mxu0 %v4973
      %v5274 = vpop.f32.mrb[0].mxu0
      %v5275 = vadd.f32 0.0, %v5274
      %v5276 = vpop.f32.mrb[0].mxu0
      %v5277 = vpop.f32.mrb[0].mxu0
      %v5278 = vadd.f32 0.0, %v5277
      %v5279 = vpop.f32.mrb[0].mxu0
      %5280 = vdwg.mxu0
      %v5305 = vunpack.c.l.b16 %v4455
      %v5306 = vunpack.c.l.b16 %v4456
      %v5307 = vunpack.c.l.b16 %v4457
      %v5308 = vunpack.c.l.b16 %v4458
      %v5309 = vunpack.c.l.b16 %v4459
      %v5310 = vunpack.c.l.b16 %v4460
      %v5311 = vunpack.c.l.b16 %v4461
      %v5312 = vunpack.c.l.b16 %v4462
      %v5313 = vunpack.c.l.b16 %v4463
      %v5314 = vunpack.c.l.b16 %v4464
      %v5315 = vunpack.c.l.b16 %v4465
      %v5316 = vunpack.c.l.b16 %v4466
      %v5317 = vunpack.c.l.b16 %v4467
      %v5318 = vunpack.c.l.b16 %v4468
      %v5319 = vunpack.c.l.b16 %v4469
      %v5320 = vunpack.c.l.b16 %v4470
      %v5321 = vunpack.c.l.b16 %v4471
      %v5322 = vunpack.c.l.b16 %v4472
      %v5323 = vunpack.c.l.b16 %v4473
      %v5324 = vunpack.c.l.b16 %v4474
      %v5325 = vunpack.c.l.b16 %v4475
      %v5326 = vunpack.c.l.b16 %v4476
      %v5327 = vunpack.c.l.b16 %v4477
      %v5328 = vunpack.c.l.b16 %v4478
      %v5329 = vpack.c.b16 %v5306, %v5305
      %v5330 = vpack.c.b16 %v5308, %v5307
      %v5331 = vpack.c.b16 %v5310, %v5309
      %v5332 = vpack.c.b16 %v5312, %v5311
      %v5333 = vpack.c.b16 %v5314, %v5313
      %v5334 = vpack.c.b16 %v5316, %v5315
      %v5335 = vpack.c.b16 %v5318, %v5317
      %v5336 = vpack.c.b16 %v5320, %v5319
      %v5337 = vpack.c.b16 %v5322, %v5321
      %v5338 = vpack.c.b16 %v5324, %v5323
      %v5339 = vpack.c.b16 %v5326, %v5325
      %v5340 = vpack.c.b16 %v5328, %v5327
      %v5354 = vsel %vm4406, %v4360, 0
      %v5357 = vsel %vm4406, %v4363, 0
      %v5360 = vsel %vm4406, %v4366, 0
      %v5363 = vsel %vm4406, %v4369, 0
      %v5366 = vsel %vm4406, %v4372, 0
      %v5369 = vsel %vm4406, %v4375, 0
      %v5372 = vsel %vm4406, %v4378, 0
      %v5375 = vsel %vm4406, %v4381, 0
      %v5378 = vsel %vm4406, %v4384, 0
      %v5381 = vsel %vm4406, %v4387, 0
      %v5384 = vsel %vm4406, %v4390, 0
      %v5387 = vsel %vm4406, %v4393, 0
      %v5390 = vsel %vm4406, %v4396, 0
      %v5393 = vsel %vm4406, %v4399, 0
      %v5396 = vsel %vm4406, %v4402, 0
      %v5399 = vsel %vm4406, %v4405, 0
      %5401 = vmatprep.subr.bf16.mxu0 0
      %5402 = vmatpush1.bf16.msra.mxu0 %v5329
      %5403 = vmatprep.subr.bf16.mxu0 0
      %5404 = vmatpush1.bf16.msra.mxu0 %v5330
      %5405 = vmatprep.subr.bf16.mxu0 0
      %5406 = vmatpush1.bf16.msra.mxu0 %v5331
      %5407 = vmatprep.subr.bf16.mxu0 0
      %5408 = vmatpush1.bf16.msra.mxu0 %v5332
      %5409 = vmatprep.subr.bf16.mxu0 0
      %5410 = vmatpush1.bf16.msra.mxu0 %v5333
      %5411 = vmatprep.subr.bf16.mxu0 0
      %5412 = vmatpush1.bf16.msra.mxu0 %v5334
      %5413 = vmatprep.subr.bf16.mxu0 0
      %5414 = vmatpush1.bf16.msra.mxu0 %v5335
      %5415 = vmatprep.subr.bf16.mxu0 0
      %5416 = vmatpush1.bf16.msra.mxu0 %v5336
      %5417 = vmatprep.subr.bf16.mxu0 0
      %5418 = vmatpush1.bf16.msra.mxu0 %v5337
      %5419 = vmatprep.subr.bf16.mxu0 0
      %5420 = vmatpush1.bf16.msra.mxu0 %v5338
      %5421 = vmatprep.subr.bf16.mxu0 0
      %5422 = vmatpush1.bf16.msra.mxu0 %v5339
      %5423 = vmatprep.subr.bf16.mxu0 0
      %5424 = vmatpush1.bf16.msra.mxu0 %v5340
      %5425 = vmatprep.subr.bf16.mxu0 0
      %5426 = vmatpush1.bf16.msra.mxu0 0
      %5427 = vmatprep.subr.bf16.mxu0 0
      %5428 = vmatpush1.bf16.msra.mxu0 0
      %5429 = vmatprep.subr.bf16.mxu0 0
      %5430 = vmatpush1.bf16.msra.mxu0 0
      %5431 = vmatprep.subr.bf16.mxu0 0
      %5432 = vmatpush1.bf16.msra.mxu0 0
      %5433 = vmatprep.mubr.bf16.mxu0 %v5354
      %5434 = vmatmul.mubr.bf16.gmra.mrb[0].mxu0 %v4408
      %v5435 = vpop.f32.mrb[0].mxu0
      %v5436 = vadd.f32 %v5155, %v5435
      %v5437 = vpop.f32.mrb[0].mxu0
      %v5438 = vpop.f32.mrb[0].mxu0
      %v5439 = vadd.f32 %v5158, %v5438
      %v5440 = vpop.f32.mrb[0].mxu0
      %5441 = vmatprep.mubr.bf16.mxu0 %v5357
      %5442 = vmatmul.mubr.bf16.gmra.mrb[0].mxu0 %v4411
      %v5443 = vpop.f32.mrb[0].mxu0
      %v5444 = vadd.f32 %v5163, %v5443
      %v5445 = vpop.f32.mrb[0].mxu0
      %v5446 = vpop.f32.mrb[0].mxu0
      %v5447 = vadd.f32 %v5166, %v5446
      %v5448 = vpop.f32.mrb[0].mxu0
      %5449 = vmatprep.mubr.bf16.mxu0 %v5360
      %5450 = vmatmul.mubr.bf16.gmra.mrb[0].mxu0 %v4414
      %v5451 = vpop.f32.mrb[0].mxu0
      %v5452 = vadd.f32 %v5171, %v5451
      %v5453 = vpop.f32.mrb[0].mxu0
      %v5454 = vpop.f32.mrb[0].mxu0
      %v5455 = vadd.f32 %v5174, %v5454
      %v5456 = vpop.f32.mrb[0].mxu0
      %5457 = vmatprep.mubr.bf16.mxu0 %v5363
      %5458 = vmatmul.mubr.bf16.gmra.mrb[0].mxu0 %v4417
      %v5459 = vpop.f32.mrb[0].mxu0
      %v5460 = vadd.f32 %v5179, %v5459
      %v5461 = vpop.f32.mrb[0].mxu0
      %v5462 = vpop.f32.mrb[0].mxu0
      %v5463 = vadd.f32 %v5182, %v5462
      %v5464 = vpop.f32.mrb[0].mxu0
      %5465 = vmatprep.mubr.bf16.mxu0 %v5366
      %5466 = vmatmul.mubr.bf16.gmra.mrb[0].mxu0 %v4420
      %v5467 = vpop.f32.mrb[0].mxu0
      %v5468 = vadd.f32 %v5187, %v5467
      %v5469 = vpop.f32.mrb[0].mxu0
      %v5470 = vpop.f32.mrb[0].mxu0
      %v5471 = vadd.f32 %v5190, %v5470
      %v5472 = vpop.f32.mrb[0].mxu0
      %5473 = vmatprep.mubr.bf16.mxu0 %v5369
      %5474 = vmatmul.mubr.bf16.gmra.mrb[0].mxu0 %v4423
      %v5475 = vpop.f32.mrb[0].mxu0
      %v5476 = vadd.f32 %v5195, %v5475
      %v5477 = vpop.f32.mrb[0].mxu0
      %v5478 = vpop.f32.mrb[0].mxu0
      %v5479 = vadd.f32 %v5198, %v5478
      %v5480 = vpop.f32.mrb[0].mxu0
      %5481 = vmatprep.mubr.bf16.mxu0 %v5372
      %5482 = vmatmul.mubr.bf16.gmra.mrb[0].mxu0 %v4426
      %v5483 = vpop.f32.mrb[0].mxu0
      %v5484 = vadd.f32 %v5203, %v5483
      %v5485 = vpop.f32.mrb[0].mxu0
      %v5486 = vpop.f32.mrb[0].mxu0
      %v5487 = vadd.f32 %v5206, %v5486
      %v5488 = vpop.f32.mrb[0].mxu0
      %5489 = vmatprep.mubr.bf16.mxu0 %v5375
      %5490 = vmatmul.mubr.bf16.gmra.mrb[0].mxu0 %v4429
      %v5491 = vpop.f32.mrb[0].mxu0
      %v5492 = vadd.f32 %v5211, %v5491
      %v5493 = vpop.f32.mrb[0].mxu0
      %v5494 = vpop.f32.mrb[0].mxu0
      %v5495 = vadd.f32 %v5214, %v5494
      %v5496 = vpop.f32.mrb[0].mxu0
      %5497 = vmatprep.mubr.bf16.mxu0 %v5378
      %5498 = vmatmul.mubr.bf16.gmra.mrb[0].mxu0 %v4432
      %v5499 = vpop.f32.mrb[0].mxu0
      %v5500 = vadd.f32 %v5219, %v5499
      %v5501 = vpop.f32.mrb[0].mxu0
      %v5502 = vpop.f32.mrb[0].mxu0
      %v5503 = vadd.f32 %v5222, %v5502
      %v5504 = vpop.f32.mrb[0].mxu0
      %5505 = vmatprep.mubr.bf16.mxu0 %v5381
      %5506 = vmatmul.mubr.bf16.gmra.mrb[0].mxu0 %v4435
      %v5507 = vpop.f32.mrb[0].mxu0
      %v5508 = vadd.f32 %v5227, %v5507
      %v5509 = vpop.f32.mrb[0].mxu0
      %v5510 = vpop.f32.mrb[0].mxu0
      %v5511 = vadd.f32 %v5230, %v5510
      %v5512 = vpop.f32.mrb[0].mxu0
      %5513 = vmatprep.mubr.bf16.mxu0 %v5384
      %5514 = vmatmul.mubr.bf16.gmra.mrb[0].mxu0 %v4438
      %v5515 = vpop.f32.mrb[0].mxu0
      %v5516 = vadd.f32 %v5235, %v5515
      %v5517 = vpop.f32.mrb[0].mxu0
      %v5518 = vpop.f32.mrb[0].mxu0
      %v5519 = vadd.f32 %v5238, %v5518
      %v5520 = vpop.f32.mrb[0].mxu0
      %5521 = vmatprep.mubr.bf16.mxu0 %v5387
      %5522 = vmatmul.mubr.bf16.gmra.mrb[0].mxu0 %v4441
      %v5523 = vpop.f32.mrb[0].mxu0
      %v5524 = vadd.f32 %v5243, %v5523
      %v5525 = vpop.f32.mrb[0].mxu0
      %v5526 = vpop.f32.mrb[0].mxu0
      %v5527 = vadd.f32 %v5246, %v5526
      %v5528 = vpop.f32.mrb[0].mxu0
      %5529 = vmatprep.mubr.bf16.mxu0 %v5390
      %5530 = vmatmul.mubr.bf16.gmra.mrb[0].mxu0 %v4444
      %v5531 = vpop.f32.mrb[0].mxu0
      %v5532 = vadd.f32 %v5251, %v5531
      %v5533 = vpop.f32.mrb[0].mxu0
      %v5534 = vpop.f32.mrb[0].mxu0
      %v5535 = vadd.f32 %v5254, %v5534
      %v5536 = vpop.f32.mrb[0].mxu0
      %5537 = vmatprep.mubr.bf16.mxu0 %v5393
      %5538 = vmatmul.mubr.bf16.gmra.mrb[0].mxu0 %v4447
      %v5539 = vpop.f32.mrb[0].mxu0
      %v5540 = vadd.f32 %v5259, %v5539
      %v5541 = vpop.f32.mrb[0].mxu0
      %v5542 = vpop.f32.mrb[0].mxu0
      %v5543 = vadd.f32 %v5262, %v5542
      %v5544 = vpop.f32.mrb[0].mxu0
      %5545 = vmatprep.mubr.bf16.mxu0 %v5396
      %5546 = vmatmul.mubr.bf16.gmra.mrb[0].mxu0 %v4450
      %v5547 = vpop.f32.mrb[0].mxu0
      %v5548 = vadd.f32 %v5267, %v5547
      %v5549 = vpop.f32.mrb[0].mxu0
      %v5550 = vpop.f32.mrb[0].mxu0
      %v5551 = vadd.f32 %v5270, %v5550
      %v5552 = vpop.f32.mrb[0].mxu0
      %5553 = vmatprep.mubr.bf16.mxu0 %v5399
      %5554 = vmatmul.mubr.bf16.gmra.mrb[0].mxu0 %v4453
      %v5555 = vpop.f32.mrb[0].mxu0
      %v5556 = vadd.f32 %v5275, %v5555
      %v5557 = vpop.f32.mrb[0].mxu0
      %v5558 = vpop.f32.mrb[0].mxu0
      %v5559 = vadd.f32 %v5278, %v5558
      %v5560 = vpop.f32.mrb[0].mxu0
      %5561 = vdwg.mxu0
      %s5562 = scalar_lea.vmem [#allocation3], 24
      %v5563 = vld [vmem:[%s5562] sm:$0xf]
      %v5564 = vld [vmem:[%s5562 + $0x4] sm:$0xf]
      %v5565 = vld [vmem:[%s5562 + $0x8] sm:$0x1]
      %v5566 = vld [vmem:[%s5562 + $0xc] sm:$0xf]
      %v5567 = vld [vmem:[%s5562 + $0x10] sm:$0xf]
      %v5568 = vld [vmem:[%s5562 + $0x14] sm:$0x1]
      %v5569 = vld [vmem:[%s5562 + $0x18] sm:$0xf]
      %v5570 = vld [vmem:[%s5562 + $0x1c] sm:$0xf]
      %v5571 = vld [vmem:[%s5562 + $0x20] sm:$0x1]
      %v5572 = vld [vmem:[%s5562 + $0x24] sm:$0xf]
      %v5573 = vld [vmem:[%s5562 + $0x28] sm:$0xf]
      %v5574 = vld [vmem:[%s5562 + $0x2c] sm:$0x1]
      %v5575 = vld [vmem:[%s5562 + $0x30] sm:$0xf]
      %v5576 = vld [vmem:[%s5562 + $0x34] sm:$0xf]
      %v5577 = vld [vmem:[%s5562 + $0x38] sm:$0x1]
      %v5578 = vld [vmem:[%s5562 + $0x3c] sm:$0xf]
      %v5579 = vld [vmem:[%s5562 + $0x40] sm:$0xf]
      %v5580 = vld [vmem:[%s5562 + $0x44] sm:$0x1]
      %v5581 = vld [vmem:[%s5562 + $0x48] sm:$0xf]
      %v5582 = vld [vmem:[%s5562 + $0x4c] sm:$0xf]
      %v5583 = vld [vmem:[%s5562 + $0x50] sm:$0x1]
      %v5584 = vld [vmem:[%s5562 + $0x54] sm:$0xf]
      %v5585 = vld [vmem:[%s5562 + $0x58] sm:$0xf]
      %v5586 = vld [vmem:[%s5562 + $0x5c] sm:$0x1]
      %v5587 = vld [vmem:[%s5562 + $0x60] sm:$0xf]
      %v5588 = vld [vmem:[%s5562 + $0x64] sm:$0xf]
      %v5589 = vld [vmem:[%s5562 + $0x68] sm:$0x1]
      %v5590 = vld [vmem:[%s5562 + $0x6c] sm:$0xf]
      %v5591 = vld [vmem:[%s5562 + $0x70] sm:$0xf]
      %v5592 = vld [vmem:[%s5562 + $0x74] sm:$0x1]
      %v5593 = vld [vmem:[%s5562 + $0x78] sm:$0xf]
      %v5594 = vld [vmem:[%s5562 + $0x7c] sm:$0xf]
      %v5595 = vld [vmem:[%s5562 + $0x80] sm:$0x1]
      %v5596 = vld [vmem:[%s5562 + $0x84] sm:$0xf]
      %v5597 = vld [vmem:[%s5562 + $0x88] sm:$0xf]
      %v5598 = vld [vmem:[%s5562 + $0x8c] sm:$0x1]
      %v5599 = vld [vmem:[%s5562 + $0x90] sm:$0xf]
      %v5600 = vld [vmem:[%s5562 + $0x94] sm:$0xf]
      %v5601 = vld [vmem:[%s5562 + $0x98] sm:$0x1]
      %v5602 = vld [vmem:[%s5562 + $0x9c] sm:$0xf]
      %v5603 = vld [vmem:[%s5562 + $0xa0] sm:$0xf]
      %v5604 = vld [vmem:[%s5562 + $0xa4] sm:$0x1]
      %v5605 = vld [vmem:[%s5562 + $0xa8] sm:$0xf]
      %v5606 = vld [vmem:[%s5562 + $0xac] sm:$0xf]
      %v5607 = vld [vmem:[%s5562 + $0xb0] sm:$0x1]
      %v5608 = vld [vmem:[%s5562 + $0xb4] sm:$0xf]
      %v5609 = vld [vmem:[%s5562 + $0xb8] sm:$0xf]
      %v5610 = vld [vmem:[%s5562 + $0xbc] sm:$0x1]
      %v5643 = vunpack.c.l.b16 %v5563
      %v5644 = vunpack.c.l.b16 %v5564
      %v5645 = vunpack.c.l.b16 %v5566
      %v5646 = vunpack.c.l.b16 %v5567
      %v5647 = vunpack.c.l.b16 %v5569
      %v5648 = vunpack.c.l.b16 %v5570
      %v5649 = vunpack.c.l.b16 %v5572
      %v5650 = vunpack.c.l.b16 %v5573
      %v5651 = vunpack.c.l.b16 %v5575
      %v5652 = vunpack.c.l.b16 %v5576
      %v5653 = vunpack.c.l.b16 %v5578
      %v5654 = vunpack.c.l.b16 %v5579
      %v5655 = vunpack.c.l.b16 %v5581
      %v5656 = vunpack.c.l.b16 %v5582
      %v5657 = vunpack.c.l.b16 %v5584
      %v5658 = vunpack.c.l.b16 %v5585
      %v5659 = vunpack.c.l.b16 %v5587
      %v5660 = vunpack.c.l.b16 %v5588
      %v5661 = vunpack.c.l.b16 %v5590
      %v5662 = vunpack.c.l.b16 %v5591
      %v5663 = vunpack.c.l.b16 %v5593
      %v5664 = vunpack.c.l.b16 %v5594
      %v5665 = vunpack.c.l.b16 %v5596
      %v5666 = vunpack.c.l.b16 %v5597
      %v5667 = vunpack.c.l.b16 %v5599
      %v5668 = vunpack.c.l.b16 %v5600
      %v5669 = vunpack.c.l.b16 %v5602
      %v5670 = vunpack.c.l.b16 %v5603
      %v5671 = vunpack.c.l.b16 %v5605
      %v5672 = vunpack.c.l.b16 %v5606
      %v5673 = vunpack.c.l.b16 %v5608
      %v5674 = vunpack.c.l.b16 %v5609
      %v5675 = vpack.c.b16 %v5644, %v5643
      %v5676 = vpack.c.b16 %v5646, %v5645
      %v5677 = vpack.c.b16 %v5648, %v5647
      %v5678 = vpack.c.b16 %v5650, %v5649
      %v5679 = vpack.c.b16 %v5652, %v5651
      %v5680 = vpack.c.b16 %v5654, %v5653
      %v5681 = vpack.c.b16 %v5656, %v5655
      %v5682 = vpack.c.b16 %v5658, %v5657
      %v5683 = vpack.c.b16 %v5660, %v5659
      %v5684 = vpack.c.b16 %v5662, %v5661
      %v5685 = vpack.c.b16 %v5664, %v5663
      %v5686 = vpack.c.b16 %v5666, %v5665
      %v5687 = vpack.c.b16 %v5668, %v5667
      %v5688 = vpack.c.b16 %v5670, %v5669
      %v5689 = vpack.c.b16 %v5672, %v5671
      %v5690 = vpack.c.b16 %v5674, %v5673
      %v5707 = vunpack.c.l.b16 %v5565
      %v5708 = vunpack.c.l.b16 %v5568
      %v5709 = vunpack.c.l.b16 %v5571
      %v5710 = vunpack.c.l.b16 %v5574
      %v5711 = vunpack.c.l.b16 %v5577
      %v5712 = vunpack.c.l.b16 %v5580
      %v5713 = vunpack.c.l.b16 %v5583
      %v5714 = vunpack.c.l.b16 %v5586
      %v5715 = vunpack.c.l.b16 %v5589
      %v5716 = vunpack.c.l.b16 %v5592
      %v5717 = vunpack.c.l.b16 %v5595
      %v5718 = vunpack.c.l.b16 %v5598
      %v5719 = vunpack.c.l.b16 %v5601
      %v5720 = vunpack.c.l.b16 %v5604
      %v5721 = vunpack.c.l.b16 %v5607
      %v5722 = vunpack.c.l.b16 %v5610
      %v5723 = vpack.c.b16 %v5707, %v5707
      %v5724 = vpack.c.b16 %v5708, %v5708
      %v5725 = vpack.c.b16 %v5709, %v5709
      %v5726 = vpack.c.b16 %v5710, %v5710
      %v5727 = vpack.c.b16 %v5711, %v5711
      %v5728 = vpack.c.b16 %v5712, %v5712
      %v5729 = vpack.c.b16 %v5713, %v5713
      %v5730 = vpack.c.b16 %v5714, %v5714
      %v5731 = vpack.c.b16 %v5715, %v5715
      %v5732 = vpack.c.b16 %v5716, %v5716
      %v5733 = vpack.c.b16 %v5717, %v5717
      %v5734 = vpack.c.b16 %v5718, %v5718
      %v5735 = vpack.c.b16 %v5719, %v5719
      %v5736 = vpack.c.b16 %v5720, %v5720
      %v5737 = vpack.c.b16 %v5721, %v5721
      %v5738 = vpack.c.b16 %v5722, %v5722
      %v5740 = vshrl.u32 %v5675, 16
      %v5742 = vshll.u32 %v5675, 16
      %v5744 = vrot.slane %v5742, 1
      %v5745 = vor.u32 %v5740, %v5744
      %v5747 = vshll.u32 %v5723, 16
      %v5749 = vrot.slane %v5747, 1
      %v5750 = vsel %vm1282, %v5745, %v5749
      %v5752 = vshrl.u32 %v5676, 16
      %v5754 = vshll.u32 %v5676, 16
      %v5756 = vrot.slane %v5754, 1
      %v5757 = vor.u32 %v5752, %v5756
      %v5759 = vshll.u32 %v5724, 16
      %v5761 = vrot.slane %v5759, 1
      %v5762 = vsel %vm1282, %v5757, %v5761
      %v5764 = vshrl.u32 %v5677, 16
      %v5766 = vshll.u32 %v5677, 16
      %v5768 = vrot.slane %v5766, 1
      %v5769 = vor.u32 %v5764, %v5768
      %v5771 = vshll.u32 %v5725, 16
      %v5773 = vrot.slane %v5771, 1
      %v5774 = vsel %vm1282, %v5769, %v5773
      %v5776 = vshrl.u32 %v5678, 16
      %v5778 = vshll.u32 %v5678, 16
      %v5780 = vrot.slane %v5778, 1
      %v5781 = vor.u32 %v5776, %v5780
      %v5783 = vshll.u32 %v5726, 16
      %v5785 = vrot.slane %v5783, 1
      %v5786 = vsel %vm1282, %v5781, %v5785
      %v5788 = vshrl.u32 %v5679, 16
      %v5790 = vshll.u32 %v5679, 16
      %v5792 = vrot.slane %v5790, 1
      %v5793 = vor.u32 %v5788, %v5792
      %v5795 = vshll.u32 %v5727, 16
      %v5797 = vrot.slane %v5795, 1
      %v5798 = vsel %vm1282, %v5793, %v5797
      %v5800 = vshrl.u32 %v5680, 16
      %v5802 = vshll.u32 %v5680, 16
      %v5804 = vrot.slane %v5802, 1
      %v5805 = vor.u32 %v5800, %v5804
      %v5807 = vshll.u32 %v5728, 16
      %v5809 = vrot.slane %v5807, 1
      %v5810 = vsel %vm1282, %v5805, %v5809
      %v5812 = vshrl.u32 %v5681, 16
      %v5814 = vshll.u32 %v5681, 16
      %v5816 = vrot.slane %v5814, 1
      %v5817 = vor.u32 %v5812, %v5816
      %v5819 = vshll.u32 %v5729, 16
      %v5821 = vrot.slane %v5819, 1
      %v5822 = vsel %vm1282, %v5817, %v5821
      %v5824 = vshrl.u32 %v5682, 16
      %v5826 = vshll.u32 %v5682, 16
      %v5828 = vrot.slane %v5826, 1
      %v5829 = vor.u32 %v5824, %v5828
      %v5831 = vshll.u32 %v5730, 16
      %v5833 = vrot.slane %v5831, 1
      %v5834 = vsel %vm1282, %v5829, %v5833
      %v5836 = vshrl.u32 %v5683, 16
      %v5838 = vshll.u32 %v5683, 16
      %v5840 = vrot.slane %v5838, 1
      %v5841 = vor.u32 %v5836, %v5840
      %v5843 = vshll.u32 %v5731, 16
      %v5845 = vrot.slane %v5843, 1
      %v5846 = vsel %vm1282, %v5841, %v5845
      %v5848 = vshrl.u32 %v5684, 16
      %v5850 = vshll.u32 %v5684, 16
      %v5852 = vrot.slane %v5850, 1
      %v5853 = vor.u32 %v5848, %v5852
      %v5855 = vshll.u32 %v5732, 16
      %v5857 = vrot.slane %v5855, 1
      %v5858 = vsel %vm1282, %v5853, %v5857
      %v5860 = vshrl.u32 %v5685, 16
      %v5862 = vshll.u32 %v5685, 16
      %v5864 = vrot.slane %v5862, 1
      %v5865 = vor.u32 %v5860, %v5864
      %v5867 = vshll.u32 %v5733, 16
      %v5869 = vrot.slane %v5867, 1
      %v5870 = vsel %vm1282, %v5865, %v5869
      %v5872 = vshrl.u32 %v5686, 16
      %v5874 = vshll.u32 %v5686, 16
      %v5876 = vrot.slane %v5874, 1
      %v5877 = vor.u32 %v5872, %v5876
      %v5879 = vshll.u32 %v5734, 16
      %v5881 = vrot.slane %v5879, 1
      %v5882 = vsel %vm1282, %v5877, %v5881
      %v5884 = vshrl.u32 %v5687, 16
      %v5886 = vshll.u32 %v5687, 16
      %v5888 = vrot.slane %v5886, 1
      %v5889 = vor.u32 %v5884, %v5888
      %v5891 = vshll.u32 %v5735, 16
      %v5893 = vrot.slane %v5891, 1
      %v5894 = vsel %vm1282, %v5889, %v5893
      %v5896 = vshrl.u32 %v5688, 16
      %v5898 = vshll.u32 %v5688, 16
      %v5900 = vrot.slane %v5898, 1
      %v5901 = vor.u32 %v5896, %v5900
      %v5903 = vshll.u32 %v5736, 16
      %v5905 = vrot.slane %v5903, 1
      %v5906 = vsel %vm1282, %v5901, %v5905
      %v5908 = vshrl.u32 %v5689, 16
      %v5910 = vshll.u32 %v5689, 16
      %v5912 = vrot.slane %v5910, 1
      %v5913 = vor.u32 %v5908, %v5912
      %v5915 = vshll.u32 %v5737, 16
      %v5917 = vrot.slane %v5915, 1
      %v5918 = vsel %vm1282, %v5913, %v5917
      %v5920 = vshrl.u32 %v5690, 16
      %v5922 = vshll.u32 %v5690, 16
      %v5924 = vrot.slane %v5922, 1
      %v5925 = vor.u32 %v5920, %v5924
      %v5927 = vshll.u32 %v5738, 16
      %v5929 = vrot.slane %v5927, 1
      %v5930 = vsel %vm1282, %v5925, %v5929
      %5931 = vrot.lane.b32.xlu0 %v5750, 64
      %v5932 = vpop.permute.xlu0 %5931
      %5933 = vrot.lane.b32.xlu0 %v5762, 64
      %v5934 = vpop.permute.xlu0 %5933
      %5935 = vrot.lane.b32.xlu0 %v5774, 64
      %v5936 = vpop.permute.xlu0 %5935
      %5937 = vrot.lane.b32.xlu0 %v5786, 64
      %v5938 = vpop.permute.xlu0 %5937
      %5939 = vrot.lane.b32.xlu0 %v5798, 64
      %v5940 = vpop.permute.xlu0 %5939
      %5941 = vrot.lane.b32.xlu0 %v5810, 64
      %v5942 = vpop.permute.xlu0 %5941
      %5943 = vrot.lane.b32.xlu0 %v5822, 64
      %v5944 = vpop.permute.xlu0 %5943
      %5945 = vrot.lane.b32.xlu0 %v5834, 64
      %v5946 = vpop.permute.xlu0 %5945
      %5947 = vrot.lane.b32.xlu0 %v5846, 64
      %v5948 = vpop.permute.xlu0 %5947
      %5949 = vrot.lane.b32.xlu0 %v5858, 64
      %v5950 = vpop.permute.xlu0 %5949
      %5951 = vrot.lane.b32.xlu0 %v5870, 64
      %v5952 = vpop.permute.xlu0 %5951
      %5953 = vrot.lane.b32.xlu0 %v5882, 64
      %v5954 = vpop.permute.xlu0 %5953
      %5955 = vrot.lane.b32.xlu0 %v5894, 64
      %v5956 = vpop.permute.xlu0 %5955
      %5957 = vrot.lane.b32.xlu0 %v5906, 64
      %v5958 = vpop.permute.xlu0 %5957
      %5959 = vrot.lane.b32.xlu0 %v5918, 64
      %v5960 = vpop.permute.xlu0 %5959
      %5961 = vrot.lane.b32.xlu0 %v5930, 64
      %v5962 = vpop.permute.xlu0 %5961
      %v5963 = vrot.slane %v5675, 1
      %v5964 = vrot.slane %v5723, 1
      %v5965 = vsel %vm1507, %v5963, %v5964
      %v5966 = vrot.slane %v5676, 1
      %v5967 = vrot.slane %v5724, 1
      %v5968 = vsel %vm1507, %v5966, %v5967
      %v5969 = vrot.slane %v5677, 1
      %v5970 = vrot.slane %v5725, 1
      %v5971 = vsel %vm1507, %v5969, %v5970
      %v5972 = vrot.slane %v5678, 1
      %v5973 = vrot.slane %v5726, 1
      %v5974 = vsel %vm1507, %v5972, %v5973
      %v5975 = vrot.slane %v5679, 1
      %v5976 = vrot.slane %v5727, 1
      %v5977 = vsel %vm1507, %v5975, %v5976
      %v5978 = vrot.slane %v5680, 1
      %v5979 = vrot.slane %v5728, 1
      %v5980 = vsel %vm1507, %v5978, %v5979
      %v5981 = vrot.slane %v5681, 1
      %v5982 = vrot.slane %v5729, 1
      %v5983 = vsel %vm1507, %v5981, %v5982
      %v5984 = vrot.slane %v5682, 1
      %v5985 = vrot.slane %v5730, 1
      %v5986 = vsel %vm1507, %v5984, %v5985
      %v5987 = vrot.slane %v5683, 1
      %v5988 = vrot.slane %v5731, 1
      %v5989 = vsel %vm1507, %v5987, %v5988
      %v5990 = vrot.slane %v5684, 1
      %v5991 = vrot.slane %v5732, 1
      %v5992 = vsel %vm1507, %v5990, %v5991
      %v5993 = vrot.slane %v5685, 1
      %v5994 = vrot.slane %v5733, 1
      %v5995 = vsel %vm1507, %v5993, %v5994
      %v5996 = vrot.slane %v5686, 1
      %v5997 = vrot.slane %v5734, 1
      %v5998 = vsel %vm1507, %v5996, %v5997
      %v5999 = vrot.slane %v5687, 1
      %v6000 = vrot.slane %v5735, 1
      %v6001 = vsel %vm1507, %v5999, %v6000
      %v6002 = vrot.slane %v5688, 1
      %v6003 = vrot.slane %v5736, 1
      %v6004 = vsel %vm1507, %v6002, %v6003
      %v6005 = vrot.slane %v5689, 1
      %v6006 = vrot.slane %v5737, 1
      %v6007 = vsel %vm1507, %v6005, %v6006
      %v6008 = vrot.slane %v5690, 1
      %v6009 = vrot.slane %v5738, 1
      %v6010 = vsel %vm1507, %v6008, %v6009
      %v6012 = vsel %vm4406, %v5675, %v5932
      %v6015 = vsel %vm4406, %v5676, %v5934
      %v6018 = vsel %vm4406, %v5677, %v5936
      %v6021 = vsel %vm4406, %v5678, %v5938
      %v6024 = vsel %vm4406, %v5679, %v5940
      %v6027 = vsel %vm4406, %v5680, %v5942
      %v6030 = vsel %vm4406, %v5681, %v5944
      %v6033 = vsel %vm4406, %v5682, %v5946
      %v6036 = vsel %vm4406, %v5683, %v5948
      %v6039 = vsel %vm4406, %v5684, %v5950
      %v6042 = vsel %vm4406, %v5685, %v5952
      %v6045 = vsel %vm4406, %v5686, %v5954
      %v6048 = vsel %vm4406, %v5687, %v5956
      %v6051 = vsel %vm4406, %v5688, %v5958
      %v6054 = vsel %vm4406, %v5689, %v5960
      %v6057 = vsel %vm4406, %v5690, %v5962
      %s6059 = scalar_lea.vmem %s2, 192
      %v6060 = vld [vmem:[%s6059] sm:$0xf]
      %v6061 = vld [vmem:[%s6059 + $0x4] sm:$0xf]
      %v6062 = vld [vmem:[%s6059 + $0x8] sm:$0xf]
      %v6063 = vld [vmem:[%s6059 + $0xc] sm:$0xf]
      %v6064 = vld [vmem:[%s6059 + $0x10] sm:$0xf]
      %v6065 = vld [vmem:[%s6059 + $0x14] sm:$0xf]
      %v6066 = vld [vmem:[%s6059 + $0x18] sm:$0xf]
      %v6067 = vld [vmem:[%s6059 + $0x1c] sm:$0xf]
      %v6068 = vld [vmem:[%s6059 + $0x20] sm:$0xf]
      %v6069 = vld [vmem:[%s6059 + $0x24] sm:$0xf]
      %v6070 = vld [vmem:[%s6059 + $0x28] sm:$0xf]
      %v6071 = vld [vmem:[%s6059 + $0x2c] sm:$0xf]
      %v6072 = vld [vmem:[%s6059 + $0x30] sm:$0xf]
      %v6073 = vld [vmem:[%s6059 + $0x34] sm:$0xf]
      %v6074 = vld [vmem:[%s6059 + $0x38] sm:$0xf]
      %v6075 = vld [vmem:[%s6059 + $0x3c] sm:$0xf]
      %v6076 = vld [vmem:[%s6059 + $0x40] sm:$0xf]
      %v6077 = vld [vmem:[%s6059 + $0x44] sm:$0xf]
      %v6078 = vld [vmem:[%s6059 + $0x48] sm:$0xf]
      %v6079 = vld [vmem:[%s6059 + $0x4c] sm:$0xf]
      %v6080 = vld [vmem:[%s6059 + $0x50] sm:$0xf]
      %v6081 = vld [vmem:[%s6059 + $0x54] sm:$0xf]
      %v6082 = vld [vmem:[%s6059 + $0x58] sm:$0xf]
      %v6083 = vld [vmem:[%s6059 + $0x5c] sm:$0xf]
      %v6108 = vunpack.c.l.b16 %v6060
      %v6109 = vunpack.c.l.b16 %v6061
      %v6110 = vunpack.c.l.b16 %v6062
      %v6111 = vunpack.c.l.b16 %v6063
      %v6112 = vunpack.c.l.b16 %v6064
      %v6113 = vunpack.c.l.b16 %v6065
      %v6114 = vunpack.c.l.b16 %v6066
      %v6115 = vunpack.c.l.b16 %v6067
      %v6116 = vunpack.c.l.b16 %v6068
      %v6117 = vunpack.c.l.b16 %v6069
      %v6118 = vunpack.c.l.b16 %v6070
      %v6119 = vunpack.c.l.b16 %v6071
      %v6120 = vunpack.c.l.b16 %v6072
      %v6121 = vunpack.c.l.b16 %v6073
      %v6122 = vunpack.c.l.b16 %v6074
      %v6123 = vunpack.c.l.b16 %v6075
      %v6124 = vunpack.c.l.b16 %v6076
      %v6125 = vunpack.c.l.b16 %v6077
      %v6126 = vunpack.c.l.b16 %v6078
      %v6127 = vunpack.c.l.b16 %v6079
      %v6128 = vunpack.c.l.b16 %v6080
      %v6129 = vunpack.c.l.b16 %v6081
      %v6130 = vunpack.c.l.b16 %v6082
      %v6131 = vunpack.c.l.b16 %v6083
      %v6132 = vpack.c.b16 %v6109, %v6108
      %v6133 = vpack.c.b16 %v6111, %v6110
      %v6134 = vpack.c.b16 %v6113, %v6112
      %v6135 = vpack.c.b16 %v6115, %v6114
      %v6136 = vpack.c.b16 %v6117, %v6116
      %v6137 = vpack.c.b16 %v6119, %v6118
      %v6138 = vpack.c.b16 %v6121, %v6120
      %v6139 = vpack.c.b16 %v6123, %v6122
      %v6140 = vpack.c.b16 %v6125, %v6124
      %v6141 = vpack.c.b16 %v6127, %v6126
      %v6142 = vpack.c.b16 %v6129, %v6128
      %v6143 = vpack.c.b16 %v6131, %v6130
      %v6157 = vsel %vm4406, %v5965, 0
      %v6160 = vsel %vm4406, %v5968, 0
      %v6163 = vsel %vm4406, %v5971, 0
      %v6166 = vsel %vm4406, %v5974, 0
      %v6169 = vsel %vm4406, %v5977, 0
      %v6172 = vsel %vm4406, %v5980, 0
      %v6175 = vsel %vm4406, %v5983, 0
      %v6178 = vsel %vm4406, %v5986, 0
      %v6181 = vsel %vm4406, %v5989, 0
      %v6184 = vsel %vm4406, %v5992, 0
      %v6187 = vsel %vm4406, %v5995, 0
      %v6190 = vsel %vm4406, %v5998, 0
      %v6193 = vsel %vm4406, %v6001, 0
      %v6196 = vsel %vm4406, %v6004, 0
      %v6199 = vsel %vm4406, %v6007, 0
      %v6202 = vsel %vm4406, %v6010, 0
      %6204 = vmatprep.subr.bf16.mxu0 0
      %6205 = vmatpush1.bf16.msra.mxu0 %v6132
      %6206 = vmatprep.subr.bf16.mxu0 0
      %6207 = vmatpush1.bf16.msra.mxu0 %v6133
      %6208 = vmatprep.subr.bf16.mxu0 0
      %6209 = vmatpush1.bf16.msra.mxu0 %v6134
      %6210 = vmatprep.subr.bf16.mxu0 0
      %6211 = vmatpush1.bf16.msra.mxu0 %v6135
      %6212 = vmatprep.subr.bf16.mxu0 0
      %6213 = vmatpush1.bf16.msra.mxu0 %v6136
      %6214 = vmatprep.subr.bf16.mxu0 0
      %6215 = vmatpush1.bf16.msra.mxu0 %v6137
      %6216 = vmatprep.subr.bf16.mxu0 0
      %6217 = vmatpush1.bf16.msra.mxu0 %v6138
      %6218 = vmatprep.subr.bf16.mxu0 0
      %6219 = vmatpush1.bf16.msra.mxu0 %v6139
      %6220 = vmatprep.subr.bf16.mxu0 0
      %6221 = vmatpush1.bf16.msra.mxu0 %v6140
      %6222 = vmatprep.subr.bf16.mxu0 0
      %6223 = vmatpush1.bf16.msra.mxu0 %v6141
      %6224 = vmatprep.subr.bf16.mxu0 0
      %6225 = vmatpush1.bf16.msra.mxu0 %v6142
      %6226 = vmatprep.subr.bf16.mxu0 0
      %6227 = vmatpush1.bf16.msra.mxu0 %v6143
      %6228 = vmatprep.subr.bf16.mxu0 0
      %6229 = vmatpush1.bf16.msra.mxu0 0
      %6230 = vmatprep.subr.bf16.mxu0 0
      %6231 = vmatpush1.bf16.msra.mxu0 0
      %6232 = vmatprep.subr.bf16.mxu0 0
      %6233 = vmatpush1.bf16.msra.mxu0 0
      %6234 = vmatprep.subr.bf16.mxu0 0
      %6235 = vmatpush1.bf16.msra.mxu0 0
      %6236 = vmatprep.mubr.bf16.mxu0 %v6157
      %6237 = vmatmul.mubr.bf16.gmra.mrb[0].mxu0 %v6012
      %v6238 = vpop.f32.mrb[0].mxu0
      %v6239 = vadd.f32 0.0, %v6238
      %v6240 = vpop.f32.mrb[0].mxu0
      %v6241 = vpop.f32.mrb[0].mxu0
      %v6242 = vadd.f32 0.0, %v6241
      %v6243 = vpop.f32.mrb[0].mxu0
      %6244 = vmatprep.mubr.bf16.mxu0 %v6160
      %6245 = vmatmul.mubr.bf16.gmra.mrb[0].mxu0 %v6015
      %v6246 = vpop.f32.mrb[0].mxu0
      %v6247 = vadd.f32 0.0, %v6246
      %v6248 = vpop.f32.mrb[0].mxu0
      %v6249 = vpop.f32.mrb[0].mxu0
      %v6250 = vadd.f32 0.0, %v6249
      %v6251 = vpop.f32.mrb[0].mxu0
      %6252 = vmatprep.mubr.bf16.mxu0 %v6163
      %6253 = vmatmul.mubr.bf16.gmra.mrb[0].mxu0 %v6018
      %v6254 = vpop.f32.mrb[0].mxu0
      %v6255 = vadd.f32 0.0, %v6254
      %v6256 = vpop.f32.mrb[0].mxu0
      %v6257 = vpop.f32.mrb[0].mxu0
      %v6258 = vadd.f32 0.0, %v6257
      %v6259 = vpop.f32.mrb[0].mxu0
      %6260 = vmatprep.mubr.bf16.mxu0 %v6166
      %6261 = vmatmul.mubr.bf16.gmra.mrb[0].mxu0 %v6021
      %v6262 = vpop.f32.mrb[0].mxu0
      %v6263 = vadd.f32 0.0, %v6262
      %v6264 = vpop.f32.mrb[0].mxu0
      %v6265 = vpop.f32.mrb[0].mxu0
      %v6266 = vadd.f32 0.0, %v6265
      %v6267 = vpop.f32.mrb[0].mxu0
      %6268 = vmatprep.mubr.bf16.mxu0 %v6169
      %6269 = vmatmul.mubr.bf16.gmra.mrb[0].mxu0 %v6024
      %v6270 = vpop.f32.mrb[0].mxu0
      %v6271 = vadd.f32 0.0, %v6270
      %v6272 = vpop.f32.mrb[0].mxu0
      %v6273 = vpop.f32.mrb[0].mxu0
      %v6274 = vadd.f32 0.0, %v6273
      %v6275 = vpop.f32.mrb[0].mxu0
      %6276 = vmatprep.mubr.bf16.mxu0 %v6172
      %6277 = vmatmul.mubr.bf16.gmra.mrb[0].mxu0 %v6027
      %v6278 = vpop.f32.mrb[0].mxu0
      %v6279 = vadd.f32 0.0, %v6278
      %v6280 = vpop.f32.mrb[0].mxu0
      %v6281 = vpop.f32.mrb[0].mxu0
      %v6282 = vadd.f32 0.0, %v6281
      %v6283 = vpop.f32.mrb[0].mxu0
      %6284 = vmatprep.mubr.bf16.mxu0 %v6175
      %6285 = vmatmul.mubr.bf16.gmra.mrb[0].mxu0 %v6030
      %v6286 = vpop.f32.mrb[0].mxu0
      %v6287 = vadd.f32 0.0, %v6286
      %v6288 = vpop.f32.mrb[0].mxu0
      %v6289 = vpop.f32.mrb[0].mxu0
      %v6290 = vadd.f32 0.0, %v6289
      %v6291 = vpop.f32.mrb[0].mxu0
      %6292 = vmatprep.mubr.bf16.mxu0 %v6178
      %6293 = vmatmul.mubr.bf16.gmra.mrb[0].mxu0 %v6033
      %v6294 = vpop.f32.mrb[0].mxu0
      %v6295 = vadd.f32 0.0, %v6294
      %v6296 = vpop.f32.mrb[0].mxu0
      %v6297 = vpop.f32.mrb[0].mxu0
      %v6298 = vadd.f32 0.0, %v6297
      %v6299 = vpop.f32.mrb[0].mxu0
      %6300 = vmatprep.mubr.bf16.mxu0 %v6181
      %6301 = vmatmul.mubr.bf16.gmra.mrb[0].mxu0 %v6036
      %v6302 = vpop.f32.mrb[0].mxu0
      %v6303 = vadd.f32 0.0, %v6302
      %v6304 = vpop.f32.mrb[0].mxu0
      %v6305 = vpop.f32.mrb[0].mxu0
      %v6306 = vadd.f32 0.0, %v6305
      %v6307 = vpop.f32.mrb[0].mxu0
      %6308 = vmatprep.mubr.bf16.mxu0 %v6184
      %6309 = vmatmul.mubr.bf16.gmra.mrb[0].mxu0 %v6039
      %v6310 = vpop.f32.mrb[0].mxu0
      %v6311 = vadd.f32 0.0, %v6310
      %v6312 = vpop.f32.mrb[0].mxu0
      %v6313 = vpop.f32.mrb[0].mxu0
      %v6314 = vadd.f32 0.0, %v6313
      %v6315 = vpop.f32.mrb[0].mxu0
      %6316 = vmatprep.mubr.bf16.mxu0 %v6187
      %6317 = vmatmul.mubr.bf16.gmra.mrb[0].mxu0 %v6042
      %v6318 = vpop.f32.mrb[0].mxu0
      %v6319 = vadd.f32 0.0, %v6318
      %v6320 = vpop.f32.mrb[0].mxu0
      %v6321 = vpop.f32.mrb[0].mxu0
      %v6322 = vadd.f32 0.0, %v6321
      %v6323 = vpop.f32.mrb[0].mxu0
      %6324 = vmatprep.mubr.bf16.mxu0 %v6190
      %6325 = vmatmul.mubr.bf16.gmra.mrb[0].mxu0 %v6045
      %v6326 = vpop.f32.mrb[0].mxu0
      %v6327 = vadd.f32 0.0, %v6326
      %v6328 = vpop.f32.mrb[0].mxu0
      %v6329 = vpop.f32.mrb[0].mxu0
      %v6330 = vadd.f32 0.0, %v6329
      %v6331 = vpop.f32.mrb[0].mxu0
      %6332 = vmatprep.mubr.bf16.mxu0 %v6193
      %6333 = vmatmul.mubr.bf16.gmra.mrb[0].mxu0 %v6048
      %v6334 = vpop.f32.mrb[0].mxu0
      %v6335 = vadd.f32 0.0, %v6334
      %v6336 = vpop.f32.mrb[0].mxu0
      %v6337 = vpop.f32.mrb[0].mxu0
      %v6338 = vadd.f32 0.0, %v6337
      %v6339 = vpop.f32.mrb[0].mxu0
      %6340 = vmatprep.mubr.bf16.mxu0 %v6196
      %6341 = vmatmul.mubr.bf16.gmra.mrb[0].mxu0 %v6051
      %v6342 = vpop.f32.mrb[0].mxu0
      %v6343 = vadd.f32 0.0, %v6342
      %v6344 = vpop.f32.mrb[0].mxu0
      %v6345 = vpop.f32.mrb[0].mxu0
      %v6346 = vadd.f32 0.0, %v6345
      %v6347 = vpop.f32.mrb[0].mxu0
      %6348 = vmatprep.mubr.bf16.mxu0 %v6199
      %6349 = vmatmul.mubr.bf16.gmra.mrb[0].mxu0 %v6054
      %v6350 = vpop.f32.mrb[0].mxu0
      %v6351 = vadd.f32 0.0, %v6350
      %v6352 = vpop.f32.mrb[0].mxu0
      %v6353 = vpop.f32.mrb[0].mxu0
      %v6354 = vadd.f32 0.0, %v6353
      %v6355 = vpop.f32.mrb[0].mxu0
      %6356 = vmatprep.mubr.bf16.mxu0 %v6202
      %6357 = vmatmul.mubr.bf16.gmra.mrb[0].mxu0 %v6057
      %v6358 = vpop.f32.mrb[0].mxu0
      %v6359 = vadd.f32 0.0, %v6358
      %v6360 = vpop.f32.mrb[0].mxu0
      %v6361 = vpop.f32.mrb[0].mxu0
      %v6362 = vadd.f32 0.0, %v6361
      %v6363 = vpop.f32.mrb[0].mxu0
      %6364 = vdwg.mxu0
      %v6365 = vadd.f32 %v5436, %v6239
      %v6366 = vadd.f32 %v5439, %v6242
      %v6367 = vadd.f32 %v5444, %v6247
      %v6368 = vadd.f32 %v5447, %v6250
      %v6369 = vadd.f32 %v5452, %v6255
      %v6370 = vadd.f32 %v5455, %v6258
      %v6371 = vadd.f32 %v5460, %v6263
      %v6372 = vadd.f32 %v5463, %v6266
      %v6373 = vadd.f32 %v5468, %v6271
      %v6374 = vadd.f32 %v5471, %v6274
      %v6375 = vadd.f32 %v5476, %v6279
      %v6376 = vadd.f32 %v5479, %v6282
      %v6377 = vadd.f32 %v5484, %v6287
      %v6378 = vadd.f32 %v5487, %v6290
      %v6379 = vadd.f32 %v5492, %v6295
      %v6380 = vadd.f32 %v5495, %v6298
      %v6381 = vadd.f32 %v5500, %v6303
      %v6382 = vadd.f32 %v5503, %v6306
      %v6383 = vadd.f32 %v5508, %v6311
      %v6384 = vadd.f32 %v5511, %v6314
      %v6385 = vadd.f32 %v5516, %v6319
      %v6386 = vadd.f32 %v5519, %v6322
      %v6387 = vadd.f32 %v5524, %v6327
      %v6388 = vadd.f32 %v5527, %v6330
      %v6389 = vadd.f32 %v5532, %v6335
      %v6390 = vadd.f32 %v5535, %v6338
      %v6391 = vadd.f32 %v5540, %v6343
      %v6392 = vadd.f32 %v5543, %v6346
      %v6393 = vadd.f32 %v5548, %v6351
      %v6394 = vadd.f32 %v5551, %v6354
      %v6395 = vadd.f32 %v5556, %v6359
      %v6396 = vadd.f32 %v5559, %v6362
      %v6397 = vld [vmem:[%s5] sm:$0x1]
      %v6399 = vlaneseq
      %v6400 = vshrl.u32 %v6399, 7
      %v6401 = vsub.s32 0, %v6400
      %v6402 = vrot.slane %v6397, %v6401
      %v6404 = vadd.f32 %v6365, %v6402
      %v6405 = vadd.f32 %v6366, %v6402
      %v6406 = vadd.f32 %v6367, %v6402
      %v6407 = vadd.f32 %v6368, %v6402
      %v6408 = vadd.f32 %v6369, %v6402
      %v6409 = vadd.f32 %v6370, %v6402
      %v6410 = vadd.f32 %v6371, %v6402
      %v6411 = vadd.f32 %v6372, %v6402
      %v6412 = vadd.f32 %v6373, %v6402
      %v6413 = vadd.f32 %v6374, %v6402
      %v6414 = vadd.f32 %v6375, %v6402
      %v6415 = vadd.f32 %v6376, %v6402
      %v6416 = vadd.f32 %v6377, %v6402
      %v6417 = vadd.f32 %v6378, %v6402
      %v6418 = vadd.f32 %v6379, %v6402
      %v6419 = vadd.f32 %v6380, %v6402
      %v6420 = vadd.f32 %v6381, %v6402
      %v6421 = vadd.f32 %v6382, %v6402
      %v6422 = vadd.f32 %v6383, %v6402
      %v6423 = vadd.f32 %v6384, %v6402
      %v6424 = vadd.f32 %v6385, %v6402
      %v6425 = vadd.f32 %v6386, %v6402
      %v6426 = vadd.f32 %v6387, %v6402
      %v6427 = vadd.f32 %v6388, %v6402
      %v6428 = vadd.f32 %v6389, %v6402
      %v6429 = vadd.f32 %v6390, %v6402
      %v6430 = vadd.f32 %v6391, %v6402
      %v6431 = vadd.f32 %v6392, %v6402
      %v6432 = vadd.f32 %v6393, %v6402
      %v6433 = vadd.f32 %v6394, %v6402
      %v6434 = vadd.f32 %v6395, %v6402
      %v6435 = vadd.f32 %v6396, %v6402
      %v6436 = vpack.c.bf16 %v6405, %v6404
      %v6437 = vpack.c.bf16 %v6407, %v6406
      %v6438 = vpack.c.bf16 %v6409, %v6408
      %v6439 = vpack.c.bf16 %v6411, %v6410
      %v6440 = vpack.c.bf16 %v6413, %v6412
      %v6441 = vpack.c.bf16 %v6415, %v6414
      %v6442 = vpack.c.bf16 %v6417, %v6416
      %v6443 = vpack.c.bf16 %v6419, %v6418
      %v6444 = vpack.c.bf16 %v6421, %v6420
      %v6445 = vpack.c.bf16 %v6423, %v6422
      %v6446 = vpack.c.bf16 %v6425, %v6424
      %v6447 = vpack.c.bf16 %v6427, %v6426
      %v6448 = vpack.c.bf16 %v6429, %v6428
      %v6449 = vpack.c.bf16 %v6431, %v6430
      %v6450 = vpack.c.bf16 %v6433, %v6432
      %v6451 = vpack.c.bf16 %v6435, %v6434
      %v6468 = vunpack.c.l.b16 %v6436
      %v6469 = vunpack.c.h.b16 %v6436
      %v6470 = vunpack.c.l.b16 %v6437
      %v6471 = vunpack.c.h.b16 %v6437
      %v6472 = vunpack.c.l.b16 %v6438
      %v6473 = vunpack.c.h.b16 %v6438
      %v6474 = vunpack.c.l.b16 %v6439
      %v6475 = vunpack.c.h.b16 %v6439
      %v6476 = vunpack.c.l.b16 %v6440
      %v6477 = vunpack.c.h.b16 %v6440
      %v6478 = vunpack.c.l.b16 %v6441
      %v6479 = vunpack.c.h.b16 %v6441
      %v6480 = vunpack.c.l.b16 %v6442
      %v6481 = vunpack.c.h.b16 %v6442
      %v6482 = vunpack.c.l.b16 %v6443
      %v6483 = vunpack.c.h.b16 %v6443
      %v6484 = vunpack.c.l.b16 %v6444
      %v6485 = vunpack.c.h.b16 %v6444
      %v6486 = vunpack.c.l.b16 %v6445
      %v6487 = vunpack.c.h.b16 %v6445
      %v6488 = vunpack.c.l.b16 %v6446
      %v6489 = vunpack.c.h.b16 %v6446
      %v6490 = vunpack.c.l.b16 %v6447
      %v6491 = vunpack.c.h.b16 %v6447
      %v6492 = vunpack.c.l.b16 %v6448
      %v6493 = vunpack.c.h.b16 %v6448
      %v6494 = vunpack.c.l.b16 %v6449
      %v6495 = vunpack.c.h.b16 %v6449
      %v6496 = vunpack.c.l.b16 %v6450
      %v6497 = vunpack.c.h.b16 %v6450
      %v6498 = vunpack.c.l.b16 %v6451
      %v6499 = vunpack.c.h.b16 %v6451
      %v6500 = vpack.c.b16 %v6468, %v6468
      %v6501 = vpack.c.b16 %v6469, %v6469
      %v6502 = vpack.c.b16 %v6470, %v6470
      %v6503 = vpack.c.b16 %v6471, %v6471
      %v6504 = vpack.c.b16 %v6472, %v6472
      %v6505 = vpack.c.b16 %v6473, %v6473
      %v6506 = vpack.c.b16 %v6474, %v6474
      %v6507 = vpack.c.b16 %v6475, %v6475
      %v6508 = vpack.c.b16 %v6476, %v6476
      %v6509 = vpack.c.b16 %v6477, %v6477
      %v6510 = vpack.c.b16 %v6478, %v6478
      %v6511 = vpack.c.b16 %v6479, %v6479
      %v6512 = vpack.c.b16 %v6480, %v6480
      %v6513 = vpack.c.b16 %v6481, %v6481
      %v6514 = vpack.c.b16 %v6482, %v6482
      %v6515 = vpack.c.b16 %v6483, %v6483
      %v6516 = vpack.c.b16 %v6484, %v6484
      %v6517 = vpack.c.b16 %v6485, %v6485
      %v6518 = vpack.c.b16 %v6486, %v6486
      %v6519 = vpack.c.b16 %v6487, %v6487
      %v6520 = vpack.c.b16 %v6488, %v6488
      %v6521 = vpack.c.b16 %v6489, %v6489
      %v6522 = vpack.c.b16 %v6490, %v6490
      %v6523 = vpack.c.b16 %v6491, %v6491
      %v6524 = vpack.c.b16 %v6492, %v6492
      %v6525 = vpack.c.b16 %v6493, %v6493
      %v6526 = vpack.c.b16 %v6494, %v6494
      %v6527 = vpack.c.b16 %v6495, %v6495
      %v6528 = vpack.c.b16 %v6496, %v6496
      %v6529 = vpack.c.b16 %v6497, %v6497
      %v6530 = vpack.c.b16 %v6498, %v6498
      %v6531 = vpack.c.b16 %v6499, %v6499
      %v6533 = vshrl.u32 %v6500, 16
      %v6535 = vrot.slane %v6533, 7
      %v6536 = vshll.u32 %v6500, 16
      %v6538 = vor.u32 %v6535, %v6536
      %v6539 = vrot.slane %v6535, 4
      %v6541 = vshrl.u32 %v6501, 16
      %v6543 = vrot.slane %v6541, 7
      %v6544 = vshll.u32 %v6501, 16
      %v6546 = vor.u32 %v6543, %v6544
      %v6547 = vsel %vm670, %v6539, %v6546
      %v6548 = vrot.slane %v6543, 4
      %v6550 = vshrl.u32 %v6502, 16
      %v6552 = vrot.slane %v6550, 7
      %v6553 = vshll.u32 %v6502, 16
      %v6555 = vor.u32 %v6552, %v6553
      %v6556 = vrot.slane %v6552, 4
      %v6558 = vshrl.u32 %v6503, 16
      %v6560 = vrot.slane %v6558, 7
      %v6561 = vshll.u32 %v6503, 16
      %v6563 = vor.u32 %v6560, %v6561
      %v6564 = vsel %vm670, %v6556, %v6563
      %v6565 = vrot.slane %v6560, 4
      %v6567 = vshrl.u32 %v6504, 16
      %v6569 = vrot.slane %v6567, 7
      %v6570 = vshll.u32 %v6504, 16
      %v6572 = vor.u32 %v6569, %v6570
      %v6573 = vrot.slane %v6569, 4
      %v6575 = vshrl.u32 %v6505, 16
      %v6577 = vrot.slane %v6575, 7
      %v6578 = vshll.u32 %v6505, 16
      %v6580 = vor.u32 %v6577, %v6578
      %v6581 = vsel %vm670, %v6573, %v6580
      %v6582 = vrot.slane %v6577, 4
      %v6584 = vshrl.u32 %v6506, 16
      %v6586 = vrot.slane %v6584, 7
      %v6587 = vshll.u32 %v6506, 16
      %v6589 = vor.u32 %v6586, %v6587
      %v6590 = vrot.slane %v6586, 4
      %v6592 = vshrl.u32 %v6507, 16
      %v6594 = vrot.slane %v6592, 7
      %v6595 = vshll.u32 %v6507, 16
      %v6597 = vor.u32 %v6594, %v6595
      %v6598 = vsel %vm670, %v6590, %v6597
      %v6599 = vrot.slane %v6594, 4
      %v6601 = vshrl.u32 %v6508, 16
      %v6603 = vrot.slane %v6601, 7
      %v6604 = vshll.u32 %v6508, 16
      %v6606 = vor.u32 %v6603, %v6604
      %v6607 = vrot.slane %v6603, 4
      %v6609 = vshrl.u32 %v6509, 16
      %v6611 = vrot.slane %v6609, 7
      %v6612 = vshll.u32 %v6509, 16
      %v6614 = vor.u32 %v6611, %v6612
      %v6615 = vsel %vm670, %v6607, %v6614
      %v6616 = vrot.slane %v6611, 4
      %v6618 = vshrl.u32 %v6510, 16
      %v6620 = vrot.slane %v6618, 7
      %v6621 = vshll.u32 %v6510, 16
      %v6623 = vor.u32 %v6620, %v6621
      %v6624 = vrot.slane %v6620, 4
      %v6626 = vshrl.u32 %v6511, 16
      %v6628 = vrot.slane %v6626, 7
      %v6629 = vshll.u32 %v6511, 16
      %v6631 = vor.u32 %v6628, %v6629
      %v6632 = vsel %vm670, %v6624, %v6631
      %v6633 = vrot.slane %v6628, 4
      %v6635 = vshrl.u32 %v6512, 16
      %v6637 = vrot.slane %v6635, 7
      %v6638 = vshll.u32 %v6512, 16
      %v6640 = vor.u32 %v6637, %v6638
      %v6641 = vrot.slane %v6637, 4
      %v6643 = vshrl.u32 %v6513, 16
      %v6645 = vrot.slane %v6643, 7
      %v6646 = vshll.u32 %v6513, 16
      %v6648 = vor.u32 %v6645, %v6646
      %v6649 = vsel %vm670, %v6641, %v6648
      %v6650 = vrot.slane %v6645, 4
      %v6652 = vshrl.u32 %v6514, 16
      %v6654 = vrot.slane %v6652, 7
      %v6655 = vshll.u32 %v6514, 16
      %v6657 = vor.u32 %v6654, %v6655
      %v6658 = vrot.slane %v6654, 4
      %v6660 = vshrl.u32 %v6515, 16
      %v6662 = vrot.slane %v6660, 7
      %v6663 = vshll.u32 %v6515, 16
      %v6665 = vor.u32 %v6662, %v6663
      %v6666 = vsel %vm670, %v6658, %v6665
      %v6667 = vrot.slane %v6662, 4
      %v6669 = vshrl.u32 %v6516, 16
      %v6671 = vrot.slane %v6669, 7
      %v6672 = vshll.u32 %v6516, 16
      %v6674 = vor.u32 %v6671, %v6672
      %v6675 = vrot.slane %v6671, 4
      %v6677 = vshrl.u32 %v6517, 16
      %v6679 = vrot.slane %v6677, 7
      %v6680 = vshll.u32 %v6517, 16
      %v6682 = vor.u32 %v6679, %v6680
      %v6683 = vsel %vm670, %v6675, %v6682
      %v6684 = vrot.slane %v6679, 4
      %v6686 = vshrl.u32 %v6518, 16
      %v6688 = vrot.slane %v6686, 7
      %v6689 = vshll.u32 %v6518, 16
      %v6691 = vor.u32 %v6688, %v6689
      %v6692 = vrot.slane %v6688, 4
      %v6694 = vshrl.u32 %v6519, 16
      %v6696 = vrot.slane %v6694, 7
      %v6697 = vshll.u32 %v6519, 16
      %v6699 = vor.u32 %v6696, %v6697
      %v6700 = vsel %vm670, %v6692, %v6699
      %v6701 = vrot.slane %v6696, 4
      %v6703 = vshrl.u32 %v6520, 16
      %v6705 = vrot.slane %v6703, 7
      %v6706 = vshll.u32 %v6520, 16
      %v6708 = vor.u32 %v6705, %v6706
      %v6709 = vrot.slane %v6705, 4
      %v6711 = vshrl.u32 %v6521, 16
      %v6713 = vrot.slane %v6711, 7
      %v6714 = vshll.u32 %v6521, 16
      %v6716 = vor.u32 %v6713, %v6714
      %v6717 = vsel %vm670, %v6709, %v6716
      %v6718 = vrot.slane %v6713, 4
      %v6720 = vshrl.u32 %v6522, 16
      %v6722 = vrot.slane %v6720, 7
      %v6723 = vshll.u32 %v6522, 16
      %v6725 = vor.u32 %v6722, %v6723
      %v6726 = vrot.slane %v6722, 4
      %v6728 = vshrl.u32 %v6523, 16
      %v6730 = vrot.slane %v6728, 7
      %v6731 = vshll.u32 %v6523, 16
      %v6733 = vor.u32 %v6730, %v6731
      %v6734 = vsel %vm670, %v6726, %v6733
      %v6735 = vrot.slane %v6730, 4
      %v6737 = vshrl.u32 %v6524, 16
      %v6739 = vrot.slane %v6737, 7
      %v6740 = vshll.u32 %v6524, 16
      %v6742 = vor.u32 %v6739, %v6740
      %v6743 = vrot.slane %v6739, 4
      %v6745 = vshrl.u32 %v6525, 16
      %v6747 = vrot.slane %v6745, 7
      %v6748 = vshll.u32 %v6525, 16
      %v6750 = vor.u32 %v6747, %v6748
      %v6751 = vsel %vm670, %v6743, %v6750
      %v6752 = vrot.slane %v6747, 4
      %v6754 = vshrl.u32 %v6526, 16
      %v6756 = vrot.slane %v6754, 7
      %v6757 = vshll.u32 %v6526, 16
      %v6759 = vor.u32 %v6756, %v6757
      %v6760 = vrot.slane %v6756, 4
      %v6762 = vshrl.u32 %v6527, 16
      %v6764 = vrot.slane %v6762, 7
      %v6765 = vshll.u32 %v6527, 16
      %v6767 = vor.u32 %v6764, %v6765
      %v6768 = vsel %vm670, %v6760, %v6767
      %v6769 = vrot.slane %v6764, 4
      %v6771 = vshrl.u32 %v6528, 16
      %v6773 = vrot.slane %v6771, 7
      %v6774 = vshll.u32 %v6528, 16
      %v6776 = vor.u32 %v6773, %v6774
      %v6777 = vrot.slane %v6773, 4
      %v6779 = vshrl.u32 %v6529, 16
      %v6781 = vrot.slane %v6779, 7
      %v6782 = vshll.u32 %v6529, 16
      %v6784 = vor.u32 %v6781, %v6782
      %v6785 = vsel %vm670, %v6777, %v6784
      %v6786 = vrot.slane %v6781, 4
      %v6788 = vshrl.u32 %v6530, 16
      %v6790 = vrot.slane %v6788, 7
      %v6791 = vshll.u32 %v6530, 16
      %v6793 = vor.u32 %v6790, %v6791
      %v6794 = vrot.slane %v6790, 4
      %v6796 = vshrl.u32 %v6531, 16
      %v6798 = vrot.slane %v6796, 7
      %v6799 = vshll.u32 %v6531, 16
      %v6801 = vor.u32 %v6798, %v6799
      %v6802 = vsel %vm670, %v6794, %v6801
      %v6803 = vrot.slane %v6798, 4
      %s6852 = scalar_lea.vmem [#allocation4], 12
      %v6853 = vld [vmem:[%s6852] sm:$0xf]
      %v6854 = vsel %vm3845, %v6538, %v6853
      %6855 = vst [vmem:[%s6852] sm:$0xf] %v6854
      %6856 = vst.msk [vmem:[%s6852 + $0x4] sm:$0xf] %vm402, %v6547
      %v6857 = vld [vmem:[%s6852 + $0x8] sm:$0x1]
      %v6858 = vsel %vm412, %v6548, %v6857
      %6859 = vst [vmem:[%s6852 + $0x8] sm:$0x1] %v6858
      %v6860 = vld [vmem:[%s6852 + $0xc] sm:$0xf]
      %v6861 = vsel %vm3845, %v6555, %v6860
      %6862 = vst [vmem:[%s6852 + $0xc] sm:$0xf] %v6861
      %6863 = vst.msk [vmem:[%s6852 + $0x10] sm:$0xf] %vm402, %v6564
      %v6864 = vld [vmem:[%s6852 + $0x14] sm:$0x1]
      %v6865 = vsel %vm412, %v6565, %v6864
      %6866 = vst [vmem:[%s6852 + $0x14] sm:$0x1] %v6865
      %v6867 = vld [vmem:[%s6852 + $0x18] sm:$0xf]
      %v6868 = vsel %vm3845, %v6572, %v6867
      %6869 = vst [vmem:[%s6852 + $0x18] sm:$0xf] %v6868
      %6870 = vst.msk [vmem:[%s6852 + $0x1c] sm:$0xf] %vm402, %v6581
      %v6871 = vld [vmem:[%s6852 + $0x20] sm:$0x1]
      %v6872 = vsel %vm412, %v6582, %v6871
      %6873 = vst [vmem:[%s6852 + $0x20] sm:$0x1] %v6872
      %v6874 = vld [vmem:[%s6852 + $0x24] sm:$0xf]
      %v6875 = vsel %vm3845, %v6589, %v6874
      %6876 = vst [vmem:[%s6852 + $0x24] sm:$0xf] %v6875
      %6877 = vst.msk [vmem:[%s6852 + $0x28] sm:$0xf] %vm402, %v6598
      %v6878 = vld [vmem:[%s6852 + $0x2c] sm:$0x1]
      %v6879 = vsel %vm412, %v6599, %v6878
      %6880 = vst [vmem:[%s6852 + $0x2c] sm:$0x1] %v6879
      %v6881 = vld [vmem:[%s6852 + $0x30] sm:$0xf]
      %v6882 = vsel %vm3845, %v6606, %v6881
      %6883 = vst [vmem:[%s6852 + $0x30] sm:$0xf] %v6882
      %6884 = vst.msk [vmem:[%s6852 + $0x34] sm:$0xf] %vm402, %v6615
      %v6885 = vld [vmem:[%s6852 + $0x38] sm:$0x1]
      %v6886 = vsel %vm412, %v6616, %v6885
      %6887 = vst [vmem:[%s6852 + $0x38] sm:$0x1] %v6886
      %v6888 = vld [vmem:[%s6852 + $0x3c] sm:$0xf]
      %v6889 = vsel %vm3845, %v6623, %v6888
      %6890 = vst [vmem:[%s6852 + $0x3c] sm:$0xf] %v6889
      %6891 = vst.msk [vmem:[%s6852 + $0x40] sm:$0xf] %vm402, %v6632
      %v6892 = vld [vmem:[%s6852 + $0x44] sm:$0x1]
      %v6893 = vsel %vm412, %v6633, %v6892
      %6894 = vst [vmem:[%s6852 + $0x44] sm:$0x1] %v6893
      %v6895 = vld [vmem:[%s6852 + $0x48] sm:$0xf]
      %v6896 = vsel %vm3845, %v6640, %v6895
      %6897 = vst [vmem:[%s6852 + $0x48] sm:$0xf] %v6896
      %6898 = vst.msk [vmem:[%s6852 + $0x4c] sm:$0xf] %vm402, %v6649
      %v6899 = vld [vmem:[%s6852 + $0x50] sm:$0x1]
      %v6900 = vsel %vm412, %v6650, %v6899
      %6901 = vst [vmem:[%s6852 + $0x50] sm:$0x1] %v6900
      %v6902 = vld [vmem:[%s6852 + $0x54] sm:$0xf]
      %v6903 = vsel %vm3845, %v6657, %v6902
      %6904 = vst [vmem:[%s6852 + $0x54] sm:$0xf] %v6903
      %6905 = vst.msk [vmem:[%s6852 + $0x58] sm:$0xf] %vm402, %v6666
      %v6906 = vld [vmem:[%s6852 + $0x5c] sm:$0x1]
      %v6907 = vsel %vm412, %v6667, %v6906
      %6908 = vst [vmem:[%s6852 + $0x5c] sm:$0x1] %v6907
      %v6909 = vld [vmem:[%s6852 + $0x60] sm:$0xf]
      %v6910 = vsel %vm3845, %v6674, %v6909
      %6911 = vst [vmem:[%s6852 + $0x60] sm:$0xf] %v6910
      %6912 = vst.msk [vmem:[%s6852 + $0x64] sm:$0xf] %vm402, %v6683
      %v6913 = vld [vmem:[%s6852 + $0x68] sm:$0x1]
      %v6914 = vsel %vm412, %v6684, %v6913
      %6915 = vst [vmem:[%s6852 + $0x68] sm:$0x1] %v6914
      %v6916 = vld [vmem:[%s6852 + $0x6c] sm:$0xf]
      %v6917 = vsel %vm3845, %v6691, %v6916
      %6918 = vst [vmem:[%s6852 + $0x6c] sm:$0xf] %v6917
      %6919 = vst.msk [vmem:[%s6852 + $0x70] sm:$0xf] %vm402, %v6700
      %v6920 = vld [vmem:[%s6852 + $0x74] sm:$0x1]
      %v6921 = vsel %vm412, %v6701, %v6920
      %6922 = vst [vmem:[%s6852 + $0x74] sm:$0x1] %v6921
      %v6923 = vld [vmem:[%s6852 + $0x78] sm:$0xf]
      %v6924 = vsel %vm3845, %v6708, %v6923
      %6925 = vst [vmem:[%s6852 + $0x78] sm:$0xf] %v6924
      %6926 = vst.msk [vmem:[%s6852 + $0x7c] sm:$0xf] %vm402, %v6717
      %v6927 = vld [vmem:[%s6852 + $0x80] sm:$0x1]
      %v6928 = vsel %vm412, %v6718, %v6927
      %6929 = vst [vmem:[%s6852 + $0x80] sm:$0x1] %v6928
      %v6930 = vld [vmem:[%s6852 + $0x84] sm:$0xf]
      %v6931 = vsel %vm3845, %v6725, %v6930
      %6932 = vst [vmem:[%s6852 + $0x84] sm:$0xf] %v6931
      %6933 = vst.msk [vmem:[%s6852 + $0x88] sm:$0xf] %vm402, %v6734
      %v6934 = vld [vmem:[%s6852 + $0x8c] sm:$0x1]
      %v6935 = vsel %vm412, %v6735, %v6934
      %6936 = vst [vmem:[%s6852 + $0x8c] sm:$0x1] %v6935
      %v6937 = vld [vmem:[%s6852 + $0x90] sm:$0xf]
      %v6938 = vsel %vm3845, %v6742, %v6937
      %6939 = vst [vmem:[%s6852 + $0x90] sm:$0xf] %v6938
      %6940 = vst.msk [vmem:[%s6852 + $0x94] sm:$0xf] %vm402, %v6751
      %v6941 = vld [vmem:[%s6852 + $0x98] sm:$0x1]
      %v6942 = vsel %vm412, %v6752, %v6941
      %6943 = vst [vmem:[%s6852 + $0x98] sm:$0x1] %v6942
      %v6944 = vld [vmem:[%s6852 + $0x9c] sm:$0xf]
      %v6945 = vsel %vm3845, %v6759, %v6944
      %6946 = vst [vmem:[%s6852 + $0x9c] sm:$0xf] %v6945
      %6947 = vst.msk [vmem:[%s6852 + $0xa0] sm:$0xf] %vm402, %v6768
      %v6948 = vld [vmem:[%s6852 + $0xa4] sm:$0x1]
      %v6949 = vsel %vm412, %v6769, %v6948
      %6950 = vst [vmem:[%s6852 + $0xa4] sm:$0x1] %v6949
      %v6951 = vld [vmem:[%s6852 + $0xa8] sm:$0xf]
      %v6952 = vsel %vm3845, %v6776, %v6951
      %6953 = vst [vmem:[%s6852 + $0xa8] sm:$0xf] %v6952
      %6954 = vst.msk [vmem:[%s6852 + $0xac] sm:$0xf] %vm402, %v6785
      %v6955 = vld [vmem:[%s6852 + $0xb0] sm:$0x1]
      %v6956 = vsel %vm412, %v6786, %v6955
      %6957 = vst [vmem:[%s6852 + $0xb0] sm:$0x1] %v6956
      %v6958 = vld [vmem:[%s6852 + $0xb4] sm:$0xf]
      %v6959 = vsel %vm3845, %v6793, %v6958
      %6960 = vst [vmem:[%s6852 + $0xb4] sm:$0xf] %v6959
      %6961 = vst.msk [vmem:[%s6852 + $0xb8] sm:$0xf] %vm402, %v6802
      %v6962 = vld [vmem:[%s6852 + $0xbc] sm:$0x1]
      %v6963 = vsel %vm412, %v6803, %v6962
      %6964 = vst [vmem:[%s6852 + $0xbc] sm:$0x1] %v6963
      %v6965 = vld [vmem:[#allocation4] sm:$0xf]
      %v6966 = vld [vmem:[#allocation4 + $0x4] sm:$0xf]
      %v6967 = vld [vmem:[#allocation4 + $0x8] sm:$0x1]
      %v6968 = vld [vmem:[#allocation4 + $0xc] sm:$0xf]
      %v6969 = vld [vmem:[#allocation4 + $0x10] sm:$0xf]
      %v6970 = vld [vmem:[#allocation4 + $0x14] sm:$0x1]
      %v6971 = vld [vmem:[#allocation4 + $0x18] sm:$0xf]
      %v6972 = vld [vmem:[#allocation4 + $0x1c] sm:$0xf]
      %v6973 = vld [vmem:[#allocation4 + $0x20] sm:$0x1]
      %v6974 = vld [vmem:[#allocation4 + $0x24] sm:$0xf]
      %v6975 = vld [vmem:[#allocation4 + $0x28] sm:$0xf]
      %v6976 = vld [vmem:[#allocation4 + $0x2c] sm:$0x1]
      %v6977 = vld [vmem:[#allocation4 + $0x30] sm:$0xf]
      %v6978 = vld [vmem:[#allocation4 + $0x34] sm:$0xf]
      %v6979 = vld [vmem:[#allocation4 + $0x38] sm:$0x1]
      %v6980 = vld [vmem:[#allocation4 + $0x3c] sm:$0xf]
      %v6981 = vld [vmem:[#allocation4 + $0x40] sm:$0xf]
      %v6982 = vld [vmem:[#allocation4 + $0x44] sm:$0x1]
      %v6983 = vld [vmem:[#allocation4 + $0x48] sm:$0xf]
      %v6984 = vld [vmem:[#allocation4 + $0x4c] sm:$0xf]
      %v6985 = vld [vmem:[#allocation4 + $0x50] sm:$0x1]
      %v6986 = vld [vmem:[#allocation4 + $0x54] sm:$0xf]
      %v6987 = vld [vmem:[#allocation4 + $0x58] sm:$0xf]
      %v6988 = vld [vmem:[#allocation4 + $0x5c] sm:$0x1]
      %v6989 = vld [vmem:[#allocation4 + $0x60] sm:$0xf]
      %v6990 = vld [vmem:[#allocation4 + $0x64] sm:$0xf]
      %v6991 = vld [vmem:[#allocation4 + $0x68] sm:$0x1]
      %v6992 = vld [vmem:[#allocation4 + $0x6c] sm:$0xf]
      %v6993 = vld [vmem:[#allocation4 + $0x70] sm:$0xf]
      %v6994 = vld [vmem:[#allocation4 + $0x74] sm:$0x1]
      %v6995 = vld [vmem:[#allocation4 + $0x78] sm:$0xf]
      %v6996 = vld [vmem:[#allocation4 + $0x7c] sm:$0xf]
      %v6997 = vld [vmem:[#allocation4 + $0x80] sm:$0x1]
      %v6998 = vld [vmem:[#allocation4 + $0x84] sm:$0xf]
      %v6999 = vld [vmem:[#allocation4 + $0x88] sm:$0xf]
      %v7000 = vld [vmem:[#allocation4 + $0x8c] sm:$0x1]
      %v7001 = vld [vmem:[#allocation4 + $0x90] sm:$0xf]
      %v7002 = vld [vmem:[#allocation4 + $0x94] sm:$0xf]
      %v7003 = vld [vmem:[#allocation4 + $0x98] sm:$0x1]
      %v7004 = vld [vmem:[#allocation4 + $0x9c] sm:$0xf]
      %v7005 = vld [vmem:[#allocation4 + $0xa0] sm:$0xf]
      %v7006 = vld [vmem:[#allocation4 + $0xa4] sm:$0x1]
      %v7007 = vld [vmem:[#allocation4 + $0xa8] sm:$0xf]
      %v7008 = vld [vmem:[#allocation4 + $0xac] sm:$0xf]
      %v7009 = vld [vmem:[#allocation4 + $0xb0] sm:$0x1]
      %v7010 = vld [vmem:[#allocation4 + $0xb4] sm:$0xf]
      %v7011 = vld [vmem:[#allocation4 + $0xb8] sm:$0xf]
      %v7012 = vld [vmem:[#allocation4 + $0xbc] sm:$0x1]
      %v7045 = vunpack.c.l.b16 %v6965
      %v7046 = vunpack.c.l.b16 %v6966
      %v7047 = vunpack.c.l.b16 %v6968
      %v7048 = vunpack.c.l.b16 %v6969
      %v7049 = vunpack.c.l.b16 %v6971
      %v7050 = vunpack.c.l.b16 %v6972
      %v7051 = vunpack.c.l.b16 %v6974
      %v7052 = vunpack.c.l.b16 %v6975
      %v7053 = vunpack.c.l.b16 %v6977
      %v7054 = vunpack.c.l.b16 %v6978
      %v7055 = vunpack.c.l.b16 %v6980
      %v7056 = vunpack.c.l.b16 %v6981
      %v7057 = vunpack.c.l.b16 %v6983
      %v7058 = vunpack.c.l.b16 %v6984
      %v7059 = vunpack.c.l.b16 %v6986
      %v7060 = vunpack.c.l.b16 %v6987
      %v7061 = vunpack.c.l.b16 %v6989
      %v7062 = vunpack.c.l.b16 %v6990
      %v7063 = vunpack.c.l.b16 %v6992
      %v7064 = vunpack.c.l.b16 %v6993
      %v7065 = vunpack.c.l.b16 %v6995
      %v7066 = vunpack.c.l.b16 %v6996
      %v7067 = vunpack.c.l.b16 %v6998
      %v7068 = vunpack.c.l.b16 %v6999
      %v7069 = vunpack.c.l.b16 %v7001
      %v7070 = vunpack.c.l.b16 %v7002
      %v7071 = vunpack.c.l.b16 %v7004
      %v7072 = vunpack.c.l.b16 %v7005
      %v7073 = vunpack.c.l.b16 %v7007
      %v7074 = vunpack.c.l.b16 %v7008
      %v7075 = vunpack.c.l.b16 %v7010
      %v7076 = vunpack.c.l.b16 %v7011
      %v7077 = vpack.c.b16 %v7046, %v7045
      %v7078 = vpack.c.b16 %v7048, %v7047
      %v7079 = vpack.c.b16 %v7050, %v7049
      %v7080 = vpack.c.b16 %v7052, %v7051
      %v7081 = vpack.c.b16 %v7054, %v7053
      %v7082 = vpack.c.b16 %v7056, %v7055
      %v7083 = vpack.c.b16 %v7058, %v7057
      %v7084 = vpack.c.b16 %v7060, %v7059
      %v7085 = vpack.c.b16 %v7062, %v7061
      %v7086 = vpack.c.b16 %v7064, %v7063
      %v7087 = vpack.c.b16 %v7066, %v7065
      %v7088 = vpack.c.b16 %v7068, %v7067
      %v7089 = vpack.c.b16 %v7070, %v7069
      %v7090 = vpack.c.b16 %v7072, %v7071
      %v7091 = vpack.c.b16 %v7074, %v7073
      %v7092 = vpack.c.b16 %v7076, %v7075
      %v7109 = vunpack.c.l.b16 %v6967
      %v7110 = vunpack.c.l.b16 %v6970
      %v7111 = vunpack.c.l.b16 %v6973
      %v7112 = vunpack.c.l.b16 %v6976
      %v7113 = vunpack.c.l.b16 %v6979
      %v7114 = vunpack.c.l.b16 %v6982
      %v7115 = vunpack.c.l.b16 %v6985
      %v7116 = vunpack.c.l.b16 %v6988
      %v7117 = vunpack.c.l.b16 %v6991
      %v7118 = vunpack.c.l.b16 %v6994
      %v7119 = vunpack.c.l.b16 %v6997
      %v7120 = vunpack.c.l.b16 %v7000
      %v7121 = vunpack.c.l.b16 %v7003
      %v7122 = vunpack.c.l.b16 %v7006
      %v7123 = vunpack.c.l.b16 %v7009
      %v7124 = vunpack.c.l.b16 %v7012
      %v7125 = vpack.c.b16 %v7109, %v7109
      %v7126 = vpack.c.b16 %v7110, %v7110
      %v7127 = vpack.c.b16 %v7111, %v7111
      %v7128 = vpack.c.b16 %v7112, %v7112
      %v7129 = vpack.c.b16 %v7113, %v7113
      %v7130 = vpack.c.b16 %v7114, %v7114
      %v7131 = vpack.c.b16 %v7115, %v7115
      %v7132 = vpack.c.b16 %v7116, %v7116
      %v7133 = vpack.c.b16 %v7117, %v7117
      %v7134 = vpack.c.b16 %v7118, %v7118
      %v7135 = vpack.c.b16 %v7119, %v7119
      %v7136 = vpack.c.b16 %v7120, %v7120
      %v7137 = vpack.c.b16 %v7121, %v7121
      %v7138 = vpack.c.b16 %v7122, %v7122
      %v7139 = vpack.c.b16 %v7123, %v7123
      %v7140 = vpack.c.b16 %v7124, %v7124
      %v7142 = vshrl.u32 %v7077, 16
      %v7144 = vshll.u32 %v7077, 16
      %v7146 = vrot.slane %v7144, 1
      %v7147 = vor.u32 %v7142, %v7146
      %v7149 = vshll.u32 %v7125, 16
      %v7151 = vrot.slane %v7149, 1
      %v7152 = vsel %vm1282, %v7147, %v7151
      %v7154 = vshrl.u32 %v7078, 16
      %v7156 = vshll.u32 %v7078, 16
      %v7158 = vrot.slane %v7156, 1
      %v7159 = vor.u32 %v7154, %v7158
      %v7161 = vshll.u32 %v7126, 16
      %v7163 = vrot.slane %v7161, 1
      %v7164 = vsel %vm1282, %v7159, %v7163
      %v7166 = vshrl.u32 %v7079, 16
      %v7168 = vshll.u32 %v7079, 16
      %v7170 = vrot.slane %v7168, 1
      %v7171 = vor.u32 %v7166, %v7170
      %v7173 = vshll.u32 %v7127, 16
      %v7175 = vrot.slane %v7173, 1
      %v7176 = vsel %vm1282, %v7171, %v7175
      %v7178 = vshrl.u32 %v7080, 16
      %v7180 = vshll.u32 %v7080, 16
      %v7182 = vrot.slane %v7180, 1
      %v7183 = vor.u32 %v7178, %v7182
      %v7185 = vshll.u32 %v7128, 16
      %v7187 = vrot.slane %v7185, 1
      %v7188 = vsel %vm1282, %v7183, %v7187
      %v7190 = vshrl.u32 %v7081, 16
      %v7192 = vshll.u32 %v7081, 16
      %v7194 = vrot.slane %v7192, 1
      %v7195 = vor.u32 %v7190, %v7194
      %v7197 = vshll.u32 %v7129, 16
      %v7199 = vrot.slane %v7197, 1
      %v7200 = vsel %vm1282, %v7195, %v7199
      %v7202 = vshrl.u32 %v7082, 16
      %v7204 = vshll.u32 %v7082, 16
      %v7206 = vrot.slane %v7204, 1
      %v7207 = vor.u32 %v7202, %v7206
      %v7209 = vshll.u32 %v7130, 16
      %v7211 = vrot.slane %v7209, 1
      %v7212 = vsel %vm1282, %v7207, %v7211
      %v7214 = vshrl.u32 %v7083, 16
      %v7216 = vshll.u32 %v7083, 16
      %v7218 = vrot.slane %v7216, 1
      %v7219 = vor.u32 %v7214, %v7218
      %v7221 = vshll.u32 %v7131, 16
      %v7223 = vrot.slane %v7221, 1
      %v7224 = vsel %vm1282, %v7219, %v7223
      %v7226 = vshrl.u32 %v7084, 16
      %v7228 = vshll.u32 %v7084, 16
      %v7230 = vrot.slane %v7228, 1
      %v7231 = vor.u32 %v7226, %v7230
      %v7233 = vshll.u32 %v7132, 16
      %v7235 = vrot.slane %v7233, 1
      %v7236 = vsel %vm1282, %v7231, %v7235
      %v7238 = vshrl.u32 %v7085, 16
      %v7240 = vshll.u32 %v7085, 16
      %v7242 = vrot.slane %v7240, 1
      %v7243 = vor.u32 %v7238, %v7242
      %v7245 = vshll.u32 %v7133, 16
      %v7247 = vrot.slane %v7245, 1
      %v7248 = vsel %vm1282, %v7243, %v7247
      %v7250 = vshrl.u32 %v7086, 16
      %v7252 = vshll.u32 %v7086, 16
      %v7254 = vrot.slane %v7252, 1
      %v7255 = vor.u32 %v7250, %v7254
      %v7257 = vshll.u32 %v7134, 16
      %v7259 = vrot.slane %v7257, 1
      %v7260 = vsel %vm1282, %v7255, %v7259
      %v7262 = vshrl.u32 %v7087, 16
      %v7264 = vshll.u32 %v7087, 16
      %v7266 = vrot.slane %v7264, 1
      %v7267 = vor.u32 %v7262, %v7266
      %v7269 = vshll.u32 %v7135, 16
      %v7271 = vrot.slane %v7269, 1
      %v7272 = vsel %vm1282, %v7267, %v7271
      %v7274 = vshrl.u32 %v7088, 16
      %v7276 = vshll.u32 %v7088, 16
      %v7278 = vrot.slane %v7276, 1
      %v7279 = vor.u32 %v7274, %v7278
      %v7281 = vshll.u32 %v7136, 16
      %v7283 = vrot.slane %v7281, 1
      %v7284 = vsel %vm1282, %v7279, %v7283
      %v7286 = vshrl.u32 %v7089, 16
      %v7288 = vshll.u32 %v7089, 16
      %v7290 = vrot.slane %v7288, 1
      %v7291 = vor.u32 %v7286, %v7290
      %v7293 = vshll.u32 %v7137, 16
      %v7295 = vrot.slane %v7293, 1
      %v7296 = vsel %vm1282, %v7291, %v7295
      %v7298 = vshrl.u32 %v7090, 16
      %v7300 = vshll.u32 %v7090, 16
      %v7302 = vrot.slane %v7300, 1
      %v7303 = vor.u32 %v7298, %v7302
      %v7305 = vshll.u32 %v7138, 16
      %v7307 = vrot.slane %v7305, 1
      %v7308 = vsel %vm1282, %v7303, %v7307
      %v7310 = vshrl.u32 %v7091, 16
      %v7312 = vshll.u32 %v7091, 16
      %v7314 = vrot.slane %v7312, 1
      %v7315 = vor.u32 %v7310, %v7314
      %v7317 = vshll.u32 %v7139, 16
      %v7319 = vrot.slane %v7317, 1
      %v7320 = vsel %vm1282, %v7315, %v7319
      %v7322 = vshrl.u32 %v7092, 16
      %v7324 = vshll.u32 %v7092, 16
      %v7326 = vrot.slane %v7324, 1
      %v7327 = vor.u32 %v7322, %v7326
      %v7329 = vshll.u32 %v7140, 16
      %v7331 = vrot.slane %v7329, 1
      %v7332 = vsel %vm1282, %v7327, %v7331
      %7333 = vrot.lane.b32.xlu0 %v7152, 64
      %v7334 = vpop.permute.xlu0 %7333
      %7335 = vrot.lane.b32.xlu0 %v7164, 64
      %v7336 = vpop.permute.xlu0 %7335
      %7337 = vrot.lane.b32.xlu0 %v7176, 64
      %v7338 = vpop.permute.xlu0 %7337
      %7339 = vrot.lane.b32.xlu0 %v7188, 64
      %v7340 = vpop.permute.xlu0 %7339
      %7341 = vrot.lane.b32.xlu0 %v7200, 64
      %v7342 = vpop.permute.xlu0 %7341
      %7343 = vrot.lane.b32.xlu0 %v7212, 64
      %v7344 = vpop.permute.xlu0 %7343
      %7345 = vrot.lane.b32.xlu0 %v7224, 64
      %v7346 = vpop.permute.xlu0 %7345
      %7347 = vrot.lane.b32.xlu0 %v7236, 64
      %v7348 = vpop.permute.xlu0 %7347
      %7349 = vrot.lane.b32.xlu0 %v7248, 64
      %v7350 = vpop.permute.xlu0 %7349
      %7351 = vrot.lane.b32.xlu0 %v7260, 64
      %v7352 = vpop.permute.xlu0 %7351
      %7353 = vrot.lane.b32.xlu0 %v7272, 64
      %v7354 = vpop.permute.xlu0 %7353
      %7355 = vrot.lane.b32.xlu0 %v7284, 64
      %v7356 = vpop.permute.xlu0 %7355
      %7357 = vrot.lane.b32.xlu0 %v7296, 64
      %v7358 = vpop.permute.xlu0 %7357
      %7359 = vrot.lane.b32.xlu0 %v7308, 64
      %v7360 = vpop.permute.xlu0 %7359
      %7361 = vrot.lane.b32.xlu0 %v7320, 64
      %v7362 = vpop.permute.xlu0 %7361
      %7363 = vrot.lane.b32.xlu0 %v7332, 64
      %v7364 = vpop.permute.xlu0 %7363
      %v7365 = vrot.slane %v7077, 1
      %v7366 = vrot.slane %v7125, 1
      %v7367 = vsel %vm1507, %v7365, %v7366
      %v7368 = vrot.slane %v7078, 1
      %v7369 = vrot.slane %v7126, 1
      %v7370 = vsel %vm1507, %v7368, %v7369
      %v7371 = vrot.slane %v7079, 1
      %v7372 = vrot.slane %v7127, 1
      %v7373 = vsel %vm1507, %v7371, %v7372
      %v7374 = vrot.slane %v7080, 1
      %v7375 = vrot.slane %v7128, 1
      %v7376 = vsel %vm1507, %v7374, %v7375
      %v7377 = vrot.slane %v7081, 1
      %v7378 = vrot.slane %v7129, 1
      %v7379 = vsel %vm1507, %v7377, %v7378
      %v7380 = vrot.slane %v7082, 1
      %v7381 = vrot.slane %v7130, 1
      %v7382 = vsel %vm1507, %v7380, %v7381
      %v7383 = vrot.slane %v7083, 1
      %v7384 = vrot.slane %v7131, 1
      %v7385 = vsel %vm1507, %v7383, %v7384
      %v7386 = vrot.slane %v7084, 1
      %v7387 = vrot.slane %v7132, 1
      %v7388 = vsel %vm1507, %v7386, %v7387
      %v7389 = vrot.slane %v7085, 1
      %v7390 = vrot.slane %v7133, 1
      %v7391 = vsel %vm1507, %v7389, %v7390
      %v7392 = vrot.slane %v7086, 1
      %v7393 = vrot.slane %v7134, 1
      %v7394 = vsel %vm1507, %v7392, %v7393
      %v7395 = vrot.slane %v7087, 1
      %v7396 = vrot.slane %v7135, 1
      %v7397 = vsel %vm1507, %v7395, %v7396
      %v7398 = vrot.slane %v7088, 1
      %v7399 = vrot.slane %v7136, 1
      %v7400 = vsel %vm1507, %v7398, %v7399
      %v7401 = vrot.slane %v7089, 1
      %v7402 = vrot.slane %v7137, 1
      %v7403 = vsel %vm1507, %v7401, %v7402
      %v7404 = vrot.slane %v7090, 1
      %v7405 = vrot.slane %v7138, 1
      %v7406 = vsel %vm1507, %v7404, %v7405
      %v7407 = vrot.slane %v7091, 1
      %v7408 = vrot.slane %v7139, 1
      %v7409 = vsel %vm1507, %v7407, %v7408
      %v7410 = vrot.slane %v7092, 1
      %v7411 = vrot.slane %v7140, 1
      %v7412 = vsel %vm1507, %v7410, %v7411
      %v7414 = vsel %vm4406, %v7077, %v7334
      %v7417 = vsel %vm4406, %v7078, %v7336
      %v7420 = vsel %vm4406, %v7079, %v7338
      %v7423 = vsel %vm4406, %v7080, %v7340
      %v7426 = vsel %vm4406, %v7081, %v7342
      %v7429 = vsel %vm4406, %v7082, %v7344
      %v7432 = vsel %vm4406, %v7083, %v7346
      %v7435 = vsel %vm4406, %v7084, %v7348
      %v7438 = vsel %vm4406, %v7085, %v7350
      %v7441 = vsel %vm4406, %v7086, %v7352
      %v7444 = vsel %vm4406, %v7087, %v7354
      %v7447 = vsel %vm4406, %v7088, %v7356
      %v7450 = vsel %vm4406, %v7089, %v7358
      %v7453 = vsel %vm4406, %v7090, %v7360
      %v7456 = vsel %vm4406, %v7091, %v7362
      %v7459 = vsel %vm4406, %v7092, %v7364
      %v7461 = vld [vmem:[%s3] sm:$0xf]
      %v7462 = vld [vmem:[%s3 + $0x4] sm:$0xf]
      %v7463 = vld [vmem:[%s3 + $0x8] sm:$0xf]
      %v7464 = vld [vmem:[%s3 + $0xc] sm:$0xf]
      %v7465 = vld [vmem:[%s3 + $0x10] sm:$0xf]
      %v7466 = vld [vmem:[%s3 + $0x14] sm:$0xf]
      %v7467 = vld [vmem:[%s3 + $0x18] sm:$0xf]
      %v7468 = vld [vmem:[%s3 + $0x1c] sm:$0xf]
      %v7469 = vld [vmem:[%s3 + $0x20] sm:$0xf]
      %v7470 = vld [vmem:[%s3 + $0x24] sm:$0xf]
      %v7471 = vld [vmem:[%s3 + $0x28] sm:$0xf]
      %v7472 = vld [vmem:[%s3 + $0x2c] sm:$0xf]
      %v7473 = vld [vmem:[%s3 + $0x30] sm:$0xf]
      %v7474 = vld [vmem:[%s3 + $0x34] sm:$0xf]
      %v7475 = vld [vmem:[%s3 + $0x38] sm:$0xf]
      %v7476 = vld [vmem:[%s3 + $0x3c] sm:$0xf]
      %v7477 = vld [vmem:[%s3 + $0x40] sm:$0xf]
      %v7478 = vld [vmem:[%s3 + $0x44] sm:$0xf]
      %v7479 = vld [vmem:[%s3 + $0x48] sm:$0xf]
      %v7480 = vld [vmem:[%s3 + $0x4c] sm:$0xf]
      %v7481 = vld [vmem:[%s3 + $0x50] sm:$0xf]
      %v7482 = vld [vmem:[%s3 + $0x54] sm:$0xf]
      %v7483 = vld [vmem:[%s3 + $0x58] sm:$0xf]
      %v7484 = vld [vmem:[%s3 + $0x5c] sm:$0xf]
      %v7485 = vld [vmem:[%s6852] sm:$0xf]
      %v7486 = vld [vmem:[%s6852 + $0x4] sm:$0xf]
      %v7487 = vld [vmem:[%s6852 + $0x8] sm:$0x1]
      %v7488 = vld [vmem:[%s6852 + $0xc] sm:$0xf]
      %v7489 = vld [vmem:[%s6852 + $0x10] sm:$0xf]
      %v7490 = vld [vmem:[%s6852 + $0x14] sm:$0x1]
      %v7491 = vld [vmem:[%s6852 + $0x18] sm:$0xf]
      %v7492 = vld [vmem:[%s6852 + $0x1c] sm:$0xf]
      %v7493 = vld [vmem:[%s6852 + $0x20] sm:$0x1]
      %v7494 = vld [vmem:[%s6852 + $0x24] sm:$0xf]
      %v7495 = vld [vmem:[%s6852 + $0x28] sm:$0xf]
      %v7496 = vld [vmem:[%s6852 + $0x2c] sm:$0x1]
      %v7497 = vld [vmem:[%s6852 + $0x30] sm:$0xf]
      %v7498 = vld [vmem:[%s6852 + $0x34] sm:$0xf]
      %v7499 = vld [vmem:[%s6852 + $0x38] sm:$0x1]
      %v7500 = vld [vmem:[%s6852 + $0x3c] sm:$0xf]
      %v7501 = vld [vmem:[%s6852 + $0x40] sm:$0xf]
      %v7502 = vld [vmem:[%s6852 + $0x44] sm:$0x1]
      %v7503 = vld [vmem:[%s6852 + $0x48] sm:$0xf]
      %v7504 = vld [vmem:[%s6852 + $0x4c] sm:$0xf]
      %v7505 = vld [vmem:[%s6852 + $0x50] sm:$0x1]
      %v7506 = vld [vmem:[%s6852 + $0x54] sm:$0xf]
      %v7507 = vld [vmem:[%s6852 + $0x58] sm:$0xf]
      %v7508 = vld [vmem:[%s6852 + $0x5c] sm:$0x1]
      %v7509 = vld [vmem:[%s6852 + $0x60] sm:$0xf]
      %v7510 = vld [vmem:[%s6852 + $0x64] sm:$0xf]
      %v7511 = vld [vmem:[%s6852 + $0x68] sm:$0x1]
      %v7512 = vld [vmem:[%s6852 + $0x6c] sm:$0xf]
      %v7513 = vld [vmem:[%s6852 + $0x70] sm:$0xf]
      %v7514 = vld [vmem:[%s6852 + $0x74] sm:$0x1]
      %v7515 = vld [vmem:[%s6852 + $0x78] sm:$0xf]
      %v7516 = vld [vmem:[%s6852 + $0x7c] sm:$0xf]
      %v7517 = vld [vmem:[%s6852 + $0x80] sm:$0x1]
      %v7518 = vld [vmem:[%s6852 + $0x84] sm:$0xf]
      %v7519 = vld [vmem:[%s6852 + $0x88] sm:$0xf]
      %v7520 = vld [vmem:[%s6852 + $0x8c] sm:$0x1]
      %v7521 = vld [vmem:[%s6852 + $0x90] sm:$0xf]
      %v7522 = vld [vmem:[%s6852 + $0x94] sm:$0xf]
      %v7523 = vld [vmem:[%s6852 + $0x98] sm:$0x1]
      %v7524 = vld [vmem:[%s6852 + $0x9c] sm:$0xf]
      %v7525 = vld [vmem:[%s6852 + $0xa0] sm:$0xf]
      %v7526 = vld [vmem:[%s6852 + $0xa4] sm:$0x1]
      %v7527 = vld [vmem:[%s6852 + $0xa8] sm:$0xf]
      %v7528 = vld [vmem:[%s6852 + $0xac] sm:$0xf]
      %v7529 = vld [vmem:[%s6852 + $0xb0] sm:$0x1]
      %v7530 = vld [vmem:[%s6852 + $0xb4] sm:$0xf]
      %v7531 = vld [vmem:[%s6852 + $0xb8] sm:$0xf]
      %v7532 = vld [vmem:[%s6852 + $0xbc] sm:$0x1]
      %v7565 = vunpack.c.l.b16 %v7485
      %v7566 = vunpack.c.l.b16 %v7486
      %v7567 = vunpack.c.l.b16 %v7488
      %v7568 = vunpack.c.l.b16 %v7489
      %v7569 = vunpack.c.l.b16 %v7491
      %v7570 = vunpack.c.l.b16 %v7492
      %v7571 = vunpack.c.l.b16 %v7494
      %v7572 = vunpack.c.l.b16 %v7495
      %v7573 = vunpack.c.l.b16 %v7497
      %v7574 = vunpack.c.l.b16 %v7498
      %v7575 = vunpack.c.l.b16 %v7500
      %v7576 = vunpack.c.l.b16 %v7501
      %v7577 = vunpack.c.l.b16 %v7503
      %v7578 = vunpack.c.l.b16 %v7504
      %v7579 = vunpack.c.l.b16 %v7506
      %v7580 = vunpack.c.l.b16 %v7507
      %v7581 = vunpack.c.l.b16 %v7509
      %v7582 = vunpack.c.l.b16 %v7510
      %v7583 = vunpack.c.l.b16 %v7512
      %v7584 = vunpack.c.l.b16 %v7513
      %v7585 = vunpack.c.l.b16 %v7515
      %v7586 = vunpack.c.l.b16 %v7516
      %v7587 = vunpack.c.l.b16 %v7518
      %v7588 = vunpack.c.l.b16 %v7519
      %v7589 = vunpack.c.l.b16 %v7521
      %v7590 = vunpack.c.l.b16 %v7522
      %v7591 = vunpack.c.l.b16 %v7524
      %v7592 = vunpack.c.l.b16 %v7525
      %v7593 = vunpack.c.l.b16 %v7527
      %v7594 = vunpack.c.l.b16 %v7528
      %v7595 = vunpack.c.l.b16 %v7530
      %v7596 = vunpack.c.l.b16 %v7531
      %v7597 = vpack.c.b16 %v7566, %v7565
      %v7598 = vpack.c.b16 %v7568, %v7567
      %v7599 = vpack.c.b16 %v7570, %v7569
      %v7600 = vpack.c.b16 %v7572, %v7571
      %v7601 = vpack.c.b16 %v7574, %v7573
      %v7602 = vpack.c.b16 %v7576, %v7575
      %v7603 = vpack.c.b16 %v7578, %v7577
      %v7604 = vpack.c.b16 %v7580, %v7579
      %v7605 = vpack.c.b16 %v7582, %v7581
      %v7606 = vpack.c.b16 %v7584, %v7583
      %v7607 = vpack.c.b16 %v7586, %v7585
      %v7608 = vpack.c.b16 %v7588, %v7587
      %v7609 = vpack.c.b16 %v7590, %v7589
      %v7610 = vpack.c.b16 %v7592, %v7591
      %v7611 = vpack.c.b16 %v7594, %v7593
      %v7612 = vpack.c.b16 %v7596, %v7595
      %v7629 = vunpack.c.l.b16 %v7487
      %v7630 = vunpack.c.l.b16 %v7490
      %v7631 = vunpack.c.l.b16 %v7493
      %v7632 = vunpack.c.l.b16 %v7496
      %v7633 = vunpack.c.l.b16 %v7499
      %v7634 = vunpack.c.l.b16 %v7502
      %v7635 = vunpack.c.l.b16 %v7505
      %v7636 = vunpack.c.l.b16 %v7508
      %v7637 = vunpack.c.l.b16 %v7511
      %v7638 = vunpack.c.l.b16 %v7514
      %v7639 = vunpack.c.l.b16 %v7517
      %v7640 = vunpack.c.l.b16 %v7520
      %v7641 = vunpack.c.l.b16 %v7523
      %v7642 = vunpack.c.l.b16 %v7526
      %v7643 = vunpack.c.l.b16 %v7529
      %v7644 = vunpack.c.l.b16 %v7532
      %v7645 = vpack.c.b16 %v7629, %v7629
      %v7646 = vpack.c.b16 %v7630, %v7630
      %v7647 = vpack.c.b16 %v7631, %v7631
      %v7648 = vpack.c.b16 %v7632, %v7632
      %v7649 = vpack.c.b16 %v7633, %v7633
      %v7650 = vpack.c.b16 %v7634, %v7634
      %v7651 = vpack.c.b16 %v7635, %v7635
      %v7652 = vpack.c.b16 %v7636, %v7636
      %v7653 = vpack.c.b16 %v7637, %v7637
      %v7654 = vpack.c.b16 %v7638, %v7638
      %v7655 = vpack.c.b16 %v7639, %v7639
      %v7656 = vpack.c.b16 %v7640, %v7640
      %v7657 = vpack.c.b16 %v7641, %v7641
      %v7658 = vpack.c.b16 %v7642, %v7642
      %v7659 = vpack.c.b16 %v7643, %v7643
      %v7660 = vpack.c.b16 %v7644, %v7644
      %v7662 = vshrl.u32 %v7597, 16
      %v7664 = vshll.u32 %v7597, 16
      %v7666 = vrot.slane %v7664, 1
      %v7667 = vor.u32 %v7662, %v7666
      %v7669 = vshll.u32 %v7645, 16
      %v7671 = vrot.slane %v7669, 1
      %v7672 = vsel %vm1282, %v7667, %v7671
      %v7674 = vshrl.u32 %v7598, 16
      %v7676 = vshll.u32 %v7598, 16
      %v7678 = vrot.slane %v7676, 1
      %v7679 = vor.u32 %v7674, %v7678
      %v7681 = vshll.u32 %v7646, 16
      %v7683 = vrot.slane %v7681, 1
      %v7684 = vsel %vm1282, %v7679, %v7683
      %v7686 = vshrl.u32 %v7599, 16
      %v7688 = vshll.u32 %v7599, 16
      %v7690 = vrot.slane %v7688, 1
      %v7691 = vor.u32 %v7686, %v7690
      %v7693 = vshll.u32 %v7647, 16
      %v7695 = vrot.slane %v7693, 1
      %v7696 = vsel %vm1282, %v7691, %v7695
      %v7698 = vshrl.u32 %v7600, 16
      %v7700 = vshll.u32 %v7600, 16
      %v7702 = vrot.slane %v7700, 1
      %v7703 = vor.u32 %v7698, %v7702
      %v7705 = vshll.u32 %v7648, 16
      %v7707 = vrot.slane %v7705, 1
      %v7708 = vsel %vm1282, %v7703, %v7707
      %v7710 = vshrl.u32 %v7601, 16
      %v7712 = vshll.u32 %v7601, 16
      %v7714 = vrot.slane %v7712, 1
      %v7715 = vor.u32 %v7710, %v7714
      %v7717 = vshll.u32 %v7649, 16
      %v7719 = vrot.slane %v7717, 1
      %v7720 = vsel %vm1282, %v7715, %v7719
      %v7722 = vshrl.u32 %v7602, 16
      %v7724 = vshll.u32 %v7602, 16
      %v7726 = vrot.slane %v7724, 1
      %v7727 = vor.u32 %v7722, %v7726
      %v7729 = vshll.u32 %v7650, 16
      %v7731 = vrot.slane %v7729, 1
      %v7732 = vsel %vm1282, %v7727, %v7731
      %v7734 = vshrl.u32 %v7603, 16
      %v7736 = vshll.u32 %v7603, 16
      %v7738 = vrot.slane %v7736, 1
      %v7739 = vor.u32 %v7734, %v7738
      %v7741 = vshll.u32 %v7651, 16
      %v7743 = vrot.slane %v7741, 1
      %v7744 = vsel %vm1282, %v7739, %v7743
      %v7746 = vshrl.u32 %v7604, 16
      %v7748 = vshll.u32 %v7604, 16
      %v7750 = vrot.slane %v7748, 1
      %v7751 = vor.u32 %v7746, %v7750
      %v7753 = vshll.u32 %v7652, 16
      %v7755 = vrot.slane %v7753, 1
      %v7756 = vsel %vm1282, %v7751, %v7755
      %v7758 = vshrl.u32 %v7605, 16
      %v7760 = vshll.u32 %v7605, 16
      %v7762 = vrot.slane %v7760, 1
      %v7763 = vor.u32 %v7758, %v7762
      %v7765 = vshll.u32 %v7653, 16
      %v7767 = vrot.slane %v7765, 1
      %v7768 = vsel %vm1282, %v7763, %v7767
      %v7770 = vshrl.u32 %v7606, 16
      %v7772 = vshll.u32 %v7606, 16
      %v7774 = vrot.slane %v7772, 1
      %v7775 = vor.u32 %v7770, %v7774
      %v7777 = vshll.u32 %v7654, 16
      %v7779 = vrot.slane %v7777, 1
      %v7780 = vsel %vm1282, %v7775, %v7779
      %v7782 = vshrl.u32 %v7607, 16
      %v7784 = vshll.u32 %v7607, 16
      %v7786 = vrot.slane %v7784, 1
      %v7787 = vor.u32 %v7782, %v7786
      %v7789 = vshll.u32 %v7655, 16
      %v7791 = vrot.slane %v7789, 1
      %v7792 = vsel %vm1282, %v7787, %v7791
      %v7794 = vshrl.u32 %v7608, 16
      %v7796 = vshll.u32 %v7608, 16
      %v7798 = vrot.slane %v7796, 1
      %v7799 = vor.u32 %v7794, %v7798
      %v7801 = vshll.u32 %v7656, 16
      %v7803 = vrot.slane %v7801, 1
      %v7804 = vsel %vm1282, %v7799, %v7803
      %v7806 = vshrl.u32 %v7609, 16
      %v7808 = vshll.u32 %v7609, 16
      %v7810 = vrot.slane %v7808, 1
      %v7811 = vor.u32 %v7806, %v7810
      %v7813 = vshll.u32 %v7657, 16
      %v7815 = vrot.slane %v7813, 1
      %v7816 = vsel %vm1282, %v7811, %v7815
      %v7818 = vshrl.u32 %v7610, 16
      %v7820 = vshll.u32 %v7610, 16
      %v7822 = vrot.slane %v7820, 1
      %v7823 = vor.u32 %v7818, %v7822
      %v7825 = vshll.u32 %v7658, 16
      %v7827 = vrot.slane %v7825, 1
      %v7828 = vsel %vm1282, %v7823, %v7827
      %v7830 = vshrl.u32 %v7611, 16
      %v7832 = vshll.u32 %v7611, 16
      %v7834 = vrot.slane %v7832, 1
      %v7835 = vor.u32 %v7830, %v7834
      %v7837 = vshll.u32 %v7659, 16
      %v7839 = vrot.slane %v7837, 1
      %v7840 = vsel %vm1282, %v7835, %v7839
      %v7842 = vshrl.u32 %v7612, 16
      %v7844 = vshll.u32 %v7612, 16
      %v7846 = vrot.slane %v7844, 1
      %v7847 = vor.u32 %v7842, %v7846
      %v7849 = vshll.u32 %v7660, 16
      %v7851 = vrot.slane %v7849, 1
      %v7852 = vsel %vm1282, %v7847, %v7851
      %7853 = vrot.lane.b32.xlu0 %v7672, 64
      %v7854 = vpop.permute.xlu0 %7853
      %7855 = vrot.lane.b32.xlu0 %v7684, 64
      %v7856 = vpop.permute.xlu0 %7855
      %7857 = vrot.lane.b32.xlu0 %v7696, 64
      %v7858 = vpop.permute.xlu0 %7857
      %7859 = vrot.lane.b32.xlu0 %v7708, 64
      %v7860 = vpop.permute.xlu0 %7859
      %7861 = vrot.lane.b32.xlu0 %v7720, 64
      %v7862 = vpop.permute.xlu0 %7861
      %7863 = vrot.lane.b32.xlu0 %v7732, 64
      %v7864 = vpop.permute.xlu0 %7863
      %7865 = vrot.lane.b32.xlu0 %v7744, 64
      %v7866 = vpop.permute.xlu0 %7865
      %7867 = vrot.lane.b32.xlu0 %v7756, 64
      %v7868 = vpop.permute.xlu0 %7867
      %7869 = vrot.lane.b32.xlu0 %v7768, 64
      %v7870 = vpop.permute.xlu0 %7869
      %7871 = vrot.lane.b32.xlu0 %v7780, 64
      %v7872 = vpop.permute.xlu0 %7871
      %7873 = vrot.lane.b32.xlu0 %v7792, 64
      %v7874 = vpop.permute.xlu0 %7873
      %7875 = vrot.lane.b32.xlu0 %v7804, 64
      %v7876 = vpop.permute.xlu0 %7875
      %7877 = vrot.lane.b32.xlu0 %v7816, 64
      %v7878 = vpop.permute.xlu0 %7877
      %7879 = vrot.lane.b32.xlu0 %v7828, 64
      %v7880 = vpop.permute.xlu0 %7879
      %7881 = vrot.lane.b32.xlu0 %v7840, 64
      %v7882 = vpop.permute.xlu0 %7881
      %7883 = vrot.lane.b32.xlu0 %v7852, 64
      %v7884 = vpop.permute.xlu0 %7883
      %v7885 = vrot.slane %v7597, 1
      %v7886 = vrot.slane %v7645, 1
      %v7887 = vsel %vm1507, %v7885, %v7886
      %v7888 = vrot.slane %v7598, 1
      %v7889 = vrot.slane %v7646, 1
      %v7890 = vsel %vm1507, %v7888, %v7889
      %v7891 = vrot.slane %v7599, 1
      %v7892 = vrot.slane %v7647, 1
      %v7893 = vsel %vm1507, %v7891, %v7892
      %v7894 = vrot.slane %v7600, 1
      %v7895 = vrot.slane %v7648, 1
      %v7896 = vsel %vm1507, %v7894, %v7895
      %v7897 = vrot.slane %v7601, 1
      %v7898 = vrot.slane %v7649, 1
      %v7899 = vsel %vm1507, %v7897, %v7898
      %v7900 = vrot.slane %v7602, 1
      %v7901 = vrot.slane %v7650, 1
      %v7902 = vsel %vm1507, %v7900, %v7901
      %v7903 = vrot.slane %v7603, 1
      %v7904 = vrot.slane %v7651, 1
      %v7905 = vsel %vm1507, %v7903, %v7904
      %v7906 = vrot.slane %v7604, 1
      %v7907 = vrot.slane %v7652, 1
      %v7908 = vsel %vm1507, %v7906, %v7907
      %v7909 = vrot.slane %v7605, 1
      %v7910 = vrot.slane %v7653, 1
      %v7911 = vsel %vm1507, %v7909, %v7910
      %v7912 = vrot.slane %v7606, 1
      %v7913 = vrot.slane %v7654, 1
      %v7914 = vsel %vm1507, %v7912, %v7913
      %v7915 = vrot.slane %v7607, 1
      %v7916 = vrot.slane %v7655, 1
      %v7917 = vsel %vm1507, %v7915, %v7916
      %v7918 = vrot.slane %v7608, 1
      %v7919 = vrot.slane %v7656, 1
      %v7920 = vsel %vm1507, %v7918, %v7919
      %v7921 = vrot.slane %v7609, 1
      %v7922 = vrot.slane %v7657, 1
      %v7923 = vsel %vm1507, %v7921, %v7922
      %v7924 = vrot.slane %v7610, 1
      %v7925 = vrot.slane %v7658, 1
      %v7926 = vsel %vm1507, %v7924, %v7925
      %v7927 = vrot.slane %v7611, 1
      %v7928 = vrot.slane %v7659, 1
      %v7929 = vsel %vm1507, %v7927, %v7928
      %v7930 = vrot.slane %v7612, 1
      %v7931 = vrot.slane %v7660, 1
      %v7932 = vsel %vm1507, %v7930, %v7931
      %v7934 = vsel %vm4406, %v7597, %v7854
      %v7937 = vsel %vm4406, %v7598, %v7856
      %v7940 = vsel %vm4406, %v7599, %v7858
      %v7943 = vsel %vm4406, %v7600, %v7860
      %v7946 = vsel %vm4406, %v7601, %v7862
      %v7949 = vsel %vm4406, %v7602, %v7864
      %v7952 = vsel %vm4406, %v7603, %v7866
      %v7955 = vsel %vm4406, %v7604, %v7868
      %v7958 = vsel %vm4406, %v7605, %v7870
      %v7961 = vsel %vm4406, %v7606, %v7872
      %v7964 = vsel %vm4406, %v7607, %v7874
      %v7967 = vsel %vm4406, %v7608, %v7876
      %v7970 = vsel %vm4406, %v7609, %v7878
      %v7973 = vsel %vm4406, %v7610, %v7880
      %v7976 = vsel %vm4406, %v7611, %v7882
      %v7979 = vsel %vm4406, %v7612, %v7884
      %s7981 = scalar_lea.vmem %s3, 96
      %v7982 = vld [vmem:[%s7981] sm:$0xf]
      %v7983 = vld [vmem:[%s7981 + $0x4] sm:$0xf]
      %v7984 = vld [vmem:[%s7981 + $0x8] sm:$0xf]
      %v7985 = vld [vmem:[%s7981 + $0xc] sm:$0xf]
      %v7986 = vld [vmem:[%s7981 + $0x10] sm:$0xf]
      %v7987 = vld [vmem:[%s7981 + $0x14] sm:$0xf]
      %v7988 = vld [vmem:[%s7981 + $0x18] sm:$0xf]
      %v7989 = vld [vmem:[%s7981 + $0x1c] sm:$0xf]
      %v7990 = vld [vmem:[%s7981 + $0x20] sm:$0xf]
      %v7991 = vld [vmem:[%s7981 + $0x24] sm:$0xf]
      %v7992 = vld [vmem:[%s7981 + $0x28] sm:$0xf]
      %v7993 = vld [vmem:[%s7981 + $0x2c] sm:$0xf]
      %v7994 = vld [vmem:[%s7981 + $0x30] sm:$0xf]
      %v7995 = vld [vmem:[%s7981 + $0x34] sm:$0xf]
      %v7996 = vld [vmem:[%s7981 + $0x38] sm:$0xf]
      %v7997 = vld [vmem:[%s7981 + $0x3c] sm:$0xf]
      %v7998 = vld [vmem:[%s7981 + $0x40] sm:$0xf]
      %v7999 = vld [vmem:[%s7981 + $0x44] sm:$0xf]
      %v8000 = vld [vmem:[%s7981 + $0x48] sm:$0xf]
      %v8001 = vld [vmem:[%s7981 + $0x4c] sm:$0xf]
      %v8002 = vld [vmem:[%s7981 + $0x50] sm:$0xf]
      %v8003 = vld [vmem:[%s7981 + $0x54] sm:$0xf]
      %v8004 = vld [vmem:[%s7981 + $0x58] sm:$0xf]
      %v8005 = vld [vmem:[%s7981 + $0x5c] sm:$0xf]
      %v8030 = vunpack.c.l.b16 %v7982
      %v8031 = vunpack.c.l.b16 %v7983
      %v8032 = vunpack.c.l.b16 %v7984
      %v8033 = vunpack.c.l.b16 %v7985
      %v8034 = vunpack.c.l.b16 %v7986
      %v8035 = vunpack.c.l.b16 %v7987
      %v8036 = vunpack.c.l.b16 %v7988
      %v8037 = vunpack.c.l.b16 %v7989
      %v8038 = vunpack.c.l.b16 %v7990
      %v8039 = vunpack.c.l.b16 %v7991
      %v8040 = vunpack.c.l.b16 %v7992
      %v8041 = vunpack.c.l.b16 %v7993
      %v8042 = vunpack.c.l.b16 %v7994
      %v8043 = vunpack.c.l.b16 %v7995
      %v8044 = vunpack.c.l.b16 %v7996
      %v8045 = vunpack.c.l.b16 %v7997
      %v8046 = vunpack.c.l.b16 %v7998
      %v8047 = vunpack.c.l.b16 %v7999
      %v8048 = vunpack.c.l.b16 %v8000
      %v8049 = vunpack.c.l.b16 %v8001
      %v8050 = vunpack.c.l.b16 %v8002
      %v8051 = vunpack.c.l.b16 %v8003
      %v8052 = vunpack.c.l.b16 %v8004
      %v8053 = vunpack.c.l.b16 %v8005
      %v8054 = vpack.c.b16 %v8031, %v8030
      %v8055 = vpack.c.b16 %v8033, %v8032
      %v8056 = vpack.c.b16 %v8035, %v8034
      %v8057 = vpack.c.b16 %v8037, %v8036
      %v8058 = vpack.c.b16 %v8039, %v8038
      %v8059 = vpack.c.b16 %v8041, %v8040
      %v8060 = vpack.c.b16 %v8043, %v8042
      %v8061 = vpack.c.b16 %v8045, %v8044
      %v8062 = vpack.c.b16 %v8047, %v8046
      %v8063 = vpack.c.b16 %v8049, %v8048
      %v8064 = vpack.c.b16 %v8051, %v8050
      %v8065 = vpack.c.b16 %v8053, %v8052
      %v8079 = vsel %vm4406, %v7887, 0
      %v8082 = vsel %vm4406, %v7890, 0
      %v8085 = vsel %vm4406, %v7893, 0
      %v8088 = vsel %vm4406, %v7896, 0
      %v8091 = vsel %vm4406, %v7899, 0
      %v8094 = vsel %vm4406, %v7902, 0
      %v8097 = vsel %vm4406, %v7905, 0
      %v8100 = vsel %vm4406, %v7908, 0
      %v8103 = vsel %vm4406, %v7911, 0
      %v8106 = vsel %vm4406, %v7914, 0
      %v8109 = vsel %vm4406, %v7917, 0
      %v8112 = vsel %vm4406, %v7920, 0
      %v8115 = vsel %vm4406, %v7923, 0
      %v8118 = vsel %vm4406, %v7926, 0
      %v8121 = vsel %vm4406, %v7929, 0
      %v8124 = vsel %vm4406, %v7932, 0
      %8126 = vmatprep.subr.bf16.mxu0 0
      %8127 = vmatpush1.bf16.msra.mxu0 %v8054
      %8128 = vmatprep.subr.bf16.mxu0 0
      %8129 = vmatpush1.bf16.msra.mxu0 %v8055
      %8130 = vmatprep.subr.bf16.mxu0 0
      %8131 = vmatpush1.bf16.msra.mxu0 %v8056
      %8132 = vmatprep.subr.bf16.mxu0 0
      %8133 = vmatpush1.bf16.msra.mxu0 %v8057
      %8134 = vmatprep.subr.bf16.mxu0 0
      %8135 = vmatpush1.bf16.msra.mxu0 %v8058
      %8136 = vmatprep.subr.bf16.mxu0 0
      %8137 = vmatpush1.bf16.msra.mxu0 %v8059
      %8138 = vmatprep.subr.bf16.mxu0 0
      %8139 = vmatpush1.bf16.msra.mxu0 %v8060
      %8140 = vmatprep.subr.bf16.mxu0 0
      %8141 = vmatpush1.bf16.msra.mxu0 %v8061
      %8142 = vmatprep.subr.bf16.mxu0 0
      %8143 = vmatpush1.bf16.msra.mxu0 %v8062
      %8144 = vmatprep.subr.bf16.mxu0 0
      %8145 = vmatpush1.bf16.msra.mxu0 %v8063
      %8146 = vmatprep.subr.bf16.mxu0 0
      %8147 = vmatpush1.bf16.msra.mxu0 %v8064
      %8148 = vmatprep.subr.bf16.mxu0 0
      %8149 = vmatpush1.bf16.msra.mxu0 %v8065
      %8150 = vmatprep.subr.bf16.mxu0 0
      %8151 = vmatpush1.bf16.msra.mxu0 0
      %8152 = vmatprep.subr.bf16.mxu0 0
      %8153 = vmatpush1.bf16.msra.mxu0 0
      %8154 = vmatprep.subr.bf16.mxu0 0
      %8155 = vmatpush1.bf16.msra.mxu0 0
      %8156 = vmatprep.subr.bf16.mxu0 0
      %8157 = vmatpush1.bf16.msra.mxu0 0
      %8158 = vmatprep.mubr.bf16.mxu0 %v8079
      %8159 = vmatmul.mubr.bf16.gmra.mrb[0].mxu0 %v7934
      %v8160 = vpop.f32.mrb[0].mxu0
      %v8161 = vadd.f32 0.0, %v8160
      %v8162 = vpop.f32.mrb[0].mxu0
      %v8163 = vpop.f32.mrb[0].mxu0
      %v8164 = vadd.f32 0.0, %v8163
      %v8165 = vpop.f32.mrb[0].mxu0
      %8166 = vmatprep.mubr.bf16.mxu0 %v8082
      %8167 = vmatmul.mubr.bf16.gmra.mrb[0].mxu0 %v7937
      %v8168 = vpop.f32.mrb[0].mxu0
      %v8169 = vadd.f32 0.0, %v8168
      %v8170 = vpop.f32.mrb[0].mxu0
      %v8171 = vpop.f32.mrb[0].mxu0
      %v8172 = vadd.f32 0.0, %v8171
      %v8173 = vpop.f32.mrb[0].mxu0
      %8174 = vmatprep.mubr.bf16.mxu0 %v8085
      %8175 = vmatmul.mubr.bf16.gmra.mrb[0].mxu0 %v7940
      %v8176 = vpop.f32.mrb[0].mxu0
      %v8177 = vadd.f32 0.0, %v8176
      %v8178 = vpop.f32.mrb[0].mxu0
      %v8179 = vpop.f32.mrb[0].mxu0
      %v8180 = vadd.f32 0.0, %v8179
      %v8181 = vpop.f32.mrb[0].mxu0
      %8182 = vmatprep.mubr.bf16.mxu0 %v8088
      %8183 = vmatmul.mubr.bf16.gmra.mrb[0].mxu0 %v7943
      %v8184 = vpop.f32.mrb[0].mxu0
      %v8185 = vadd.f32 0.0, %v8184
      %v8186 = vpop.f32.mrb[0].mxu0
      %v8187 = vpop.f32.mrb[0].mxu0
      %v8188 = vadd.f32 0.0, %v8187
      %v8189 = vpop.f32.mrb[0].mxu0
      %8190 = vmatprep.mubr.bf16.mxu0 %v8091
      %8191 = vmatmul.mubr.bf16.gmra.mrb[0].mxu0 %v7946
      %v8192 = vpop.f32.mrb[0].mxu0
      %v8193 = vadd.f32 0.0, %v8192
      %v8194 = vpop.f32.mrb[0].mxu0
      %v8195 = vpop.f32.mrb[0].mxu0
      %v8196 = vadd.f32 0.0, %v8195
      %v8197 = vpop.f32.mrb[0].mxu0
      %8198 = vmatprep.mubr.bf16.mxu0 %v8094
      %8199 = vmatmul.mubr.bf16.gmra.mrb[0].mxu0 %v7949
      %v8200 = vpop.f32.mrb[0].mxu0
      %v8201 = vadd.f32 0.0, %v8200
      %v8202 = vpop.f32.mrb[0].mxu0
      %v8203 = vpop.f32.mrb[0].mxu0
      %v8204 = vadd.f32 0.0, %v8203
      %v8205 = vpop.f32.mrb[0].mxu0
      %8206 = vmatprep.mubr.bf16.mxu0 %v8097
      %8207 = vmatmul.mubr.bf16.gmra.mrb[0].mxu0 %v7952
      %v8208 = vpop.f32.mrb[0].mxu0
      %v8209 = vadd.f32 0.0, %v8208
      %v8210 = vpop.f32.mrb[0].mxu0
      %v8211 = vpop.f32.mrb[0].mxu0
      %v8212 = vadd.f32 0.0, %v8211
      %v8213 = vpop.f32.mrb[0].mxu0
      %8214 = vmatprep.mubr.bf16.mxu0 %v8100
      %8215 = vmatmul.mubr.bf16.gmra.mrb[0].mxu0 %v7955
      %v8216 = vpop.f32.mrb[0].mxu0
      %v8217 = vadd.f32 0.0, %v8216
      %v8218 = vpop.f32.mrb[0].mxu0
      %v8219 = vpop.f32.mrb[0].mxu0
      %v8220 = vadd.f32 0.0, %v8219
      %v8221 = vpop.f32.mrb[0].mxu0
      %8222 = vmatprep.mubr.bf16.mxu0 %v8103
      %8223 = vmatmul.mubr.bf16.gmra.mrb[0].mxu0 %v7958
      %v8224 = vpop.f32.mrb[0].mxu0
      %v8225 = vadd.f32 0.0, %v8224
      %v8226 = vpop.f32.mrb[0].mxu0
      %v8227 = vpop.f32.mrb[0].mxu0
      %v8228 = vadd.f32 0.0, %v8227
      %v8229 = vpop.f32.mrb[0].mxu0
      %8230 = vmatprep.mubr.bf16.mxu0 %v8106
      %8231 = vmatmul.mubr.bf16.gmra.mrb[0].mxu0 %v7961
      %v8232 = vpop.f32.mrb[0].mxu0
      %v8233 = vadd.f32 0.0, %v8232
      %v8234 = vpop.f32.mrb[0].mxu0
      %v8235 = vpop.f32.mrb[0].mxu0
      %v8236 = vadd.f32 0.0, %v8235
      %v8237 = vpop.f32.mrb[0].mxu0
      %8238 = vmatprep.mubr.bf16.mxu0 %v8109
      %8239 = vmatmul.mubr.bf16.gmra.mrb[0].mxu0 %v7964
      %v8240 = vpop.f32.mrb[0].mxu0
      %v8241 = vadd.f32 0.0, %v8240
      %v8242 = vpop.f32.mrb[0].mxu0
      %v8243 = vpop.f32.mrb[0].mxu0
      %v8244 = vadd.f32 0.0, %v8243
      %v8245 = vpop.f32.mrb[0].mxu0
      %8246 = vmatprep.mubr.bf16.mxu0 %v8112
      %8247 = vmatmul.mubr.bf16.gmra.mrb[0].mxu0 %v7967
      %v8248 = vpop.f32.mrb[0].mxu0
      %v8249 = vadd.f32 0.0, %v8248
      %v8250 = vpop.f32.mrb[0].mxu0
      %v8251 = vpop.f32.mrb[0].mxu0
      %v8252 = vadd.f32 0.0, %v8251
      %v8253 = vpop.f32.mrb[0].mxu0
      %8254 = vmatprep.mubr.bf16.mxu0 %v8115
      %8255 = vmatmul.mubr.bf16.gmra.mrb[0].mxu0 %v7970
      %v8256 = vpop.f32.mrb[0].mxu0
      %v8257 = vadd.f32 0.0, %v8256
      %v8258 = vpop.f32.mrb[0].mxu0
      %v8259 = vpop.f32.mrb[0].mxu0
      %v8260 = vadd.f32 0.0, %v8259
      %v8261 = vpop.f32.mrb[0].mxu0
      %8262 = vmatprep.mubr.bf16.mxu0 %v8118
      %8263 = vmatmul.mubr.bf16.gmra.mrb[0].mxu0 %v7973
      %v8264 = vpop.f32.mrb[0].mxu0
      %v8265 = vadd.f32 0.0, %v8264
      %v8266 = vpop.f32.mrb[0].mxu0
      %v8267 = vpop.f32.mrb[0].mxu0
      %v8268 = vadd.f32 0.0, %v8267
      %v8269 = vpop.f32.mrb[0].mxu0
      %8270 = vmatprep.mubr.bf16.mxu0 %v8121
      %8271 = vmatmul.mubr.bf16.gmra.mrb[0].mxu0 %v7976
      %v8272 = vpop.f32.mrb[0].mxu0
      %v8273 = vadd.f32 0.0, %v8272
      %v8274 = vpop.f32.mrb[0].mxu0
      %v8275 = vpop.f32.mrb[0].mxu0
      %v8276 = vadd.f32 0.0, %v8275
      %v8277 = vpop.f32.mrb[0].mxu0
      %8278 = vmatprep.mubr.bf16.mxu0 %v8124
      %8279 = vmatmul.mubr.bf16.gmra.mrb[0].mxu0 %v7979
      %v8280 = vpop.f32.mrb[0].mxu0
      %v8281 = vadd.f32 0.0, %v8280
      %v8282 = vpop.f32.mrb[0].mxu0
      %v8283 = vpop.f32.mrb[0].mxu0
      %v8284 = vadd.f32 0.0, %v8283
      %v8285 = vpop.f32.mrb[0].mxu0
      %8286 = vdwg.mxu0
      %v8311 = vunpack.c.l.b16 %v7461
      %v8312 = vunpack.c.l.b16 %v7462
      %v8313 = vunpack.c.l.b16 %v7463
      %v8314 = vunpack.c.l.b16 %v7464
      %v8315 = vunpack.c.l.b16 %v7465
      %v8316 = vunpack.c.l.b16 %v7466
      %v8317 = vunpack.c.l.b16 %v7467
      %v8318 = vunpack.c.l.b16 %v7468
      %v8319 = vunpack.c.l.b16 %v7469
      %v8320 = vunpack.c.l.b16 %v7470
      %v8321 = vunpack.c.l.b16 %v7471
      %v8322 = vunpack.c.l.b16 %v7472
      %v8323 = vunpack.c.l.b16 %v7473
      %v8324 = vunpack.c.l.b16 %v7474
      %v8325 = vunpack.c.l.b16 %v7475
      %v8326 = vunpack.c.l.b16 %v7476
      %v8327 = vunpack.c.l.b16 %v7477
      %v8328 = vunpack.c.l.b16 %v7478
      %v8329 = vunpack.c.l.b16 %v7479
      %v8330 = vunpack.c.l.b16 %v7480
      %v8331 = vunpack.c.l.b16 %v7481
      %v8332 = vunpack.c.l.b16 %v7482
      %v8333 = vunpack.c.l.b16 %v7483
      %v8334 = vunpack.c.l.b16 %v7484
      %v8335 = vpack.c.b16 %v8312, %v8311
      %v8336 = vpack.c.b16 %v8314, %v8313
      %v8337 = vpack.c.b16 %v8316, %v8315
      %v8338 = vpack.c.b16 %v8318, %v8317
      %v8339 = vpack.c.b16 %v8320, %v8319
      %v8340 = vpack.c.b16 %v8322, %v8321
      %v8341 = vpack.c.b16 %v8324, %v8323
      %v8342 = vpack.c.b16 %v8326, %v8325
      %v8343 = vpack.c.b16 %v8328, %v8327
      %v8344 = vpack.c.b16 %v8330, %v8329
      %v8345 = vpack.c.b16 %v8332, %v8331
      %v8346 = vpack.c.b16 %v8334, %v8333
      %v8360 = vsel %vm4406, %v7367, 0
      %v8363 = vsel %vm4406, %v7370, 0
      %v8366 = vsel %vm4406, %v7373, 0
      %v8369 = vsel %vm4406, %v7376, 0
      %v8372 = vsel %vm4406, %v7379, 0
      %v8375 = vsel %vm4406, %v7382, 0
      %v8378 = vsel %vm4406, %v7385, 0
      %v8381 = vsel %vm4406, %v7388, 0
      %v8384 = vsel %vm4406, %v7391, 0
      %v8387 = vsel %vm4406, %v7394, 0
      %v8390 = vsel %vm4406, %v7397, 0
      %v8393 = vsel %vm4406, %v7400, 0
      %v8396 = vsel %vm4406, %v7403, 0
      %v8399 = vsel %vm4406, %v7406, 0
      %v8402 = vsel %vm4406, %v7409, 0
      %v8405 = vsel %vm4406, %v7412, 0
      %8407 = vmatprep.subr.bf16.mxu0 0
      %8408 = vmatpush1.bf16.msra.mxu0 %v8335
      %8409 = vmatprep.subr.bf16.mxu0 0
      %8410 = vmatpush1.bf16.msra.mxu0 %v8336
      %8411 = vmatprep.subr.bf16.mxu0 0
      %8412 = vmatpush1.bf16.msra.mxu0 %v8337
      %8413 = vmatprep.subr.bf16.mxu0 0
      %8414 = vmatpush1.bf16.msra.mxu0 %v8338
      %8415 = vmatprep.subr.bf16.mxu0 0
      %8416 = vmatpush1.bf16.msra.mxu0 %v8339
      %8417 = vmatprep.subr.bf16.mxu0 0
      %8418 = vmatpush1.bf16.msra.mxu0 %v8340
      %8419 = vmatprep.subr.bf16.mxu0 0
      %8420 = vmatpush1.bf16.msra.mxu0 %v8341
      %8421 = vmatprep.subr.bf16.mxu0 0
      %8422 = vmatpush1.bf16.msra.mxu0 %v8342
      %8423 = vmatprep.subr.bf16.mxu0 0
      %8424 = vmatpush1.bf16.msra.mxu0 %v8343
      %8425 = vmatprep.subr.bf16.mxu0 0
      %8426 = vmatpush1.bf16.msra.mxu0 %v8344
      %8427 = vmatprep.subr.bf16.mxu0 0
      %8428 = vmatpush1.bf16.msra.mxu0 %v8345
      %8429 = vmatprep.subr.bf16.mxu0 0
      %8430 = vmatpush1.bf16.msra.mxu0 %v8346
      %8431 = vmatprep.subr.bf16.mxu0 0
      %8432 = vmatpush1.bf16.msra.mxu0 0
      %8433 = vmatprep.subr.bf16.mxu0 0
      %8434 = vmatpush1.bf16.msra.mxu0 0
      %8435 = vmatprep.subr.bf16.mxu0 0
      %8436 = vmatpush1.bf16.msra.mxu0 0
      %8437 = vmatprep.subr.bf16.mxu0 0
      %8438 = vmatpush1.bf16.msra.mxu0 0
      %8439 = vmatprep.mubr.bf16.mxu0 %v8360
      %8440 = vmatmul.mubr.bf16.gmra.mrb[0].mxu0 %v7414
      %v8441 = vpop.f32.mrb[0].mxu0
      %v8442 = vadd.f32 %v8161, %v8441
      %v8443 = vpop.f32.mrb[0].mxu0
      %v8444 = vpop.f32.mrb[0].mxu0
      %v8445 = vadd.f32 %v8164, %v8444
      %v8446 = vpop.f32.mrb[0].mxu0
      %8447 = vmatprep.mubr.bf16.mxu0 %v8363
      %8448 = vmatmul.mubr.bf16.gmra.mrb[0].mxu0 %v7417
      %v8449 = vpop.f32.mrb[0].mxu0
      %v8450 = vadd.f32 %v8169, %v8449
      %v8451 = vpop.f32.mrb[0].mxu0
      %v8452 = vpop.f32.mrb[0].mxu0
      %v8453 = vadd.f32 %v8172, %v8452
      %v8454 = vpop.f32.mrb[0].mxu0
      %8455 = vmatprep.mubr.bf16.mxu0 %v8366
      %8456 = vmatmul.mubr.bf16.gmra.mrb[0].mxu0 %v7420
      %v8457 = vpop.f32.mrb[0].mxu0
      %v8458 = vadd.f32 %v8177, %v8457
      %v8459 = vpop.f32.mrb[0].mxu0
      %v8460 = vpop.f32.mrb[0].mxu0
      %v8461 = vadd.f32 %v8180, %v8460
      %v8462 = vpop.f32.mrb[0].mxu0
      %8463 = vmatprep.mubr.bf16.mxu0 %v8369
      %8464 = vmatmul.mubr.bf16.gmra.mrb[0].mxu0 %v7423
      %v8465 = vpop.f32.mrb[0].mxu0
      %v8466 = vadd.f32 %v8185, %v8465
      %v8467 = vpop.f32.mrb[0].mxu0
      %v8468 = vpop.f32.mrb[0].mxu0
      %v8469 = vadd.f32 %v8188, %v8468
      %v8470 = vpop.f32.mrb[0].mxu0
      %8471 = vmatprep.mubr.bf16.mxu0 %v8372
      %8472 = vmatmul.mubr.bf16.gmra.mrb[0].mxu0 %v7426
      %v8473 = vpop.f32.mrb[0].mxu0
      %v8474 = vadd.f32 %v8193, %v8473
      %v8475 = vpop.f32.mrb[0].mxu0
      %v8476 = vpop.f32.mrb[0].mxu0
      %v8477 = vadd.f32 %v8196, %v8476
      %v8478 = vpop.f32.mrb[0].mxu0
      %8479 = vmatprep.mubr.bf16.mxu0 %v8375
      %8480 = vmatmul.mubr.bf16.gmra.mrb[0].mxu0 %v7429
      %v8481 = vpop.f32.mrb[0].mxu0
      %v8482 = vadd.f32 %v8201, %v8481
      %v8483 = vpop.f32.mrb[0].mxu0
      %v8484 = vpop.f32.mrb[0].mxu0
      %v8485 = vadd.f32 %v8204, %v8484
      %v8486 = vpop.f32.mrb[0].mxu0
      %8487 = vmatprep.mubr.bf16.mxu0 %v8378
      %8488 = vmatmul.mubr.bf16.gmra.mrb[0].mxu0 %v7432
      %v8489 = vpop.f32.mrb[0].mxu0
      %v8490 = vadd.f32 %v8209, %v8489
      %v8491 = vpop.f32.mrb[0].mxu0
      %v8492 = vpop.f32.mrb[0].mxu0
      %v8493 = vadd.f32 %v8212, %v8492
      %v8494 = vpop.f32.mrb[0].mxu0
      %8495 = vmatprep.mubr.bf16.mxu0 %v8381
      %8496 = vmatmul.mubr.bf16.gmra.mrb[0].mxu0 %v7435
      %v8497 = vpop.f32.mrb[0].mxu0
      %v8498 = vadd.f32 %v8217, %v8497
      %v8499 = vpop.f32.mrb[0].mxu0
      %v8500 = vpop.f32.mrb[0].mxu0
      %v8501 = vadd.f32 %v8220, %v8500
      %v8502 = vpop.f32.mrb[0].mxu0
      %8503 = vmatprep.mubr.bf16.mxu0 %v8384
      %8504 = vmatmul.mubr.bf16.gmra.mrb[0].mxu0 %v7438
      %v8505 = vpop.f32.mrb[0].mxu0
      %v8506 = vadd.f32 %v8225, %v8505
      %v8507 = vpop.f32.mrb[0].mxu0
      %v8508 = vpop.f32.mrb[0].mxu0
      %v8509 = vadd.f32 %v8228, %v8508
      %v8510 = vpop.f32.mrb[0].mxu0
      %8511 = vmatprep.mubr.bf16.mxu0 %v8387
      %8512 = vmatmul.mubr.bf16.gmra.mrb[0].mxu0 %v7441
      %v8513 = vpop.f32.mrb[0].mxu0
      %v8514 = vadd.f32 %v8233, %v8513
      %v8515 = vpop.f32.mrb[0].mxu0
      %v8516 = vpop.f32.mrb[0].mxu0
      %v8517 = vadd.f32 %v8236, %v8516
      %v8518 = vpop.f32.mrb[0].mxu0
      %8519 = vmatprep.mubr.bf16.mxu0 %v8390
      %8520 = vmatmul.mubr.bf16.gmra.mrb[0].mxu0 %v7444
      %v8521 = vpop.f32.mrb[0].mxu0
      %v8522 = vadd.f32 %v8241, %v8521
      %v8523 = vpop.f32.mrb[0].mxu0
      %v8524 = vpop.f32.mrb[0].mxu0
      %v8525 = vadd.f32 %v8244, %v8524
      %v8526 = vpop.f32.mrb[0].mxu0
      %8527 = vmatprep.mubr.bf16.mxu0 %v8393
      %8528 = vmatmul.mubr.bf16.gmra.mrb[0].mxu0 %v7447
      %v8529 = vpop.f32.mrb[0].mxu0
      %v8530 = vadd.f32 %v8249, %v8529
      %v8531 = vpop.f32.mrb[0].mxu0
      %v8532 = vpop.f32.mrb[0].mxu0
      %v8533 = vadd.f32 %v8252, %v8532
      %v8534 = vpop.f32.mrb[0].mxu0
      %8535 = vmatprep.mubr.bf16.mxu0 %v8396
      %8536 = vmatmul.mubr.bf16.gmra.mrb[0].mxu0 %v7450
      %v8537 = vpop.f32.mrb[0].mxu0
      %v8538 = vadd.f32 %v8257, %v8537
      %v8539 = vpop.f32.mrb[0].mxu0
      %v8540 = vpop.f32.mrb[0].mxu0
      %v8541 = vadd.f32 %v8260, %v8540
      %v8542 = vpop.f32.mrb[0].mxu0
      %8543 = vmatprep.mubr.bf16.mxu0 %v8399
      %8544 = vmatmul.mubr.bf16.gmra.mrb[0].mxu0 %v7453
      %v8545 = vpop.f32.mrb[0].mxu0
      %v8546 = vadd.f32 %v8265, %v8545
      %v8547 = vpop.f32.mrb[0].mxu0
      %v8548 = vpop.f32.mrb[0].mxu0
      %v8549 = vadd.f32 %v8268, %v8548
      %v8550 = vpop.f32.mrb[0].mxu0
      %8551 = vmatprep.mubr.bf16.mxu0 %v8402
      %8552 = vmatmul.mubr.bf16.gmra.mrb[0].mxu0 %v7456
      %v8553 = vpop.f32.mrb[0].mxu0
      %v8554 = vadd.f32 %v8273, %v8553
      %v8555 = vpop.f32.mrb[0].mxu0
      %v8556 = vpop.f32.mrb[0].mxu0
      %v8557 = vadd.f32 %v8276, %v8556
      %v8558 = vpop.f32.mrb[0].mxu0
      %8559 = vmatprep.mubr.bf16.mxu0 %v8405
      %8560 = vmatmul.mubr.bf16.gmra.mrb[0].mxu0 %v7459
      %v8561 = vpop.f32.mrb[0].mxu0
      %v8562 = vadd.f32 %v8281, %v8561
      %v8563 = vpop.f32.mrb[0].mxu0
      %v8564 = vpop.f32.mrb[0].mxu0
      %v8565 = vadd.f32 %v8284, %v8564
      %v8566 = vpop.f32.mrb[0].mxu0
      %8567 = vdwg.mxu0
      %s8568 = scalar_lea.vmem [#allocation4], 24
      %v8569 = vld [vmem:[%s8568] sm:$0xf]
      %v8570 = vld [vmem:[%s8568 + $0x4] sm:$0xf]
      %v8571 = vld [vmem:[%s8568 + $0x8] sm:$0x1]
      %v8572 = vld [vmem:[%s8568 + $0xc] sm:$0xf]
      %v8573 = vld [vmem:[%s8568 + $0x10] sm:$0xf]
      %v8574 = vld [vmem:[%s8568 + $0x14] sm:$0x1]
      %v8575 = vld [vmem:[%s8568 + $0x18] sm:$0xf]
      %v8576 = vld [vmem:[%s8568 + $0x1c] sm:$0xf]
      %v8577 = vld [vmem:[%s8568 + $0x20] sm:$0x1]
      %v8578 = vld [vmem:[%s8568 + $0x24] sm:$0xf]
      %v8579 = vld [vmem:[%s8568 + $0x28] sm:$0xf]
      %v8580 = vld [vmem:[%s8568 + $0x2c] sm:$0x1]
      %v8581 = vld [vmem:[%s8568 + $0x30] sm:$0xf]
      %v8582 = vld [vmem:[%s8568 + $0x34] sm:$0xf]
      %v8583 = vld [vmem:[%s8568 + $0x38] sm:$0x1]
      %v8584 = vld [vmem:[%s8568 + $0x3c] sm:$0xf]
      %v8585 = vld [vmem:[%s8568 + $0x40] sm:$0xf]
      %v8586 = vld [vmem:[%s8568 + $0x44] sm:$0x1]
      %v8587 = vld [vmem:[%s8568 + $0x48] sm:$0xf]
      %v8588 = vld [vmem:[%s8568 + $0x4c] sm:$0xf]
      %v8589 = vld [vmem:[%s8568 + $0x50] sm:$0x1]
      %v8590 = vld [vmem:[%s8568 + $0x54] sm:$0xf]
      %v8591 = vld [vmem:[%s8568 + $0x58] sm:$0xf]
      %v8592 = vld [vmem:[%s8568 + $0x5c] sm:$0x1]
      %v8593 = vld [vmem:[%s8568 + $0x60] sm:$0xf]
      %v8594 = vld [vmem:[%s8568 + $0x64] sm:$0xf]
      %v8595 = vld [vmem:[%s8568 + $0x68] sm:$0x1]
      %v8596 = vld [vmem:[%s8568 + $0x6c] sm:$0xf]
      %v8597 = vld [vmem:[%s8568 + $0x70] sm:$0xf]
      %v8598 = vld [vmem:[%s8568 + $0x74] sm:$0x1]
      %v8599 = vld [vmem:[%s8568 + $0x78] sm:$0xf]
      %v8600 = vld [vmem:[%s8568 + $0x7c] sm:$0xf]
      %v8601 = vld [vmem:[%s8568 + $0x80] sm:$0x1]
      %v8602 = vld [vmem:[%s8568 + $0x84] sm:$0xf]
      %v8603 = vld [vmem:[%s8568 + $0x88] sm:$0xf]
      %v8604 = vld [vmem:[%s8568 + $0x8c] sm:$0x1]
      %v8605 = vld [vmem:[%s8568 + $0x90] sm:$0xf]
      %v8606 = vld [vmem:[%s8568 + $0x94] sm:$0xf]
      %v8607 = vld [vmem:[%s8568 + $0x98] sm:$0x1]
      %v8608 = vld [vmem:[%s8568 + $0x9c] sm:$0xf]
      %v8609 = vld [vmem:[%s8568 + $0xa0] sm:$0xf]
      %v8610 = vld [vmem:[%s8568 + $0xa4] sm:$0x1]
      %v8611 = vld [vmem:[%s8568 + $0xa8] sm:$0xf]
      %v8612 = vld [vmem:[%s8568 + $0xac] sm:$0xf]
      %v8613 = vld [vmem:[%s8568 + $0xb0] sm:$0x1]
      %v8614 = vld [vmem:[%s8568 + $0xb4] sm:$0xf]
      %v8615 = vld [vmem:[%s8568 + $0xb8] sm:$0xf]
      %v8616 = vld [vmem:[%s8568 + $0xbc] sm:$0x1]
      %v8649 = vunpack.c.l.b16 %v8569
      %v8650 = vunpack.c.l.b16 %v8570
      %v8651 = vunpack.c.l.b16 %v8572
      %v8652 = vunpack.c.l.b16 %v8573
      %v8653 = vunpack.c.l.b16 %v8575
      %v8654 = vunpack.c.l.b16 %v8576
      %v8655 = vunpack.c.l.b16 %v8578
      %v8656 = vunpack.c.l.b16 %v8579
      %v8657 = vunpack.c.l.b16 %v8581
      %v8658 = vunpack.c.l.b16 %v8582
      %v8659 = vunpack.c.l.b16 %v8584
      %v8660 = vunpack.c.l.b16 %v8585
      %v8661 = vunpack.c.l.b16 %v8587
      %v8662 = vunpack.c.l.b16 %v8588
      %v8663 = vunpack.c.l.b16 %v8590
      %v8664 = vunpack.c.l.b16 %v8591
      %v8665 = vunpack.c.l.b16 %v8593
      %v8666 = vunpack.c.l.b16 %v8594
      %v8667 = vunpack.c.l.b16 %v8596
      %v8668 = vunpack.c.l.b16 %v8597
      %v8669 = vunpack.c.l.b16 %v8599
      %v8670 = vunpack.c.l.b16 %v8600
      %v8671 = vunpack.c.l.b16 %v8602
      %v8672 = vunpack.c.l.b16 %v8603
      %v8673 = vunpack.c.l.b16 %v8605
      %v8674 = vunpack.c.l.b16 %v8606
      %v8675 = vunpack.c.l.b16 %v8608
      %v8676 = vunpack.c.l.b16 %v8609
      %v8677 = vunpack.c.l.b16 %v8611
      %v8678 = vunpack.c.l.b16 %v8612
      %v8679 = vunpack.c.l.b16 %v8614
      %v8680 = vunpack.c.l.b16 %v8615
      %v8681 = vpack.c.b16 %v8650, %v8649
      %v8682 = vpack.c.b16 %v8652, %v8651
      %v8683 = vpack.c.b16 %v8654, %v8653
      %v8684 = vpack.c.b16 %v8656, %v8655
      %v8685 = vpack.c.b16 %v8658, %v8657
      %v8686 = vpack.c.b16 %v8660, %v8659
      %v8687 = vpack.c.b16 %v8662, %v8661
      %v8688 = vpack.c.b16 %v8664, %v8663
      %v8689 = vpack.c.b16 %v8666, %v8665
      %v8690 = vpack.c.b16 %v8668, %v8667
      %v8691 = vpack.c.b16 %v8670, %v8669
      %v8692 = vpack.c.b16 %v8672, %v8671
      %v8693 = vpack.c.b16 %v8674, %v8673
      %v8694 = vpack.c.b16 %v8676, %v8675
      %v8695 = vpack.c.b16 %v8678, %v8677
      %v8696 = vpack.c.b16 %v8680, %v8679
      %v8713 = vunpack.c.l.b16 %v8571
      %v8714 = vunpack.c.l.b16 %v8574
      %v8715 = vunpack.c.l.b16 %v8577
      %v8716 = vunpack.c.l.b16 %v8580
      %v8717 = vunpack.c.l.b16 %v8583
      %v8718 = vunpack.c.l.b16 %v8586
      %v8719 = vunpack.c.l.b16 %v8589
      %v8720 = vunpack.c.l.b16 %v8592
      %v8721 = vunpack.c.l.b16 %v8595
      %v8722 = vunpack.c.l.b16 %v8598
      %v8723 = vunpack.c.l.b16 %v8601
      %v8724 = vunpack.c.l.b16 %v8604
      %v8725 = vunpack.c.l.b16 %v8607
      %v8726 = vunpack.c.l.b16 %v8610
      %v8727 = vunpack.c.l.b16 %v8613
      %v8728 = vunpack.c.l.b16 %v8616
      %v8729 = vpack.c.b16 %v8713, %v8713
      %v8730 = vpack.c.b16 %v8714, %v8714
      %v8731 = vpack.c.b16 %v8715, %v8715
      %v8732 = vpack.c.b16 %v8716, %v8716
      %v8733 = vpack.c.b16 %v8717, %v8717
      %v8734 = vpack.c.b16 %v8718, %v8718
      %v8735 = vpack.c.b16 %v8719, %v8719
      %v8736 = vpack.c.b16 %v8720, %v8720
      %v8737 = vpack.c.b16 %v8721, %v8721
      %v8738 = vpack.c.b16 %v8722, %v8722
      %v8739 = vpack.c.b16 %v8723, %v8723
      %v8740 = vpack.c.b16 %v8724, %v8724
      %v8741 = vpack.c.b16 %v8725, %v8725
      %v8742 = vpack.c.b16 %v8726, %v8726
      %v8743 = vpack.c.b16 %v8727, %v8727
      %v8744 = vpack.c.b16 %v8728, %v8728
      %v8746 = vshrl.u32 %v8681, 16
      %v8748 = vshll.u32 %v8681, 16
      %v8750 = vrot.slane %v8748, 1
      %v8751 = vor.u32 %v8746, %v8750
      %v8753 = vshll.u32 %v8729, 16
      %v8755 = vrot.slane %v8753, 1
      %v8756 = vsel %vm1282, %v8751, %v8755
      %v8758 = vshrl.u32 %v8682, 16
      %v8760 = vshll.u32 %v8682, 16
      %v8762 = vrot.slane %v8760, 1
      %v8763 = vor.u32 %v8758, %v8762
      %v8765 = vshll.u32 %v8730, 16
      %v8767 = vrot.slane %v8765, 1
      %v8768 = vsel %vm1282, %v8763, %v8767
      %v8770 = vshrl.u32 %v8683, 16
      %v8772 = vshll.u32 %v8683, 16
      %v8774 = vrot.slane %v8772, 1
      %v8775 = vor.u32 %v8770, %v8774
      %v8777 = vshll.u32 %v8731, 16
      %v8779 = vrot.slane %v8777, 1
      %v8780 = vsel %vm1282, %v8775, %v8779
      %v8782 = vshrl.u32 %v8684, 16
      %v8784 = vshll.u32 %v8684, 16
      %v8786 = vrot.slane %v8784, 1
      %v8787 = vor.u32 %v8782, %v8786
      %v8789 = vshll.u32 %v8732, 16
      %v8791 = vrot.slane %v8789, 1
      %v8792 = vsel %vm1282, %v8787, %v8791
      %v8794 = vshrl.u32 %v8685, 16
      %v8796 = vshll.u32 %v8685, 16
      %v8798 = vrot.slane %v8796, 1
      %v8799 = vor.u32 %v8794, %v8798
      %v8801 = vshll.u32 %v8733, 16
      %v8803 = vrot.slane %v8801, 1
      %v8804 = vsel %vm1282, %v8799, %v8803
      %v8806 = vshrl.u32 %v8686, 16
      %v8808 = vshll.u32 %v8686, 16
      %v8810 = vrot.slane %v8808, 1
      %v8811 = vor.u32 %v8806, %v8810
      %v8813 = vshll.u32 %v8734, 16
      %v8815 = vrot.slane %v8813, 1
      %v8816 = vsel %vm1282, %v8811, %v8815
      %v8818 = vshrl.u32 %v8687, 16
      %v8820 = vshll.u32 %v8687, 16
      %v8822 = vrot.slane %v8820, 1
      %v8823 = vor.u32 %v8818, %v8822
      %v8825 = vshll.u32 %v8735, 16
      %v8827 = vrot.slane %v8825, 1
      %v8828 = vsel %vm1282, %v8823, %v8827
      %v8830 = vshrl.u32 %v8688, 16
      %v8832 = vshll.u32 %v8688, 16
      %v8834 = vrot.slane %v8832, 1
      %v8835 = vor.u32 %v8830, %v8834
      %v8837 = vshll.u32 %v8736, 16
      %v8839 = vrot.slane %v8837, 1
      %v8840 = vsel %vm1282, %v8835, %v8839
      %v8842 = vshrl.u32 %v8689, 16
      %v8844 = vshll.u32 %v8689, 16
      %v8846 = vrot.slane %v8844, 1
      %v8847 = vor.u32 %v8842, %v8846
      %v8849 = vshll.u32 %v8737, 16
      %v8851 = vrot.slane %v8849, 1
      %v8852 = vsel %vm1282, %v8847, %v8851
      %v8854 = vshrl.u32 %v8690, 16
      %v8856 = vshll.u32 %v8690, 16
      %v8858 = vrot.slane %v8856, 1
      %v8859 = vor.u32 %v8854, %v8858
      %v8861 = vshll.u32 %v8738, 16
      %v8863 = vrot.slane %v8861, 1
      %v8864 = vsel %vm1282, %v8859, %v8863
      %v8866 = vshrl.u32 %v8691, 16
      %v8868 = vshll.u32 %v8691, 16
      %v8870 = vrot.slane %v8868, 1
      %v8871 = vor.u32 %v8866, %v8870
      %v8873 = vshll.u32 %v8739, 16
      %v8875 = vrot.slane %v8873, 1
      %v8876 = vsel %vm1282, %v8871, %v8875
      %v8878 = vshrl.u32 %v8692, 16
      %v8880 = vshll.u32 %v8692, 16
      %v8882 = vrot.slane %v8880, 1
      %v8883 = vor.u32 %v8878, %v8882
      %v8885 = vshll.u32 %v8740, 16
      %v8887 = vrot.slane %v8885, 1
      %v8888 = vsel %vm1282, %v8883, %v8887
      %v8890 = vshrl.u32 %v8693, 16
      %v8892 = vshll.u32 %v8693, 16
      %v8894 = vrot.slane %v8892, 1
      %v8895 = vor.u32 %v8890, %v8894
      %v8897 = vshll.u32 %v8741, 16
      %v8899 = vrot.slane %v8897, 1
      %v8900 = vsel %vm1282, %v8895, %v8899
      %v8902 = vshrl.u32 %v8694, 16
      %v8904 = vshll.u32 %v8694, 16
      %v8906 = vrot.slane %v8904, 1
      %v8907 = vor.u32 %v8902, %v8906
      %v8909 = vshll.u32 %v8742, 16
      %v8911 = vrot.slane %v8909, 1
      %v8912 = vsel %vm1282, %v8907, %v8911
      %v8914 = vshrl.u32 %v8695, 16
      %v8916 = vshll.u32 %v8695, 16
      %v8918 = vrot.slane %v8916, 1
      %v8919 = vor.u32 %v8914, %v8918
      %v8921 = vshll.u32 %v8743, 16
      %v8923 = vrot.slane %v8921, 1
      %v8924 = vsel %vm1282, %v8919, %v8923
      %v8926 = vshrl.u32 %v8696, 16
      %v8928 = vshll.u32 %v8696, 16
      %v8930 = vrot.slane %v8928, 1
      %v8931 = vor.u32 %v8926, %v8930
      %v8933 = vshll.u32 %v8744, 16
      %v8935 = vrot.slane %v8933, 1
      %v8936 = vsel %vm1282, %v8931, %v8935
      %8937 = vrot.lane.b32.xlu0 %v8756, 64
      %v8938 = vpop.permute.xlu0 %8937
      %8939 = vrot.lane.b32.xlu0 %v8768, 64
      %v8940 = vpop.permute.xlu0 %8939
      %8941 = vrot.lane.b32.xlu0 %v8780, 64
      %v8942 = vpop.permute.xlu0 %8941
      %8943 = vrot.lane.b32.xlu0 %v8792, 64
      %v8944 = vpop.permute.xlu0 %8943
      %8945 = vrot.lane.b32.xlu0 %v8804, 64
      %v8946 = vpop.permute.xlu0 %8945
      %8947 = vrot.lane.b32.xlu0 %v8816, 64
      %v8948 = vpop.permute.xlu0 %8947
      %8949 = vrot.lane.b32.xlu0 %v8828, 64
      %v8950 = vpop.permute.xlu0 %8949
      %8951 = vrot.lane.b32.xlu0 %v8840, 64
      %v8952 = vpop.permute.xlu0 %8951
      %8953 = vrot.lane.b32.xlu0 %v8852, 64
      %v8954 = vpop.permute.xlu0 %8953
      %8955 = vrot.lane.b32.xlu0 %v8864, 64
      %v8956 = vpop.permute.xlu0 %8955
      %8957 = vrot.lane.b32.xlu0 %v8876, 64
      %v8958 = vpop.permute.xlu0 %8957
      %8959 = vrot.lane.b32.xlu0 %v8888, 64
      %v8960 = vpop.permute.xlu0 %8959
      %8961 = vrot.lane.b32.xlu0 %v8900, 64
      %v8962 = vpop.permute.xlu0 %8961
      %8963 = vrot.lane.b32.xlu0 %v8912, 64
      %v8964 = vpop.permute.xlu0 %8963
      %8965 = vrot.lane.b32.xlu0 %v8924, 64
      %v8966 = vpop.permute.xlu0 %8965
      %8967 = vrot.lane.b32.xlu0 %v8936, 64
      %v8968 = vpop.permute.xlu0 %8967
      %v8969 = vrot.slane %v8681, 1
      %v8970 = vrot.slane %v8729, 1
      %v8971 = vsel %vm1507, %v8969, %v8970
      %v8972 = vrot.slane %v8682, 1
      %v8973 = vrot.slane %v8730, 1
      %v8974 = vsel %vm1507, %v8972, %v8973
      %v8975 = vrot.slane %v8683, 1
      %v8976 = vrot.slane %v8731, 1
      %v8977 = vsel %vm1507, %v8975, %v8976
      %v8978 = vrot.slane %v8684, 1
      %v8979 = vrot.slane %v8732, 1
      %v8980 = vsel %vm1507, %v8978, %v8979
      %v8981 = vrot.slane %v8685, 1
      %v8982 = vrot.slane %v8733, 1
      %v8983 = vsel %vm1507, %v8981, %v8982
      %v8984 = vrot.slane %v8686, 1
      %v8985 = vrot.slane %v8734, 1
      %v8986 = vsel %vm1507, %v8984, %v8985
      %v8987 = vrot.slane %v8687, 1
      %v8988 = vrot.slane %v8735, 1
      %v8989 = vsel %vm1507, %v8987, %v8988
      %v8990 = vrot.slane %v8688, 1
      %v8991 = vrot.slane %v8736, 1
      %v8992 = vsel %vm1507, %v8990, %v8991
      %v8993 = vrot.slane %v8689, 1
      %v8994 = vrot.slane %v8737, 1
      %v8995 = vsel %vm1507, %v8993, %v8994
      %v8996 = vrot.slane %v8690, 1
      %v8997 = vrot.slane %v8738, 1
      %v8998 = vsel %vm1507, %v8996, %v8997
      %v8999 = vrot.slane %v8691, 1
      %v9000 = vrot.slane %v8739, 1
      %v9001 = vsel %vm1507, %v8999, %v9000
      %v9002 = vrot.slane %v8692, 1
      %v9003 = vrot.slane %v8740, 1
      %v9004 = vsel %vm1507, %v9002, %v9003
      %v9005 = vrot.slane %v8693, 1
      %v9006 = vrot.slane %v8741, 1
      %v9007 = vsel %vm1507, %v9005, %v9006
      %v9008 = vrot.slane %v8694, 1
      %v9009 = vrot.slane %v8742, 1
      %v9010 = vsel %vm1507, %v9008, %v9009
      %v9011 = vrot.slane %v8695, 1
      %v9012 = vrot.slane %v8743, 1
      %v9013 = vsel %vm1507, %v9011, %v9012
      %v9014 = vrot.slane %v8696, 1
      %v9015 = vrot.slane %v8744, 1
      %v9016 = vsel %vm1507, %v9014, %v9015
      %v9018 = vsel %vm4406, %v8681, %v8938
      %v9021 = vsel %vm4406, %v8682, %v8940
      %v9024 = vsel %vm4406, %v8683, %v8942
      %v9027 = vsel %vm4406, %v8684, %v8944
      %v9030 = vsel %vm4406, %v8685, %v8946
      %v9033 = vsel %vm4406, %v8686, %v8948
      %v9036 = vsel %vm4406, %v8687, %v8950
      %v9039 = vsel %vm4406, %v8688, %v8952
      %v9042 = vsel %vm4406, %v8689, %v8954
      %v9045 = vsel %vm4406, %v8690, %v8956
      %v9048 = vsel %vm4406, %v8691, %v8958
      %v9051 = vsel %vm4406, %v8692, %v8960
      %v9054 = vsel %vm4406, %v8693, %v8962
      %v9057 = vsel %vm4406, %v8694, %v8964
      %v9060 = vsel %vm4406, %v8695, %v8966
      %v9063 = vsel %vm4406, %v8696, %v8968
      %s9065 = scalar_lea.vmem %s3, 192
      %v9066 = vld [vmem:[%s9065] sm:$0xf]
      %v9067 = vld [vmem:[%s9065 + $0x4] sm:$0xf]
      %v9068 = vld [vmem:[%s9065 + $0x8] sm:$0xf]
      %v9069 = vld [vmem:[%s9065 + $0xc] sm:$0xf]
      %v9070 = vld [vmem:[%s9065 + $0x10] sm:$0xf]
      %v9071 = vld [vmem:[%s9065 + $0x14] sm:$0xf]
      %v9072 = vld [vmem:[%s9065 + $0x18] sm:$0xf]
      %v9073 = vld [vmem:[%s9065 + $0x1c] sm:$0xf]
      %v9074 = vld [vmem:[%s9065 + $0x20] sm:$0xf]
      %v9075 = vld [vmem:[%s9065 + $0x24] sm:$0xf]
      %v9076 = vld [vmem:[%s9065 + $0x28] sm:$0xf]
      %v9077 = vld [vmem:[%s9065 + $0x2c] sm:$0xf]
      %v9078 = vld [vmem:[%s9065 + $0x30] sm:$0xf]
      %v9079 = vld [vmem:[%s9065 + $0x34] sm:$0xf]
      %v9080 = vld [vmem:[%s9065 + $0x38] sm:$0xf]
      %v9081 = vld [vmem:[%s9065 + $0x3c] sm:$0xf]
      %v9082 = vld [vmem:[%s9065 + $0x40] sm:$0xf]
      %v9083 = vld [vmem:[%s9065 + $0x44] sm:$0xf]
      %v9084 = vld [vmem:[%s9065 + $0x48] sm:$0xf]
      %v9085 = vld [vmem:[%s9065 + $0x4c] sm:$0xf]
      %v9086 = vld [vmem:[%s9065 + $0x50] sm:$0xf]
      %v9087 = vld [vmem:[%s9065 + $0x54] sm:$0xf]
      %v9088 = vld [vmem:[%s9065 + $0x58] sm:$0xf]
      %v9089 = vld [vmem:[%s9065 + $0x5c] sm:$0xf]
      %v9114 = vunpack.c.l.b16 %v9066
      %v9115 = vunpack.c.l.b16 %v9067
      %v9116 = vunpack.c.l.b16 %v9068
      %v9117 = vunpack.c.l.b16 %v9069
      %v9118 = vunpack.c.l.b16 %v9070
      %v9119 = vunpack.c.l.b16 %v9071
      %v9120 = vunpack.c.l.b16 %v9072
      %v9121 = vunpack.c.l.b16 %v9073
      %v9122 = vunpack.c.l.b16 %v9074
      %v9123 = vunpack.c.l.b16 %v9075
      %v9124 = vunpack.c.l.b16 %v9076
      %v9125 = vunpack.c.l.b16 %v9077
      %v9126 = vunpack.c.l.b16 %v9078
      %v9127 = vunpack.c.l.b16 %v9079
      %v9128 = vunpack.c.l.b16 %v9080
      %v9129 = vunpack.c.l.b16 %v9081
      %v9130 = vunpack.c.l.b16 %v9082
      %v9131 = vunpack.c.l.b16 %v9083
      %v9132 = vunpack.c.l.b16 %v9084
      %v9133 = vunpack.c.l.b16 %v9085
      %v9134 = vunpack.c.l.b16 %v9086
      %v9135 = vunpack.c.l.b16 %v9087
      %v9136 = vunpack.c.l.b16 %v9088
      %v9137 = vunpack.c.l.b16 %v9089
      %v9138 = vpack.c.b16 %v9115, %v9114
      %v9139 = vpack.c.b16 %v9117, %v9116
      %v9140 = vpack.c.b16 %v9119, %v9118
      %v9141 = vpack.c.b16 %v9121, %v9120
      %v9142 = vpack.c.b16 %v9123, %v9122
      %v9143 = vpack.c.b16 %v9125, %v9124
      %v9144 = vpack.c.b16 %v9127, %v9126
      %v9145 = vpack.c.b16 %v9129, %v9128
      %v9146 = vpack.c.b16 %v9131, %v9130
      %v9147 = vpack.c.b16 %v9133, %v9132
      %v9148 = vpack.c.b16 %v9135, %v9134
      %v9149 = vpack.c.b16 %v9137, %v9136
      %v9163 = vsel %vm4406, %v8971, 0
      %v9166 = vsel %vm4406, %v8974, 0
      %v9169 = vsel %vm4406, %v8977, 0
      %v9172 = vsel %vm4406, %v8980, 0
      %v9175 = vsel %vm4406, %v8983, 0
      %v9178 = vsel %vm4406, %v8986, 0
      %v9181 = vsel %vm4406, %v8989, 0
      %v9184 = vsel %vm4406, %v8992, 0
      %v9187 = vsel %vm4406, %v8995, 0
      %v9190 = vsel %vm4406, %v8998, 0
      %v9193 = vsel %vm4406, %v9001, 0
      %v9196 = vsel %vm4406, %v9004, 0
      %v9199 = vsel %vm4406, %v9007, 0
      %v9202 = vsel %vm4406, %v9010, 0
      %v9205 = vsel %vm4406, %v9013, 0
      %v9208 = vsel %vm4406, %v9016, 0
      %9210 = vmatprep.subr.bf16.mxu0 0
      %9211 = vmatpush1.bf16.msra.mxu0 %v9138
      %9212 = vmatprep.subr.bf16.mxu0 0
      %9213 = vmatpush1.bf16.msra.mxu0 %v9139
      %9214 = vmatprep.subr.bf16.mxu0 0
      %9215 = vmatpush1.bf16.msra.mxu0 %v9140
      %9216 = vmatprep.subr.bf16.mxu0 0
      %9217 = vmatpush1.bf16.msra.mxu0 %v9141
      %9218 = vmatprep.subr.bf16.mxu0 0
      %9219 = vmatpush1.bf16.msra.mxu0 %v9142
      %9220 = vmatprep.subr.bf16.mxu0 0
      %9221 = vmatpush1.bf16.msra.mxu0 %v9143
      %9222 = vmatprep.subr.bf16.mxu0 0
      %9223 = vmatpush1.bf16.msra.mxu0 %v9144
      %9224 = vmatprep.subr.bf16.mxu0 0
      %9225 = vmatpush1.bf16.msra.mxu0 %v9145
      %9226 = vmatprep.subr.bf16.mxu0 0
      %9227 = vmatpush1.bf16.msra.mxu0 %v9146
      %9228 = vmatprep.subr.bf16.mxu0 0
      %9229 = vmatpush1.bf16.msra.mxu0 %v9147
      %9230 = vmatprep.subr.bf16.mxu0 0
      %9231 = vmatpush1.bf16.msra.mxu0 %v9148
      %9232 = vmatprep.subr.bf16.mxu0 0
      %9233 = vmatpush1.bf16.msra.mxu0 %v9149
      %9234 = vmatprep.subr.bf16.mxu0 0
      %9235 = vmatpush1.bf16.msra.mxu0 0
      %9236 = vmatprep.subr.bf16.mxu0 0
      %9237 = vmatpush1.bf16.msra.mxu0 0
      %9238 = vmatprep.subr.bf16.mxu0 0
      %9239 = vmatpush1.bf16.msra.mxu0 0
      %9240 = vmatprep.subr.bf16.mxu0 0
      %9241 = vmatpush1.bf16.msra.mxu0 0
      %9242 = vmatprep.mubr.bf16.mxu0 %v9163
      %9243 = vmatmul.mubr.bf16.gmra.mrb[0].mxu0 %v9018
      %v9244 = vpop.f32.mrb[0].mxu0
      %v9245 = vadd.f32 0.0, %v9244
      %v9246 = vpop.f32.mrb[0].mxu0
      %v9247 = vpop.f32.mrb[0].mxu0
      %v9248 = vadd.f32 0.0, %v9247
      %v9249 = vpop.f32.mrb[0].mxu0
      %9250 = vmatprep.mubr.bf16.mxu0 %v9166
      %9251 = vmatmul.mubr.bf16.gmra.mrb[0].mxu0 %v9021
      %v9252 = vpop.f32.mrb[0].mxu0
      %v9253 = vadd.f32 0.0, %v9252
      %v9254 = vpop.f32.mrb[0].mxu0
      %v9255 = vpop.f32.mrb[0].mxu0
      %v9256 = vadd.f32 0.0, %v9255
      %v9257 = vpop.f32.mrb[0].mxu0
      %9258 = vmatprep.mubr.bf16.mxu0 %v9169
      %9259 = vmatmul.mubr.bf16.gmra.mrb[0].mxu0 %v9024
      %v9260 = vpop.f32.mrb[0].mxu0
      %v9261 = vadd.f32 0.0, %v9260
      %v9262 = vpop.f32.mrb[0].mxu0
      %v9263 = vpop.f32.mrb[0].mxu0
      %v9264 = vadd.f32 0.0, %v9263
      %v9265 = vpop.f32.mrb[0].mxu0
      %9266 = vmatprep.mubr.bf16.mxu0 %v9172
      %9267 = vmatmul.mubr.bf16.gmra.mrb[0].mxu0 %v9027
      %v9268 = vpop.f32.mrb[0].mxu0
      %v9269 = vadd.f32 0.0, %v9268
      %v9270 = vpop.f32.mrb[0].mxu0
      %v9271 = vpop.f32.mrb[0].mxu0
      %v9272 = vadd.f32 0.0, %v9271
      %v9273 = vpop.f32.mrb[0].mxu0
      %9274 = vmatprep.mubr.bf16.mxu0 %v9175
      %9275 = vmatmul.mubr.bf16.gmra.mrb[0].mxu0 %v9030
      %v9276 = vpop.f32.mrb[0].mxu0
      %v9277 = vadd.f32 0.0, %v9276
      %v9278 = vpop.f32.mrb[0].mxu0
      %v9279 = vpop.f32.mrb[0].mxu0
      %v9280 = vadd.f32 0.0, %v9279
      %v9281 = vpop.f32.mrb[0].mxu0
      %9282 = vmatprep.mubr.bf16.mxu0 %v9178
      %9283 = vmatmul.mubr.bf16.gmra.mrb[0].mxu0 %v9033
      %v9284 = vpop.f32.mrb[0].mxu0
      %v9285 = vadd.f32 0.0, %v9284
      %v9286 = vpop.f32.mrb[0].mxu0
      %v9287 = vpop.f32.mrb[0].mxu0
      %v9288 = vadd.f32 0.0, %v9287
      %v9289 = vpop.f32.mrb[0].mxu0
      %9290 = vmatprep.mubr.bf16.mxu0 %v9181
      %9291 = vmatmul.mubr.bf16.gmra.mrb[0].mxu0 %v9036
      %v9292 = vpop.f32.mrb[0].mxu0
      %v9293 = vadd.f32 0.0, %v9292
      %v9294 = vpop.f32.mrb[0].mxu0
      %v9295 = vpop.f32.mrb[0].mxu0
      %v9296 = vadd.f32 0.0, %v9295
      %v9297 = vpop.f32.mrb[0].mxu0
      %9298 = vmatprep.mubr.bf16.mxu0 %v9184
      %9299 = vmatmul.mubr.bf16.gmra.mrb[0].mxu0 %v9039
      %v9300 = vpop.f32.mrb[0].mxu0
      %v9301 = vadd.f32 0.0, %v9300
      %v9302 = vpop.f32.mrb[0].mxu0
      %v9303 = vpop.f32.mrb[0].mxu0
      %v9304 = vadd.f32 0.0, %v9303
      %v9305 = vpop.f32.mrb[0].mxu0
      %9306 = vmatprep.mubr.bf16.mxu0 %v9187
      %9307 = vmatmul.mubr.bf16.gmra.mrb[0].mxu0 %v9042
      %v9308 = vpop.f32.mrb[0].mxu0
      %v9309 = vadd.f32 0.0, %v9308
      %v9310 = vpop.f32.mrb[0].mxu0
      %v9311 = vpop.f32.mrb[0].mxu0
      %v9312 = vadd.f32 0.0, %v9311
      %v9313 = vpop.f32.mrb[0].mxu0
      %9314 = vmatprep.mubr.bf16.mxu0 %v9190
      %9315 = vmatmul.mubr.bf16.gmra.mrb[0].mxu0 %v9045
      %v9316 = vpop.f32.mrb[0].mxu0
      %v9317 = vadd.f32 0.0, %v9316
      %v9318 = vpop.f32.mrb[0].mxu0
      %v9319 = vpop.f32.mrb[0].mxu0
      %v9320 = vadd.f32 0.0, %v9319
      %v9321 = vpop.f32.mrb[0].mxu0
      %9322 = vmatprep.mubr.bf16.mxu0 %v9193
      %9323 = vmatmul.mubr.bf16.gmra.mrb[0].mxu0 %v9048
      %v9324 = vpop.f32.mrb[0].mxu0
      %v9325 = vadd.f32 0.0, %v9324
      %v9326 = vpop.f32.mrb[0].mxu0
      %v9327 = vpop.f32.mrb[0].mxu0
      %v9328 = vadd.f32 0.0, %v9327
      %v9329 = vpop.f32.mrb[0].mxu0
      %9330 = vmatprep.mubr.bf16.mxu0 %v9196
      %9331 = vmatmul.mubr.bf16.gmra.mrb[0].mxu0 %v9051
      %v9332 = vpop.f32.mrb[0].mxu0
      %v9333 = vadd.f32 0.0, %v9332
      %v9334 = vpop.f32.mrb[0].mxu0
      %v9335 = vpop.f32.mrb[0].mxu0
      %v9336 = vadd.f32 0.0, %v9335
      %v9337 = vpop.f32.mrb[0].mxu0
      %9338 = vmatprep.mubr.bf16.mxu0 %v9199
      %9339 = vmatmul.mubr.bf16.gmra.mrb[0].mxu0 %v9054
      %v9340 = vpop.f32.mrb[0].mxu0
      %v9341 = vadd.f32 0.0, %v9340
      %v9342 = vpop.f32.mrb[0].mxu0
      %v9343 = vpop.f32.mrb[0].mxu0
      %v9344 = vadd.f32 0.0, %v9343
      %v9345 = vpop.f32.mrb[0].mxu0
      %9346 = vmatprep.mubr.bf16.mxu0 %v9202
      %9347 = vmatmul.mubr.bf16.gmra.mrb[0].mxu0 %v9057
      %v9348 = vpop.f32.mrb[0].mxu0
      %v9349 = vadd.f32 0.0, %v9348
      %v9350 = vpop.f32.mrb[0].mxu0
      %v9351 = vpop.f32.mrb[0].mxu0
      %v9352 = vadd.f32 0.0, %v9351
      %v9353 = vpop.f32.mrb[0].mxu0
      %9354 = vmatprep.mubr.bf16.mxu0 %v9205
      %9355 = vmatmul.mubr.bf16.gmra.mrb[0].mxu0 %v9060
      %v9356 = vpop.f32.mrb[0].mxu0
      %v9357 = vadd.f32 0.0, %v9356
      %v9358 = vpop.f32.mrb[0].mxu0
      %v9359 = vpop.f32.mrb[0].mxu0
      %v9360 = vadd.f32 0.0, %v9359
      %v9361 = vpop.f32.mrb[0].mxu0
      %9362 = vmatprep.mubr.bf16.mxu0 %v9208
      %9363 = vmatmul.mubr.bf16.gmra.mrb[0].mxu0 %v9063
      %v9364 = vpop.f32.mrb[0].mxu0
      %v9365 = vadd.f32 0.0, %v9364
      %v9366 = vpop.f32.mrb[0].mxu0
      %v9367 = vpop.f32.mrb[0].mxu0
      %v9368 = vadd.f32 0.0, %v9367
      %v9369 = vpop.f32.mrb[0].mxu0
      %9370 = vdwg.mxu0
      %v9371 = vadd.f32 %v8442, %v9245
      %v9372 = vadd.f32 %v8445, %v9248
      %v9373 = vadd.f32 %v8450, %v9253
      %v9374 = vadd.f32 %v8453, %v9256
      %v9375 = vadd.f32 %v8458, %v9261
      %v9376 = vadd.f32 %v8461, %v9264
      %v9377 = vadd.f32 %v8466, %v9269
      %v9378 = vadd.f32 %v8469, %v9272
      %v9379 = vadd.f32 %v8474, %v9277
      %v9380 = vadd.f32 %v8477, %v9280
      %v9381 = vadd.f32 %v8482, %v9285
      %v9382 = vadd.f32 %v8485, %v9288
      %v9383 = vadd.f32 %v8490, %v9293
      %v9384 = vadd.f32 %v8493, %v9296
      %v9385 = vadd.f32 %v8498, %v9301
      %v9386 = vadd.f32 %v8501, %v9304
      %v9387 = vadd.f32 %v8506, %v9309
      %v9388 = vadd.f32 %v8509, %v9312
      %v9389 = vadd.f32 %v8514, %v9317
      %v9390 = vadd.f32 %v8517, %v9320
      %v9391 = vadd.f32 %v8522, %v9325
      %v9392 = vadd.f32 %v8525, %v9328
      %v9393 = vadd.f32 %v8530, %v9333
      %v9394 = vadd.f32 %v8533, %v9336
      %v9395 = vadd.f32 %v8538, %v9341
      %v9396 = vadd.f32 %v8541, %v9344
      %v9397 = vadd.f32 %v8546, %v9349
      %v9398 = vadd.f32 %v8549, %v9352
      %v9399 = vadd.f32 %v8554, %v9357
      %v9400 = vadd.f32 %v8557, %v9360
      %v9401 = vadd.f32 %v8562, %v9365
      %v9402 = vadd.f32 %v8565, %v9368
      %v9403 = vld [vmem:[%s6] sm:$0x1]
      %v9405 = vlaneseq
      %v9406 = vshrl.u32 %v9405, 7
      %v9407 = vsub.s32 0, %v9406
      %v9408 = vrot.slane %v9403, %v9407
      %v9410 = vadd.f32 %v9371, %v9408
      %v9411 = vadd.f32 %v9372, %v9408
      %v9412 = vadd.f32 %v9373, %v9408
      %v9413 = vadd.f32 %v9374, %v9408
      %v9414 = vadd.f32 %v9375, %v9408
      %v9415 = vadd.f32 %v9376, %v9408
      %v9416 = vadd.f32 %v9377, %v9408
      %v9417 = vadd.f32 %v9378, %v9408
      %v9418 = vadd.f32 %v9379, %v9408
      %v9419 = vadd.f32 %v9380, %v9408
      %v9420 = vadd.f32 %v9381, %v9408
      %v9421 = vadd.f32 %v9382, %v9408
      %v9422 = vadd.f32 %v9383, %v9408
      %v9423 = vadd.f32 %v9384, %v9408
      %v9424 = vadd.f32 %v9385, %v9408
      %v9425 = vadd.f32 %v9386, %v9408
      %v9426 = vadd.f32 %v9387, %v9408
      %v9427 = vadd.f32 %v9388, %v9408
      %v9428 = vadd.f32 %v9389, %v9408
      %v9429 = vadd.f32 %v9390, %v9408
      %v9430 = vadd.f32 %v9391, %v9408
      %v9431 = vadd.f32 %v9392, %v9408
      %v9432 = vadd.f32 %v9393, %v9408
      %v9433 = vadd.f32 %v9394, %v9408
      %v9434 = vadd.f32 %v9395, %v9408
      %v9435 = vadd.f32 %v9396, %v9408
      %v9436 = vadd.f32 %v9397, %v9408
      %v9437 = vadd.f32 %v9398, %v9408
      %v9438 = vadd.f32 %v9399, %v9408
      %v9439 = vadd.f32 %v9400, %v9408
      %v9440 = vadd.f32 %v9401, %v9408
      %v9441 = vadd.f32 %v9402, %v9408
      %v9442 = vsub.f32 0.0, %v9410
      %v9443 = vsub.f32 0.0, %v9411
      %v9444 = vsub.f32 0.0, %v9412
      %v9445 = vsub.f32 0.0, %v9413
      %v9446 = vsub.f32 0.0, %v9414
      %v9447 = vsub.f32 0.0, %v9415
      %v9448 = vsub.f32 0.0, %v9416
      %v9449 = vsub.f32 0.0, %v9417
      %v9450 = vsub.f32 0.0, %v9418
      %v9451 = vsub.f32 0.0, %v9419
      %v9452 = vsub.f32 0.0, %v9420
      %v9453 = vsub.f32 0.0, %v9421
      %v9454 = vsub.f32 0.0, %v9422
      %v9455 = vsub.f32 0.0, %v9423
      %v9456 = vsub.f32 0.0, %v9424
      %v9457 = vsub.f32 0.0, %v9425
      %v9458 = vsub.f32 0.0, %v9426
      %v9459 = vsub.f32 0.0, %v9427
      %v9460 = vsub.f32 0.0, %v9428
      %v9461 = vsub.f32 0.0, %v9429
      %v9462 = vsub.f32 0.0, %v9430
      %v9463 = vsub.f32 0.0, %v9431
      %v9464 = vsub.f32 0.0, %v9432
      %v9465 = vsub.f32 0.0, %v9433
      %v9466 = vsub.f32 0.0, %v9434
      %v9467 = vsub.f32 0.0, %v9435
      %v9468 = vsub.f32 0.0, %v9436
      %v9469 = vsub.f32 0.0, %v9437
      %v9470 = vsub.f32 0.0, %v9438
      %v9471 = vsub.f32 0.0, %v9439
      %v9472 = vsub.f32 0.0, %v9440
      %v9473 = vsub.f32 0.0, %v9441
      %v9474 = vmul.f32 %v9442, 1.442695
      %v9475 = vpow.pop %v9474
      %v9476 = vmul.f32 %v9443, 1.442695
      %v9477 = vpow.pop %v9476
      %v9478 = vmul.f32 %v9444, 1.442695
      %v9479 = vpow.pop %v9478
      %v9480 = vmul.f32 %v9445, 1.442695
      %v9481 = vpow.pop %v9480
      %v9482 = vmul.f32 %v9446, 1.442695
      %v9483 = vpow.pop %v9482
      %v9484 = vmul.f32 %v9447, 1.442695
      %v9485 = vpow.pop %v9484
      %v9486 = vmul.f32 %v9448, 1.442695
      %v9487 = vpow.pop %v9486
      %v9488 = vmul.f32 %v9449, 1.442695
      %v9489 = vpow.pop %v9488
      %v9490 = vmul.f32 %v9450, 1.442695
      %v9491 = vpow.pop %v9490
      %v9492 = vmul.f32 %v9451, 1.442695
      %v9493 = vpow.pop %v9492
      %v9494 = vmul.f32 %v9452, 1.442695
      %v9495 = vpow.pop %v9494
      %v9496 = vmul.f32 %v9453, 1.442695
      %v9497 = vpow.pop %v9496
      %v9498 = vmul.f32 %v9454, 1.442695
      %v9499 = vpow.pop %v9498
      %v9500 = vmul.f32 %v9455, 1.442695
      %v9501 = vpow.pop %v9500
      %v9502 = vmul.f32 %v9456, 1.442695
      %v9503 = vpow.pop %v9502
      %v9504 = vmul.f32 %v9457, 1.442695
      %v9505 = vpow.pop %v9504
      %v9506 = vmul.f32 %v9458, 1.442695
      %v9507 = vpow.pop %v9506
      %v9508 = vmul.f32 %v9459, 1.442695
      %v9509 = vpow.pop %v9508
      %v9510 = vmul.f32 %v9460, 1.442695
      %v9511 = vpow.pop %v9510
      %v9512 = vmul.f32 %v9461, 1.442695
      %v9513 = vpow.pop %v9512
      %v9514 = vmul.f32 %v9462, 1.442695
      %v9515 = vpow.pop %v9514
      %v9516 = vmul.f32 %v9463, 1.442695
      %v9517 = vpow.pop %v9516
      %v9518 = vmul.f32 %v9464, 1.442695
      %v9519 = vpow.pop %v9518
      %v9520 = vmul.f32 %v9465, 1.442695
      %v9521 = vpow.pop %v9520
      %v9522 = vmul.f32 %v9466, 1.442695
      %v9523 = vpow.pop %v9522
      %v9524 = vmul.f32 %v9467, 1.442695
      %v9525 = vpow.pop %v9524
      %v9526 = vmul.f32 %v9468, 1.442695
      %v9527 = vpow.pop %v9526
      %v9528 = vmul.f32 %v9469, 1.442695
      %v9529 = vpow.pop %v9528
      %v9530 = vmul.f32 %v9470, 1.442695
      %v9531 = vpow.pop %v9530
      %v9532 = vmul.f32 %v9471, 1.442695
      %v9533 = vpow.pop %v9532
      %v9534 = vmul.f32 %v9472, 1.442695
      %v9535 = vpow.pop %v9534
      %v9536 = vmul.f32 %v9473, 1.442695
      %v9537 = vpow.pop %v9536
      %v9538 = vadd.f32 %v9475, 1.0
      %v9539 = vadd.f32 %v9477, 1.0
      %v9540 = vadd.f32 %v9479, 1.0
      %v9541 = vadd.f32 %v9481, 1.0
      %v9542 = vadd.f32 %v9483, 1.0
      %v9543 = vadd.f32 %v9485, 1.0
      %v9544 = vadd.f32 %v9487, 1.0
      %v9545 = vadd.f32 %v9489, 1.0
      %v9546 = vadd.f32 %v9491, 1.0
      %v9547 = vadd.f32 %v9493, 1.0
      %v9548 = vadd.f32 %v9495, 1.0
      %v9549 = vadd.f32 %v9497, 1.0
      %v9550 = vadd.f32 %v9499, 1.0
      %v9551 = vadd.f32 %v9501, 1.0
      %v9552 = vadd.f32 %v9503, 1.0
      %v9553 = vadd.f32 %v9505, 1.0
      %v9554 = vadd.f32 %v9507, 1.0
      %v9555 = vadd.f32 %v9509, 1.0
      %v9556 = vadd.f32 %v9511, 1.0
      %v9557 = vadd.f32 %v9513, 1.0
      %v9558 = vadd.f32 %v9515, 1.0
      %v9559 = vadd.f32 %v9517, 1.0
      %v9560 = vadd.f32 %v9519, 1.0
      %v9561 = vadd.f32 %v9521, 1.0
      %v9562 = vadd.f32 %v9523, 1.0
      %v9563 = vadd.f32 %v9525, 1.0
      %v9564 = vadd.f32 %v9527, 1.0
      %v9565 = vadd.f32 %v9529, 1.0
      %v9566 = vadd.f32 %v9531, 1.0
      %v9567 = vadd.f32 %v9533, 1.0
      %v9568 = vadd.f32 %v9535, 1.0
      %v9569 = vadd.f32 %v9537, 1.0
      %v9570 = vrcp.pop %v9538
      %v9571 = vmul.f32 1.0, %v9570
      %v9572 = vrcp.pop %v9539
      %v9573 = vmul.f32 1.0, %v9572
      %v9574 = vrcp.pop %v9540
      %v9575 = vmul.f32 1.0, %v9574
      %v9576 = vrcp.pop %v9541
      %v9577 = vmul.f32 1.0, %v9576
      %v9578 = vrcp.pop %v9542
      %v9579 = vmul.f32 1.0, %v9578
      %v9580 = vrcp.pop %v9543
      %v9581 = vmul.f32 1.0, %v9580
      %v9582 = vrcp.pop %v9544
      %v9583 = vmul.f32 1.0, %v9582
      %v9584 = vrcp.pop %v9545
      %v9585 = vmul.f32 1.0, %v9584
      %v9586 = vrcp.pop %v9546
      %v9587 = vmul.f32 1.0, %v9586
      %v9588 = vrcp.pop %v9547
      %v9589 = vmul.f32 1.0, %v9588
      %v9590 = vrcp.pop %v9548
      %v9591 = vmul.f32 1.0, %v9590
      %v9592 = vrcp.pop %v9549
      %v9593 = vmul.f32 1.0, %v9592
      %v9594 = vrcp.pop %v9550
      %v9595 = vmul.f32 1.0, %v9594
      %v9596 = vrcp.pop %v9551
      %v9597 = vmul.f32 1.0, %v9596
      %v9598 = vrcp.pop %v9552
      %v9599 = vmul.f32 1.0, %v9598
      %v9600 = vrcp.pop %v9553
      %v9601 = vmul.f32 1.0, %v9600
      %v9602 = vrcp.pop %v9554
      %v9603 = vmul.f32 1.0, %v9602
      %v9604 = vrcp.pop %v9555
      %v9605 = vmul.f32 1.0, %v9604
      %v9606 = vrcp.pop %v9556
      %v9607 = vmul.f32 1.0, %v9606
      %v9608 = vrcp.pop %v9557
      %v9609 = vmul.f32 1.0, %v9608
      %v9610 = vrcp.pop %v9558
      %v9611 = vmul.f32 1.0, %v9610
      %v9612 = vrcp.pop %v9559
      %v9613 = vmul.f32 1.0, %v9612
      %v9614 = vrcp.pop %v9560
      %v9615 = vmul.f32 1.0, %v9614
      %v9616 = vrcp.pop %v9561
      %v9617 = vmul.f32 1.0, %v9616
      %v9618 = vrcp.pop %v9562
      %v9619 = vmul.f32 1.0, %v9618
      %v9620 = vrcp.pop %v9563
      %v9621 = vmul.f32 1.0, %v9620
      %v9622 = vrcp.pop %v9564
      %v9623 = vmul.f32 1.0, %v9622
      %v9624 = vrcp.pop %v9565
      %v9625 = vmul.f32 1.0, %v9624
      %v9626 = vrcp.pop %v9566
      %v9627 = vmul.f32 1.0, %v9626
      %v9628 = vrcp.pop %v9567
      %v9629 = vmul.f32 1.0, %v9628
      %v9630 = vrcp.pop %v9568
      %v9631 = vmul.f32 1.0, %v9630
      %v9632 = vrcp.pop %v9569
      %v9633 = vmul.f32 1.0, %v9632
      %9634 = vst.msk [vmem:[%s278] sm:$0xff] %vm1588, %v9571
      %9635 = vst.msk [vmem:[%s278 + $0x8] sm:$0xff] %vm1588, %v9573
      %9636 = vst.msk [vmem:[%s278 + $0x10] sm:$0xff] %vm1588, %v9575
      %9637 = vst.msk [vmem:[%s278 + $0x18] sm:$0xff] %vm1588, %v9577
      %9638 = vst.msk [vmem:[%s278 + $0x20] sm:$0xff] %vm1588, %v9579
      %9639 = vst.msk [vmem:[%s278 + $0x28] sm:$0xff] %vm1588, %v9581
      %9640 = vst.msk [vmem:[%s278 + $0x30] sm:$0xff] %vm1588, %v9583
      %9641 = vst.msk [vmem:[%s278 + $0x38] sm:$0xff] %vm1588, %v9585
      %9642 = vst.msk [vmem:[%s278 + $0x40] sm:$0xff] %vm1588, %v9587
      %9643 = vst.msk [vmem:[%s278 + $0x48] sm:$0xff] %vm1588, %v9589
      %9644 = vst.msk [vmem:[%s278 + $0x50] sm:$0xff] %vm1588, %v9591
      %9645 = vst.msk [vmem:[%s278 + $0x58] sm:$0xff] %vm1588, %v9593
      %9646 = vst.msk [vmem:[%s278 + $0x60] sm:$0xff] %vm1588, %v9595
      %9647 = vst.msk [vmem:[%s278 + $0x68] sm:$0xff] %vm1588, %v9597
      %9648 = vst.msk [vmem:[%s278 + $0x70] sm:$0xff] %vm1588, %v9599
      %9649 = vst.msk [vmem:[%s278 + $0x78] sm:$0xff] %vm1588, %v9601
      %9650 = vst.msk [vmem:[%s278 + $0x80] sm:$0xff] %vm1588, %v9603
      %9651 = vst.msk [vmem:[%s278 + $0x88] sm:$0xff] %vm1588, %v9605
      %9652 = vst.msk [vmem:[%s278 + $0x90] sm:$0xff] %vm1588, %v9607
      %9653 = vst.msk [vmem:[%s278 + $0x98] sm:$0xff] %vm1588, %v9609
      %9654 = vst.msk [vmem:[%s278 + $0xa0] sm:$0xff] %vm1588, %v9611
      %9655 = vst.msk [vmem:[%s278 + $0xa8] sm:$0xff] %vm1588, %v9613
      %9656 = vst.msk [vmem:[%s278 + $0xb0] sm:$0xff] %vm1588, %v9615
      %9657 = vst.msk [vmem:[%s278 + $0xb8] sm:$0xff] %vm1588, %v9617
      %9658 = vst.msk [vmem:[%s278 + $0xc0] sm:$0xff] %vm1588, %v9619
      %9659 = vst.msk [vmem:[%s278 + $0xc8] sm:$0xff] %vm1588, %v9621
      %9660 = vst.msk [vmem:[%s278 + $0xd0] sm:$0xff] %vm1588, %v9623
      %9661 = vst.msk [vmem:[%s278 + $0xd8] sm:$0xff] %vm1588, %v9625
      %9662 = vst.msk [vmem:[%s278 + $0xe0] sm:$0xff] %vm1588, %v9627
      %9663 = vst.msk [vmem:[%s278 + $0xe8] sm:$0xff] %vm1588, %v9629
      %9664 = vst.msk [vmem:[%s278 + $0xf0] sm:$0xff] %vm1588, %v9631
      %9665 = vst.msk [vmem:[%s278 + $0xf8] sm:$0xff] %vm1588, %v9633
      %p9666 = scmp.lt.s32.totalorder %s18, 1
      %s9667 = scalar_select %p9666, %s18, 1
      %s9668 = smul.addr %s9667, 32
      %s9669 = smul.addr %s9668, 8
      %s9670 = scalar_lea.vmem %s7, %s9669
      // Predicated region
      $region49: #{occupancy_encoder_cnn.1} parent=47 // pred_check
        %p9671 = pneg %p188
      $region50: #{occupancy_encoder_cnn.1} parent=47 // pred_check_branch
        %9673 = sbr.rel (%p9671) target = $region52
      $region51: #{occupancy_encoder_cnn.1} parent=47 // pred_region
        _
      $region52: #{occupancy_encoder_cnn.1} parent=47 // pred_fallthru
        _
    $region48: #{occupancy_encoder_cnn.1} parent=5 // pred_fallthru
      _
    %p9674 = scmp.le.s32.totalorder 2, %s13
    // Predicated region
    $region53: #{occupancy_encoder_cnn.1} parent=5 // pred_check
      %p9675 = pneg %p9674
    $region54: #{occupancy_encoder_cnn.1} parent=5 // pred_check_branch
      %9677 = sbr.rel (%p9675) target = $region56
    $region55: #{occupancy_encoder_cnn.1} parent=5 // pred_region
      %s9678 = ssub.s32 %s13, 2
      // Predicated region
      $region57: #{occupancy_encoder_cnn.1} parent=55 // pred_check
        %p9679 = pneg %p194
      $region58: #{occupancy_encoder_cnn.1} parent=55 // pred_check_branch
        %9681 = sbr.rel (%p9679) target = $region60
      $region59: #{occupancy_encoder_cnn.1} parent=55 // pred_region
        %p9682 = scmp.lt.s32.totalorder %s19, 1
        %s9683 = scalar_select %p9682, %s19, 1
        %s9684 = smul.addr %s9683, 32
        %s9685 = smul.addr %s9684, 8
        %s9686 = scalar_lea.vmem %s7, %s9685
      $region60: #{occupancy_encoder_cnn.1} parent=55 // pred_fallthru
        _
    $region56: #{occupancy_encoder_cnn.1} parent=5 // pred_fallthru
      _
  $region6: #{occupancy_encoder_cnn.1} parent=0 // loop_footer
    %s17 = sadd.s32 1, %s13
  $region7: #{occupancy_encoder_cnn.1} parent=0 // loop_footer_branch
    %12 = sbr.rel target = $region3
  $region8: #{occupancy_encoder_cnn.1} parent=0 // loop_exit
    _

</llo_original>
